<compile_context>
chip_gen: v5e
topology: v5e:2x2
jax: 0.10.0
libtpu: 0.0.40
codegen_flags: <defaults>
</compile_context>

<pallas_src>
import math
import functools

import jax
import jax.numpy as jnp
from jax.experimental import pallas as pl
from jax.experimental.pallas import tpu as pltpu

EPS = 1e-5                      # PyTorch LayerNorm default eps
VMEM_LIMIT = 32 * 1024 * 1024   # explicit scoped-VMEM limit (safe on v5e/v6e/v7x)


# ----------------------------------------------------------------------------
# small in-kernel helpers
# ----------------------------------------------------------------------------
def _mm(a, b):
    """[M,K] @ [K,N] with bf16 operands, f32 accumulation (MXU fast path)."""
    return jnp.dot(a.astype(jnp.bfloat16), b.astype(jnp.bfloat16),
                   preferred_element_type=jnp.float32)


def _mm_nt(a, b):
    """[M,K] x [N,K] -> [M,N] (contract last dims, no explicit transpose)."""
    return jax.lax.dot_general(
        a.astype(jnp.bfloat16), b.astype(jnp.bfloat16),
        (((1,), (1,)), ((), ())), preferred_element_type=jnp.float32)


def _ln(x, g, b):
    mu = jnp.mean(x, axis=-1, keepdims=True)
    var = jnp.mean((x - mu) ** 2, axis=-1, keepdims=True)
    return (x - mu) * jax.lax.rsqrt(var + EPS) * g + b


def _softmax_last(s):
    s = s - jnp.max(s, axis=-1, keepdims=True)
    e = jnp.exp(s)
    return e * pl.reciprocal(jnp.sum(e, axis=-1, keepdims=True), approx=True)


# ----------------------------------------------------------------------------
# Kernel 1: fully fused Fission / Fusion block
#   per batch element:  LN(x) -> key_proj/value_proj -> MHA(k/v/q in-proj,
#   SDPA, out-proj) -> output_proj -> add&LN           grid = (B,)
#   x [B, Lk, D],  q_pe [Lq, D]  ->  out [B, Lq, D]
# ----------------------------------------------------------------------------
def _fission_fusion_kernel(x_ref, qpe_ref, ln1_g_ref, ln1_b_ref,
                           wkv_ref, bkv_ref, wk_ref, bk_ref, wv_ref, bv_ref,
                           wq_ref, bq_ref, wao_ref, bao_ref,
                           wop_ref, bop_ref, ln2_g_ref, ln2_b_ref, o_ref,
                           *, num_heads):
    x = x_ref[0]                                    # [Lk, D]
    qpe = qpe_ref[...]                              # [Lq, D]
    d = x.shape[-1]
    hd = d // num_heads
    scale = 1.0 / math.sqrt(hd)

    xn = _ln(x, ln1_g_ref[...], ln1_b_ref[...])
    kv = _mm(xn, wkv_ref[...]) + bkv_ref[...]       # key_proj || value_proj
    k = _mm(kv[:, :d], wk_ref[...]) + bk_ref[...]   # MHA k in-proj
    v = _mm(kv[:, d:], wv_ref[...]) + bv_ref[...]   # MHA v in-proj
    q = _mm(qpe, wq_ref[...]) + bq_ref[...]         # MHA q in-proj

    heads = []
    for h in range(num_heads):                      # static unroll, tiny H
        qs = q[:, h * hd:(h + 1) * hd]
        ks = k[:, h * hd:(h + 1) * hd]
        vs = v[:, h * hd:(h + 1) * hd]
        p = _softmax_last(_mm_nt(qs, ks) * scale)   # [Lq, Lk]
        heads.append(_mm(p, vs))                    # [Lq, hd]
    o = jnp.concatenate(heads, axis=-1)             # [Lq, D]
    o = _mm(o, wao_ref[...]) + bao_ref[...]         # MHA out_proj
    o = _mm(o, wop_ref[...]) + bop_ref[...]         # module output_proj
    o_ref[0] = _ln(o + qpe, ln2_g_ref[...], ln2_b_ref[...])


def fused_cross_attention(x3d, q_pe, wp, num_heads):
    b, lk, d = x3d.shape
    lq = q_pe.shape[0]
    kern = functools.partial(_fission_fusion_kernel, num_heads=num_heads)
    full = lambda bi: (0, 0)
    return pl.pallas_call(
        kern,
        out_shape=jax.ShapeDtypeStruct((b, lq, d), jnp.float32),
        grid=(b,),
        in_specs=[
            pl.BlockSpec((1, lk, d), lambda bi: (bi, 0, 0)),
            pl.BlockSpec((lq, d), full),
            pl.BlockSpec((1, d), full), pl.BlockSpec((1, d), full),
            pl.BlockSpec((d, 2 * d), full), pl.BlockSpec((1, 2 * d), full),
            pl.BlockSpec((d, d), full), pl.BlockSpec((1, d), full),
            pl.BlockSpec((d, d), full), pl.BlockSpec((1, d), full),
            pl.BlockSpec((d, d), full), pl.BlockSpec((1, d), full),
            pl.BlockSpec((d, d), full), pl.BlockSpec((1, d), full),
            pl.BlockSpec((d, d), full), pl.BlockSpec((1, d), full),
            pl.BlockSpec((1, d), full), pl.BlockSpec((1, d), full),
        ],
        out_specs=pl.BlockSpec((1, lq, d), lambda bi: (bi, 0, 0)),
        compiler_params=pltpu.CompilerParams(
            dimension_semantics=("parallel",), vmem_limit_bytes=VMEM_LIMIT),
    )(x3d, q_pe, wp["ln1_g"], wp["ln1_b"], wp["w_kv"], wp["b_kv"],
      wp["w_k_in"], wp["b_k_in"], wp["w_v_in"], wp["b_v_in"],
      wp["w_q_in"], wp["b_q_in"], wp["w_mha_out"], wp["b_mha_out"],
      wp["w_out_proj"], wp["b_out_proj"], wp["ln2_g"], wp["ln2_b"])


# ----------------------------------------------------------------------------
# Kernel 2: fused nn.TransformerEncoderLayer (post-norm, ReLU, dropout=0)
#   batched over nodes: x [B, N, P, D], per-node stacked weights; grid=(N,)
#   optional fused 1-D pos-enc add (first encoder layer) and tanh (last one)
# ----------------------------------------------------------------------------
def _encoder_layer_kernel(x_ref, pe_ref, wqkv_ref, bqkv_ref, wo_ref, bo_ref,
                          ln1_g_ref, ln1_b_ref, w1_ref, b1_ref, w2_ref, b2_ref,
                          ln2_g_ref, ln2_b_ref, o_ref,
                          *, num_heads, apply_tanh, apply_pe):
    bsz, _, p_len, d = x_ref.shape
    hd = d // num_heads
    scale = 1.0 / math.sqrt(hd)

    xb = x_ref[...].reshape(bsz, p_len, d)          # squeeze node dim
    if apply_pe:
        xb = xb + pe_ref[...]
    x2 = xb.reshape(bsz * p_len, d)

    qkv = _mm(x2, wqkv_ref[0]) + bqkv_ref[0]        # one fused QKV matmul
    q = qkv[:, :d].reshape(bsz, p_len, d)
    k = qkv[:, d:2 * d].reshape(bsz, p_len, d)
    v = qkv[:, 2 * d:].reshape(bsz, p_len, d)

    heads = []
    for h in range(num_heads):                      # static unroll, tiny H
        qs = q[:, :, h * hd:(h + 1) * hd].astype(jnp.bfloat16)
        ks = k[:, :, h * hd:(h + 1) * hd].astype(jnp.bfloat16)
        vs = v[:, :, h * hd:(h + 1) * hd].astype(jnp.bfloat16)
        s = jnp.einsum('bqd,bkd->bqk', qs, ks,
                       preferred_element_type=jnp.float32) * scale
        pm = _softmax_last(s).astype(jnp.bfloat16)
        heads.append(jnp.einsum('bqk,bkd->bqd', pm, vs,
                                preferred_element_type=jnp.float32))
    attn = jnp.concatenate(heads, axis=-1).reshape(bsz * p_len, d)
    attn = _mm(attn, wo_ref[0]) + bo_ref[0]

    y1 = _ln(x2 + attn, ln1_g_ref[0], ln1_b_ref[0])
    # FFN (F kept whole; tile F on a grid axis for scaled-up configs)
    h1 = jnp.maximum(_mm(y1, w1_ref[0]) + b1_ref[0], 0.0)
    ff = _mm(h1, w2_ref[0]) + b2_ref[0]
    y2 = _ln(y1 + ff, ln2_g_ref[0], ln2_b_ref[0])
    if apply_tanh:
        y2 = jnp.tanh(y2)
    o_ref[...] = y2.reshape(bsz, 1, p_len, d)


def encoder_layer_batched(x, pe, lp, num_heads, apply_pe=False, apply_tanh=False):
    b, n, p, d = x.shape
    f = lp["w1"].shape[-1]
    kern = functools.partial(_encoder_layer_kernel, num_heads=num_heads,
                             apply_tanh=apply_tanh, apply_pe=apply_pe)
    w = lambda shape: pl.BlockSpec(shape, lambda ni: (ni, 0, 0))
    return pl.pallas_call(
        kern,
        out_shape=jax.ShapeDtypeStruct((b, n, p, d), jnp.float32),
        grid=(n,),
        in_specs=[
            pl.BlockSpec((b, 1, p, d), lambda ni: (0, ni, 0, 0)),
            pl.BlockSpec((p, d), lambda ni: (0, 0)),
            w((1, d, 3 * d)), w((1, 1, 3 * d)),
            w((1, d, d)), w((1, 1, d)),
            w((1, 1, d)), w((1, 1, d)),
            w((1, d, f)), w((1, 1, f)),
            w((1, f, d)), w((1, 1, d)),
            w((1, 1, d)), w((1, 1, d)),
        ],
        out_specs=pl.BlockSpec((b, 1, p, d), lambda ni: (0, ni, 0, 0)),
        compiler_params=pltpu.CompilerParams(
            dimension_semantics=("parallel",), vmem_limit_bytes=VMEM_LIMIT),
    )(x, pe, lp["w_qkv"], lp["b_qkv"], lp["w_o"], lp["b_o"],
      lp["ln1_g"], lp["ln1_b"], lp["w1"], lp["b1"], lp["w2"], lp["b2"],
      lp["ln2_g"], lp["ln2_b"])


# ----------------------------------------------------------------------------
# Positional encodings (pure JAX glue, matches the torch builders)
# ----------------------------------------------------------------------------
def build_1d_sin_encoding(seq_len, d_model):
    div = jnp.exp(jnp.arange(0, d_model, 2, dtype=jnp.float32)
                  * (-math.log(10000.0) / d_model))
    pos = jnp.arange(seq_len, dtype=jnp.float32)[:, None]
    pe = jnp.zeros((seq_len, d_model), jnp.float32)
    pe = pe.at[:, 0::2].set(jnp.sin(pos * div))
    pe = pe.at[:, 1::2].set(jnp.cos(pos * div))
    return pe


def build_2d_sin_encoding(h, w, d_model):
    d_h = d_model // 2
    row = jnp.arange(h, dtype=jnp.float32)[:, None]
    col = jnp.arange(w, dtype=jnp.float32)[:, None]
    div = jnp.exp(jnp.arange(0, d_h, 2, dtype=jnp.float32)
                  * (-math.log(10000.0) / d_h))
    row_enc = jnp.zeros((h, d_h), jnp.float32)
    row_enc = row_enc.at[:, 0::2].set(jnp.sin(row * div))
    row_enc = row_enc.at[:, 1::2].set(jnp.cos(row * div))
    col_enc = jnp.zeros((w, d_h), jnp.float32)
    col_enc = col_enc.at[:, 0::2].set(jnp.sin(col * div))
    col_enc = col_enc.at[:, 1::2].set(jnp.cos(col * div))
    return jnp.concatenate(
        [jnp.broadcast_to(row_enc[:, None, :], (h, w, d_h)),
         jnp.broadcast_to(col_enc[None, :, :], (h, w, d_h))], axis=-1)


# ----------------------------------------------------------------------------
# HAMABlock forward (4 pallas_call launches total for the toy config)
# ----------------------------------------------------------------------------
def fission_forward(wp, x, cfg):
    b, l, d = x.shape
    n, p = cfg["num_nodes"], cfg["partition_length"]
    q_pe = build_2d_sin_encoding(n, p, d).reshape(n * p, d)        # [N*P, D]
    out = fused_cross_attention(x, q_pe, wp, cfg["num_heads"])     # [B, N*P, D]
    return out.reshape(b, n, p, d)                                 # [B, N, P, D]


def baby_autoencoders_forward(wp, x, cfg):
    b, n, p, d = x.shape
    pe = build_1d_sin_encoding(p, d)
    n_enc = len(wp["encoder"])
    for li, lp in enumerate(wp["encoder"]):
        x = encoder_layer_batched(x, pe, lp, cfg["num_heads"],
                                  apply_pe=(li == 0),
                                  apply_tanh=(li == n_enc - 1))
    if cfg["use_masking"] and cfg["n_mask"] > 0:
        # TODO(synk): per-sequence torch.topk-based token masking kept in plain
        # JAX (tiny per-sequence index scatter has no natural Pallas tiling).
        scores = jnp.sqrt(jnp.sum(x * x, axis=-1))                 # [B, N, P]
        idx = jax.lax.top_k(-scores, cfg["n_mask"])[1]             # smallest norms
        mask = jnp.zeros((b, n, p), jnp.bool_).at[
            jnp.arange(b)[:, None, None], jnp.arange(n)[None, :, None], idx
        ].set(True)
        x = jnp.where(mask[..., None], 0.0, x)
    for lp in wp["decoder"]:
        x = encoder_layer_batched(x, pe, lp, cfg["num_heads"])
    return x


def fusion_forward(wp, x_bnpd, seq_len, cfg):
    b, n, p, d = x_bnpd.shape
    x = x_bnpd.reshape(b, n * p, d)
    q_pe = build_1d_sin_encoding(seq_len, d)                       # [L, D]
    return fused_cross_attention(x, q_pe, wp, cfg["num_heads"])    # [B, L, D]


def hama_block_forward(dev_params, x, cfg):
    b, l, d = x.shape
    node_repr = fission_forward(dev_params["fission"], x, cfg)     # [B, N, P, D]
    node_repr = baby_autoencoders_forward(dev_params["autoencoders"], node_repr, cfg)
    return fusion_forward(dev_params["fusion"], node_repr, l, cfg)  # [B, L, D]


# ----------------------------------------------------------------------------
# Deterministic parameter init (PyTorch layout) + one-time device-layout prep
# ----------------------------------------------------------------------------
def _init_dense(key, out_dim, in_dim, scale=0.05):
    kw, kb = jax.random.split(key)
    return {"weight": scale * jax.random.normal(kw, (out_dim, in_dim), jnp.float32),
            "bias": scale * jax.random.normal(kb, (out_dim,), jnp.float32)}


def _init_ln(dim):
    return {"weight": jnp.ones((dim,), jnp.float32),
            "bias": jnp.zeros((dim,), jnp.float32)}


def _init_mha(key, dim, scale=0.05):
    k1, k2, k3 = jax.random.split(key, 3)
    return {"in_proj_weight": scale * jax.random.normal(k1, (3 * dim, dim), jnp.float32),
            "in_proj_bias": scale * jax.random.normal(k2, (3 * dim,), jnp.float32),
            "out_proj": _init_dense(k3, dim, dim, scale)}


def _init_encoder_layer(key, dim, ff_dim):
    k1, k2, k3 = jax.random.split(key, 3)
    return {"self_attn": _init_mha(k1, dim),
            "linear1": _init_dense(k2, ff_dim, dim),
            "linear2": _init_dense(k3, dim, ff_dim),
            "norm1": _init_ln(dim), "norm2": _init_ln(dim)}


def _init_baby(key, dim, ff_dim, num_layers):
    keys = jax.random.split(key, 2 * num_layers)
    return {"encoder": [_init_encoder_layer(keys[i], dim, ff_dim)
                        for i in range(num_layers)],
            "decoder": [_init_encoder_layer(keys[num_layers + i], dim, ff_dim)
                        for i in range(num_layers)]}


def _init_fission_or_fusion(key, dim):
    k1, k2, k3, k4 = jax.random.split(key, 4)
    return {"norm": _init_ln(dim), "key_proj": _init_dense(k1, dim, dim),
            "value_proj": _init_dense(k2, dim, dim), "attention": _init_mha(k3, dim),
            "output_proj": _init_dense(k4, dim, dim), "output_norm": _init_ln(dim)}


def init_hama(key, cfg):
    keys = jax.random.split(key, 2 + cfg["num_nodes"])
    return {"fission": _init_fission_or_fusion(keys[0], cfg["embedding_dim"]),
            "fusion": _init_fission_or_fusion(keys[1], cfg["embedding_dim"]),
            "autoencoders": [_init_baby(keys[2 + i], cfg["embedding_dim"],
                                        cfg["dim_feedforward"], cfg["num_layers"])
                             for i in range(cfg["num_nodes"])]}


def _bf16(w):
    return w.astype(jnp.bfloat16)


def _prepare_fission_fusion(p):
    d = p["key_proj"]["weight"].shape[0]
    w_in, b_in = p["attention"]["in_proj_weight"], p["attention"]["in_proj_bias"]
    return {
        "ln1_g": p["norm"]["weight"].reshape(1, d),
        "ln1_b": p["norm"]["bias"].reshape(1, d),
        "w_kv": _bf16(jnp.concatenate([p["key_proj"]["weight"].T,
                                       p["value_proj"]["weight"].T], axis=1)),
        "b_kv": jnp.concatenate([p["key_proj"]["bias"],
                                 p["value_proj"]["bias"]]).reshape(1, 2 * d),
        "w_k_in": _bf16(w_in[d:2 * d].T), "b_k_in": b_in[d:2 * d].reshape(1, d),
        "w_v_in": _bf16(w_in[2 * d:].T), "b_v_in": b_in[2 * d:].reshape(1, d),
        "w_q_in": _bf16(w_in[:d].T), "b_q_in": b_in[:d].reshape(1, d),
        "w_mha_out": _bf16(p["attention"]["out_proj"]["weight"].T),
        "b_mha_out": p["attention"]["out_proj"]["bias"].reshape(1, d),
        "w_out_proj": _bf16(p["output_proj"]["weight"].T),
        "b_out_proj": p["output_proj"]["bias"].reshape(1, d),
        "ln2_g": p["output_norm"]["weight"].reshape(1, d),
        "ln2_b": p["output_norm"]["bias"].reshape(1, d),
    }


def _prepare_ae_layers(ae_list, which):
    num_layers = len(ae_list[0][which])
    layers = []
    for li in range(num_layers):
        stack = lambda fn: jnp.stack([fn(ae[which][li]) for ae in ae_list], axis=0)
        layers.append({
            "w_qkv": _bf16(stack(lambda lp: lp["self_attn"]["in_proj_weight"].T)),
            "b_qkv": stack(lambda lp: lp["self_attn"]["in_proj_bias"].reshape(1, -1)),
            "w_o": _bf16(stack(lambda lp: lp["self_attn"]["out_proj"]["weight"].T)),
            "b_o": stack(lambda lp: lp["self_attn"]["out_proj"]["bias"].reshape(1, -1)),
            "ln1_g": stack(lambda lp: lp["norm1"]["weight"].reshape(1, -1)),
            "ln1_b": stack(lambda lp: lp["norm1"]["bias"].reshape(1, -1)),
            "w1": _bf16(stack(lambda lp: lp["linear1"]["weight"].T)),
            "b1": stack(lambda lp: lp["linear1"]["bias"].reshape(1, -1)),
            "w2": _bf16(stack(lambda lp: lp["linear2"]["weight"].T)),
            "b2": stack(lambda lp: lp["linear2"]["bias"].reshape(1, -1)),
            "ln2_g": stack(lambda lp: lp["norm2"]["weight"].reshape(1, -1)),
            "ln2_b": stack(lambda lp: lp["norm2"]["bias"].reshape(1, -1)),
        })
    return layers


def prepare_device_params(params):
    """One-time transpose / concat / bf16-cast / per-node stacking of the
    PyTorch-layout params."""
    return {
        "fission": _prepare_fission_fusion(params["fission"]),
        "fusion": _prepare_fission_fusion(params["fusion"]),
        "autoencoders": {
            "encoder": _prepare_ae_layers(params["autoencoders"], "encoder"),
            "decoder": _prepare_ae_layers(params["autoencoders"], "decoder"),
        },
    }


# ----------------------------------------------------------------------------
# Main
# ----------------------------------------------------------------------------
if __name__ == "__main__":
    cfg = dict(
        num_nodes=2,
        partition_length=8,
        embedding_dim=32,
        num_heads=4,
        num_layers=1,
        n_mask=1,
        use_masking=True,
        compression_factor=1,
        dim_feedforward=2048,  # nn.TransformerEncoderLayer default
    )
    B, L = 2, 16

    root = jax.random.PRNGKey(0)
    kp, kx = jax.random.split(root)
    params = init_hama(kp, cfg)
    dev_params = prepare_device_params(params)
    x = jax.random.normal(kx, (B, L, cfg["embedding_dim"]), jnp.float32)

    fwd = jax.jit(functools.partial(hama_block_forward, cfg=cfg))
    out = jax.block_until_ready(fwd(dev_params, x))

    assert out.shape == (B, L, cfg["embedding_dim"]), out.shape
    assert out.dtype == jnp.float32
    assert bool(jnp.all(jnp.isfinite(out)))
    print("KERNEL_OK")
</pallas_src>

<mosaic_0001>
module attributes {stable_mosaic.version = 11 : i64} {
  func.func @_fission_fusion_kernel(%arg0: i32, %arg1: memref<1x16x32xf32, #tpu.memory_space<vmem>>, %arg2: memref<16x32xf32, #tpu.memory_space<vmem>>, %arg3: memref<1x32xf32, #tpu.memory_space<vmem>>, %arg4: memref<1x32xf32, #tpu.memory_space<vmem>>, %arg5: memref<32x64xbf16, #tpu.memory_space<vmem>>, %arg6: memref<1x64xf32, #tpu.memory_space<vmem>>, %arg7: memref<32x32xbf16, #tpu.memory_space<vmem>>, %arg8: memref<1x32xf32, #tpu.memory_space<vmem>>, %arg9: memref<32x32xbf16, #tpu.memory_space<vmem>>, %arg10: memref<1x32xf32, #tpu.memory_space<vmem>>, %arg11: memref<32x32xbf16, #tpu.memory_space<vmem>>, %arg12: memref<1x32xf32, #tpu.memory_space<vmem>>, %arg13: memref<32x32xbf16, #tpu.memory_space<vmem>>, %arg14: memref<1x32xf32, #tpu.memory_space<vmem>>, %arg15: memref<32x32xbf16, #tpu.memory_space<vmem>>, %arg16: memref<1x32xf32, #tpu.memory_space<vmem>>, %arg17: memref<1x32xf32, #tpu.memory_space<vmem>>, %arg18: memref<1x32xf32, #tpu.memory_space<vmem>>, %arg19: memref<1x16x32xf32, #tpu.memory_space<vmem>>) attributes {dimension_semantics = [#tpu.dimension_semantics<parallel>], iteration_bounds = array<i64: 2>, scalar_prefetch = 0 : i64, scratch_operands = 0 : i64, tpu.core_type = #tpu.core_type<tc>, window_params = [{transform_indices = @transform_0, window_bounds = array<i64: 1, 16, 32>}, {pipeline_mode = #tpu.pipeline_mode<synchronous>, transform_indices = @transform_1, window_bounds = array<i64: 16, 32>}, {pipeline_mode = #tpu.pipeline_mode<synchronous>, transform_indices = @transform_2, window_bounds = array<i64: 1, 32>}, {pipeline_mode = #tpu.pipeline_mode<synchronous>, transform_indices = @transform_3, window_bounds = array<i64: 1, 32>}, {pipeline_mode = #tpu.pipeline_mode<synchronous>, transform_indices = @transform_4, window_bounds = array<i64: 32, 64>}, {pipeline_mode = #tpu.pipeline_mode<synchronous>, transform_indices = @transform_5, window_bounds = array<i64: 1, 64>}, {pipeline_mode = #tpu.pipeline_mode<synchronous>, transform_indices = @transform_6, window_bounds = array<i64: 32, 32>}, {pipeline_mode = #tpu.pipeline_mode<synchronous>, transform_indices = @transform_7, window_bounds = array<i64: 1, 32>}, {pipeline_mode = #tpu.pipeline_mode<synchronous>, transform_indices = @transform_8, window_bounds = array<i64: 32, 32>}, {pipeline_mode = #tpu.pipeline_mode<synchronous>, transform_indices = @transform_9, window_bounds = array<i64: 1, 32>}, {pipeline_mode = #tpu.pipeline_mode<synchronous>, transform_indices = @transform_10, window_bounds = array<i64: 32, 32>}, {pipeline_mode = #tpu.pipeline_mode<synchronous>, transform_indices = @transform_11, window_bounds = array<i64: 1, 32>}, {pipeline_mode = #tpu.pipeline_mode<synchronous>, transform_indices = @transform_12, window_bounds = array<i64: 32, 32>}, {pipeline_mode = #tpu.pipeline_mode<synchronous>, transform_indices = @transform_13, window_bounds = array<i64: 1, 32>}, {pipeline_mode = #tpu.pipeline_mode<synchronous>, transform_indices = @transform_14, window_bounds = array<i64: 32, 32>}, {pipeline_mode = #tpu.pipeline_mode<synchronous>, transform_indices = @transform_15, window_bounds = array<i64: 1, 32>}, {pipeline_mode = #tpu.pipeline_mode<synchronous>, transform_indices = @transform_16, window_bounds = array<i64: 1, 32>}, {pipeline_mode = #tpu.pipeline_mode<synchronous>, transform_indices = @transform_17, window_bounds = array<i64: 1, 32>}, {transform_indices = @transform_18, window_bounds = array<i64: 1, 16, 32>}]} {
    %c0 = arith.constant 0 : index
    %c0_0 = arith.constant 0 : index
    %c0_1 = arith.constant 0 : index
    %0 = vector.load %arg1[%c0, %c0_0, %c0_1] : memref<1x16x32xf32, #tpu.memory_space<vmem>>, vector<1x16x32xf32>
    %1 = vector.shape_cast %0 : vector<1x16x32xf32> to vector<16x32xf32>
    %c0_2 = arith.constant 0 : index
    %c0_3 = arith.constant 0 : index
    %2 = vector.load %arg2[%c0_2, %c0_3] : memref<16x32xf32, #tpu.memory_space<vmem>>, vector<16x32xf32>
    %c0_4 = arith.constant 0 : index
    %c0_5 = arith.constant 0 : index
    %3 = vector.load %arg3[%c0_4, %c0_5] : memref<1x32xf32, #tpu.memory_space<vmem>>, vector<1x32xf32>
    %c0_6 = arith.constant 0 : index
    %c0_7 = arith.constant 0 : index
    %4 = vector.load %arg4[%c0_6, %c0_7] : memref<1x32xf32, #tpu.memory_space<vmem>>, vector<1x32xf32>
    %cst = arith.constant dense<0.000000e+00> : vector<16xf32>
    %5 = vector.multi_reduction <add>, %1, %cst [1] : vector<16x32xf32> to vector<16xf32>
    %6 = vector.shape_cast %5 : vector<16xf32> to vector<16x1xf32>
    %cst_8 = arith.constant 3.200000e+01 : f32
    %7 = vector.broadcast %cst_8 : f32 to vector<16x1xf32>
    %8 = arith.divf %6, %7 : vector<16x1xf32>
    %9 = vector.broadcast %8 : vector<16x1xf32> to vector<16x32xf32>
    %10 = arith.subf %1, %9 : vector<16x32xf32>
    %11 = arith.mulf %10, %10 : vector<16x32xf32>
    %cst_9 = arith.constant dense<0.000000e+00> : vector<16xf32>
    %12 = vector.multi_reduction <add>, %11, %cst_9 [1] : vector<16x32xf32> to vector<16xf32>
    %13 = vector.shape_cast %12 : vector<16xf32> to vector<16x1xf32>
    %cst_10 = arith.constant 3.200000e+01 : f32
    %14 = vector.broadcast %cst_10 : f32 to vector<16x1xf32>
    %15 = arith.divf %13, %14 : vector<16x1xf32>
    %16 = vector.broadcast %8 : vector<16x1xf32> to vector<16x32xf32>
    %17 = arith.subf %1, %16 : vector<16x32xf32>
    %cst_11 = arith.constant 9.99999974E-6 : f32
    %18 = vector.broadcast %cst_11 : f32 to vector<16x1xf32>
    %19 = arith.addf %15, %18 : vector<16x1xf32>
    %20 = math.rsqrt %19 : vector<16x1xf32>
    %21 = vector.broadcast %20 : vector<16x1xf32> to vector<16x32xf32>
    %22 = arith.mulf %17, %21 : vector<16x32xf32>
    %23 = vector.broadcast %3 : vector<1x32xf32> to vector<16x32xf32>
    %24 = arith.mulf %22, %23 : vector<16x32xf32>
    %25 = vector.broadcast %4 : vector<1x32xf32> to vector<16x32xf32>
    %26 = arith.addf %24, %25 : vector<16x32xf32>
    %c0_12 = arith.constant 0 : index
    %c0_13 = arith.constant 0 : index
    %27 = vector.load %arg5[%c0_12, %c0_13] : memref<32x64xbf16, #tpu.memory_space<vmem>>, vector<32x64xbf16>
    %28 = arith.truncf %26 : vector<16x32xf32> to vector<16x32xbf16>
    %cst_14 = arith.constant dense<0.000000e+00> : vector<16x64xf32>
    %29 = tpu.matmul %28, %27, %cst_14 {dimension_numbers = #tpu.dot_dimension_numbers<[1], [0], [0], [1], [0, 0, 1, 1], [], []>} : vector<16x32xbf16>, vector<32x64xbf16>, vector<16x64xf32> -> vector<16x64xf32>
    %c0_15 = arith.constant 0 : index
    %c0_16 = arith.constant 0 : index
    %30 = vector.load %arg6[%c0_15, %c0_16] : memref<1x64xf32, #tpu.memory_space<vmem>>, vector<1x64xf32>
    %31 = vector.broadcast %30 : vector<1x64xf32> to vector<16x64xf32>
    %32 = arith.addf %29, %31 : vector<16x64xf32>
    %33 = vector.extract_strided_slice %32 {offsets = [0, 0], sizes = [16, 32], strides = [1, 1]} : vector<16x64xf32> to vector<16x32xf32>
    %c0_17 = arith.constant 0 : index
    %c0_18 = arith.constant 0 : index
    %34 = vector.load %arg7[%c0_17, %c0_18] : memref<32x32xbf16, #tpu.memory_space<vmem>>, vector<32x32xbf16>
    %35 = arith.truncf %33 : vector<16x32xf32> to vector<16x32xbf16>
    %cst_19 = arith.constant dense<0.000000e+00> : vector<16x32xf32>
    %36 = tpu.matmul %35, %34, %cst_19 {dimension_numbers = #tpu.dot_dimension_numbers<[1], [0], [0], [1], [0, 0, 1, 1], [], []>} : vector<16x32xbf16>, vector<32x32xbf16>, vector<16x32xf32> -> vector<16x32xf32>
    %c0_20 = arith.constant 0 : index
    %c0_21 = arith.constant 0 : index
    %37 = vector.load %arg8[%c0_20, %c0_21] : memref<1x32xf32, #tpu.memory_space<vmem>>, vector<1x32xf32>
    %38 = vector.broadcast %37 : vector<1x32xf32> to vector<16x32xf32>
    %39 = arith.addf %36, %38 : vector<16x32xf32>
    %40 = vector.extract_strided_slice %32 {offsets = [0, 32], sizes = [16, 32], strides = [1, 1]} : vector<16x64xf32> to vector<16x32xf32>
    %c0_22 = arith.constant 0 : index
    %c0_23 = arith.constant 0 : index
    %41 = vector.load %arg9[%c0_22, %c0_23] : memref<32x32xbf16, #tpu.memory_space<vmem>>, vector<32x32xbf16>
    %42 = arith.truncf %40 : vector<16x32xf32> to vector<16x32xbf16>
    %cst_24 = arith.constant dense<0.000000e+00> : vector<16x32xf32>
    %43 = tpu.matmul %42, %41, %cst_24 {dimension_numbers = #tpu.dot_dimension_numbers<[1], [0], [0], [1], [0, 0, 1, 1], [], []>} : vector<16x32xbf16>, vector<32x32xbf16>, vector<16x32xf32> -> vector<16x32xf32>
    %c0_25 = arith.constant 0 : index
    %c0_26 = arith.constant 0 : index
    %44 = vector.load %arg10[%c0_25, %c0_26] : memref<1x32xf32, #tpu.memory_space<vmem>>, vector<1x32xf32>
    %45 = vector.broadcast %44 : vector<1x32xf32> to vector<16x32xf32>
    %46 = arith.addf %43, %45 : vector<16x32xf32>
    %c0_27 = arith.constant 0 : index
    %c0_28 = arith.constant 0 : index
    %47 = vector.load %arg11[%c0_27, %c0_28] : memref<32x32xbf16, #tpu.memory_space<vmem>>, vector<32x32xbf16>
    %48 = arith.truncf %2 : vector<16x32xf32> to vector<16x32xbf16>
    %cst_29 = arith.constant dense<0.000000e+00> : vector<16x32xf32>
    %49 = tpu.matmul %48, %47, %cst_29 {dimension_numbers = #tpu.dot_dimension_numbers<[1], [0], [0], [1], [0, 0, 1, 1], [], []>} : vector<16x32xbf16>, vector<32x32xbf16>, vector<16x32xf32> -> vector<16x32xf32>
    %c0_30 = arith.constant 0 : index
    %c0_31 = arith.constant 0 : index
    %50 = vector.load %arg12[%c0_30, %c0_31] : memref<1x32xf32, #tpu.memory_space<vmem>>, vector<1x32xf32>
    %51 = vector.broadcast %50 : vector<1x32xf32> to vector<16x32xf32>
    %52 = arith.addf %49, %51 : vector<16x32xf32>
    %53 = vector.extract_strided_slice %52 {offsets = [0, 0], sizes = [16, 8], strides = [1, 1]} : vector<16x32xf32> to vector<16x8xf32>
    %54 = vector.extract_strided_slice %39 {offsets = [0, 0], sizes = [16, 8], strides = [1, 1]} : vector<16x32xf32> to vector<16x8xf32>
    %55 = vector.extract_strided_slice %46 {offsets = [0, 0], sizes = [16, 8], strides = [1, 1]} : vector<16x32xf32> to vector<16x8xf32>
    %56 = arith.truncf %53 : vector<16x8xf32> to vector<16x8xbf16>
    %57 = arith.truncf %54 : vector<16x8xf32> to vector<16x8xbf16>
    %cst_32 = arith.constant dense<0.000000e+00> : vector<16x16xf32>
    %58 = tpu.matmul %56, %57, %cst_32 {dimension_numbers = #tpu.dot_dimension_numbers<[1], [1], [0], [0], [0, 0, 1, 0], [], []>} : vector<16x8xbf16>, vector<16x8xbf16>, vector<16x16xf32> -> vector<16x16xf32>
    %cst_33 = arith.constant 0.353553385 : f32
    %59 = vector.broadcast %cst_33 : f32 to vector<16x16xf32>
    %60 = arith.mulf %58, %59 : vector<16x16xf32>
    %cst_34 = arith.constant dense<0xFF800000> : vector<16xf32>
    %61 = vector.multi_reduction <maximumf>, %60, %cst_34 [1] : vector<16x16xf32> to vector<16xf32>
    %62 = vector.shape_cast %61 : vector<16xf32> to vector<16x1xf32>
    %63 = vector.broadcast %62 : vector<16x1xf32> to vector<16x16xf32>
    %64 = arith.subf %60, %63 : vector<16x16xf32>
    %65 = math.exp %64 : vector<16x16xf32>
    %cst_35 = arith.constant dense<0.000000e+00> : vector<16xf32>
    %66 = vector.multi_reduction <add>, %65, %cst_35 [1] : vector<16x16xf32> to vector<16xf32>
    %67 = vector.shape_cast %66 : vector<16xf32> to vector<16x1xf32>
    %68 = tpu.reciprocal %67 {approx = true} : vector<16x1xf32> -> vector<16x1xf32>
    %69 = vector.broadcast %68 : vector<16x1xf32> to vector<16x16xf32>
    %70 = arith.mulf %65, %69 : vector<16x16xf32>
    %71 = arith.truncf %70 : vector<16x16xf32> to vector<16x16xbf16>
    %72 = arith.truncf %55 : vector<16x8xf32> to vector<16x8xbf16>
    %cst_36 = arith.constant dense<0.000000e+00> : vector<16x8xf32>
    %73 = tpu.matmul %71, %72, %cst_36 {dimension_numbers = #tpu.dot_dimension_numbers<[1], [0], [0], [1], [0, 0, 1, 1], [], []>} : vector<16x16xbf16>, vector<16x8xbf16>, vector<16x8xf32> -> vector<16x8xf32>
    %74 = vector.extract_strided_slice %52 {offsets = [0, 8], sizes = [16, 8], strides = [1, 1]} : vector<16x32xf32> to vector<16x8xf32>
    %75 = vector.extract_strided_slice %39 {offsets = [0, 8], sizes = [16, 8], strides = [1, 1]} : vector<16x32xf32> to vector<16x8xf32>
    %76 = vector.extract_strided_slice %46 {offsets = [0, 8], sizes = [16, 8], strides = [1, 1]} : vector<16x32xf32> to vector<16x8xf32>
    %77 = arith.truncf %74 : vector<16x8xf32> to vector<16x8xbf16>
    %78 = arith.truncf %75 : vector<16x8xf32> to vector<16x8xbf16>
    %cst_37 = arith.constant dense<0.000000e+00> : vector<16x16xf32>
    %79 = tpu.matmul %77, %78, %cst_37 {dimension_numbers = #tpu.dot_dimension_numbers<[1], [1], [0], [0], [0, 0, 1, 0], [], []>} : vector<16x8xbf16>, vector<16x8xbf16>, vector<16x16xf32> -> vector<16x16xf32>
    %cst_38 = arith.constant 0.353553385 : f32
    %80 = vector.broadcast %cst_38 : f32 to vector<16x16xf32>
    %81 = arith.mulf %79, %80 : vector<16x16xf32>
    %cst_39 = arith.constant dense<0xFF800000> : vector<16xf32>
    %82 = vector.multi_reduction <maximumf>, %81, %cst_39 [1] : vector<16x16xf32> to vector<16xf32>
    %83 = vector.shape_cast %82 : vector<16xf32> to vector<16x1xf32>
    %84 = vector.broadcast %83 : vector<16x1xf32> to vector<16x16xf32>
    %85 = arith.subf %81, %84 : vector<16x16xf32>
    %86 = math.exp %85 : vector<16x16xf32>
    %cst_40 = arith.constant dense<0.000000e+00> : vector<16xf32>
    %87 = vector.multi_reduction <add>, %86, %cst_40 [1] : vector<16x16xf32> to vector<16xf32>
    %88 = vector.shape_cast %87 : vector<16xf32> to vector<16x1xf32>
    %89 = tpu.reciprocal %88 {approx = true} : vector<16x1xf32> -> vector<16x1xf32>
    %90 = vector.broadcast %89 : vector<16x1xf32> to vector<16x16xf32>
    %91 = arith.mulf %86, %90 : vector<16x16xf32>
    %92 = arith.truncf %91 : vector<16x16xf32> to vector<16x16xbf16>
    %93 = arith.truncf %76 : vector<16x8xf32> to vector<16x8xbf16>
    %cst_41 = arith.constant dense<0.000000e+00> : vector<16x8xf32>
    %94 = tpu.matmul %92, %93, %cst_41 {dimension_numbers = #tpu.dot_dimension_numbers<[1], [0], [0], [1], [0, 0, 1, 1], [], []>} : vector<16x16xbf16>, vector<16x8xbf16>, vector<16x8xf32> -> vector<16x8xf32>
    %95 = vector.extract_strided_slice %52 {offsets = [0, 16], sizes = [16, 8], strides = [1, 1]} : vector<16x32xf32> to vector<16x8xf32>
    %96 = vector.extract_strided_slice %39 {offsets = [0, 16], sizes = [16, 8], strides = [1, 1]} : vector<16x32xf32> to vector<16x8xf32>
    %97 = vector.extract_strided_slice %46 {offsets = [0, 16], sizes = [16, 8], strides = [1, 1]} : vector<16x32xf32> to vector<16x8xf32>
    %98 = arith.truncf %95 : vector<16x8xf32> to vector<16x8xbf16>
    %99 = arith.truncf %96 : vector<16x8xf32> to vector<16x8xbf16>
    %cst_42 = arith.constant dense<0.000000e+00> : vector<16x16xf32>
    %100 = tpu.matmul %98, %99, %cst_42 {dimension_numbers = #tpu.dot_dimension_numbers<[1], [1], [0], [0], [0, 0, 1, 0], [], []>} : vector<16x8xbf16>, vector<16x8xbf16>, vector<16x16xf32> -> vector<16x16xf32>
    %cst_43 = arith.constant 0.353553385 : f32
    %101 = vector.broadcast %cst_43 : f32 to vector<16x16xf32>
    %102 = arith.mulf %100, %101 : vector<16x16xf32>
    %cst_44 = arith.constant dense<0xFF800000> : vector<16xf32>
    %103 = vector.multi_reduction <maximumf>, %102, %cst_44 [1] : vector<16x16xf32> to vector<16xf32>
    %104 = vector.shape_cast %103 : vector<16xf32> to vector<16x1xf32>
    %105 = vector.broadcast %104 : vector<16x1xf32> to vector<16x16xf32>
    %106 = arith.subf %102, %105 : vector<16x16xf32>
    %107 = math.exp %106 : vector<16x16xf32>
    %cst_45 = arith.constant dense<0.000000e+00> : vector<16xf32>
    %108 = vector.multi_reduction <add>, %107, %cst_45 [1] : vector<16x16xf32> to vector<16xf32>
    %109 = vector.shape_cast %108 : vector<16xf32> to vector<16x1xf32>
    %110 = tpu.reciprocal %109 {approx = true} : vector<16x1xf32> -> vector<16x1xf32>
    %111 = vector.broadcast %110 : vector<16x1xf32> to vector<16x16xf32>
    %112 = arith.mulf %107, %111 : vector<16x16xf32>
    %113 = arith.truncf %112 : vector<16x16xf32> to vector<16x16xbf16>
    %114 = arith.truncf %97 : vector<16x8xf32> to vector<16x8xbf16>
    %cst_46 = arith.constant dense<0.000000e+00> : vector<16x8xf32>
    %115 = tpu.matmul %113, %114, %cst_46 {dimension_numbers = #tpu.dot_dimension_numbers<[1], [0], [0], [1], [0, 0, 1, 1], [], []>} : vector<16x16xbf16>, vector<16x8xbf16>, vector<16x8xf32> -> vector<16x8xf32>
    %116 = vector.extract_strided_slice %52 {offsets = [0, 24], sizes = [16, 8], strides = [1, 1]} : vector<16x32xf32> to vector<16x8xf32>
    %117 = vector.extract_strided_slice %39 {offsets = [0, 24], sizes = [16, 8], strides = [1, 1]} : vector<16x32xf32> to vector<16x8xf32>
    %118 = vector.extract_strided_slice %46 {offsets = [0, 24], sizes = [16, 8], strides = [1, 1]} : vector<16x32xf32> to vector<16x8xf32>
    %119 = arith.truncf %116 : vector<16x8xf32> to vector<16x8xbf16>
    %120 = arith.truncf %117 : vector<16x8xf32> to vector<16x8xbf16>
    %cst_47 = arith.constant dense<0.000000e+00> : vector<16x16xf32>
    %121 = tpu.matmul %119, %120, %cst_47 {dimension_numbers = #tpu.dot_dimension_numbers<[1], [1], [0], [0], [0, 0, 1, 0], [], []>} : vector<16x8xbf16>, vector<16x8xbf16>, vector<16x16xf32> -> vector<16x16xf32>
    %cst_48 = arith.constant 0.353553385 : f32
    %122 = vector.broadcast %cst_48 : f32 to vector<16x16xf32>
    %123 = arith.mulf %121, %122 : vector<16x16xf32>
    %cst_49 = arith.constant dense<0xFF800000> : vector<16xf32>
    %124 = vector.multi_reduction <maximumf>, %123, %cst_49 [1] : vector<16x16xf32> to vector<16xf32>
    %125 = vector.shape_cast %124 : vector<16xf32> to vector<16x1xf32>
    %126 = vector.broadcast %125 : vector<16x1xf32> to vector<16x16xf32>
    %127 = arith.subf %123, %126 : vector<16x16xf32>
    %128 = math.exp %127 : vector<16x16xf32>
    %cst_50 = arith.constant dense<0.000000e+00> : vector<16xf32>
    %129 = vector.multi_reduction <add>, %128, %cst_50 [1] : vector<16x16xf32> to vector<16xf32>
    %130 = vector.shape_cast %129 : vector<16xf32> to vector<16x1xf32>
    %131 = tpu.reciprocal %130 {approx = true} : vector<16x1xf32> -> vector<16x1xf32>
    %132 = vector.broadcast %131 : vector<16x1xf32> to vector<16x16xf32>
    %133 = arith.mulf %128, %132 : vector<16x16xf32>
    %134 = arith.truncf %133 : vector<16x16xf32> to vector<16x16xbf16>
    %135 = arith.truncf %118 : vector<16x8xf32> to vector<16x8xbf16>
    %cst_51 = arith.constant dense<0.000000e+00> : vector<16x8xf32>
    %136 = tpu.matmul %134, %135, %cst_51 {dimension_numbers = #tpu.dot_dimension_numbers<[1], [0], [0], [1], [0, 0, 1, 1], [], []>} : vector<16x16xbf16>, vector<16x8xbf16>, vector<16x8xf32> -> vector<16x8xf32>
    %137 = tpu.concatenate %73, %94, %115, %136 in 1 : vector<16x8xf32>, vector<16x8xf32>, vector<16x8xf32>, vector<16x8xf32> -> vector<16x32xf32>
    %c0_52 = arith.constant 0 : index
    %c0_53 = arith.constant 0 : index
    %138 = vector.load %arg13[%c0_52, %c0_53] : memref<32x32xbf16, #tpu.memory_space<vmem>>, vector<32x32xbf16>
    %139 = arith.truncf %137 : vector<16x32xf32> to vector<16x32xbf16>
    %cst_54 = arith.constant dense<0.000000e+00> : vector<16x32xf32>
    %140 = tpu.matmul %139, %138, %cst_54 {dimension_numbers = #tpu.dot_dimension_numbers<[1], [0], [0], [1], [0, 0, 1, 1], [], []>} : vector<16x32xbf16>, vector<32x32xbf16>, vector<16x32xf32> -> vector<16x32xf32>
    %c0_55 = arith.constant 0 : index
    %c0_56 = arith.constant 0 : index
    %141 = vector.load %arg14[%c0_55, %c0_56] : memref<1x32xf32, #tpu.memory_space<vmem>>, vector<1x32xf32>
    %142 = vector.broadcast %141 : vector<1x32xf32> to vector<16x32xf32>
    %143 = arith.addf %140, %142 : vector<16x32xf32>
    %c0_57 = arith.constant 0 : index
    %c0_58 = arith.constant 0 : index
    %144 = vector.load %arg15[%c0_57, %c0_58] : memref<32x32xbf16, #tpu.memory_space<vmem>>, vector<32x32xbf16>
    %145 = arith.truncf %143 : vector<16x32xf32> to vector<16x32xbf16>
    %cst_59 = arith.constant dense<0.000000e+00> : vector<16x32xf32>
    %146 = tpu.matmul %145, %144, %cst_59 {dimension_numbers = #tpu.dot_dimension_numbers<[1], [0], [0], [1], [0, 0, 1, 1], [], []>} : vector<16x32xbf16>, vector<32x32xbf16>, vector<16x32xf32> -> vector<16x32xf32>
    %c0_60 = arith.constant 0 : index
    %c0_61 = arith.constant 0 : index
    %147 = vector.load %arg16[%c0_60, %c0_61] : memref<1x32xf32, #tpu.memory_space<vmem>>, vector<1x32xf32>
    %148 = vector.broadcast %147 : vector<1x32xf32> to vector<16x32xf32>
    %149 = arith.addf %146, %148 : vector<16x32xf32>
    %150 = arith.addf %149, %2 : vector<16x32xf32>
    %c0_62 = arith.constant 0 : index
    %c0_63 = arith.constant 0 : index
    %151 = vector.load %arg17[%c0_62, %c0_63] : memref<1x32xf32, #tpu.memory_space<vmem>>, vector<1x32xf32>
    %c0_64 = arith.constant 0 : index
    %c0_65 = arith.constant 0 : index
    %152 = vector.load %arg18[%c0_64, %c0_65] : memref<1x32xf32, #tpu.memory_space<vmem>>, vector<1x32xf32>
    %cst_66 = arith.constant dense<0.000000e+00> : vector<16xf32>
    %153 = vector.multi_reduction <add>, %150, %cst_66 [1] : vector<16x32xf32> to vector<16xf32>
    %154 = vector.shape_cast %153 : vector<16xf32> to vector<16x1xf32>
    %cst_67 = arith.constant 3.200000e+01 : f32
    %155 = vector.broadcast %cst_67 : f32 to vector<16x1xf32>
    %156 = arith.divf %154, %155 : vector<16x1xf32>
    %157 = vector.broadcast %156 : vector<16x1xf32> to vector<16x32xf32>
    %158 = arith.subf %150, %157 : vector<16x32xf32>
    %159 = arith.mulf %158, %158 : vector<16x32xf32>
    %cst_68 = arith.constant dense<0.000000e+00> : vector<16xf32>
    %160 = vector.multi_reduction <add>, %159, %cst_68 [1] : vector<16x32xf32> to vector<16xf32>
    %161 = vector.shape_cast %160 : vector<16xf32> to vector<16x1xf32>
    %cst_69 = arith.constant 3.200000e+01 : f32
    %162 = vector.broadcast %cst_69 : f32 to vector<16x1xf32>
    %163 = arith.divf %161, %162 : vector<16x1xf32>
    %164 = vector.broadcast %156 : vector<16x1xf32> to vector<16x32xf32>
    %165 = arith.subf %150, %164 : vector<16x32xf32>
    %cst_70 = arith.constant 9.99999974E-6 : f32
    %166 = vector.broadcast %cst_70 : f32 to vector<16x1xf32>
    %167 = arith.addf %163, %166 : vector<16x1xf32>
    %168 = math.rsqrt %167 : vector<16x1xf32>
    %169 = vector.broadcast %168 : vector<16x1xf32> to vector<16x32xf32>
    %170 = arith.mulf %165, %169 : vector<16x32xf32>
    %171 = vector.broadcast %151 : vector<1x32xf32> to vector<16x32xf32>
    %172 = arith.mulf %170, %171 : vector<16x32xf32>
    %173 = vector.broadcast %152 : vector<1x32xf32> to vector<16x32xf32>
    %174 = arith.addf %172, %173 : vector<16x32xf32>
    %c0_71 = arith.constant 0 : index
    %c0_72 = arith.constant 0 : index
    %c0_73 = arith.constant 0 : index
    %175 = vector.load %arg19[%c0_71, %c0_72, %c0_73] : memref<1x16x32xf32, #tpu.memory_space<vmem>>, vector<1x16x32xf32>
    %176 = vector.shape_cast %175 : vector<1x16x32xf32> to vector<16x32xf32>
    %177 = vector.shape_cast %174 : vector<16x32xf32> to vector<1x16x32xf32>
    tpu.vector_store %arg19[%c0_71, %c0_72, %c0_73], %177 {strides = array<i32>} : memref<1x16x32xf32, #tpu.memory_space<vmem>>, vector<1x16x32xf32>,
    return
  }
  func.func @transform_0(%arg0: i32) -> (i32, i32, i32) {
    %c0_i32 = arith.constant 0 : i32
    %c0_i32_0 = arith.constant 0 : i32
    %c0_i32_1 = arith.constant 0 : i32
    return %arg0, %c0_i32, %c0_i32_0 : i32, i32, i32
  }
  func.func @transform_1(%arg0: i32) -> (i32, i32) {
    %c0_i32 = arith.constant 0 : i32
    %c0_i32_0 = arith.constant 0 : i32
    %c0_i32_1 = arith.constant 0 : i32
    return %c0_i32, %c0_i32_0 : i32, i32
  }
  func.func @transform_2(%arg0: i32) -> (i32, i32) {
    %c0_i32 = arith.constant 0 : i32
    %c0_i32_0 = arith.constant 0 : i32
    %c0_i32_1 = arith.constant 0 : i32
    return %c0_i32, %c0_i32_0 : i32, i32
  }
  func.func @transform_3(%arg0: i32) -> (i32, i32) {
    %c0_i32 = arith.constant 0 : i32
    %c0_i32_0 = arith.constant 0 : i32
    %c0_i32_1 = arith.constant 0 : i32
    return %c0_i32, %c0_i32_0 : i32, i32
  }
  func.func @transform_4(%arg0: i32) -> (i32, i32) {
    %c0_i32 = arith.constant 0 : i32
    %c0_i32_0 = arith.constant 0 : i32
    %c0_i32_1 = arith.constant 0 : i32
    return %c0_i32, %c0_i32_0 : i32, i32
  }
  func.func @transform_5(%arg0: i32) -> (i32, i32) {
    %c0_i32 = arith.constant 0 : i32
    %c0_i32_0 = arith.constant 0 : i32
    %c0_i32_1 = arith.constant 0 : i32
    return %c0_i32, %c0_i32_0 : i32, i32
  }
  func.func @transform_6(%arg0: i32) -> (i32, i32) {
    %c0_i32 = arith.constant 0 : i32
    %c0_i32_0 = arith.constant 0 : i32
    %c0_i32_1 = arith.constant 0 : i32
    return %c0_i32, %c0_i32_0 : i32, i32
  }
  func.func @transform_7(%arg0: i32) -> (i32, i32) {
    %c0_i32 = arith.constant 0 : i32
    %c0_i32_0 = arith.constant 0 : i32
    %c0_i32_1 = arith.constant 0 : i32
    return %c0_i32, %c0_i32_0 : i32, i32
  }
  func.func @transform_8(%arg0: i32) -> (i32, i32) {
    %c0_i32 = arith.constant 0 : i32
    %c0_i32_0 = arith.constant 0 : i32
    %c0_i32_1 = arith.constant 0 : i32
    return %c0_i32, %c0_i32_0 : i32, i32
  }
  func.func @transform_9(%arg0: i32) -> (i32, i32) {
    %c0_i32 = arith.constant 0 : i32
    %c0_i32_0 = arith.constant 0 : i32
    %c0_i32_1 = arith.constant 0 : i32
    return %c0_i32, %c0_i32_0 : i32, i32
  }
  func.func @transform_10(%arg0: i32) -> (i32, i32) {
    %c0_i32 = arith.constant 0 : i32
    %c0_i32_0 = arith.constant 0 : i32
    %c0_i32_1 = arith.constant 0 : i32
    return %c0_i32, %c0_i32_0 : i32, i32
  }
  func.func @transform_11(%arg0: i32) -> (i32, i32) {
    %c0_i32 = arith.constant 0 : i32
    %c0_i32_0 = arith.constant 0 : i32
    %c0_i32_1 = arith.constant 0 : i32
    return %c0_i32, %c0_i32_0 : i32, i32
  }
  func.func @transform_12(%arg0: i32) -> (i32, i32) {
    %c0_i32 = arith.constant 0 : i32
    %c0_i32_0 = arith.constant 0 : i32
    %c0_i32_1 = arith.constant 0 : i32
    return %c0_i32, %c0_i32_0 : i32, i32
  }
  func.func @transform_13(%arg0: i32) -> (i32, i32) {
    %c0_i32 = arith.constant 0 : i32
    %c0_i32_0 = arith.constant 0 : i32
    %c0_i32_1 = arith.constant 0 : i32
    return %c0_i32, %c0_i32_0 : i32, i32
  }
  func.func @transform_14(%arg0: i32) -> (i32, i32) {
    %c0_i32 = arith.constant 0 : i32
    %c0_i32_0 = arith.constant 0 : i32
    %c0_i32_1 = arith.constant 0 : i32
    return %c0_i32, %c0_i32_0 : i32, i32
  }
  func.func @transform_15(%arg0: i32) -> (i32, i32) {
    %c0_i32 = arith.constant 0 : i32
    %c0_i32_0 = arith.constant 0 : i32
    %c0_i32_1 = arith.constant 0 : i32
    return %c0_i32, %c0_i32_0 : i32, i32
  }
  func.func @transform_16(%arg0: i32) -> (i32, i32) {
    %c0_i32 = arith.constant 0 : i32
    %c0_i32_0 = arith.constant 0 : i32
    %c0_i32_1 = arith.constant 0 : i32
    return %c0_i32, %c0_i32_0 : i32, i32
  }
  func.func @transform_17(%arg0: i32) -> (i32, i32) {
    %c0_i32 = arith.constant 0 : i32
    %c0_i32_0 = arith.constant 0 : i32
    %c0_i32_1 = arith.constant 0 : i32
    return %c0_i32, %c0_i32_0 : i32, i32
  }
  func.func @transform_18(%arg0: i32) -> (i32, i32, i32) {
    %c0_i32 = arith.constant 0 : i32
    %c0_i32_0 = arith.constant 0 : i32
    %c0_i32_1 = arith.constant 0 : i32
    return %arg0, %c0_i32, %c0_i32_0 : i32, i32, i32
  }
}

module attributes {stable_mosaic.version = 11 : i64} {
  func.func @_encoder_layer_kernel(%arg0: i32, %arg1: memref<2x1x8x32xf32, #tpu.memory_space<vmem>>, %arg2: memref<8x32xf32, #tpu.memory_space<vmem>>, %arg3: memref<1x32x96xbf16, #tpu.memory_space<vmem>>, %arg4: memref<1x1x96xf32, #tpu.memory_space<vmem>>, %arg5: memref<1x32x32xbf16, #tpu.memory_space<vmem>>, %arg6: memref<1x1x32xf32, #tpu.memory_space<vmem>>, %arg7: memref<1x1x32xf32, #tpu.memory_space<vmem>>, %arg8: memref<1x1x32xf32, #tpu.memory_space<vmem>>, %arg9: memref<1x32x2048xbf16, #tpu.memory_space<vmem>>, %arg10: memref<1x1x2048xf32, #tpu.memory_space<vmem>>, %arg11: memref<1x2048x32xbf16, #tpu.memory_space<vmem>>, %arg12: memref<1x1x32xf32, #tpu.memory_space<vmem>>, %arg13: memref<1x1x32xf32, #tpu.memory_space<vmem>>, %arg14: memref<1x1x32xf32, #tpu.memory_space<vmem>>, %arg15: memref<2x1x8x32xf32, #tpu.memory_space<vmem>>) attributes {dimension_semantics = [#tpu.dimension_semantics<parallel>], iteration_bounds = array<i64: 2>, scalar_prefetch = 0 : i64, scratch_operands = 0 : i64, tpu.core_type = #tpu.core_type<tc>, window_params = [{transform_indices = @transform_0, window_bounds = array<i64: 2, 1, 8, 32>}, {pipeline_mode = #tpu.pipeline_mode<synchronous>, transform_indices = @transform_1, window_bounds = array<i64: 8, 32>}, {transform_indices = @transform_2, window_bounds = array<i64: 1, 32, 96>}, {transform_indices = @transform_3, window_bounds = array<i64: 1, 1, 96>}, {transform_indices = @transform_4, window_bounds = array<i64: 1, 32, 32>}, {transform_indices = @transform_5, window_bounds = array<i64: 1, 1, 32>}, {transform_indices = @transform_6, window_bounds = array<i64: 1, 1, 32>}, {transform_indices = @transform_7, window_bounds = array<i64: 1, 1, 32>}, {transform_indices = @transform_8, window_bounds = array<i64: 1, 32, 2048>}, {transform_indices = @transform_9, window_bounds = array<i64: 1, 1, 2048>}, {transform_indices = @transform_10, window_bounds = array<i64: 1, 2048, 32>}, {transform_indices = @transform_11, window_bounds = array<i64: 1, 1, 32>}, {transform_indices = @transform_12, window_bounds = array<i64: 1, 1, 32>}, {transform_indices = @transform_13, window_bounds = array<i64: 1, 1, 32>}, {transform_indices = @transform_14, window_bounds = array<i64: 2, 1, 8, 32>}]} {
    %c0 = arith.constant 0 : index
    %c0_0 = arith.constant 0 : index
    %c0_1 = arith.constant 0 : index
    %c0_2 = arith.constant 0 : index
    %0 = vector.load %arg1[%c0, %c0_0, %c0_1, %c0_2] : memref<2x1x8x32xf32, #tpu.memory_space<vmem>>, vector<2x1x8x32xf32>
    %1 = vector.shape_cast %0 : vector<2x1x8x32xf32> to vector<2x8x32xf32>
    %c0_3 = arith.constant 0 : index
    %c0_4 = arith.constant 0 : index
    %2 = vector.load %arg2[%c0_3, %c0_4] : memref<8x32xf32, #tpu.memory_space<vmem>>, vector<8x32xf32>
    %3 = vector.shape_cast %2 : vector<8x32xf32> to vector<1x8x32xf32>
    %4 = vector.broadcast %3 : vector<1x8x32xf32> to vector<2x8x32xf32>
    %5 = arith.addf %1, %4 : vector<2x8x32xf32>
    %6 = vector.shape_cast %5 : vector<2x8x32xf32> to vector<16x32xf32>
    %c0_5 = arith.constant 0 : index
    %c0_6 = arith.constant 0 : index
    %c0_7 = arith.constant 0 : index
    %7 = vector.load %arg3[%c0_5, %c0_6, %c0_7] : memref<1x32x96xbf16, #tpu.memory_space<vmem>>, vector<1x32x96xbf16>
    %8 = vector.shape_cast %7 : vector<1x32x96xbf16> to vector<32x96xbf16>
    %9 = arith.truncf %6 : vector<16x32xf32> to vector<16x32xbf16>
    %cst = arith.constant dense<0.000000e+00> : vector<16x96xf32>
    %10 = tpu.matmul %9, %8, %cst {dimension_numbers = #tpu.dot_dimension_numbers<[1], [0], [0], [1], [0, 0, 1, 1], [], []>} : vector<16x32xbf16>, vector<32x96xbf16>, vector<16x96xf32> -> vector<16x96xf32>
    %c0_8 = arith.constant 0 : index
    %c0_9 = arith.constant 0 : index
    %c0_10 = arith.constant 0 : index
    %11 = vector.load %arg4[%c0_8, %c0_9, %c0_10] : memref<1x1x96xf32, #tpu.memory_space<vmem>>, vector<1x1x96xf32>
    %12 = vector.shape_cast %11 : vector<1x1x96xf32> to vector<1x96xf32>
    %13 = vector.broadcast %12 : vector<1x96xf32> to vector<16x96xf32>
    %14 = arith.addf %10, %13 : vector<16x96xf32>
    %15 = vector.extract_strided_slice %14 {offsets = [0, 0], sizes = [16, 32], strides = [1, 1]} : vector<16x96xf32> to vector<16x32xf32>
    %16 = vector.shape_cast %15 : vector<16x32xf32> to vector<2x8x32xf32>
    %17 = vector.extract_strided_slice %14 {offsets = [0, 32], sizes = [16, 32], strides = [1, 1]} : vector<16x96xf32> to vector<16x32xf32>
    %18 = vector.shape_cast %17 : vector<16x32xf32> to vector<2x8x32xf32>
    %19 = vector.extract_strided_slice %14 {offsets = [0, 64], sizes = [16, 32], strides = [1, 1]} : vector<16x96xf32> to vector<16x32xf32>
    %20 = vector.shape_cast %19 : vector<16x32xf32> to vector<2x8x32xf32>
    %21 = vector.extract_strided_slice %16 {offsets = [0, 0, 0], sizes = [2, 8, 8], strides = [1, 1, 1]} : vector<2x8x32xf32> to vector<2x8x8xf32>
    %22 = arith.truncf %21 : vector<2x8x8xf32> to vector<2x8x8xbf16>
    %23 = vector.extract_strided_slice %18 {offsets = [0, 0, 0], sizes = [2, 8, 8], strides = [1, 1, 1]} : vector<2x8x32xf32> to vector<2x8x8xf32>
    %24 = arith.truncf %23 : vector<2x8x8xf32> to vector<2x8x8xbf16>
    %25 = vector.extract_strided_slice %20 {offsets = [0, 0, 0], sizes = [2, 8, 8], strides = [1, 1, 1]} : vector<2x8x32xf32> to vector<2x8x8xf32>
    %26 = arith.truncf %25 : vector<2x8x8xf32> to vector<2x8x8xbf16>
    "tpu.trace_start"() <{level = 10 : i32, message = "bqd,bkd->bqk"}> : () -> ()
    %cst_11 = arith.constant dense<0.000000e+00> : vector<2x8x8xf32>
    %27 = tpu.matmul %22, %24, %cst_11 {dimension_numbers = #tpu.dot_dimension_numbers<[2], [2], [1], [1], [0, 0, 0, 1, 1, 1], [0], [0]>} : vector<2x8x8xbf16>, vector<2x8x8xbf16>, vector<2x8x8xf32> -> vector<2x8x8xf32>
    "tpu.trace_stop"() : () -> ()
    %cst_12 = arith.constant 0.353553385 : f32
    %28 = vector.broadcast %cst_12 : f32 to vector<2x8x8xf32>
    %29 = arith.mulf %27, %28 : vector<2x8x8xf32>
    %cst_13 = arith.constant dense<0xFF800000> : vector<2x8xf32>
    %30 = vector.multi_reduction <maximumf>, %29, %cst_13 [2] : vector<2x8x8xf32> to vector<2x8xf32>
    %31 = vector.shape_cast %30 : vector<2x8xf32> to vector<2x8x1xf32>
    %32 = vector.broadcast %31 : vector<2x8x1xf32> to vector<2x8x8xf32>
    %33 = arith.subf %29, %32 : vector<2x8x8xf32>
    %34 = math.exp %33 : vector<2x8x8xf32>
    %cst_14 = arith.constant dense<0.000000e+00> : vector<2x8xf32>
    %35 = vector.multi_reduction <add>, %34, %cst_14 [2] : vector<2x8x8xf32> to vector<2x8xf32>
    %36 = vector.shape_cast %35 : vector<2x8xf32> to vector<2x8x1xf32>
    %37 = tpu.reciprocal %36 {approx = true} : vector<2x8x1xf32> -> vector<2x8x1xf32>
    %38 = vector.broadcast %37 : vector<2x8x1xf32> to vector<2x8x8xf32>
    %39 = arith.mulf %34, %38 : vector<2x8x8xf32>
    %40 = arith.truncf %39 : vector<2x8x8xf32> to vector<2x8x8xbf16>
    "tpu.trace_start"() <{level = 10 : i32, message = "bqk,bkd->bqd"}> : () -> ()
    %cst_15 = arith.constant dense<0.000000e+00> : vector<2x8x8xf32>
    %41 = tpu.matmul %40, %26, %cst_15 {dimension_numbers = #tpu.dot_dimension_numbers<[2], [1], [1], [2], [0, 0, 0, 1, 1, 2], [0], [0]>} : vector<2x8x8xbf16>, vector<2x8x8xbf16>, vector<2x8x8xf32> -> vector<2x8x8xf32>
    "tpu.trace_stop"() : () -> ()
    %42 = vector.extract_strided_slice %16 {offsets = [0, 0, 8], sizes = [2, 8, 8], strides = [1, 1, 1]} : vector<2x8x32xf32> to vector<2x8x8xf32>
    %43 = arith.truncf %42 : vector<2x8x8xf32> to vector<2x8x8xbf16>
    %44 = vector.extract_strided_slice %18 {offsets = [0, 0, 8], sizes = [2, 8, 8], strides = [1, 1, 1]} : vector<2x8x32xf32> to vector<2x8x8xf32>
    %45 = arith.truncf %44 : vector<2x8x8xf32> to vector<2x8x8xbf16>
    %46 = vector.extract_strided_slice %20 {offsets = [0, 0, 8], sizes = [2, 8, 8], strides = [1, 1, 1]} : vector<2x8x32xf32> to vector<2x8x8xf32>
    %47 = arith.truncf %46 : vector<2x8x8xf32> to vector<2x8x8xbf16>
    "tpu.trace_start"() <{level = 10 : i32, message = "bqd,bkd->bqk"}> : () -> ()
    %cst_16 = arith.constant dense<0.000000e+00> : vector<2x8x8xf32>
    %48 = tpu.matmul %43, %45, %cst_16 {dimension_numbers = #tpu.dot_dimension_numbers<[2], [2], [1], [1], [0, 0, 0, 1, 1, 1], [0], [0]>} : vector<2x8x8xbf16>, vector<2x8x8xbf16>, vector<2x8x8xf32> -> vector<2x8x8xf32>
    "tpu.trace_stop"() : () -> ()
    %cst_17 = arith.constant 0.353553385 : f32
    %49 = vector.broadcast %cst_17 : f32 to vector<2x8x8xf32>
    %50 = arith.mulf %48, %49 : vector<2x8x8xf32>
    %cst_18 = arith.constant dense<0xFF800000> : vector<2x8xf32>
    %51 = vector.multi_reduction <maximumf>, %50, %cst_18 [2] : vector<2x8x8xf32> to vector<2x8xf32>
    %52 = vector.shape_cast %51 : vector<2x8xf32> to vector<2x8x1xf32>
    %53 = vector.broadcast %52 : vector<2x8x1xf32> to vector<2x8x8xf32>
    %54 = arith.subf %50, %53 : vector<2x8x8xf32>
    %55 = math.exp %54 : vector<2x8x8xf32>
    %cst_19 = arith.constant dense<0.000000e+00> : vector<2x8xf32>
    %56 = vector.multi_reduction <add>, %55, %cst_19 [2] : vector<2x8x8xf32> to vector<2x8xf32>
    %57 = vector.shape_cast %56 : vector<2x8xf32> to vector<2x8x1xf32>
    %58 = tpu.reciprocal %57 {approx = true} : vector<2x8x1xf32> -> vector<2x8x1xf32>
    %59 = vector.broadcast %58 : vector<2x8x1xf32> to vector<2x8x8xf32>
    %60 = arith.mulf %55, %59 : vector<2x8x8xf32>
    %61 = arith.truncf %60 : vector<2x8x8xf32> to vector<2x8x8xbf16>
    "tpu.trace_start"() <{level = 10 : i32, message = "bqk,bkd->bqd"}> : () -> ()
    %cst_20 = arith.constant dense<0.000000e+00> : vector<2x8x8xf32>
    %62 = tpu.matmul %61, %47, %cst_20 {dimension_numbers = #tpu.dot_dimension_numbers<[2], [1], [1], [2], [0, 0, 0, 1, 1, 2], [0], [0]>} : vector<2x8x8xbf16>, vector<2x8x8xbf16>, vector<2x8x8xf32> -> vector<2x8x8xf32>
    "tpu.trace_stop"() : () -> ()
    %63 = vector.extract_strided_slice %16 {offsets = [0, 0, 16], sizes = [2, 8, 8], strides = [1, 1, 1]} : vector<2x8x32xf32> to vector<2x8x8xf32>
    %64 = arith.truncf %63 : vector<2x8x8xf32> to vector<2x8x8xbf16>
    %65 = vector.extract_strided_slice %18 {offsets = [0, 0, 16], sizes = [2, 8, 8], strides = [1, 1, 1]} : vector<2x8x32xf32> to vector<2x8x8xf32>
    %66 = arith.truncf %65 : vector<2x8x8xf32> to vector<2x8x8xbf16>
    %67 = vector.extract_strided_slice %20 {offsets = [0, 0, 16], sizes = [2, 8, 8], strides = [1, 1, 1]} : vector<2x8x32xf32> to vector<2x8x8xf32>
    %68 = arith.truncf %67 : vector<2x8x8xf32> to vector<2x8x8xbf16>
    "tpu.trace_start"() <{level = 10 : i32, message = "bqd,bkd->bqk"}> : () -> ()
    %cst_21 = arith.constant dense<0.000000e+00> : vector<2x8x8xf32>
    %69 = tpu.matmul %64, %66, %cst_21 {dimension_numbers = #tpu.dot_dimension_numbers<[2], [2], [1], [1], [0, 0, 0, 1, 1, 1], [0], [0]>} : vector<2x8x8xbf16>, vector<2x8x8xbf16>, vector<2x8x8xf32> -> vector<2x8x8xf32>
    "tpu.trace_stop"() : () -> ()
    %cst_22 = arith.constant 0.353553385 : f32
    %70 = vector.broadcast %cst_22 : f32 to vector<2x8x8xf32>
    %71 = arith.mulf %69, %70 : vector<2x8x8xf32>
    %cst_23 = arith.constant dense<0xFF800000> : vector<2x8xf32>
    %72 = vector.multi_reduction <maximumf>, %71, %cst_23 [2] : vector<2x8x8xf32> to vector<2x8xf32>
    %73 = vector.shape_cast %72 : vector<2x8xf32> to vector<2x8x1xf32>
    %74 = vector.broadcast %73 : vector<2x8x1xf32> to vector<2x8x8xf32>
    %75 = arith.subf %71, %74 : vector<2x8x8xf32>
    %76 = math.exp %75 : vector<2x8x8xf32>
    %cst_24 = arith.constant dense<0.000000e+00> : vector<2x8xf32>
    %77 = vector.multi_reduction <add>, %76, %cst_24 [2] : vector<2x8x8xf32> to vector<2x8xf32>
    %78 = vector.shape_cast %77 : vector<2x8xf32> to vector<2x8x1xf32>
    %79 = tpu.reciprocal %78 {approx = true} : vector<2x8x1xf32> -> vector<2x8x1xf32>
    %80 = vector.broadcast %79 : vector<2x8x1xf32> to vector<2x8x8xf32>
    %81 = arith.mulf %76, %80 : vector<2x8x8xf32>
    %82 = arith.truncf %81 : vector<2x8x8xf32> to vector<2x8x8xbf16>
    "tpu.trace_start"() <{level = 10 : i32, message = "bqk,bkd->bqd"}> : () -> ()
    %cst_25 = arith.constant dense<0.000000e+00> : vector<2x8x8xf32>
    %83 = tpu.matmul %82, %68, %cst_25 {dimension_numbers = #tpu.dot_dimension_numbers<[2], [1], [1], [2], [0, 0, 0, 1, 1, 2], [0], [0]>} : vector<2x8x8xbf16>, vector<2x8x8xbf16>, vector<2x8x8xf32> -> vector<2x8x8xf32>
    "tpu.trace_stop"() : () -> ()
    %84 = vector.extract_strided_slice %16 {offsets = [0, 0, 24], sizes = [2, 8, 8], strides = [1, 1, 1]} : vector<2x8x32xf32> to vector<2x8x8xf32>
    %85 = arith.truncf %84 : vector<2x8x8xf32> to vector<2x8x8xbf16>
    %86 = vector.extract_strided_slice %18 {offsets = [0, 0, 24], sizes = [2, 8, 8], strides = [1, 1, 1]} : vector<2x8x32xf32> to vector<2x8x8xf32>
    %87 = arith.truncf %86 : vector<2x8x8xf32> to vector<2x8x8xbf16>
    %88 = vector.extract_strided_slice %20 {offsets = [0, 0, 24], sizes = [2, 8, 8], strides = [1, 1, 1]} : vector<2x8x32xf32> to vector<2x8x8xf32>
    %89 = arith.truncf %88 : vector<2x8x8xf32> to vector<2x8x8xbf16>
    "tpu.trace_start"() <{level = 10 : i32, message = "bqd,bkd->bqk"}> : () -> ()
    %cst_26 = arith.constant dense<0.000000e+00> : vector<2x8x8xf32>
    %90 = tpu.matmul %85, %87, %cst_26 {dimension_numbers = #tpu.dot_dimension_numbers<[2], [2], [1], [1], [0, 0, 0, 1, 1, 1], [0], [0]>} : vector<2x8x8xbf16>, vector<2x8x8xbf16>, vector<2x8x8xf32> -> vector<2x8x8xf32>
    "tpu.trace_stop"() : () -> ()
    %cst_27 = arith.constant 0.353553385 : f32
    %91 = vector.broadcast %cst_27 : f32 to vector<2x8x8xf32>
    %92 = arith.mulf %90, %91 : vector<2x8x8xf32>
    %cst_28 = arith.constant dense<0xFF800000> : vector<2x8xf32>
    %93 = vector.multi_reduction <maximumf>, %92, %cst_28 [2] : vector<2x8x8xf32> to vector<2x8xf32>
    %94 = vector.shape_cast %93 : vector<2x8xf32> to vector<2x8x1xf32>
    %95 = vector.broadcast %94 : vector<2x8x1xf32> to vector<2x8x8xf32>
    %96 = arith.subf %92, %95 : vector<2x8x8xf32>
    %97 = math.exp %96 : vector<2x8x8xf32>
    %cst_29 = arith.constant dense<0.000000e+00> : vector<2x8xf32>
    %98 = vector.multi_reduction <add>, %97, %cst_29 [2] : vector<2x8x8xf32> to vector<2x8xf32>
    %99 = vector.shape_cast %98 : vector<2x8xf32> to vector<2x8x1xf32>
    %100 = tpu.reciprocal %99 {approx = true} : vector<2x8x1xf32> -> vector<2x8x1xf32>
    %101 = vector.broadcast %100 : vector<2x8x1xf32> to vector<2x8x8xf32>
    %102 = arith.mulf %97, %101 : vector<2x8x8xf32>
    %103 = arith.truncf %102 : vector<2x8x8xf32> to vector<2x8x8xbf16>
    "tpu.trace_start"() <{level = 10 : i32, message = "bqk,bkd->bqd"}> : () -> ()
    %cst_30 = arith.constant dense<0.000000e+00> : vector<2x8x8xf32>
    %104 = tpu.matmul %103, %89, %cst_30 {dimension_numbers = #tpu.dot_dimension_numbers<[2], [1], [1], [2], [0, 0, 0, 1, 1, 2], [0], [0]>} : vector<2x8x8xbf16>, vector<2x8x8xbf16>, vector<2x8x8xf32> -> vector<2x8x8xf32>
    "tpu.trace_stop"() : () -> ()
    %105 = tpu.concatenate %41, %62, %83, %104 in 2 : vector<2x8x8xf32>, vector<2x8x8xf32>, vector<2x8x8xf32>, vector<2x8x8xf32> -> vector<2x8x32xf32>
    %106 = vector.shape_cast %105 : vector<2x8x32xf32> to vector<16x32xf32>
    %c0_31 = arith.constant 0 : index
    %c0_32 = arith.constant 0 : index
    %c0_33 = arith.constant 0 : index
    %107 = vector.load %arg5[%c0_31, %c0_32, %c0_33] : memref<1x32x32xbf16, #tpu.memory_space<vmem>>, vector<1x32x32xbf16>
    %108 = vector.shape_cast %107 : vector<1x32x32xbf16> to vector<32x32xbf16>
    %109 = arith.truncf %106 : vector<16x32xf32> to vector<16x32xbf16>
    %cst_34 = arith.constant dense<0.000000e+00> : vector<16x32xf32>
    %110 = tpu.matmul %109, %108, %cst_34 {dimension_numbers = #tpu.dot_dimension_numbers<[1], [0], [0], [1], [0, 0, 1, 1], [], []>} : vector<16x32xbf16>, vector<32x32xbf16>, vector<16x32xf32> -> vector<16x32xf32>
    %c0_35 = arith.constant 0 : index
    %c0_36 = arith.constant 0 : index
    %c0_37 = arith.constant 0 : index
    %111 = vector.load %arg6[%c0_35, %c0_36, %c0_37] : memref<1x1x32xf32, #tpu.memory_space<vmem>>, vector<1x1x32xf32>
    %112 = vector.shape_cast %111 : vector<1x1x32xf32> to vector<1x32xf32>
    %113 = vector.broadcast %112 : vector<1x32xf32> to vector<16x32xf32>
    %114 = arith.addf %110, %113 : vector<16x32xf32>
    %115 = arith.addf %6, %114 : vector<16x32xf32>
    %c0_38 = arith.constant 0 : index
    %c0_39 = arith.constant 0 : index
    %c0_40 = arith.constant 0 : index
    %116 = vector.load %arg7[%c0_38, %c0_39, %c0_40] : memref<1x1x32xf32, #tpu.memory_space<vmem>>, vector<1x1x32xf32>
    %117 = vector.shape_cast %116 : vector<1x1x32xf32> to vector<1x32xf32>
    %c0_41 = arith.constant 0 : index
    %c0_42 = arith.constant 0 : index
    %c0_43 = arith.constant 0 : index
    %118 = vector.load %arg8[%c0_41, %c0_42, %c0_43] : memref<1x1x32xf32, #tpu.memory_space<vmem>>, vector<1x1x32xf32>
    %119 = vector.shape_cast %118 : vector<1x1x32xf32> to vector<1x32xf32>
    %cst_44 = arith.constant dense<0.000000e+00> : vector<16xf32>
    %120 = vector.multi_reduction <add>, %115, %cst_44 [1] : vector<16x32xf32> to vector<16xf32>
    %121 = vector.shape_cast %120 : vector<16xf32> to vector<16x1xf32>
    %cst_45 = arith.constant 3.200000e+01 : f32
    %122 = vector.broadcast %cst_45 : f32 to vector<16x1xf32>
    %123 = arith.divf %121, %122 : vector<16x1xf32>
    %124 = vector.broadcast %123 : vector<16x1xf32> to vector<16x32xf32>
    %125 = arith.subf %115, %124 : vector<16x32xf32>
    %126 = arith.mulf %125, %125 : vector<16x32xf32>
    %cst_46 = arith.constant dense<0.000000e+00> : vector<16xf32>
    %127 = vector.multi_reduction <add>, %126, %cst_46 [1] : vector<16x32xf32> to vector<16xf32>
    %128 = vector.shape_cast %127 : vector<16xf32> to vector<16x1xf32>
    %cst_47 = arith.constant 3.200000e+01 : f32
    %129 = vector.broadcast %cst_47 : f32 to vector<16x1xf32>
    %130 = arith.divf %128, %129 : vector<16x1xf32>
    %131 = vector.broadcast %123 : vector<16x1xf32> to vector<16x32xf32>
    %132 = arith.subf %115, %131 : vector<16x32xf32>
    %cst_48 = arith.constant 9.99999974E-6 : f32
    %133 = vector.broadcast %cst_48 : f32 to vector<16x1xf32>
    %134 = arith.addf %130, %133 : vector<16x1xf32>
    %135 = math.rsqrt %134 : vector<16x1xf32>
    %136 = vector.broadcast %135 : vector<16x1xf32> to vector<16x32xf32>
    %137 = arith.mulf %132, %136 : vector<16x32xf32>
    %138 = vector.broadcast %117 : vector<1x32xf32> to vector<16x32xf32>
    %139 = arith.mulf %137, %138 : vector<16x32xf32>
    %140 = vector.broadcast %119 : vector<1x32xf32> to vector<16x32xf32>
    %141 = arith.addf %139, %140 : vector<16x32xf32>
    %c0_49 = arith.constant 0 : index
    %c0_50 = arith.constant 0 : index
    %c0_51 = arith.constant 0 : index
    %142 = vector.load %arg9[%c0_49, %c0_50, %c0_51] : memref<1x32x2048xbf16, #tpu.memory_space<vmem>>, vector<1x32x2048xbf16>
    %143 = vector.shape_cast %142 : vector<1x32x2048xbf16> to vector<32x2048xbf16>
    %144 = arith.truncf %141 : vector<16x32xf32> to vector<16x32xbf16>
    %cst_52 = arith.constant dense<0.000000e+00> : vector<16x2048xf32>
    %145 = tpu.matmul %144, %143, %cst_52 {dimension_numbers = #tpu.dot_dimension_numbers<[1], [0], [0], [1], [0, 0, 1, 1], [], []>} : vector<16x32xbf16>, vector<32x2048xbf16>, vector<16x2048xf32> -> vector<16x2048xf32>
    %c0_53 = arith.constant 0 : index
    %c0_54 = arith.constant 0 : index
    %c0_55 = arith.constant 0 : index
    %146 = vector.load %arg10[%c0_53, %c0_54, %c0_55] : memref<1x1x2048xf32, #tpu.memory_space<vmem>>, vector<1x1x2048xf32>
    %147 = vector.shape_cast %146 : vector<1x1x2048xf32> to vector<1x2048xf32>
    %148 = vector.broadcast %147 : vector<1x2048xf32> to vector<16x2048xf32>
    %149 = arith.addf %145, %148 : vector<16x2048xf32>
    %cst_56 = arith.constant 0.000000e+00 : f32
    %150 = vector.broadcast %cst_56 : f32 to vector<16x2048xf32>
    %151 = arith.maximumf %149, %150 : vector<16x2048xf32>
    %c0_57 = arith.constant 0 : index
    %c0_58 = arith.constant 0 : index
    %c0_59 = arith.constant 0 : index
    %152 = vector.load %arg11[%c0_57, %c0_58, %c0_59] : memref<1x2048x32xbf16, #tpu.memory_space<vmem>>, vector<1x2048x32xbf16>
    %153 = vector.shape_cast %152 : vector<1x2048x32xbf16> to vector<2048x32xbf16>
    %154 = arith.truncf %151 : vector<16x2048xf32> to vector<16x2048xbf16>
    %cst_60 = arith.constant dense<0.000000e+00> : vector<16x32xf32>
    %155 = tpu.matmul %154, %153, %cst_60 {dimension_numbers = #tpu.dot_dimension_numbers<[1], [0], [0], [1], [0, 0, 1, 1], [], []>} : vector<16x2048xbf16>, vector<2048x32xbf16>, vector<16x32xf32> -> vector<16x32xf32>
    %c0_61 = arith.constant 0 : index
    %c0_62 = arith.constant 0 : index
    %c0_63 = arith.constant 0 : index
    %156 = vector.load %arg12[%c0_61, %c0_62, %c0_63] : memref<1x1x32xf32, #tpu.memory_space<vmem>>, vector<1x1x32xf32>
    %157 = vector.shape_cast %156 : vector<1x1x32xf32> to vector<1x32xf32>
    %158 = vector.broadcast %157 : vector<1x32xf32> to vector<16x32xf32>
    %159 = arith.addf %155, %158 : vector<16x32xf32>
    %160 = arith.addf %141, %159 : vector<16x32xf32>
    %c0_64 = arith.constant 0 : index
    %c0_65 = arith.constant 0 : index
    %c0_66 = arith.constant 0 : index
    %161 = vector.load %arg13[%c0_64, %c0_65, %c0_66] : memref<1x1x32xf32, #tpu.memory_space<vmem>>, vector<1x1x32xf32>
    %162 = vector.shape_cast %161 : vector<1x1x32xf32> to vector<1x32xf32>
    %c0_67 = arith.constant 0 : index
    %c0_68 = arith.constant 0 : index
    %c0_69 = arith.constant 0 : index
    %163 = vector.load %arg14[%c0_67, %c0_68, %c0_69] : memref<1x1x32xf32, #tpu.memory_space<vmem>>, vector<1x1x32xf32>
    %164 = vector.shape_cast %163 : vector<1x1x32xf32> to vector<1x32xf32>
    %cst_70 = arith.constant dense<0.000000e+00> : vector<16xf32>
    %165 = vector.multi_reduction <add>, %160, %cst_70 [1] : vector<16x32xf32> to vector<16xf32>
    %166 = vector.shape_cast %165 : vector<16xf32> to vector<16x1xf32>
    %cst_71 = arith.constant 3.200000e+01 : f32
    %167 = vector.broadcast %cst_71 : f32 to vector<16x1xf32>
    %168 = arith.divf %166, %167 : vector<16x1xf32>
    %169 = vector.broadcast %168 : vector<16x1xf32> to vector<16x32xf32>
    %170 = arith.subf %160, %169 : vector<16x32xf32>
    %171 = arith.mulf %170, %170 : vector<16x32xf32>
    %cst_72 = arith.constant dense<0.000000e+00> : vector<16xf32>
    %172 = vector.multi_reduction <add>, %171, %cst_72 [1] : vector<16x32xf32> to vector<16xf32>
    %173 = vector.shape_cast %172 : vector<16xf32> to vector<16x1xf32>
    %cst_73 = arith.constant 3.200000e+01 : f32
    %174 = vector.broadcast %cst_73 : f32 to vector<16x1xf32>
    %175 = arith.divf %173, %174 : vector<16x1xf32>
    %176 = vector.broadcast %168 : vector<16x1xf32> to vector<16x32xf32>
    %177 = arith.subf %160, %176 : vector<16x32xf32>
    %cst_74 = arith.constant 9.99999974E-6 : f32
    %178 = vector.broadcast %cst_74 : f32 to vector<16x1xf32>
    %179 = arith.addf %175, %178 : vector<16x1xf32>
    %180 = math.rsqrt %179 : vector<16x1xf32>
    %181 = vector.broadcast %180 : vector<16x1xf32> to vector<16x32xf32>
    %182 = arith.mulf %177, %181 : vector<16x32xf32>
    %183 = vector.broadcast %162 : vector<1x32xf32> to vector<16x32xf32>
    %184 = arith.mulf %182, %183 : vector<16x32xf32>
    %185 = vector.broadcast %164 : vector<1x32xf32> to vector<16x32xf32>
    %186 = arith.addf %184, %185 : vector<16x32xf32>
    %187 = math.tanh %186 : vector<16x32xf32>
    %188 = vector.shape_cast %187 : vector<16x32xf32> to vector<2x1x8x32xf32>
    %c0_75 = arith.constant 0 : index
    %c0_76 = arith.constant 0 : index
    %c0_77 = arith.constant 0 : index
    %c0_78 = arith.constant 0 : index
    %189 = vector.load %arg15[%c0_75, %c0_76, %c0_77, %c0_78] : memref<2x1x8x32xf32, #tpu.memory_space<vmem>>, vector<2x1x8x32xf32>
    tpu.vector_store %arg15[%c0_75, %c0_76, %c0_77, %c0_78], %188 {strides = array<i32>} : memref<2x1x8x32xf32, #tpu.memory_space<vmem>>, vector<2x1x8x32xf32>,
    return
  }
  func.func @transform_0(%arg0: i32) -> (i32, i32, i32, i32) {
    %c0_i32 = arith.constant 0 : i32
    %c0_i32_0 = arith.constant 0 : i32
    %c0_i32_1 = arith.constant 0 : i32
    %c0_i32_2 = arith.constant 0 : i32
    return %c0_i32, %arg0, %c0_i32_0, %c0_i32_1 : i32, i32, i32, i32
  }
  func.func @transform_1(%arg0: i32) -> (i32, i32) {
    %c0_i32 = arith.constant 0 : i32
    %c0_i32_0 = arith.constant 0 : i32
    %c0_i32_1 = arith.constant 0 : i32
    return %c0_i32, %c0_i32_0 : i32, i32
  }
  func.func @transform_2(%arg0: i32) -> (i32, i32, i32) {
    %c0_i32 = arith.constant 0 : i32
    %c0_i32_0 = arith.constant 0 : i32
    %c0_i32_1 = arith.constant 0 : i32
    return %arg0, %c0_i32, %c0_i32_0 : i32, i32, i32
  }
  func.func @transform_3(%arg0: i32) -> (i32, i32, i32) {
    %c0_i32 = arith.constant 0 : i32
    %c0_i32_0 = arith.constant 0 : i32
    %c0_i32_1 = arith.constant 0 : i32
    return %arg0, %c0_i32, %c0_i32_0 : i32, i32, i32
  }
  func.func @transform_4(%arg0: i32) -> (i32, i32, i32) {
    %c0_i32 = arith.constant 0 : i32
    %c0_i32_0 = arith.constant 0 : i32
    %c0_i32_1 = arith.constant 0 : i32
    return %arg0, %c0_i32, %c0_i32_0 : i32, i32, i32
  }
  func.func @transform_5(%arg0: i32) -> (i32, i32, i32) {
    %c0_i32 = arith.constant 0 : i32
    %c0_i32_0 = arith.constant 0 : i32
    %c0_i32_1 = arith.constant 0 : i32
    return %arg0, %c0_i32, %c0_i32_0 : i32, i32, i32
  }
  func.func @transform_6(%arg0: i32) -> (i32, i32, i32) {
    %c0_i32 = arith.constant 0 : i32
    %c0_i32_0 = arith.constant 0 : i32
    %c0_i32_1 = arith.constant 0 : i32
    return %arg0, %c0_i32, %c0_i32_0 : i32, i32, i32
  }
  func.func @transform_7(%arg0: i32) -> (i32, i32, i32) {
    %c0_i32 = arith.constant 0 : i32
    %c0_i32_0 = arith.constant 0 : i32
    %c0_i32_1 = arith.constant 0 : i32
    return %arg0, %c0_i32, %c0_i32_0 : i32, i32, i32
  }
  func.func @transform_8(%arg0: i32) -> (i32, i32, i32) {
    %c0_i32 = arith.constant 0 : i32
    %c0_i32_0 = arith.constant 0 : i32
    %c0_i32_1 = arith.constant 0 : i32
    return %arg0, %c0_i32, %c0_i32_0 : i32, i32, i32
  }
  func.func @transform_9(%arg0: i32) -> (i32, i32, i32) {
    %c0_i32 = arith.constant 0 : i32
    %c0_i32_0 = arith.constant 0 : i32
    %c0_i32_1 = arith.constant 0 : i32
    return %arg0, %c0_i32, %c0_i32_0 : i32, i32, i32
  }
  func.func @transform_10(%arg0: i32) -> (i32, i32, i32) {
    %c0_i32 = arith.constant 0 : i32
    %c0_i32_0 = arith.constant 0 : i32
    %c0_i32_1 = arith.constant 0 : i32
    return %arg0, %c0_i32, %c0_i32_0 : i32, i32, i32
  }
  func.func @transform_11(%arg0: i32) -> (i32, i32, i32) {
    %c0_i32 = arith.constant 0 : i32
    %c0_i32_0 = arith.constant 0 : i32
    %c0_i32_1 = arith.constant 0 : i32
    return %arg0, %c0_i32, %c0_i32_0 : i32, i32, i32
  }
  func.func @transform_12(%arg0: i32) -> (i32, i32, i32) {
    %c0_i32 = arith.constant 0 : i32
    %c0_i32_0 = arith.constant 0 : i32
    %c0_i32_1 = arith.constant 0 : i32
    return %arg0, %c0_i32, %c0_i32_0 : i32, i32, i32
  }
  func.func @transform_13(%arg0: i32) -> (i32, i32, i32) {
    %c0_i32 = arith.constant 0 : i32
    %c0_i32_0 = arith.constant 0 : i32
    %c0_i32_1 = arith.constant 0 : i32
    return %arg0, %c0_i32, %c0_i32_0 : i32, i32, i32
  }
  func.func @transform_14(%arg0: i32) -> (i32, i32, i32, i32) {
    %c0_i32 = arith.constant 0 : i32
    %c0_i32_0 = arith.constant 0 : i32
    %c0_i32_1 = arith.constant 0 : i32
    %c0_i32_2 = arith.constant 0 : i32
    return %c0_i32, %arg0, %c0_i32_0, %c0_i32_1 : i32, i32, i32, i32
  }
}

module attributes {stable_mosaic.version = 11 : i64} {
  func.func @_encoder_layer_kernel(%arg0: i32, %arg1: memref<2x1x8x32xf32, #tpu.memory_space<vmem>>, %arg2: memref<8x32xf32, #tpu.memory_space<vmem>>, %arg3: memref<1x32x96xbf16, #tpu.memory_space<vmem>>, %arg4: memref<1x1x96xf32, #tpu.memory_space<vmem>>, %arg5: memref<1x32x32xbf16, #tpu.memory_space<vmem>>, %arg6: memref<1x1x32xf32, #tpu.memory_space<vmem>>, %arg7: memref<1x1x32xf32, #tpu.memory_space<vmem>>, %arg8: memref<1x1x32xf32, #tpu.memory_space<vmem>>, %arg9: memref<1x32x2048xbf16, #tpu.memory_space<vmem>>, %arg10: memref<1x1x2048xf32, #tpu.memory_space<vmem>>, %arg11: memref<1x2048x32xbf16, #tpu.memory_space<vmem>>, %arg12: memref<1x1x32xf32, #tpu.memory_space<vmem>>, %arg13: memref<1x1x32xf32, #tpu.memory_space<vmem>>, %arg14: memref<1x1x32xf32, #tpu.memory_space<vmem>>, %arg15: memref<2x1x8x32xf32, #tpu.memory_space<vmem>>) attributes {dimension_semantics = [#tpu.dimension_semantics<parallel>], iteration_bounds = array<i64: 2>, scalar_prefetch = 0 : i64, scratch_operands = 0 : i64, tpu.core_type = #tpu.core_type<tc>, window_params = [{transform_indices = @transform_0, window_bounds = array<i64: 2, 1, 8, 32>}, {pipeline_mode = #tpu.pipeline_mode<synchronous>, transform_indices = @transform_1, window_bounds = array<i64: 8, 32>}, {transform_indices = @transform_2, window_bounds = array<i64: 1, 32, 96>}, {transform_indices = @transform_3, window_bounds = array<i64: 1, 1, 96>}, {transform_indices = @transform_4, window_bounds = array<i64: 1, 32, 32>}, {transform_indices = @transform_5, window_bounds = array<i64: 1, 1, 32>}, {transform_indices = @transform_6, window_bounds = array<i64: 1, 1, 32>}, {transform_indices = @transform_7, window_bounds = array<i64: 1, 1, 32>}, {transform_indices = @transform_8, window_bounds = array<i64: 1, 32, 2048>}, {transform_indices = @transform_9, window_bounds = array<i64: 1, 1, 2048>}, {transform_indices = @transform_10, window_bounds = array<i64: 1, 2048, 32>}, {transform_indices = @transform_11, window_bounds = array<i64: 1, 1, 32>}, {transform_indices = @transform_12, window_bounds = array<i64: 1, 1, 32>}, {transform_indices = @transform_13, window_bounds = array<i64: 1, 1, 32>}, {transform_indices = @transform_14, window_bounds = array<i64: 2, 1, 8, 32>}]} {
    %c0 = arith.constant 0 : index
    %c0_0 = arith.constant 0 : index
    %c0_1 = arith.constant 0 : index
    %c0_2 = arith.constant 0 : index
    %0 = vector.load %arg1[%c0, %c0_0, %c0_1, %c0_2] : memref<2x1x8x32xf32, #tpu.memory_space<vmem>>, vector<2x1x8x32xf32>
    %1 = vector.shape_cast %0 : vector<2x1x8x32xf32> to vector<2x8x32xf32>
    %2 = vector.shape_cast %1 : vector<2x8x32xf32> to vector<16x32xf32>
    %c0_3 = arith.constant 0 : index
    %c0_4 = arith.constant 0 : index
    %c0_5 = arith.constant 0 : index
    %3 = vector.load %arg3[%c0_3, %c0_4, %c0_5] : memref<1x32x96xbf16, #tpu.memory_space<vmem>>, vector<1x32x96xbf16>
    %4 = vector.shape_cast %3 : vector<1x32x96xbf16> to vector<32x96xbf16>
    %5 = arith.truncf %2 : vector<16x32xf32> to vector<16x32xbf16>
    %cst = arith.constant dense<0.000000e+00> : vector<16x96xf32>
    %6 = tpu.matmul %5, %4, %cst {dimension_numbers = #tpu.dot_dimension_numbers<[1], [0], [0], [1], [0, 0, 1, 1], [], []>} : vector<16x32xbf16>, vector<32x96xbf16>, vector<16x96xf32> -> vector<16x96xf32>
    %c0_6 = arith.constant 0 : index
    %c0_7 = arith.constant 0 : index
    %c0_8 = arith.constant 0 : index
    %7 = vector.load %arg4[%c0_6, %c0_7, %c0_8] : memref<1x1x96xf32, #tpu.memory_space<vmem>>, vector<1x1x96xf32>
    %8 = vector.shape_cast %7 : vector<1x1x96xf32> to vector<1x96xf32>
    %9 = vector.broadcast %8 : vector<1x96xf32> to vector<16x96xf32>
    %10 = arith.addf %6, %9 : vector<16x96xf32>
    %11 = vector.extract_strided_slice %10 {offsets = [0, 0], sizes = [16, 32], strides = [1, 1]} : vector<16x96xf32> to vector<16x32xf32>
    %12 = vector.shape_cast %11 : vector<16x32xf32> to vector<2x8x32xf32>
    %13 = vector.extract_strided_slice %10 {offsets = [0, 32], sizes = [16, 32], strides = [1, 1]} : vector<16x96xf32> to vector<16x32xf32>
    %14 = vector.shape_cast %13 : vector<16x32xf32> to vector<2x8x32xf32>
    %15 = vector.extract_strided_slice %10 {offsets = [0, 64], sizes = [16, 32], strides = [1, 1]} : vector<16x96xf32> to vector<16x32xf32>
    %16 = vector.shape_cast %15 : vector<16x32xf32> to vector<2x8x32xf32>
    %17 = vector.extract_strided_slice %12 {offsets = [0, 0, 0], sizes = [2, 8, 8], strides = [1, 1, 1]} : vector<2x8x32xf32> to vector<2x8x8xf32>
    %18 = arith.truncf %17 : vector<2x8x8xf32> to vector<2x8x8xbf16>
    %19 = vector.extract_strided_slice %14 {offsets = [0, 0, 0], sizes = [2, 8, 8], strides = [1, 1, 1]} : vector<2x8x32xf32> to vector<2x8x8xf32>
    %20 = arith.truncf %19 : vector<2x8x8xf32> to vector<2x8x8xbf16>
    %21 = vector.extract_strided_slice %16 {offsets = [0, 0, 0], sizes = [2, 8, 8], strides = [1, 1, 1]} : vector<2x8x32xf32> to vector<2x8x8xf32>
    %22 = arith.truncf %21 : vector<2x8x8xf32> to vector<2x8x8xbf16>
    "tpu.trace_start"() <{level = 10 : i32, message = "bqd,bkd->bqk"}> : () -> ()
    %cst_9 = arith.constant dense<0.000000e+00> : vector<2x8x8xf32>
    %23 = tpu.matmul %18, %20, %cst_9 {dimension_numbers = #tpu.dot_dimension_numbers<[2], [2], [1], [1], [0, 0, 0, 1, 1, 1], [0], [0]>} : vector<2x8x8xbf16>, vector<2x8x8xbf16>, vector<2x8x8xf32> -> vector<2x8x8xf32>
    "tpu.trace_stop"() : () -> ()
    %cst_10 = arith.constant 0.353553385 : f32
    %24 = vector.broadcast %cst_10 : f32 to vector<2x8x8xf32>
    %25 = arith.mulf %23, %24 : vector<2x8x8xf32>
    %cst_11 = arith.constant dense<0xFF800000> : vector<2x8xf32>
    %26 = vector.multi_reduction <maximumf>, %25, %cst_11 [2] : vector<2x8x8xf32> to vector<2x8xf32>
    %27 = vector.shape_cast %26 : vector<2x8xf32> to vector<2x8x1xf32>
    %28 = vector.broadcast %27 : vector<2x8x1xf32> to vector<2x8x8xf32>
    %29 = arith.subf %25, %28 : vector<2x8x8xf32>
    %30 = math.exp %29 : vector<2x8x8xf32>
    %cst_12 = arith.constant dense<0.000000e+00> : vector<2x8xf32>
    %31 = vector.multi_reduction <add>, %30, %cst_12 [2] : vector<2x8x8xf32> to vector<2x8xf32>
    %32 = vector.shape_cast %31 : vector<2x8xf32> to vector<2x8x1xf32>
    %33 = tpu.reciprocal %32 {approx = true} : vector<2x8x1xf32> -> vector<2x8x1xf32>
    %34 = vector.broadcast %33 : vector<2x8x1xf32> to vector<2x8x8xf32>
    %35 = arith.mulf %30, %34 : vector<2x8x8xf32>
    %36 = arith.truncf %35 : vector<2x8x8xf32> to vector<2x8x8xbf16>
    "tpu.trace_start"() <{level = 10 : i32, message = "bqk,bkd->bqd"}> : () -> ()
    %cst_13 = arith.constant dense<0.000000e+00> : vector<2x8x8xf32>
    %37 = tpu.matmul %36, %22, %cst_13 {dimension_numbers = #tpu.dot_dimension_numbers<[2], [1], [1], [2], [0, 0, 0, 1, 1, 2], [0], [0]>} : vector<2x8x8xbf16>, vector<2x8x8xbf16>, vector<2x8x8xf32> -> vector<2x8x8xf32>
    "tpu.trace_stop"() : () -> ()
    %38 = vector.extract_strided_slice %12 {offsets = [0, 0, 8], sizes = [2, 8, 8], strides = [1, 1, 1]} : vector<2x8x32xf32> to vector<2x8x8xf32>
    %39 = arith.truncf %38 : vector<2x8x8xf32> to vector<2x8x8xbf16>
    %40 = vector.extract_strided_slice %14 {offsets = [0, 0, 8], sizes = [2, 8, 8], strides = [1, 1, 1]} : vector<2x8x32xf32> to vector<2x8x8xf32>
    %41 = arith.truncf %40 : vector<2x8x8xf32> to vector<2x8x8xbf16>
    %42 = vector.extract_strided_slice %16 {offsets = [0, 0, 8], sizes = [2, 8, 8], strides = [1, 1, 1]} : vector<2x8x32xf32> to vector<2x8x8xf32>
    %43 = arith.truncf %42 : vector<2x8x8xf32> to vector<2x8x8xbf16>
    "tpu.trace_start"() <{level = 10 : i32, message = "bqd,bkd->bqk"}> : () -> ()
    %cst_14 = arith.constant dense<0.000000e+00> : vector<2x8x8xf32>
    %44 = tpu.matmul %39, %41, %cst_14 {dimension_numbers = #tpu.dot_dimension_numbers<[2], [2], [1], [1], [0, 0, 0, 1, 1, 1], [0], [0]>} : vector<2x8x8xbf16>, vector<2x8x8xbf16>, vector<2x8x8xf32> -> vector<2x8x8xf32>
    "tpu.trace_stop"() : () -> ()
    %cst_15 = arith.constant 0.353553385 : f32
    %45 = vector.broadcast %cst_15 : f32 to vector<2x8x8xf32>
    %46 = arith.mulf %44, %45 : vector<2x8x8xf32>
    %cst_16 = arith.constant dense<0xFF800000> : vector<2x8xf32>
    %47 = vector.multi_reduction <maximumf>, %46, %cst_16 [2] : vector<2x8x8xf32> to vector<2x8xf32>
    %48 = vector.shape_cast %47 : vector<2x8xf32> to vector<2x8x1xf32>
    %49 = vector.broadcast %48 : vector<2x8x1xf32> to vector<2x8x8xf32>
    %50 = arith.subf %46, %49 : vector<2x8x8xf32>
    %51 = math.exp %50 : vector<2x8x8xf32>
    %cst_17 = arith.constant dense<0.000000e+00> : vector<2x8xf32>
    %52 = vector.multi_reduction <add>, %51, %cst_17 [2] : vector<2x8x8xf32> to vector<2x8xf32>
    %53 = vector.shape_cast %52 : vector<2x8xf32> to vector<2x8x1xf32>
    %54 = tpu.reciprocal %53 {approx = true} : vector<2x8x1xf32> -> vector<2x8x1xf32>
    %55 = vector.broadcast %54 : vector<2x8x1xf32> to vector<2x8x8xf32>
    %56 = arith.mulf %51, %55 : vector<2x8x8xf32>
    %57 = arith.truncf %56 : vector<2x8x8xf32> to vector<2x8x8xbf16>
    "tpu.trace_start"() <{level = 10 : i32, message = "bqk,bkd->bqd"}> : () -> ()
    %cst_18 = arith.constant dense<0.000000e+00> : vector<2x8x8xf32>
    %58 = tpu.matmul %57, %43, %cst_18 {dimension_numbers = #tpu.dot_dimension_numbers<[2], [1], [1], [2], [0, 0, 0, 1, 1, 2], [0], [0]>} : vector<2x8x8xbf16>, vector<2x8x8xbf16>, vector<2x8x8xf32> -> vector<2x8x8xf32>
    "tpu.trace_stop"() : () -> ()
    %59 = vector.extract_strided_slice %12 {offsets = [0, 0, 16], sizes = [2, 8, 8], strides = [1, 1, 1]} : vector<2x8x32xf32> to vector<2x8x8xf32>
    %60 = arith.truncf %59 : vector<2x8x8xf32> to vector<2x8x8xbf16>
    %61 = vector.extract_strided_slice %14 {offsets = [0, 0, 16], sizes = [2, 8, 8], strides = [1, 1, 1]} : vector<2x8x32xf32> to vector<2x8x8xf32>
    %62 = arith.truncf %61 : vector<2x8x8xf32> to vector<2x8x8xbf16>
    %63 = vector.extract_strided_slice %16 {offsets = [0, 0, 16], sizes = [2, 8, 8], strides = [1, 1, 1]} : vector<2x8x32xf32> to vector<2x8x8xf32>
    %64 = arith.truncf %63 : vector<2x8x8xf32> to vector<2x8x8xbf16>
    "tpu.trace_start"() <{level = 10 : i32, message = "bqd,bkd->bqk"}> : () -> ()
    %cst_19 = arith.constant dense<0.000000e+00> : vector<2x8x8xf32>
    %65 = tpu.matmul %60, %62, %cst_19 {dimension_numbers = #tpu.dot_dimension_numbers<[2], [2], [1], [1], [0, 0, 0, 1, 1, 1], [0], [0]>} : vector<2x8x8xbf16>, vector<2x8x8xbf16>, vector<2x8x8xf32> -> vector<2x8x8xf32>
    "tpu.trace_stop"() : () -> ()
    %cst_20 = arith.constant 0.353553385 : f32
    %66 = vector.broadcast %cst_20 : f32 to vector<2x8x8xf32>
    %67 = arith.mulf %65, %66 : vector<2x8x8xf32>
    %cst_21 = arith.constant dense<0xFF800000> : vector<2x8xf32>
    %68 = vector.multi_reduction <maximumf>, %67, %cst_21 [2] : vector<2x8x8xf32> to vector<2x8xf32>
    %69 = vector.shape_cast %68 : vector<2x8xf32> to vector<2x8x1xf32>
    %70 = vector.broadcast %69 : vector<2x8x1xf32> to vector<2x8x8xf32>
    %71 = arith.subf %67, %70 : vector<2x8x8xf32>
    %72 = math.exp %71 : vector<2x8x8xf32>
    %cst_22 = arith.constant dense<0.000000e+00> : vector<2x8xf32>
    %73 = vector.multi_reduction <add>, %72, %cst_22 [2] : vector<2x8x8xf32> to vector<2x8xf32>
    %74 = vector.shape_cast %73 : vector<2x8xf32> to vector<2x8x1xf32>
    %75 = tpu.reciprocal %74 {approx = true} : vector<2x8x1xf32> -> vector<2x8x1xf32>
    %76 = vector.broadcast %75 : vector<2x8x1xf32> to vector<2x8x8xf32>
    %77 = arith.mulf %72, %76 : vector<2x8x8xf32>
    %78 = arith.truncf %77 : vector<2x8x8xf32> to vector<2x8x8xbf16>
    "tpu.trace_start"() <{level = 10 : i32, message = "bqk,bkd->bqd"}> : () -> ()
    %cst_23 = arith.constant dense<0.000000e+00> : vector<2x8x8xf32>
    %79 = tpu.matmul %78, %64, %cst_23 {dimension_numbers = #tpu.dot_dimension_numbers<[2], [1], [1], [2], [0, 0, 0, 1, 1, 2], [0], [0]>} : vector<2x8x8xbf16>, vector<2x8x8xbf16>, vector<2x8x8xf32> -> vector<2x8x8xf32>
    "tpu.trace_stop"() : () -> ()
    %80 = vector.extract_strided_slice %12 {offsets = [0, 0, 24], sizes = [2, 8, 8], strides = [1, 1, 1]} : vector<2x8x32xf32> to vector<2x8x8xf32>
    %81 = arith.truncf %80 : vector<2x8x8xf32> to vector<2x8x8xbf16>
    %82 = vector.extract_strided_slice %14 {offsets = [0, 0, 24], sizes = [2, 8, 8], strides = [1, 1, 1]} : vector<2x8x32xf32> to vector<2x8x8xf32>
    %83 = arith.truncf %82 : vector<2x8x8xf32> to vector<2x8x8xbf16>
    %84 = vector.extract_strided_slice %16 {offsets = [0, 0, 24], sizes = [2, 8, 8], strides = [1, 1, 1]} : vector<2x8x32xf32> to vector<2x8x8xf32>
    %85 = arith.truncf %84 : vector<2x8x8xf32> to vector<2x8x8xbf16>
    "tpu.trace_start"() <{level = 10 : i32, message = "bqd,bkd->bqk"}> : () -> ()
    %cst_24 = arith.constant dense<0.000000e+00> : vector<2x8x8xf32>
    %86 = tpu.matmul %81, %83, %cst_24 {dimension_numbers = #tpu.dot_dimension_numbers<[2], [2], [1], [1], [0, 0, 0, 1, 1, 1], [0], [0]>} : vector<2x8x8xbf16>, vector<2x8x8xbf16>, vector<2x8x8xf32> -> vector<2x8x8xf32>
    "tpu.trace_stop"() : () -> ()
    %cst_25 = arith.constant 0.353553385 : f32
    %87 = vector.broadcast %cst_25 : f32 to vector<2x8x8xf32>
    %88 = arith.mulf %86, %87 : vector<2x8x8xf32>
    %cst_26 = arith.constant dense<0xFF800000> : vector<2x8xf32>
    %89 = vector.multi_reduction <maximumf>, %88, %cst_26 [2] : vector<2x8x8xf32> to vector<2x8xf32>
    %90 = vector.shape_cast %89 : vector<2x8xf32> to vector<2x8x1xf32>
    %91 = vector.broadcast %90 : vector<2x8x1xf32> to vector<2x8x8xf32>
    %92 = arith.subf %88, %91 : vector<2x8x8xf32>
    %93 = math.exp %92 : vector<2x8x8xf32>
    %cst_27 = arith.constant dense<0.000000e+00> : vector<2x8xf32>
    %94 = vector.multi_reduction <add>, %93, %cst_27 [2] : vector<2x8x8xf32> to vector<2x8xf32>
    %95 = vector.shape_cast %94 : vector<2x8xf32> to vector<2x8x1xf32>
    %96 = tpu.reciprocal %95 {approx = true} : vector<2x8x1xf32> -> vector<2x8x1xf32>
    %97 = vector.broadcast %96 : vector<2x8x1xf32> to vector<2x8x8xf32>
    %98 = arith.mulf %93, %97 : vector<2x8x8xf32>
    %99 = arith.truncf %98 : vector<2x8x8xf32> to vector<2x8x8xbf16>
    "tpu.trace_start"() <{level = 10 : i32, message = "bqk,bkd->bqd"}> : () -> ()
    %cst_28 = arith.constant dense<0.000000e+00> : vector<2x8x8xf32>
    %100 = tpu.matmul %99, %85, %cst_28 {dimension_numbers = #tpu.dot_dimension_numbers<[2], [1], [1], [2], [0, 0, 0, 1, 1, 2], [0], [0]>} : vector<2x8x8xbf16>, vector<2x8x8xbf16>, vector<2x8x8xf32> -> vector<2x8x8xf32>
    "tpu.trace_stop"() : () -> ()
    %101 = tpu.concatenate %37, %58, %79, %100 in 2 : vector<2x8x8xf32>, vector<2x8x8xf32>, vector<2x8x8xf32>, vector<2x8x8xf32> -> vector<2x8x32xf32>
    %102 = vector.shape_cast %101 : vector<2x8x32xf32> to vector<16x32xf32>
    %c0_29 = arith.constant 0 : index
    %c0_30 = arith.constant 0 : index
    %c0_31 = arith.constant 0 : index
    %103 = vector.load %arg5[%c0_29, %c0_30, %c0_31] : memref<1x32x32xbf16, #tpu.memory_space<vmem>>, vector<1x32x32xbf16>
    %104 = vector.shape_cast %103 : vector<1x32x32xbf16> to vector<32x32xbf16>
    %105 = arith.truncf %102 : vector<16x32xf32> to vector<16x32xbf16>
    %cst_32 = arith.constant dense<0.000000e+00> : vector<16x32xf32>
    %106 = tpu.matmul %105, %104, %cst_32 {dimension_numbers = #tpu.dot_dimension_numbers<[1], [0], [0], [1], [0, 0, 1, 1], [], []>} : vector<16x32xbf16>, vector<32x32xbf16>, vector<16x32xf32> -> vector<16x32xf32>
    %c0_33 = arith.constant 0 : index
    %c0_34 = arith.constant 0 : index
    %c0_35 = arith.constant 0 : index
    %107 = vector.load %arg6[%c0_33, %c0_34, %c0_35] : memref<1x1x32xf32, #tpu.memory_space<vmem>>, vector<1x1x32xf32>
    %108 = vector.shape_cast %107 : vector<1x1x32xf32> to vector<1x32xf32>
    %109 = vector.broadcast %108 : vector<1x32xf32> to vector<16x32xf32>
    %110 = arith.addf %106, %109 : vector<16x32xf32>
    %111 = arith.addf %2, %110 : vector<16x32xf32>
    %c0_36 = arith.constant 0 : index
    %c0_37 = arith.constant 0 : index
    %c0_38 = arith.constant 0 : index
    %112 = vector.load %arg7[%c0_36, %c0_37, %c0_38] : memref<1x1x32xf32, #tpu.memory_space<vmem>>, vector<1x1x32xf32>
    %113 = vector.shape_cast %112 : vector<1x1x32xf32> to vector<1x32xf32>
    %c0_39 = arith.constant 0 : index
    %c0_40 = arith.constant 0 : index
    %c0_41 = arith.constant 0 : index
    %114 = vector.load %arg8[%c0_39, %c0_40, %c0_41] : memref<1x1x32xf32, #tpu.memory_space<vmem>>, vector<1x1x32xf32>
    %115 = vector.shape_cast %114 : vector<1x1x32xf32> to vector<1x32xf32>
    %cst_42 = arith.constant dense<0.000000e+00> : vector<16xf32>
    %116 = vector.multi_reduction <add>, %111, %cst_42 [1] : vector<16x32xf32> to vector<16xf32>
    %117 = vector.shape_cast %116 : vector<16xf32> to vector<16x1xf32>
    %cst_43 = arith.constant 3.200000e+01 : f32
    %118 = vector.broadcast %cst_43 : f32 to vector<16x1xf32>
    %119 = arith.divf %117, %118 : vector<16x1xf32>
    %120 = vector.broadcast %119 : vector<16x1xf32> to vector<16x32xf32>
    %121 = arith.subf %111, %120 : vector<16x32xf32>
    %122 = arith.mulf %121, %121 : vector<16x32xf32>
    %cst_44 = arith.constant dense<0.000000e+00> : vector<16xf32>
    %123 = vector.multi_reduction <add>, %122, %cst_44 [1] : vector<16x32xf32> to vector<16xf32>
    %124 = vector.shape_cast %123 : vector<16xf32> to vector<16x1xf32>
    %cst_45 = arith.constant 3.200000e+01 : f32
    %125 = vector.broadcast %cst_45 : f32 to vector<16x1xf32>
    %126 = arith.divf %124, %125 : vector<16x1xf32>
    %127 = vector.broadcast %119 : vector<16x1xf32> to vector<16x32xf32>
    %128 = arith.subf %111, %127 : vector<16x32xf32>
    %cst_46 = arith.constant 9.99999974E-6 : f32
    %129 = vector.broadcast %cst_46 : f32 to vector<16x1xf32>
    %130 = arith.addf %126, %129 : vector<16x1xf32>
    %131 = math.rsqrt %130 : vector<16x1xf32>
    %132 = vector.broadcast %131 : vector<16x1xf32> to vector<16x32xf32>
    %133 = arith.mulf %128, %132 : vector<16x32xf32>
    %134 = vector.broadcast %113 : vector<1x32xf32> to vector<16x32xf32>
    %135 = arith.mulf %133, %134 : vector<16x32xf32>
    %136 = vector.broadcast %115 : vector<1x32xf32> to vector<16x32xf32>
    %137 = arith.addf %135, %136 : vector<16x32xf32>
    %c0_47 = arith.constant 0 : index
    %c0_48 = arith.constant 0 : index
    %c0_49 = arith.constant 0 : index
    %138 = vector.load %arg9[%c0_47, %c0_48, %c0_49] : memref<1x32x2048xbf16, #tpu.memory_space<vmem>>, vector<1x32x2048xbf16>
    %139 = vector.shape_cast %138 : vector<1x32x2048xbf16> to vector<32x2048xbf16>
    %140 = arith.truncf %137 : vector<16x32xf32> to vector<16x32xbf16>
    %cst_50 = arith.constant dense<0.000000e+00> : vector<16x2048xf32>
    %141 = tpu.matmul %140, %139, %cst_50 {dimension_numbers = #tpu.dot_dimension_numbers<[1], [0], [0], [1], [0, 0, 1, 1], [], []>} : vector<16x32xbf16>, vector<32x2048xbf16>, vector<16x2048xf32> -> vector<16x2048xf32>
    %c0_51 = arith.constant 0 : index
    %c0_52 = arith.constant 0 : index
    %c0_53 = arith.constant 0 : index
    %142 = vector.load %arg10[%c0_51, %c0_52, %c0_53] : memref<1x1x2048xf32, #tpu.memory_space<vmem>>, vector<1x1x2048xf32>
    %143 = vector.shape_cast %142 : vector<1x1x2048xf32> to vector<1x2048xf32>
    %144 = vector.broadcast %143 : vector<1x2048xf32> to vector<16x2048xf32>
    %145 = arith.addf %141, %144 : vector<16x2048xf32>
    %cst_54 = arith.constant 0.000000e+00 : f32
    %146 = vector.broadcast %cst_54 : f32 to vector<16x2048xf32>
    %147 = arith.maximumf %145, %146 : vector<16x2048xf32>
    %c0_55 = arith.constant 0 : index
    %c0_56 = arith.constant 0 : index
    %c0_57 = arith.constant 0 : index
    %148 = vector.load %arg11[%c0_55, %c0_56, %c0_57] : memref<1x2048x32xbf16, #tpu.memory_space<vmem>>, vector<1x2048x32xbf16>
    %149 = vector.shape_cast %148 : vector<1x2048x32xbf16> to vector<2048x32xbf16>
    %150 = arith.truncf %147 : vector<16x2048xf32> to vector<16x2048xbf16>
    %cst_58 = arith.constant dense<0.000000e+00> : vector<16x32xf32>
    %151 = tpu.matmul %150, %149, %cst_58 {dimension_numbers = #tpu.dot_dimension_numbers<[1], [0], [0], [1], [0, 0, 1, 1], [], []>} : vector<16x2048xbf16>, vector<2048x32xbf16>, vector<16x32xf32> -> vector<16x32xf32>
    %c0_59 = arith.constant 0 : index
    %c0_60 = arith.constant 0 : index
    %c0_61 = arith.constant 0 : index
    %152 = vector.load %arg12[%c0_59, %c0_60, %c0_61] : memref<1x1x32xf32, #tpu.memory_space<vmem>>, vector<1x1x32xf32>
    %153 = vector.shape_cast %152 : vector<1x1x32xf32> to vector<1x32xf32>
    %154 = vector.broadcast %153 : vector<1x32xf32> to vector<16x32xf32>
    %155 = arith.addf %151, %154 : vector<16x32xf32>
    %156 = arith.addf %137, %155 : vector<16x32xf32>
    %c0_62 = arith.constant 0 : index
    %c0_63 = arith.constant 0 : index
    %c0_64 = arith.constant 0 : index
    %157 = vector.load %arg13[%c0_62, %c0_63, %c0_64] : memref<1x1x32xf32, #tpu.memory_space<vmem>>, vector<1x1x32xf32>
    %158 = vector.shape_cast %157 : vector<1x1x32xf32> to vector<1x32xf32>
    %c0_65 = arith.constant 0 : index
    %c0_66 = arith.constant 0 : index
    %c0_67 = arith.constant 0 : index
    %159 = vector.load %arg14[%c0_65, %c0_66, %c0_67] : memref<1x1x32xf32, #tpu.memory_space<vmem>>, vector<1x1x32xf32>
    %160 = vector.shape_cast %159 : vector<1x1x32xf32> to vector<1x32xf32>
    %cst_68 = arith.constant dense<0.000000e+00> : vector<16xf32>
    %161 = vector.multi_reduction <add>, %156, %cst_68 [1] : vector<16x32xf32> to vector<16xf32>
    %162 = vector.shape_cast %161 : vector<16xf32> to vector<16x1xf32>
    %cst_69 = arith.constant 3.200000e+01 : f32
    %163 = vector.broadcast %cst_69 : f32 to vector<16x1xf32>
    %164 = arith.divf %162, %163 : vector<16x1xf32>
    %165 = vector.broadcast %164 : vector<16x1xf32> to vector<16x32xf32>
    %166 = arith.subf %156, %165 : vector<16x32xf32>
    %167 = arith.mulf %166, %166 : vector<16x32xf32>
    %cst_70 = arith.constant dense<0.000000e+00> : vector<16xf32>
    %168 = vector.multi_reduction <add>, %167, %cst_70 [1] : vector<16x32xf32> to vector<16xf32>
    %169 = vector.shape_cast %168 : vector<16xf32> to vector<16x1xf32>
    %cst_71 = arith.constant 3.200000e+01 : f32
    %170 = vector.broadcast %cst_71 : f32 to vector<16x1xf32>
    %171 = arith.divf %169, %170 : vector<16x1xf32>
    %172 = vector.broadcast %164 : vector<16x1xf32> to vector<16x32xf32>
    %173 = arith.subf %156, %172 : vector<16x32xf32>
    %cst_72 = arith.constant 9.99999974E-6 : f32
    %174 = vector.broadcast %cst_72 : f32 to vector<16x1xf32>
    %175 = arith.addf %171, %174 : vector<16x1xf32>
    %176 = math.rsqrt %175 : vector<16x1xf32>
    %177 = vector.broadcast %176 : vector<16x1xf32> to vector<16x32xf32>
    %178 = arith.mulf %173, %177 : vector<16x32xf32>
    %179 = vector.broadcast %158 : vector<1x32xf32> to vector<16x32xf32>
    %180 = arith.mulf %178, %179 : vector<16x32xf32>
    %181 = vector.broadcast %160 : vector<1x32xf32> to vector<16x32xf32>
    %182 = arith.addf %180, %181 : vector<16x32xf32>
    %183 = vector.shape_cast %182 : vector<16x32xf32> to vector<2x1x8x32xf32>
    %c0_73 = arith.constant 0 : index
    %c0_74 = arith.constant 0 : index
    %c0_75 = arith.constant 0 : index
    %c0_76 = arith.constant 0 : index
    %184 = vector.load %arg15[%c0_73, %c0_74, %c0_75, %c0_76] : memref<2x1x8x32xf32, #tpu.memory_space<vmem>>, vector<2x1x8x32xf32>
    tpu.vector_store %arg15[%c0_73, %c0_74, %c0_75, %c0_76], %183 {strides = array<i32>} : memref<2x1x8x32xf32, #tpu.memory_space<vmem>>, vector<2x1x8x32xf32>,
    return
  }
  func.func @transform_0(%arg0: i32) -> (i32, i32, i32, i32) {
    %c0_i32 = arith.constant 0 : i32
    %c0_i32_0 = arith.constant 0 : i32
    %c0_i32_1 = arith.constant 0 : i32
    %c0_i32_2 = arith.constant 0 : i32
    return %c0_i32, %arg0, %c0_i32_0, %c0_i32_1 : i32, i32, i32, i32
  }
  func.func @transform_1(%arg0: i32) -> (i32, i32) {
    %c0_i32 = arith.constant 0 : i32
    %c0_i32_0 = arith.constant 0 : i32
    %c0_i32_1 = arith.constant 0 : i32
    return %c0_i32, %c0_i32_0 : i32, i32
  }
  func.func @transform_2(%arg0: i32) -> (i32, i32, i32) {
    %c0_i32 = arith.constant 0 : i32
    %c0_i32_0 = arith.constant 0 : i32
    %c0_i32_1 = arith.constant 0 : i32
    return %arg0, %c0_i32, %c0_i32_0 : i32, i32, i32
  }
  func.func @transform_3(%arg0: i32) -> (i32, i32, i32) {
    %c0_i32 = arith.constant 0 : i32
    %c0_i32_0 = arith.constant 0 : i32
    %c0_i32_1 = arith.constant 0 : i32
    return %arg0, %c0_i32, %c0_i32_0 : i32, i32, i32
  }
  func.func @transform_4(%arg0: i32) -> (i32, i32, i32) {
    %c0_i32 = arith.constant 0 : i32
    %c0_i32_0 = arith.constant 0 : i32
    %c0_i32_1 = arith.constant 0 : i32
    return %arg0, %c0_i32, %c0_i32_0 : i32, i32, i32
  }
  func.func @transform_5(%arg0: i32) -> (i32, i32, i32) {
    %c0_i32 = arith.constant 0 : i32
    %c0_i32_0 = arith.constant 0 : i32
    %c0_i32_1 = arith.constant 0 : i32
    return %arg0, %c0_i32, %c0_i32_0 : i32, i32, i32
  }
  func.func @transform_6(%arg0: i32) -> (i32, i32, i32) {
    %c0_i32 = arith.constant 0 : i32
    %c0_i32_0 = arith.constant 0 : i32
    %c0_i32_1 = arith.constant 0 : i32
    return %arg0, %c0_i32, %c0_i32_0 : i32, i32, i32
  }
  func.func @transform_7(%arg0: i32) -> (i32, i32, i32) {
    %c0_i32 = arith.constant 0 : i32
    %c0_i32_0 = arith.constant 0 : i32
    %c0_i32_1 = arith.constant 0 : i32
    return %arg0, %c0_i32, %c0_i32_0 : i32, i32, i32
  }
  func.func @transform_8(%arg0: i32) -> (i32, i32, i32) {
    %c0_i32 = arith.constant 0 : i32
    %c0_i32_0 = arith.constant 0 : i32
    %c0_i32_1 = arith.constant 0 : i32
    return %arg0, %c0_i32, %c0_i32_0 : i32, i32, i32
  }
  func.func @transform_9(%arg0: i32) -> (i32, i32, i32) {
    %c0_i32 = arith.constant 0 : i32
    %c0_i32_0 = arith.constant 0 : i32
    %c0_i32_1 = arith.constant 0 : i32
    return %arg0, %c0_i32, %c0_i32_0 : i32, i32, i32
  }
  func.func @transform_10(%arg0: i32) -> (i32, i32, i32) {
    %c0_i32 = arith.constant 0 : i32
    %c0_i32_0 = arith.constant 0 : i32
    %c0_i32_1 = arith.constant 0 : i32
    return %arg0, %c0_i32, %c0_i32_0 : i32, i32, i32
  }
  func.func @transform_11(%arg0: i32) -> (i32, i32, i32) {
    %c0_i32 = arith.constant 0 : i32
    %c0_i32_0 = arith.constant 0 : i32
    %c0_i32_1 = arith.constant 0 : i32
    return %arg0, %c0_i32, %c0_i32_0 : i32, i32, i32
  }
  func.func @transform_12(%arg0: i32) -> (i32, i32, i32) {
    %c0_i32 = arith.constant 0 : i32
    %c0_i32_0 = arith.constant 0 : i32
    %c0_i32_1 = arith.constant 0 : i32
    return %arg0, %c0_i32, %c0_i32_0 : i32, i32, i32
  }
  func.func @transform_13(%arg0: i32) -> (i32, i32, i32) {
    %c0_i32 = arith.constant 0 : i32
    %c0_i32_0 = arith.constant 0 : i32
    %c0_i32_1 = arith.constant 0 : i32
    return %arg0, %c0_i32, %c0_i32_0 : i32, i32, i32
  }
  func.func @transform_14(%arg0: i32) -> (i32, i32, i32, i32) {
    %c0_i32 = arith.constant 0 : i32
    %c0_i32_0 = arith.constant 0 : i32
    %c0_i32_1 = arith.constant 0 : i32
    %c0_i32_2 = arith.constant 0 : i32
    return %c0_i32, %arg0, %c0_i32_0, %c0_i32_1 : i32, i32, i32, i32
  }
}

module attributes {stable_mosaic.version = 11 : i64} {
  func.func @_fission_fusion_kernel(%arg0: i32, %arg1: memref<1x16x32xf32, #tpu.memory_space<vmem>>, %arg2: memref<16x32xf32, #tpu.memory_space<vmem>>, %arg3: memref<1x32xf32, #tpu.memory_space<vmem>>, %arg4: memref<1x32xf32, #tpu.memory_space<vmem>>, %arg5: memref<32x64xbf16, #tpu.memory_space<vmem>>, %arg6: memref<1x64xf32, #tpu.memory_space<vmem>>, %arg7: memref<32x32xbf16, #tpu.memory_space<vmem>>, %arg8: memref<1x32xf32, #tpu.memory_space<vmem>>, %arg9: memref<32x32xbf16, #tpu.memory_space<vmem>>, %arg10: memref<1x32xf32, #tpu.memory_space<vmem>>, %arg11: memref<32x32xbf16, #tpu.memory_space<vmem>>, %arg12: memref<1x32xf32, #tpu.memory_space<vmem>>, %arg13: memref<32x32xbf16, #tpu.memory_space<vmem>>, %arg14: memref<1x32xf32, #tpu.memory_space<vmem>>, %arg15: memref<32x32xbf16, #tpu.memory_space<vmem>>, %arg16: memref<1x32xf32, #tpu.memory_space<vmem>>, %arg17: memref<1x32xf32, #tpu.memory_space<vmem>>, %arg18: memref<1x32xf32, #tpu.memory_space<vmem>>, %arg19: memref<1x16x32xf32, #tpu.memory_space<vmem>>) attributes {dimension_semantics = [#tpu.dimension_semantics<parallel>], iteration_bounds = array<i64: 2>, scalar_prefetch = 0 : i64, scratch_operands = 0 : i64, tpu.core_type = #tpu.core_type<tc>, window_params = [{transform_indices = @transform_0, window_bounds = array<i64: 1, 16, 32>}, {pipeline_mode = #tpu.pipeline_mode<synchronous>, transform_indices = @transform_1, window_bounds = array<i64: 16, 32>}, {pipeline_mode = #tpu.pipeline_mode<synchronous>, transform_indices = @transform_2, window_bounds = array<i64: 1, 32>}, {pipeline_mode = #tpu.pipeline_mode<synchronous>, transform_indices = @transform_3, window_bounds = array<i64: 1, 32>}, {pipeline_mode = #tpu.pipeline_mode<synchronous>, transform_indices = @transform_4, window_bounds = array<i64: 32, 64>}, {pipeline_mode = #tpu.pipeline_mode<synchronous>, transform_indices = @transform_5, window_bounds = array<i64: 1, 64>}, {pipeline_mode = #tpu.pipeline_mode<synchronous>, transform_indices = @transform_6, window_bounds = array<i64: 32, 32>}, {pipeline_mode = #tpu.pipeline_mode<synchronous>, transform_indices = @transform_7, window_bounds = array<i64: 1, 32>}, {pipeline_mode = #tpu.pipeline_mode<synchronous>, transform_indices = @transform_8, window_bounds = array<i64: 32, 32>}, {pipeline_mode = #tpu.pipeline_mode<synchronous>, transform_indices = @transform_9, window_bounds = array<i64: 1, 32>}, {pipeline_mode = #tpu.pipeline_mode<synchronous>, transform_indices = @transform_10, window_bounds = array<i64: 32, 32>}, {pipeline_mode = #tpu.pipeline_mode<synchronous>, transform_indices = @transform_11, window_bounds = array<i64: 1, 32>}, {pipeline_mode = #tpu.pipeline_mode<synchronous>, transform_indices = @transform_12, window_bounds = array<i64: 32, 32>}, {pipeline_mode = #tpu.pipeline_mode<synchronous>, transform_indices = @transform_13, window_bounds = array<i64: 1, 32>}, {pipeline_mode = #tpu.pipeline_mode<synchronous>, transform_indices = @transform_14, window_bounds = array<i64: 32, 32>}, {pipeline_mode = #tpu.pipeline_mode<synchronous>, transform_indices = @transform_15, window_bounds = array<i64: 1, 32>}, {pipeline_mode = #tpu.pipeline_mode<synchronous>, transform_indices = @transform_16, window_bounds = array<i64: 1, 32>}, {pipeline_mode = #tpu.pipeline_mode<synchronous>, transform_indices = @transform_17, window_bounds = array<i64: 1, 32>}, {transform_indices = @transform_18, window_bounds = array<i64: 1, 16, 32>}]} {
    %c0 = arith.constant 0 : index
    %c0_0 = arith.constant 0 : index
    %c0_1 = arith.constant 0 : index
    %0 = vector.load %arg1[%c0, %c0_0, %c0_1] : memref<1x16x32xf32, #tpu.memory_space<vmem>>, vector<1x16x32xf32>
    %1 = vector.shape_cast %0 : vector<1x16x32xf32> to vector<16x32xf32>
    %c0_2 = arith.constant 0 : index
    %c0_3 = arith.constant 0 : index
    %2 = vector.load %arg2[%c0_2, %c0_3] : memref<16x32xf32, #tpu.memory_space<vmem>>, vector<16x32xf32>
    %c0_4 = arith.constant 0 : index
    %c0_5 = arith.constant 0 : index
    %3 = vector.load %arg3[%c0_4, %c0_5] : memref<1x32xf32, #tpu.memory_space<vmem>>, vector<1x32xf32>
    %c0_6 = arith.constant 0 : index
    %c0_7 = arith.constant 0 : index
    %4 = vector.load %arg4[%c0_6, %c0_7] : memref<1x32xf32, #tpu.memory_space<vmem>>, vector<1x32xf32>
    %cst = arith.constant dense<0.000000e+00> : vector<16xf32>
    %5 = vector.multi_reduction <add>, %1, %cst [1] : vector<16x32xf32> to vector<16xf32>
    %6 = vector.shape_cast %5 : vector<16xf32> to vector<16x1xf32>
    %cst_8 = arith.constant 3.200000e+01 : f32
    %7 = vector.broadcast %cst_8 : f32 to vector<16x1xf32>
    %8 = arith.divf %6, %7 : vector<16x1xf32>
    %9 = vector.broadcast %8 : vector<16x1xf32> to vector<16x32xf32>
    %10 = arith.subf %1, %9 : vector<16x32xf32>
    %11 = arith.mulf %10, %10 : vector<16x32xf32>
    %cst_9 = arith.constant dense<0.000000e+00> : vector<16xf32>
    %12 = vector.multi_reduction <add>, %11, %cst_9 [1] : vector<16x32xf32> to vector<16xf32>
    %13 = vector.shape_cast %12 : vector<16xf32> to vector<16x1xf32>
    %cst_10 = arith.constant 3.200000e+01 : f32
    %14 = vector.broadcast %cst_10 : f32 to vector<16x1xf32>
    %15 = arith.divf %13, %14 : vector<16x1xf32>
    %16 = vector.broadcast %8 : vector<16x1xf32> to vector<16x32xf32>
    %17 = arith.subf %1, %16 : vector<16x32xf32>
    %cst_11 = arith.constant 9.99999974E-6 : f32
    %18 = vector.broadcast %cst_11 : f32 to vector<16x1xf32>
    %19 = arith.addf %15, %18 : vector<16x1xf32>
    %20 = math.rsqrt %19 : vector<16x1xf32>
    %21 = vector.broadcast %20 : vector<16x1xf32> to vector<16x32xf32>
    %22 = arith.mulf %17, %21 : vector<16x32xf32>
    %23 = vector.broadcast %3 : vector<1x32xf32> to vector<16x32xf32>
    %24 = arith.mulf %22, %23 : vector<16x32xf32>
    %25 = vector.broadcast %4 : vector<1x32xf32> to vector<16x32xf32>
    %26 = arith.addf %24, %25 : vector<16x32xf32>
    %c0_12 = arith.constant 0 : index
    %c0_13 = arith.constant 0 : index
    %27 = vector.load %arg5[%c0_12, %c0_13] : memref<32x64xbf16, #tpu.memory_space<vmem>>, vector<32x64xbf16>
    %28 = arith.truncf %26 : vector<16x32xf32> to vector<16x32xbf16>
    %cst_14 = arith.constant dense<0.000000e+00> : vector<16x64xf32>
    %29 = tpu.matmul %28, %27, %cst_14 {dimension_numbers = #tpu.dot_dimension_numbers<[1], [0], [0], [1], [0, 0, 1, 1], [], []>} : vector<16x32xbf16>, vector<32x64xbf16>, vector<16x64xf32> -> vector<16x64xf32>
    %c0_15 = arith.constant 0 : index
    %c0_16 = arith.constant 0 : index
    %30 = vector.load %arg6[%c0_15, %c0_16] : memref<1x64xf32, #tpu.memory_space<vmem>>, vector<1x64xf32>
    %31 = vector.broadcast %30 : vector<1x64xf32> to vector<16x64xf32>
    %32 = arith.addf %29, %31 : vector<16x64xf32>
    %33 = vector.extract_strided_slice %32 {offsets = [0, 0], sizes = [16, 32], strides = [1, 1]} : vector<16x64xf32> to vector<16x32xf32>
    %c0_17 = arith.constant 0 : index
    %c0_18 = arith.constant 0 : index
    %34 = vector.load %arg7[%c0_17, %c0_18] : memref<32x32xbf16, #tpu.memory_space<vmem>>, vector<32x32xbf16>
    %35 = arith.truncf %33 : vector<16x32xf32> to vector<16x32xbf16>
    %cst_19 = arith.constant dense<0.000000e+00> : vector<16x32xf32>
    %36 = tpu.matmul %35, %34, %cst_19 {dimension_numbers = #tpu.dot_dimension_numbers<[1], [0], [0], [1], [0, 0, 1, 1], [], []>} : vector<16x32xbf16>, vector<32x32xbf16>, vector<16x32xf32> -> vector<16x32xf32>
    %c0_20 = arith.constant 0 : index
    %c0_21 = arith.constant 0 : index
    %37 = vector.load %arg8[%c0_20, %c0_21] : memref<1x32xf32, #tpu.memory_space<vmem>>, vector<1x32xf32>
    %38 = vector.broadcast %37 : vector<1x32xf32> to vector<16x32xf32>
    %39 = arith.addf %36, %38 : vector<16x32xf32>
    %40 = vector.extract_strided_slice %32 {offsets = [0, 32], sizes = [16, 32], strides = [1, 1]} : vector<16x64xf32> to vector<16x32xf32>
    %c0_22 = arith.constant 0 : index
    %c0_23 = arith.constant 0 : index
    %41 = vector.load %arg9[%c0_22, %c0_23] : memref<32x32xbf16, #tpu.memory_space<vmem>>, vector<32x32xbf16>
    %42 = arith.truncf %40 : vector<16x32xf32> to vector<16x32xbf16>
    %cst_24 = arith.constant dense<0.000000e+00> : vector<16x32xf32>
    %43 = tpu.matmul %42, %41, %cst_24 {dimension_numbers = #tpu.dot_dimension_numbers<[1], [0], [0], [1], [0, 0, 1, 1], [], []>} : vector<16x32xbf16>, vector<32x32xbf16>, vector<16x32xf32> -> vector<16x32xf32>
    %c0_25 = arith.constant 0 : index
    %c0_26 = arith.constant 0 : index
    %44 = vector.load %arg10[%c0_25, %c0_26] : memref<1x32xf32, #tpu.memory_space<vmem>>, vector<1x32xf32>
    %45 = vector.broadcast %44 : vector<1x32xf32> to vector<16x32xf32>
    %46 = arith.addf %43, %45 : vector<16x32xf32>
    %c0_27 = arith.constant 0 : index
    %c0_28 = arith.constant 0 : index
    %47 = vector.load %arg11[%c0_27, %c0_28] : memref<32x32xbf16, #tpu.memory_space<vmem>>, vector<32x32xbf16>
    %48 = arith.truncf %2 : vector<16x32xf32> to vector<16x32xbf16>
    %cst_29 = arith.constant dense<0.000000e+00> : vector<16x32xf32>
    %49 = tpu.matmul %48, %47, %cst_29 {dimension_numbers = #tpu.dot_dimension_numbers<[1], [0], [0], [1], [0, 0, 1, 1], [], []>} : vector<16x32xbf16>, vector<32x32xbf16>, vector<16x32xf32> -> vector<16x32xf32>
    %c0_30 = arith.constant 0 : index
    %c0_31 = arith.constant 0 : index
    %50 = vector.load %arg12[%c0_30, %c0_31] : memref<1x32xf32, #tpu.memory_space<vmem>>, vector<1x32xf32>
    %51 = vector.broadcast %50 : vector<1x32xf32> to vector<16x32xf32>
    %52 = arith.addf %49, %51 : vector<16x32xf32>
    %53 = vector.extract_strided_slice %52 {offsets = [0, 0], sizes = [16, 8], strides = [1, 1]} : vector<16x32xf32> to vector<16x8xf32>
    %54 = vector.extract_strided_slice %39 {offsets = [0, 0], sizes = [16, 8], strides = [1, 1]} : vector<16x32xf32> to vector<16x8xf32>
    %55 = vector.extract_strided_slice %46 {offsets = [0, 0], sizes = [16, 8], strides = [1, 1]} : vector<16x32xf32> to vector<16x8xf32>
    %56 = arith.truncf %53 : vector<16x8xf32> to vector<16x8xbf16>
    %57 = arith.truncf %54 : vector<16x8xf32> to vector<16x8xbf16>
    %cst_32 = arith.constant dense<0.000000e+00> : vector<16x16xf32>
    %58 = tpu.matmul %56, %57, %cst_32 {dimension_numbers = #tpu.dot_dimension_numbers<[1], [1], [0], [0], [0, 0, 1, 0], [], []>} : vector<16x8xbf16>, vector<16x8xbf16>, vector<16x16xf32> -> vector<16x16xf32>
    %cst_33 = arith.constant 0.353553385 : f32
    %59 = vector.broadcast %cst_33 : f32 to vector<16x16xf32>
    %60 = arith.mulf %58, %59 : vector<16x16xf32>
    %cst_34 = arith.constant dense<0xFF800000> : vector<16xf32>
    %61 = vector.multi_reduction <maximumf>, %60, %cst_34 [1] : vector<16x16xf32> to vector<16xf32>
    %62 = vector.shape_cast %61 : vector<16xf32> to vector<16x1xf32>
    %63 = vector.broadcast %62 : vector<16x1xf32> to vector<16x16xf32>
    %64 = arith.subf %60, %63 : vector<16x16xf32>
    %65 = math.exp %64 : vector<16x16xf32>
    %cst_35 = arith.constant dense<0.000000e+00> : vector<16xf32>
    %66 = vector.multi_reduction <add>, %65, %cst_35 [1] : vector<16x16xf32> to vector<16xf32>
    %67 = vector.shape_cast %66 : vector<16xf32> to vector<16x1xf32>
    %68 = tpu.reciprocal %67 {approx = true} : vector<16x1xf32> -> vector<16x1xf32>
    %69 = vector.broadcast %68 : vector<16x1xf32> to vector<16x16xf32>
    %70 = arith.mulf %65, %69 : vector<16x16xf32>
    %71 = arith.truncf %70 : vector<16x16xf32> to vector<16x16xbf16>
    %72 = arith.truncf %55 : vector<16x8xf32> to vector<16x8xbf16>
    %cst_36 = arith.constant dense<0.000000e+00> : vector<16x8xf32>
    %73 = tpu.matmul %71, %72, %cst_36 {dimension_numbers = #tpu.dot_dimension_numbers<[1], [0], [0], [1], [0, 0, 1, 1], [], []>} : vector<16x16xbf16>, vector<16x8xbf16>, vector<16x8xf32> -> vector<16x8xf32>
    %74 = vector.extract_strided_slice %52 {offsets = [0, 8], sizes = [16, 8], strides = [1, 1]} : vector<16x32xf32> to vector<16x8xf32>
    %75 = vector.extract_strided_slice %39 {offsets = [0, 8], sizes = [16, 8], strides = [1, 1]} : vector<16x32xf32> to vector<16x8xf32>
    %76 = vector.extract_strided_slice %46 {offsets = [0, 8], sizes = [16, 8], strides = [1, 1]} : vector<16x32xf32> to vector<16x8xf32>
    %77 = arith.truncf %74 : vector<16x8xf32> to vector<16x8xbf16>
    %78 = arith.truncf %75 : vector<16x8xf32> to vector<16x8xbf16>
    %cst_37 = arith.constant dense<0.000000e+00> : vector<16x16xf32>
    %79 = tpu.matmul %77, %78, %cst_37 {dimension_numbers = #tpu.dot_dimension_numbers<[1], [1], [0], [0], [0, 0, 1, 0], [], []>} : vector<16x8xbf16>, vector<16x8xbf16>, vector<16x16xf32> -> vector<16x16xf32>
    %cst_38 = arith.constant 0.353553385 : f32
    %80 = vector.broadcast %cst_38 : f32 to vector<16x16xf32>
    %81 = arith.mulf %79, %80 : vector<16x16xf32>
    %cst_39 = arith.constant dense<0xFF800000> : vector<16xf32>
    %82 = vector.multi_reduction <maximumf>, %81, %cst_39 [1] : vector<16x16xf32> to vector<16xf32>
    %83 = vector.shape_cast %82 : vector<16xf32> to vector<16x1xf32>
    %84 = vector.broadcast %83 : vector<16x1xf32> to vector<16x16xf32>
    %85 = arith.subf %81, %84 : vector<16x16xf32>
    %86 = math.exp %85 : vector<16x16xf32>
    %cst_40 = arith.constant dense<0.000000e+00> : vector<16xf32>
    %87 = vector.multi_reduction <add>, %86, %cst_40 [1] : vector<16x16xf32> to vector<16xf32>
    %88 = vector.shape_cast %87 : vector<16xf32> to vector<16x1xf32>
    %89 = tpu.reciprocal %88 {approx = true} : vector<16x1xf32> -> vector<16x1xf32>
    %90 = vector.broadcast %89 : vector<16x1xf32> to vector<16x16xf32>
    %91 = arith.mulf %86, %90 : vector<16x16xf32>
    %92 = arith.truncf %91 : vector<16x16xf32> to vector<16x16xbf16>
    %93 = arith.truncf %76 : vector<16x8xf32> to vector<16x8xbf16>
    %cst_41 = arith.constant dense<0.000000e+00> : vector<16x8xf32>
    %94 = tpu.matmul %92, %93, %cst_41 {dimension_numbers = #tpu.dot_dimension_numbers<[1], [0], [0], [1], [0, 0, 1, 1], [], []>} : vector<16x16xbf16>, vector<16x8xbf16>, vector<16x8xf32> -> vector<16x8xf32>
    %95 = vector.extract_strided_slice %52 {offsets = [0, 16], sizes = [16, 8], strides = [1, 1]} : vector<16x32xf32> to vector<16x8xf32>
    %96 = vector.extract_strided_slice %39 {offsets = [0, 16], sizes = [16, 8], strides = [1, 1]} : vector<16x32xf32> to vector<16x8xf32>
    %97 = vector.extract_strided_slice %46 {offsets = [0, 16], sizes = [16, 8], strides = [1, 1]} : vector<16x32xf32> to vector<16x8xf32>
    %98 = arith.truncf %95 : vector<16x8xf32> to vector<16x8xbf16>
    %99 = arith.truncf %96 : vector<16x8xf32> to vector<16x8xbf16>
    %cst_42 = arith.constant dense<0.000000e+00> : vector<16x16xf32>
    %100 = tpu.matmul %98, %99, %cst_42 {dimension_numbers = #tpu.dot_dimension_numbers<[1], [1], [0], [0], [0, 0, 1, 0], [], []>} : vector<16x8xbf16>, vector<16x8xbf16>, vector<16x16xf32> -> vector<16x16xf32>
    %cst_43 = arith.constant 0.353553385 : f32
    %101 = vector.broadcast %cst_43 : f32 to vector<16x16xf32>
    %102 = arith.mulf %100, %101 : vector<16x16xf32>
    %cst_44 = arith.constant dense<0xFF800000> : vector<16xf32>
    %103 = vector.multi_reduction <maximumf>, %102, %cst_44 [1] : vector<16x16xf32> to vector<16xf32>
    %104 = vector.shape_cast %103 : vector<16xf32> to vector<16x1xf32>
    %105 = vector.broadcast %104 : vector<16x1xf32> to vector<16x16xf32>
    %106 = arith.subf %102, %105 : vector<16x16xf32>
    %107 = math.exp %106 : vector<16x16xf32>
    %cst_45 = arith.constant dense<0.000000e+00> : vector<16xf32>
    %108 = vector.multi_reduction <add>, %107, %cst_45 [1] : vector<16x16xf32> to vector<16xf32>
    %109 = vector.shape_cast %108 : vector<16xf32> to vector<16x1xf32>
    %110 = tpu.reciprocal %109 {approx = true} : vector<16x1xf32> -> vector<16x1xf32>
    %111 = vector.broadcast %110 : vector<16x1xf32> to vector<16x16xf32>
    %112 = arith.mulf %107, %111 : vector<16x16xf32>
    %113 = arith.truncf %112 : vector<16x16xf32> to vector<16x16xbf16>
    %114 = arith.truncf %97 : vector<16x8xf32> to vector<16x8xbf16>
    %cst_46 = arith.constant dense<0.000000e+00> : vector<16x8xf32>
    %115 = tpu.matmul %113, %114, %cst_46 {dimension_numbers = #tpu.dot_dimension_numbers<[1], [0], [0], [1], [0, 0, 1, 1], [], []>} : vector<16x16xbf16>, vector<16x8xbf16>, vector<16x8xf32> -> vector<16x8xf32>
    %116 = vector.extract_strided_slice %52 {offsets = [0, 24], sizes = [16, 8], strides = [1, 1]} : vector<16x32xf32> to vector<16x8xf32>
    %117 = vector.extract_strided_slice %39 {offsets = [0, 24], sizes = [16, 8], strides = [1, 1]} : vector<16x32xf32> to vector<16x8xf32>
    %118 = vector.extract_strided_slice %46 {offsets = [0, 24], sizes = [16, 8], strides = [1, 1]} : vector<16x32xf32> to vector<16x8xf32>
    %119 = arith.truncf %116 : vector<16x8xf32> to vector<16x8xbf16>
    %120 = arith.truncf %117 : vector<16x8xf32> to vector<16x8xbf16>
    %cst_47 = arith.constant dense<0.000000e+00> : vector<16x16xf32>
    %121 = tpu.matmul %119, %120, %cst_47 {dimension_numbers = #tpu.dot_dimension_numbers<[1], [1], [0], [0], [0, 0, 1, 0], [], []>} : vector<16x8xbf16>, vector<16x8xbf16>, vector<16x16xf32> -> vector<16x16xf32>
    %cst_48 = arith.constant 0.353553385 : f32
    %122 = vector.broadcast %cst_48 : f32 to vector<16x16xf32>
    %123 = arith.mulf %121, %122 : vector<16x16xf32>
    %cst_49 = arith.constant dense<0xFF800000> : vector<16xf32>
    %124 = vector.multi_reduction <maximumf>, %123, %cst_49 [1] : vector<16x16xf32> to vector<16xf32>
    %125 = vector.shape_cast %124 : vector<16xf32> to vector<16x1xf32>
    %126 = vector.broadcast %125 : vector<16x1xf32> to vector<16x16xf32>
    %127 = arith.subf %123, %126 : vector<16x16xf32>
    %128 = math.exp %127 : vector<16x16xf32>
    %cst_50 = arith.constant dense<0.000000e+00> : vector<16xf32>
    %129 = vector.multi_reduction <add>, %128, %cst_50 [1] : vector<16x16xf32> to vector<16xf32>
    %130 = vector.shape_cast %129 : vector<16xf32> to vector<16x1xf32>
    %131 = tpu.reciprocal %130 {approx = true} : vector<16x1xf32> -> vector<16x1xf32>
    %132 = vector.broadcast %131 : vector<16x1xf32> to vector<16x16xf32>
    %133 = arith.mulf %128, %132 : vector<16x16xf32>
    %134 = arith.truncf %133 : vector<16x16xf32> to vector<16x16xbf16>
    %135 = arith.truncf %118 : vector<16x8xf32> to vector<16x8xbf16>
    %cst_51 = arith.constant dense<0.000000e+00> : vector<16x8xf32>
    %136 = tpu.matmul %134, %135, %cst_51 {dimension_numbers = #tpu.dot_dimension_numbers<[1], [0], [0], [1], [0, 0, 1, 1], [], []>} : vector<16x16xbf16>, vector<16x8xbf16>, vector<16x8xf32> -> vector<16x8xf32>
    %137 = tpu.concatenate %73, %94, %115, %136 in 1 : vector<16x8xf32>, vector<16x8xf32>, vector<16x8xf32>, vector<16x8xf32> -> vector<16x32xf32>
    %c0_52 = arith.constant 0 : index
    %c0_53 = arith.constant 0 : index
    %138 = vector.load %arg13[%c0_52, %c0_53] : memref<32x32xbf16, #tpu.memory_space<vmem>>, vector<32x32xbf16>
    %139 = arith.truncf %137 : vector<16x32xf32> to vector<16x32xbf16>
    %cst_54 = arith.constant dense<0.000000e+00> : vector<16x32xf32>
    %140 = tpu.matmul %139, %138, %cst_54 {dimension_numbers = #tpu.dot_dimension_numbers<[1], [0], [0], [1], [0, 0, 1, 1], [], []>} : vector<16x32xbf16>, vector<32x32xbf16>, vector<16x32xf32> -> vector<16x32xf32>
    %c0_55 = arith.constant 0 : index
    %c0_56 = arith.constant 0 : index
    %141 = vector.load %arg14[%c0_55, %c0_56] : memref<1x32xf32, #tpu.memory_space<vmem>>, vector<1x32xf32>
    %142 = vector.broadcast %141 : vector<1x32xf32> to vector<16x32xf32>
    %143 = arith.addf %140, %142 : vector<16x32xf32>
    %c0_57 = arith.constant 0 : index
    %c0_58 = arith.constant 0 : index
    %144 = vector.load %arg15[%c0_57, %c0_58] : memref<32x32xbf16, #tpu.memory_space<vmem>>, vector<32x32xbf16>
    %145 = arith.truncf %143 : vector<16x32xf32> to vector<16x32xbf16>
    %cst_59 = arith.constant dense<0.000000e+00> : vector<16x32xf32>
    %146 = tpu.matmul %145, %144, %cst_59 {dimension_numbers = #tpu.dot_dimension_numbers<[1], [0], [0], [1], [0, 0, 1, 1], [], []>} : vector<16x32xbf16>, vector<32x32xbf16>, vector<16x32xf32> -> vector<16x32xf32>
    %c0_60 = arith.constant 0 : index
    %c0_61 = arith.constant 0 : index
    %147 = vector.load %arg16[%c0_60, %c0_61] : memref<1x32xf32, #tpu.memory_space<vmem>>, vector<1x32xf32>
    %148 = vector.broadcast %147 : vector<1x32xf32> to vector<16x32xf32>
    %149 = arith.addf %146, %148 : vector<16x32xf32>
    %150 = arith.addf %149, %2 : vector<16x32xf32>
    %c0_62 = arith.constant 0 : index
    %c0_63 = arith.constant 0 : index
    %151 = vector.load %arg17[%c0_62, %c0_63] : memref<1x32xf32, #tpu.memory_space<vmem>>, vector<1x32xf32>
    %c0_64 = arith.constant 0 : index
    %c0_65 = arith.constant 0 : index
    %152 = vector.load %arg18[%c0_64, %c0_65] : memref<1x32xf32, #tpu.memory_space<vmem>>, vector<1x32xf32>
    %cst_66 = arith.constant dense<0.000000e+00> : vector<16xf32>
    %153 = vector.multi_reduction <add>, %150, %cst_66 [1] : vector<16x32xf32> to vector<16xf32>
    %154 = vector.shape_cast %153 : vector<16xf32> to vector<16x1xf32>
    %cst_67 = arith.constant 3.200000e+01 : f32
    %155 = vector.broadcast %cst_67 : f32 to vector<16x1xf32>
    %156 = arith.divf %154, %155 : vector<16x1xf32>
    %157 = vector.broadcast %156 : vector<16x1xf32> to vector<16x32xf32>
    %158 = arith.subf %150, %157 : vector<16x32xf32>
    %159 = arith.mulf %158, %158 : vector<16x32xf32>
    %cst_68 = arith.constant dense<0.000000e+00> : vector<16xf32>
    %160 = vector.multi_reduction <add>, %159, %cst_68 [1] : vector<16x32xf32> to vector<16xf32>
    %161 = vector.shape_cast %160 : vector<16xf32> to vector<16x1xf32>
    %cst_69 = arith.constant 3.200000e+01 : f32
    %162 = vector.broadcast %cst_69 : f32 to vector<16x1xf32>
    %163 = arith.divf %161, %162 : vector<16x1xf32>
    %164 = vector.broadcast %156 : vector<16x1xf32> to vector<16x32xf32>
    %165 = arith.subf %150, %164 : vector<16x32xf32>
    %cst_70 = arith.constant 9.99999974E-6 : f32
    %166 = vector.broadcast %cst_70 : f32 to vector<16x1xf32>
    %167 = arith.addf %163, %166 : vector<16x1xf32>
    %168 = math.rsqrt %167 : vector<16x1xf32>
    %169 = vector.broadcast %168 : vector<16x1xf32> to vector<16x32xf32>
    %170 = arith.mulf %165, %169 : vector<16x32xf32>
    %171 = vector.broadcast %151 : vector<1x32xf32> to vector<16x32xf32>
    %172 = arith.mulf %170, %171 : vector<16x32xf32>
    %173 = vector.broadcast %152 : vector<1x32xf32> to vector<16x32xf32>
    %174 = arith.addf %172, %173 : vector<16x32xf32>
    %c0_71 = arith.constant 0 : index
    %c0_72 = arith.constant 0 : index
    %c0_73 = arith.constant 0 : index
    %175 = vector.load %arg19[%c0_71, %c0_72, %c0_73] : memref<1x16x32xf32, #tpu.memory_space<vmem>>, vector<1x16x32xf32>
    %176 = vector.shape_cast %175 : vector<1x16x32xf32> to vector<16x32xf32>
    %177 = vector.shape_cast %174 : vector<16x32xf32> to vector<1x16x32xf32>
    tpu.vector_store %arg19[%c0_71, %c0_72, %c0_73], %177 {strides = array<i32>} : memref<1x16x32xf32, #tpu.memory_space<vmem>>, vector<1x16x32xf32>,
    return
  }
  func.func @transform_0(%arg0: i32) -> (i32, i32, i32) {
    %c0_i32 = arith.constant 0 : i32
    %c0_i32_0 = arith.constant 0 : i32
    %c0_i32_1 = arith.constant 0 : i32
    return %arg0, %c0_i32, %c0_i32_0 : i32, i32, i32
  }
  func.func @transform_1(%arg0: i32) -> (i32, i32) {
    %c0_i32 = arith.constant 0 : i32
    %c0_i32_0 = arith.constant 0 : i32
    %c0_i32_1 = arith.constant 0 : i32
    return %c0_i32, %c0_i32_0 : i32, i32
  }
  func.func @transform_2(%arg0: i32) -> (i32, i32) {
    %c0_i32 = arith.constant 0 : i32
    %c0_i32_0 = arith.constant 0 : i32
    %c0_i32_1 = arith.constant 0 : i32
    return %c0_i32, %c0_i32_0 : i32, i32
  }
  func.func @transform_3(%arg0: i32) -> (i32, i32) {
    %c0_i32 = arith.constant 0 : i32
    %c0_i32_0 = arith.constant 0 : i32
    %c0_i32_1 = arith.constant 0 : i32
    return %c0_i32, %c0_i32_0 : i32, i32
  }
  func.func @transform_4(%arg0: i32) -> (i32, i32) {
    %c0_i32 = arith.constant 0 : i32
    %c0_i32_0 = arith.constant 0 : i32
    %c0_i32_1 = arith.constant 0 : i32
    return %c0_i32, %c0_i32_0 : i32, i32
  }
  func.func @transform_5(%arg0: i32) -> (i32, i32) {
    %c0_i32 = arith.constant 0 : i32
    %c0_i32_0 = arith.constant 0 : i32
    %c0_i32_1 = arith.constant 0 : i32
    return %c0_i32, %c0_i32_0 : i32, i32
  }
  func.func @transform_6(%arg0: i32) -> (i32, i32) {
    %c0_i32 = arith.constant 0 : i32
    %c0_i32_0 = arith.constant 0 : i32
    %c0_i32_1 = arith.constant 0 : i32
    return %c0_i32, %c0_i32_0 : i32, i32
  }
  func.func @transform_7(%arg0: i32) -> (i32, i32) {
    %c0_i32 = arith.constant 0 : i32
    %c0_i32_0 = arith.constant 0 : i32
    %c0_i32_1 = arith.constant 0 : i32
    return %c0_i32, %c0_i32_0 : i32, i32
  }
  func.func @transform_8(%arg0: i32) -> (i32, i32) {
    %c0_i32 = arith.constant 0 : i32
    %c0_i32_0 = arith.constant 0 : i32
    %c0_i32_1 = arith.constant 0 : i32
    return %c0_i32, %c0_i32_0 : i32, i32
  }
  func.func @transform_9(%arg0: i32) -> (i32, i32) {
    %c0_i32 = arith.constant 0 : i32
    %c0_i32_0 = arith.constant 0 : i32
    %c0_i32_1 = arith.constant 0 : i32
    return %c0_i32, %c0_i32_0 : i32, i32
  }
  func.func @transform_10(%arg0: i32) -> (i32, i32) {
    %c0_i32 = arith.constant 0 : i32
    %c0_i32_0 = arith.constant 0 : i32
    %c0_i32_1 = arith.constant 0 : i32
    return %c0_i32, %c0_i32_0 : i32, i32
  }
  func.func @transform_11(%arg0: i32) -> (i32, i32) {
    %c0_i32 = arith.constant 0 : i32
    %c0_i32_0 = arith.constant 0 : i32
    %c0_i32_1 = arith.constant 0 : i32
    return %c0_i32, %c0_i32_0 : i32, i32
  }
  func.func @transform_12(%arg0: i32) -> (i32, i32) {
    %c0_i32 = arith.constant 0 : i32
    %c0_i32_0 = arith.constant 0 : i32
    %c0_i32_1 = arith.constant 0 : i32
    return %c0_i32, %c0_i32_0 : i32, i32
  }
  func.func @transform_13(%arg0: i32) -> (i32, i32) {
    %c0_i32 = arith.constant 0 : i32
    %c0_i32_0 = arith.constant 0 : i32
    %c0_i32_1 = arith.constant 0 : i32
    return %c0_i32, %c0_i32_0 : i32, i32
  }
  func.func @transform_14(%arg0: i32) -> (i32, i32) {
    %c0_i32 = arith.constant 0 : i32
    %c0_i32_0 = arith.constant 0 : i32
    %c0_i32_1 = arith.constant 0 : i32
    return %c0_i32, %c0_i32_0 : i32, i32
  }
  func.func @transform_15(%arg0: i32) -> (i32, i32) {
    %c0_i32 = arith.constant 0 : i32
    %c0_i32_0 = arith.constant 0 : i32
    %c0_i32_1 = arith.constant 0 : i32
    return %c0_i32, %c0_i32_0 : i32, i32
  }
  func.func @transform_16(%arg0: i32) -> (i32, i32) {
    %c0_i32 = arith.constant 0 : i32
    %c0_i32_0 = arith.constant 0 : i32
    %c0_i32_1 = arith.constant 0 : i32
    return %c0_i32, %c0_i32_0 : i32, i32
  }
  func.func @transform_17(%arg0: i32) -> (i32, i32) {
    %c0_i32 = arith.constant 0 : i32
    %c0_i32_0 = arith.constant 0 : i32
    %c0_i32_1 = arith.constant 0 : i32
    return %c0_i32, %c0_i32_0 : i32, i32
  }
  func.func @transform_18(%arg0: i32) -> (i32, i32, i32) {
    %c0_i32 = arith.constant 0 : i32
    %c0_i32_0 = arith.constant 0 : i32
    %c0_i32_1 = arith.constant 0 : i32
    return %arg0, %c0_i32, %c0_i32_0 : i32, i32, i32
  }
}

</mosaic_0001>

<llo_original>
// kernel: hama_block_forward.4
$region0: #{hama_block_forward.4}
  #allocation0 [shape = 'u32[]', space=smem, size = 0x4, offset = 0x4, fixed_abs, tag = 'smem constant byte address 0x4 - core index']
  #allocation1 [shape = 'u32[72,128]{1,0:T(1,128)}', space=vmem, size = 0x9000, scoped, tag = 'internal scratch']
  %s0 = inlined_call_operand.vmem [shape: f32[2,16,32], index: 0, kind: input, shape index: {}]
  %s1 = inlined_call_operand.vmem [shape: f32[16,32], index: 1, kind: input, shape index: {}]
  %s2 = inlined_call_operand.vmem [shape: f32[1,32], index: 2, kind: input, shape index: {}]
  %s3 = inlined_call_operand.vmem [shape: f32[1,32], index: 3, kind: input, shape index: {}]
  %s4 = inlined_call_operand.vmem [shape: bf16[32,64], index: 4, kind: input, shape index: {}]
  %s5 = inlined_call_operand.vmem [shape: f32[1,64], index: 5, kind: input, shape index: {}]
  %s6 = inlined_call_operand.vmem [shape: bf16[32,32], index: 6, kind: input, shape index: {}]
  %s7 = inlined_call_operand.vmem [shape: f32[1,32], index: 7, kind: input, shape index: {}]
  %s8 = inlined_call_operand.vmem [shape: bf16[32,32], index: 8, kind: input, shape index: {}]
  %s9 = inlined_call_operand.vmem [shape: f32[1,32], index: 9, kind: input, shape index: {}]
  %s10 = inlined_call_operand.vmem [shape: bf16[32,32], index: 10, kind: input, shape index: {}]
  %s11 = inlined_call_operand.vmem [shape: f32[1,32], index: 11, kind: input, shape index: {}]
  %s12 = inlined_call_operand.vmem [shape: bf16[32,32], index: 12, kind: input, shape index: {}]
  %s13 = inlined_call_operand.vmem [shape: f32[1,32], index: 13, kind: input, shape index: {}]
  %s14 = inlined_call_operand.vmem [shape: bf16[32,32], index: 14, kind: input, shape index: {}]
  %s15 = inlined_call_operand.vmem [shape: f32[1,32], index: 15, kind: input, shape index: {}]
  %s16 = inlined_call_operand.vmem [shape: f32[1,32], index: 16, kind: input, shape index: {}]
  %s17 = inlined_call_operand.vmem [shape: f32[1,32], index: 17, kind: input, shape index: {}]
  %s18 = inlined_call_operand.vmem [shape: f32[2,16,32], index: 18, kind: output, shape index: {}]
  %s19 = sld [smem:[#allocation0]]
  $region105: #{hama_block_forward.4} parent=0
    _
  %s21 = ssub.s32 1, %s19
  %s22 = scalar_select 0, %s21, %s19
  loop: start=0, step=1, limit=4
  $region2: #{hama_block_forward.4} parent=0 // loop_pre_header
    _
  $region3: #{hama_block_forward.4} parent=0 // loop_header
    %s24 = sphi 0, %s28
    %p25 = scmp.ge.s32.totalorder %s24, 4
    %s34 = sphi 0, %s36
    %s37 = sphi 0, %s34
    %s38 = sphi 0, %s37
    %s54 = sphi 0, %s38
    %s58 = sphi 0, %s58
    %s60 = sphi 0, %s58
    %s61 = sphi 0, %s60
    %s75 = sphi 0, %s61
    %s79 = sphi 0, %s79
    %s81 = sphi 0, %s79
    %s82 = sphi 0, %s81
    %s96 = sphi 0, %s82
    %s100 = sphi 0, %s100
    %s102 = sphi 0, %s100
    %s103 = sphi 0, %s102
    %s117 = sphi 0, %s103
    %s121 = sphi 0, %s121
    %s123 = sphi 0, %s121
    %s124 = sphi 0, %s123
    %s138 = sphi 0, %s124
    %s142 = sphi 0, %s142
    %s144 = sphi 0, %s142
    %s145 = sphi 0, %s144
    %s159 = sphi 0, %s145
    %s163 = sphi 0, %s163
    %s165 = sphi 0, %s163
    %s166 = sphi 0, %s165
    %s180 = sphi 0, %s166
    %s184 = sphi 0, %s184
    %s186 = sphi 0, %s184
    %s187 = sphi 0, %s186
    %s201 = sphi 0, %s187
    %s205 = sphi 0, %s205
    %s207 = sphi 0, %s205
    %s208 = sphi 0, %s207
    %s222 = sphi 0, %s208
    %s226 = sphi 0, %s226
    %s228 = sphi 0, %s226
    %s229 = sphi 0, %s228
    %s243 = sphi 0, %s229
    %s247 = sphi 0, %s247
    %s249 = sphi 0, %s247
    %s250 = sphi 0, %s249
    %s264 = sphi 0, %s250
    %s268 = sphi 0, %s268
    %s270 = sphi 0, %s268
    %s271 = sphi 0, %s270
    %s285 = sphi 0, %s271
    %s289 = sphi 0, %s289
    %s291 = sphi 0, %s289
    %s292 = sphi 0, %s291
    %s306 = sphi 0, %s292
    %s310 = sphi 0, %s310
    %s312 = sphi 0, %s310
    %s313 = sphi 0, %s312
    %s327 = sphi 0, %s313
    %s331 = sphi 0, %s331
    %s333 = sphi 0, %s331
    %s334 = sphi 0, %s333
    %s348 = sphi 0, %s334
    %s352 = sphi 0, %s352
    %s354 = sphi 0, %s352
    %s355 = sphi 0, %s354
    %s369 = sphi 0, %s355
    %s373 = sphi 0, %s373
    %s375 = sphi 0, %s373
    %s376 = sphi 0, %s375
    %s390 = sphi 0, %s376
    %s394 = sphi 0, %s394
    %s396 = sphi 0, %s394
    %s397 = sphi 0, %s396
    %s411 = sphi 0, %s397
    %s417 = sphi 0, %s419
    %s420 = sphi 0, %s417
    %s421 = sphi 0, %s420
    %s437 = sphi 0, %s421
  $region4: #{hama_block_forward.4} parent=0 // loop_header_branch
    %27 = sbr.rel (%p25) target = $region8
  $region5: #{hama_block_forward.4} parent=0 // loop_body
    %s29 = ssub.s32 %s24, 1
    %s30 = ssub.s32 %s24, 2
    %s31 = sadd.s32 %s24, 1
    %s32 = ssub.s32 %s24, %s31
    %p33 = scmp.eq.s32.totalorder %s32, 0
    %s35 = sadd.s32 %s34, 1
    %s36 = scalar_select %p33, %s34, %s35
    %p39 = pneg %p33
    %p40 = scmp.eq.s32.totalorder %s24, 1
    %p41 = por %p39, %p40
    %p42 = scmp.ne.s32.totalorder %s34, %s37
    %p43 = scmp.eq.s32.totalorder %s24, 0
    %p44 = por %p42, %p43
    %p45 = scmp.ne.s32.totalorder %s34, %s37
    %p46 = scmp.eq.s32.totalorder %s29, 1
    %p47 = por %p45, %p46
    %p48 = scmp.ne.s32.totalorder %s37, %s38
    %p49 = scmp.eq.s32.totalorder %s29, 0
    %p50 = por %p48, %p49
    %p51 = scmp.ne.s32.totalorder %s37, %s38
    %p52 = scmp.eq.s32.totalorder %s30, 1
    %p53 = por %p51, %p52
    %p55 = scmp.ne.s32.totalorder %s38, %s54
    %p56 = scmp.eq.s32.totalorder %s30, 0
    %p57 = por %p55, %p56
    %s59 = sadd.s32 %s58, 1
    %p62 = scmp.eq.s32.totalorder %s24, 1
    %p63 = scmp.ne.s32.totalorder %s58, %s60
    %p64 = scmp.eq.s32.totalorder %s24, 0
    %p65 = por %p63, %p64
    %p66 = scmp.ne.s32.totalorder %s58, %s60
    %p67 = scmp.eq.s32.totalorder %s29, 1
    %p68 = por %p66, %p67
    %p69 = scmp.ne.s32.totalorder %s60, %s61
    %p70 = scmp.eq.s32.totalorder %s29, 0
    %p71 = por %p69, %p70
    %p72 = scmp.ne.s32.totalorder %s60, %s61
    %p73 = scmp.eq.s32.totalorder %s30, 1
    %p74 = por %p72, %p73
    %p76 = scmp.ne.s32.totalorder %s61, %s75
    %p77 = scmp.eq.s32.totalorder %s30, 0
    %p78 = por %p76, %p77
    %s80 = sadd.s32 %s79, 1
    %p83 = scmp.eq.s32.totalorder %s24, 1
    %p84 = scmp.ne.s32.totalorder %s79, %s81
    %p85 = scmp.eq.s32.totalorder %s24, 0
    %p86 = por %p84, %p85
    %p87 = scmp.ne.s32.totalorder %s79, %s81
    %p88 = scmp.eq.s32.totalorder %s29, 1
    %p89 = por %p87, %p88
    %p90 = scmp.ne.s32.totalorder %s81, %s82
    %p91 = scmp.eq.s32.totalorder %s29, 0
    %p92 = por %p90, %p91
    %p93 = scmp.ne.s32.totalorder %s81, %s82
    %p94 = scmp.eq.s32.totalorder %s30, 1
    %p95 = por %p93, %p94
    %p97 = scmp.ne.s32.totalorder %s82, %s96
    %p98 = scmp.eq.s32.totalorder %s30, 0
    %p99 = por %p97, %p98
    %s101 = sadd.s32 %s100, 1
    %p104 = scmp.eq.s32.totalorder %s24, 1
    %p105 = scmp.ne.s32.totalorder %s100, %s102
    %p106 = scmp.eq.s32.totalorder %s24, 0
    %p107 = por %p105, %p106
    %p108 = scmp.ne.s32.totalorder %s100, %s102
    %p109 = scmp.eq.s32.totalorder %s29, 1
    %p110 = por %p108, %p109
    %p111 = scmp.ne.s32.totalorder %s102, %s103
    %p112 = scmp.eq.s32.totalorder %s29, 0
    %p113 = por %p111, %p112
    %p114 = scmp.ne.s32.totalorder %s102, %s103
    %p115 = scmp.eq.s32.totalorder %s30, 1
    %p116 = por %p114, %p115
    %p118 = scmp.ne.s32.totalorder %s103, %s117
    %p119 = scmp.eq.s32.totalorder %s30, 0
    %p120 = por %p118, %p119
    %s122 = sadd.s32 %s121, 1
    %p125 = scmp.eq.s32.totalorder %s24, 1
    %p126 = scmp.ne.s32.totalorder %s121, %s123
    %p127 = scmp.eq.s32.totalorder %s24, 0
    %p128 = por %p126, %p127
    %p129 = scmp.ne.s32.totalorder %s121, %s123
    %p130 = scmp.eq.s32.totalorder %s29, 1
    %p131 = por %p129, %p130
    %p132 = scmp.ne.s32.totalorder %s123, %s124
    %p133 = scmp.eq.s32.totalorder %s29, 0
    %p134 = por %p132, %p133
    %p135 = scmp.ne.s32.totalorder %s123, %s124
    %p136 = scmp.eq.s32.totalorder %s30, 1
    %p137 = por %p135, %p136
    %p139 = scmp.ne.s32.totalorder %s124, %s138
    %p140 = scmp.eq.s32.totalorder %s30, 0
    %p141 = por %p139, %p140
    %s143 = sadd.s32 %s142, 1
    %p146 = scmp.eq.s32.totalorder %s24, 1
    %p147 = scmp.ne.s32.totalorder %s142, %s144
    %p148 = scmp.eq.s32.totalorder %s24, 0
    %p149 = por %p147, %p148
    %p150 = scmp.ne.s32.totalorder %s142, %s144
    %p151 = scmp.eq.s32.totalorder %s29, 1
    %p152 = por %p150, %p151
    %p153 = scmp.ne.s32.totalorder %s144, %s145
    %p154 = scmp.eq.s32.totalorder %s29, 0
    %p155 = por %p153, %p154
    %p156 = scmp.ne.s32.totalorder %s144, %s145
    %p157 = scmp.eq.s32.totalorder %s30, 1
    %p158 = por %p156, %p157
    %p160 = scmp.ne.s32.totalorder %s145, %s159
    %p161 = scmp.eq.s32.totalorder %s30, 0
    %p162 = por %p160, %p161
    %s164 = sadd.s32 %s163, 1
    %p167 = scmp.eq.s32.totalorder %s24, 1
    %p168 = scmp.ne.s32.totalorder %s163, %s165
    %p169 = scmp.eq.s32.totalorder %s24, 0
    %p170 = por %p168, %p169
    %p171 = scmp.ne.s32.totalorder %s163, %s165
    %p172 = scmp.eq.s32.totalorder %s29, 1
    %p173 = por %p171, %p172
    %p174 = scmp.ne.s32.totalorder %s165, %s166
    %p175 = scmp.eq.s32.totalorder %s29, 0
    %p176 = por %p174, %p175
    %p177 = scmp.ne.s32.totalorder %s165, %s166
    %p178 = scmp.eq.s32.totalorder %s30, 1
    %p179 = por %p177, %p178
    %p181 = scmp.ne.s32.totalorder %s166, %s180
    %p182 = scmp.eq.s32.totalorder %s30, 0
    %p183 = por %p181, %p182
    %s185 = sadd.s32 %s184, 1
    %p188 = scmp.eq.s32.totalorder %s24, 1
    %p189 = scmp.ne.s32.totalorder %s184, %s186
    %p190 = scmp.eq.s32.totalorder %s24, 0
    %p191 = por %p189, %p190
    %p192 = scmp.ne.s32.totalorder %s184, %s186
    %p193 = scmp.eq.s32.totalorder %s29, 1
    %p194 = por %p192, %p193
    %p195 = scmp.ne.s32.totalorder %s186, %s187
    %p196 = scmp.eq.s32.totalorder %s29, 0
    %p197 = por %p195, %p196
    %p198 = scmp.ne.s32.totalorder %s186, %s187
    %p199 = scmp.eq.s32.totalorder %s30, 1
    %p200 = por %p198, %p199
    %p202 = scmp.ne.s32.totalorder %s187, %s201
    %p203 = scmp.eq.s32.totalorder %s30, 0
    %p204 = por %p202, %p203
    %s206 = sadd.s32 %s205, 1
    %p209 = scmp.eq.s32.totalorder %s24, 1
    %p210 = scmp.ne.s32.totalorder %s205, %s207
    %p211 = scmp.eq.s32.totalorder %s24, 0
    %p212 = por %p210, %p211
    %p213 = scmp.ne.s32.totalorder %s205, %s207
    %p214 = scmp.eq.s32.totalorder %s29, 1
    %p215 = por %p213, %p214
    %p216 = scmp.ne.s32.totalorder %s207, %s208
    %p217 = scmp.eq.s32.totalorder %s29, 0
    %p218 = por %p216, %p217
    %p219 = scmp.ne.s32.totalorder %s207, %s208
    %p220 = scmp.eq.s32.totalorder %s30, 1
    %p221 = por %p219, %p220
    %p223 = scmp.ne.s32.totalorder %s208, %s222
    %p224 = scmp.eq.s32.totalorder %s30, 0
    %p225 = por %p223, %p224
    %s227 = sadd.s32 %s226, 1
    %p230 = scmp.eq.s32.totalorder %s24, 1
    %p231 = scmp.ne.s32.totalorder %s226, %s228
    %p232 = scmp.eq.s32.totalorder %s24, 0
    %p233 = por %p231, %p232
    %p234 = scmp.ne.s32.totalorder %s226, %s228
    %p235 = scmp.eq.s32.totalorder %s29, 1
    %p236 = por %p234, %p235
    %p237 = scmp.ne.s32.totalorder %s228, %s229
    %p238 = scmp.eq.s32.totalorder %s29, 0
    %p239 = por %p237, %p238
    %p240 = scmp.ne.s32.totalorder %s228, %s229
    %p241 = scmp.eq.s32.totalorder %s30, 1
    %p242 = por %p240, %p241
    %p244 = scmp.ne.s32.totalorder %s229, %s243
    %p245 = scmp.eq.s32.totalorder %s30, 0
    %p246 = por %p244, %p245
    %s248 = sadd.s32 %s247, 1
    %p251 = scmp.eq.s32.totalorder %s24, 1
    %p252 = scmp.ne.s32.totalorder %s247, %s249
    %p253 = scmp.eq.s32.totalorder %s24, 0
    %p254 = por %p252, %p253
    %p255 = scmp.ne.s32.totalorder %s247, %s249
    %p256 = scmp.eq.s32.totalorder %s29, 1
    %p257 = por %p255, %p256
    %p258 = scmp.ne.s32.totalorder %s249, %s250
    %p259 = scmp.eq.s32.totalorder %s29, 0
    %p260 = por %p258, %p259
    %p261 = scmp.ne.s32.totalorder %s249, %s250
    %p262 = scmp.eq.s32.totalorder %s30, 1
    %p263 = por %p261, %p262
    %p265 = scmp.ne.s32.totalorder %s250, %s264
    %p266 = scmp.eq.s32.totalorder %s30, 0
    %p267 = por %p265, %p266
    %s269 = sadd.s32 %s268, 1
    %p272 = scmp.eq.s32.totalorder %s24, 1
    %p273 = scmp.ne.s32.totalorder %s268, %s270
    %p274 = scmp.eq.s32.totalorder %s24, 0
    %p275 = por %p273, %p274
    %p276 = scmp.ne.s32.totalorder %s268, %s270
    %p277 = scmp.eq.s32.totalorder %s29, 1
    %p278 = por %p276, %p277
    %p279 = scmp.ne.s32.totalorder %s270, %s271
    %p280 = scmp.eq.s32.totalorder %s29, 0
    %p281 = por %p279, %p280
    %p282 = scmp.ne.s32.totalorder %s270, %s271
    %p283 = scmp.eq.s32.totalorder %s30, 1
    %p284 = por %p282, %p283
    %p286 = scmp.ne.s32.totalorder %s271, %s285
    %p287 = scmp.eq.s32.totalorder %s30, 0
    %p288 = por %p286, %p287
    %s290 = sadd.s32 %s289, 1
    %p293 = scmp.eq.s32.totalorder %s24, 1
    %p294 = scmp.ne.s32.totalorder %s289, %s291
    %p295 = scmp.eq.s32.totalorder %s24, 0
    %p296 = por %p294, %p295
    %p297 = scmp.ne.s32.totalorder %s289, %s291
    %p298 = scmp.eq.s32.totalorder %s29, 1
    %p299 = por %p297, %p298
    %p300 = scmp.ne.s32.totalorder %s291, %s292
    %p301 = scmp.eq.s32.totalorder %s29, 0
    %p302 = por %p300, %p301
    %p303 = scmp.ne.s32.totalorder %s291, %s292
    %p304 = scmp.eq.s32.totalorder %s30, 1
    %p305 = por %p303, %p304
    %p307 = scmp.ne.s32.totalorder %s292, %s306
    %p308 = scmp.eq.s32.totalorder %s30, 0
    %p309 = por %p307, %p308
    %s311 = sadd.s32 %s310, 1
    %p314 = scmp.eq.s32.totalorder %s24, 1
    %p315 = scmp.ne.s32.totalorder %s310, %s312
    %p316 = scmp.eq.s32.totalorder %s24, 0
    %p317 = por %p315, %p316
    %p318 = scmp.ne.s32.totalorder %s310, %s312
    %p319 = scmp.eq.s32.totalorder %s29, 1
    %p320 = por %p318, %p319
    %p321 = scmp.ne.s32.totalorder %s312, %s313
    %p322 = scmp.eq.s32.totalorder %s29, 0
    %p323 = por %p321, %p322
    %p324 = scmp.ne.s32.totalorder %s312, %s313
    %p325 = scmp.eq.s32.totalorder %s30, 1
    %p326 = por %p324, %p325
    %p328 = scmp.ne.s32.totalorder %s313, %s327
    %p329 = scmp.eq.s32.totalorder %s30, 0
    %p330 = por %p328, %p329
    %s332 = sadd.s32 %s331, 1
    %p335 = scmp.eq.s32.totalorder %s24, 1
    %p336 = scmp.ne.s32.totalorder %s331, %s333
    %p337 = scmp.eq.s32.totalorder %s24, 0
    %p338 = por %p336, %p337
    %p339 = scmp.ne.s32.totalorder %s331, %s333
    %p340 = scmp.eq.s32.totalorder %s29, 1
    %p341 = por %p339, %p340
    %p342 = scmp.ne.s32.totalorder %s333, %s334
    %p343 = scmp.eq.s32.totalorder %s29, 0
    %p344 = por %p342, %p343
    %p345 = scmp.ne.s32.totalorder %s333, %s334
    %p346 = scmp.eq.s32.totalorder %s30, 1
    %p347 = por %p345, %p346
    %p349 = scmp.ne.s32.totalorder %s334, %s348
    %p350 = scmp.eq.s32.totalorder %s30, 0
    %p351 = por %p349, %p350
    %s353 = sadd.s32 %s352, 1
    %p356 = scmp.eq.s32.totalorder %s24, 1
    %p357 = scmp.ne.s32.totalorder %s352, %s354
    %p358 = scmp.eq.s32.totalorder %s24, 0
    %p359 = por %p357, %p358
    %p360 = scmp.ne.s32.totalorder %s352, %s354
    %p361 = scmp.eq.s32.totalorder %s29, 1
    %p362 = por %p360, %p361
    %p363 = scmp.ne.s32.totalorder %s354, %s355
    %p364 = scmp.eq.s32.totalorder %s29, 0
    %p365 = por %p363, %p364
    %p366 = scmp.ne.s32.totalorder %s354, %s355
    %p367 = scmp.eq.s32.totalorder %s30, 1
    %p368 = por %p366, %p367
    %p370 = scmp.ne.s32.totalorder %s355, %s369
    %p371 = scmp.eq.s32.totalorder %s30, 0
    %p372 = por %p370, %p371
    %s374 = sadd.s32 %s373, 1
    %p377 = scmp.eq.s32.totalorder %s24, 1
    %p378 = scmp.ne.s32.totalorder %s373, %s375
    %p379 = scmp.eq.s32.totalorder %s24, 0
    %p380 = por %p378, %p379
    %p381 = scmp.ne.s32.totalorder %s373, %s375
    %p382 = scmp.eq.s32.totalorder %s29, 1
    %p383 = por %p381, %p382
    %p384 = scmp.ne.s32.totalorder %s375, %s376
    %p385 = scmp.eq.s32.totalorder %s29, 0
    %p386 = por %p384, %p385
    %p387 = scmp.ne.s32.totalorder %s375, %s376
    %p388 = scmp.eq.s32.totalorder %s30, 1
    %p389 = por %p387, %p388
    %p391 = scmp.ne.s32.totalorder %s376, %s390
    %p392 = scmp.eq.s32.totalorder %s30, 0
    %p393 = por %p391, %p392
    %s395 = sadd.s32 %s394, 1
    %p398 = scmp.eq.s32.totalorder %s24, 1
    %p399 = scmp.ne.s32.totalorder %s394, %s396
    %p400 = scmp.eq.s32.totalorder %s24, 0
    %p401 = por %p399, %p400
    %p402 = scmp.ne.s32.totalorder %s394, %s396
    %p403 = scmp.eq.s32.totalorder %s29, 1
    %p404 = por %p402, %p403
    %p405 = scmp.ne.s32.totalorder %s396, %s397
    %p406 = scmp.eq.s32.totalorder %s29, 0
    %p407 = por %p405, %p406
    %p408 = scmp.ne.s32.totalorder %s396, %s397
    %p409 = scmp.eq.s32.totalorder %s30, 1
    %p410 = por %p408, %p409
    %p412 = scmp.ne.s32.totalorder %s397, %s411
    %p413 = scmp.eq.s32.totalorder %s30, 0
    %p414 = por %p412, %p413
    %s415 = ssub.s32 %s24, %s31
    %p416 = scmp.eq.s32.totalorder %s415, 0
    %s418 = sadd.s32 %s417, 1
    %s419 = scalar_select %p416, %s417, %s418
    %p422 = pneg %p416
    %p423 = scmp.eq.s32.totalorder %s24, 1
    %p424 = por %p422, %p423
    %p425 = scmp.ne.s32.totalorder %s417, %s420
    %p426 = scmp.eq.s32.totalorder %s24, 0
    %p427 = por %p425, %p426
    %p428 = scmp.ne.s32.totalorder %s417, %s420
    %p429 = scmp.eq.s32.totalorder %s29, 1
    %p430 = por %p428, %p429
    %p431 = scmp.ne.s32.totalorder %s420, %s421
    %p432 = scmp.eq.s32.totalorder %s29, 0
    %p433 = por %p431, %p432
    %p434 = scmp.ne.s32.totalorder %s420, %s421
    %p435 = scmp.eq.s32.totalorder %s30, 1
    %p436 = por %p434, %p435
    %p438 = scmp.ne.s32.totalorder %s421, %s437
    %p439 = scmp.eq.s32.totalorder %s30, 0
    %p440 = por %p438, %p439
    %p441 = scmp.le.s32.totalorder 1, %s24
    %p442 = scmp.lt.s32.totalorder %s24, 3
    %p443 = pnand %p441, %p442
    %p444 = pneg %p443
    // Predicated region
    $region9: #{hama_block_forward.4} parent=5 // pred_check
      _
    $region10: #{hama_block_forward.4} parent=5 // pred_check_branch
      %446 = sbr.rel (%p443) target = $region12
    $region11: #{hama_block_forward.4} parent=5 // pred_region
      %s447 = ssub.s32 %s24, 1
      // Predicated region
      $region13: #{hama_block_forward.4} parent=11 // pred_check
        %p448 = pneg %p71
      $region14: #{hama_block_forward.4} parent=11 // pred_check_branch
        %450 = sbr.rel (%p448) target = $region16
      $region15: #{hama_block_forward.4} parent=11 // pred_region
        _
      $region16: #{hama_block_forward.4} parent=11 // pred_fallthru
        _
      // Predicated region
      $region17: #{hama_block_forward.4} parent=11 // pred_check
        %p451 = pneg %p92
      $region18: #{hama_block_forward.4} parent=11 // pred_check_branch
        %453 = sbr.rel (%p451) target = $region20
      $region19: #{hama_block_forward.4} parent=11 // pred_region
        _
      $region20: #{hama_block_forward.4} parent=11 // pred_fallthru
        _
      // Predicated region
      $region21: #{hama_block_forward.4} parent=11 // pred_check
        %p454 = pneg %p113
      $region22: #{hama_block_forward.4} parent=11 // pred_check_branch
        %456 = sbr.rel (%p454) target = $region24
      $region23: #{hama_block_forward.4} parent=11 // pred_region
        _
      $region24: #{hama_block_forward.4} parent=11 // pred_fallthru
        _
      // Predicated region
      $region25: #{hama_block_forward.4} parent=11 // pred_check
        %p457 = pneg %p134
      $region26: #{hama_block_forward.4} parent=11 // pred_check_branch
        %459 = sbr.rel (%p457) target = $region28
      $region27: #{hama_block_forward.4} parent=11 // pred_region
        _
      $region28: #{hama_block_forward.4} parent=11 // pred_fallthru
        _
      // Predicated region
      $region29: #{hama_block_forward.4} parent=11 // pred_check
        %p460 = pneg %p155
      $region30: #{hama_block_forward.4} parent=11 // pred_check_branch
        %462 = sbr.rel (%p460) target = $region32
      $region31: #{hama_block_forward.4} parent=11 // pred_region
        _
      $region32: #{hama_block_forward.4} parent=11 // pred_fallthru
        _
      // Predicated region
      $region33: #{hama_block_forward.4} parent=11 // pred_check
        %p463 = pneg %p176
      $region34: #{hama_block_forward.4} parent=11 // pred_check_branch
        %465 = sbr.rel (%p463) target = $region36
      $region35: #{hama_block_forward.4} parent=11 // pred_region
        _
      $region36: #{hama_block_forward.4} parent=11 // pred_fallthru
        _
      // Predicated region
      $region37: #{hama_block_forward.4} parent=11 // pred_check
        %p466 = pneg %p197
      $region38: #{hama_block_forward.4} parent=11 // pred_check_branch
        %468 = sbr.rel (%p466) target = $region40
      $region39: #{hama_block_forward.4} parent=11 // pred_region
        _
      $region40: #{hama_block_forward.4} parent=11 // pred_fallthru
        _
      // Predicated region
      $region41: #{hama_block_forward.4} parent=11 // pred_check
        %p469 = pneg %p218
      $region42: #{hama_block_forward.4} parent=11 // pred_check_branch
        %471 = sbr.rel (%p469) target = $region44
      $region43: #{hama_block_forward.4} parent=11 // pred_region
        _
      $region44: #{hama_block_forward.4} parent=11 // pred_fallthru
        _
      // Predicated region
      $region45: #{hama_block_forward.4} parent=11 // pred_check
        %p472 = pneg %p239
      $region46: #{hama_block_forward.4} parent=11 // pred_check_branch
        %474 = sbr.rel (%p472) target = $region48
      $region47: #{hama_block_forward.4} parent=11 // pred_region
        _
      $region48: #{hama_block_forward.4} parent=11 // pred_fallthru
        _
      // Predicated region
      $region49: #{hama_block_forward.4} parent=11 // pred_check
        %p475 = pneg %p260
      $region50: #{hama_block_forward.4} parent=11 // pred_check_branch
        %477 = sbr.rel (%p475) target = $region52
      $region51: #{hama_block_forward.4} parent=11 // pred_region
        _
      $region52: #{hama_block_forward.4} parent=11 // pred_fallthru
        _
      // Predicated region
      $region53: #{hama_block_forward.4} parent=11 // pred_check
        %p478 = pneg %p281
      $region54: #{hama_block_forward.4} parent=11 // pred_check_branch
        %480 = sbr.rel (%p478) target = $region56
      $region55: #{hama_block_forward.4} parent=11 // pred_region
        _
      $region56: #{hama_block_forward.4} parent=11 // pred_fallthru
        _
      // Predicated region
      $region57: #{hama_block_forward.4} parent=11 // pred_check
        %p481 = pneg %p302
      $region58: #{hama_block_forward.4} parent=11 // pred_check_branch
        %483 = sbr.rel (%p481) target = $region60
      $region59: #{hama_block_forward.4} parent=11 // pred_region
        _
      $region60: #{hama_block_forward.4} parent=11 // pred_fallthru
        _
      // Predicated region
      $region61: #{hama_block_forward.4} parent=11 // pred_check
        %p484 = pneg %p323
      $region62: #{hama_block_forward.4} parent=11 // pred_check_branch
        %486 = sbr.rel (%p484) target = $region64
      $region63: #{hama_block_forward.4} parent=11 // pred_region
        _
      $region64: #{hama_block_forward.4} parent=11 // pred_fallthru
        _
      // Predicated region
      $region65: #{hama_block_forward.4} parent=11 // pred_check
        %p487 = pneg %p344
      $region66: #{hama_block_forward.4} parent=11 // pred_check_branch
        %489 = sbr.rel (%p487) target = $region68
      $region67: #{hama_block_forward.4} parent=11 // pred_region
        _
      $region68: #{hama_block_forward.4} parent=11 // pred_fallthru
        _
      // Predicated region
      $region69: #{hama_block_forward.4} parent=11 // pred_check
        %p490 = pneg %p365
      $region70: #{hama_block_forward.4} parent=11 // pred_check_branch
        %492 = sbr.rel (%p490) target = $region72
      $region71: #{hama_block_forward.4} parent=11 // pred_region
        _
      $region72: #{hama_block_forward.4} parent=11 // pred_fallthru
        _
      // Predicated region
      $region73: #{hama_block_forward.4} parent=11 // pred_check
        %p493 = pneg %p386
      $region74: #{hama_block_forward.4} parent=11 // pred_check_branch
        %495 = sbr.rel (%p493) target = $region76
      $region75: #{hama_block_forward.4} parent=11 // pred_region
        _
      $region76: #{hama_block_forward.4} parent=11 // pred_fallthru
        _
      // Predicated region
      $region77: #{hama_block_forward.4} parent=11 // pred_check
        %p496 = pneg %p407
      $region78: #{hama_block_forward.4} parent=11 // pred_check_branch
        %498 = sbr.rel (%p496) target = $region80
      $region79: #{hama_block_forward.4} parent=11 // pred_region
        _
      $region80: #{hama_block_forward.4} parent=11 // pred_fallthru
        _
    $region12: #{hama_block_forward.4} parent=5 // pred_fallthru
      _
    %p499 = scmp.lt.s32.totalorder %s24, 2
    // Predicated region
    $region81: #{hama_block_forward.4} parent=5 // pred_check
      %p500 = pneg %p499
    $region82: #{hama_block_forward.4} parent=5 // pred_check_branch
      %502 = sbr.rel (%p500) target = $region84
    $region83: #{hama_block_forward.4} parent=5 // pred_region
      // Predicated region
      $region85: #{hama_block_forward.4} parent=83 // pred_check
        %p503 = pneg %p44
      $region86: #{hama_block_forward.4} parent=83 // pred_check_branch
        %505 = sbr.rel (%p503) target = $region88
      $region87: #{hama_block_forward.4} parent=83 // pred_region
        %p506 = scmp.lt.s32.totalorder %s24, 1
        %s507 = scalar_select %p506, %s24, 1
        %s508 = smul.addr %s507, 2
        %s509 = smul.addr %s508, 8
        %s510 = scalar_lea.vmem %s0, %s509
      $region88: #{hama_block_forward.4} parent=83 // pred_fallthru
        _
    $region84: #{hama_block_forward.4} parent=5 // pred_fallthru
      _
    %p511 = scmp.le.s32.totalorder 1, %s24
    %p512 = scmp.lt.s32.totalorder %s24, 3
    %p513 = pnand %p511, %p512
    %p514 = pneg %p513
    // Predicated region
    $region89: #{hama_block_forward.4} parent=5 // pred_check
      _
    $region90: #{hama_block_forward.4} parent=5 // pred_check_branch
      %516 = sbr.rel (%p513) target = $region92
    $region91: #{hama_block_forward.4} parent=5 // pred_region
      %s517 = ssub.s32 %s24, 1
      %p518 = scmp.lt.s32.totalorder %s29, 1
      %s519 = scalar_select %p518, %s29, 1
      %s520 = smul.addr %s519, 2
      %s521 = smul.addr %s520, 8
      %s522 = scalar_lea.vmem %s0, %s521
      %p523 = pneg %p50
      %p524 = pneg %p47
      %p525 = pneg %p71
      %p526 = pneg %p68
      %p527 = pneg %p92
      %p528 = pneg %p89
      %p529 = pneg %p113
      %p530 = pneg %p110
      %p531 = pneg %p134
      %p532 = pneg %p131
      %p533 = pneg %p155
      %p534 = pneg %p152
      %p535 = pneg %p176
      %p536 = pneg %p173
      %p537 = pneg %p197
      %p538 = pneg %p194
      %p539 = pneg %p218
      %p540 = pneg %p215
      %p541 = pneg %p239
      %p542 = pneg %p236
      %p543 = pneg %p260
      %p544 = pneg %p257
      %p545 = pneg %p281
      %p546 = pneg %p278
      %p547 = pneg %p302
      %p548 = pneg %p299
      %p549 = pneg %p323
      %p550 = pneg %p320
      %p551 = pneg %p344
      %p552 = pneg %p341
      %p553 = pneg %p365
      %p554 = pneg %p362
      %p555 = pneg %p386
      %p556 = pneg %p383
      %p557 = pneg %p407
      %p558 = pneg %p404
      %p559 = pneg %p433
      %p560 = pneg %p430
      %p561 = scmp.lt.s32.totalorder %s29, 1
      %s562 = scalar_select %p561, %s29, 1
      %s563 = smul.addr %s562, 2
      %s564 = smul.addr %s563, 8
      %s565 = scalar_lea.vmem %s18, %s564
      %p566 = scmp.lt.s32.totalorder %s29, 1
      %s567 = scalar_select %p566, %s29, 1
      %s568 = smul.addr %s567, 2
      %s569 = smul.addr %s568, 8
      %s570 = scalar_lea.vmem %s0, %s569
      %p571 = scmp.lt.s32.totalorder %s29, 1
      %s572 = scalar_select %p571, %s29, 1
      %s573 = smul.addr %s572, 2
      %s574 = smul.addr %s573, 8
      %s575 = scalar_lea.vmem %s18, %s574
      %v577 = vld [vmem:[%s570] sm:$0xff]
      %v578 = vld [vmem:[%s570 + $0x8] sm:$0xff]
      %v579 = vld [vmem:[%s1] sm:$0xff]
      %v580 = vld [vmem:[%s1 + $0x8] sm:$0xff]
      %v581 = vld [vmem:[%s2] sm:$0x1]
      %v582 = vld [vmem:[%s3] sm:$0x1]
      %vm583 = vcmask 261120
      %v584 = vsel %vm583, %v577, 0.0
      %585 = vadd.xlane.f32.xlu0 %v584
      %v586 = vpop.xlane.xlu0 %585
      %v587 = vsel %vm583, %v578, 0.0
      %588 = vadd.xlane.f32.xlu0 %v587
      %v589 = vpop.xlane.xlu0 %588
      %v590 = vrcp.pop 32.0
      %v591 = vmul.f32 32.0, %v590
      %v592 = vsub.f32 1.0, %v591
      %v593 = vmul.f32 %v590, %v592
      %v594 = vadd.f32 %v590, %v593
      %vm595 = vweird.f32 %v590
      %v596 = vsel %vm595, %v590, %v594
      %v597 = vmul.f32 %v586, %v596
      %v598 = vmul.f32 %v589, %v596
      %v599 = vsub.f32 %v577, %v597
      %v600 = vsub.f32 %v578, %v598
      %v601 = vmul.f32 %v599, %v599
      %v602 = vmul.f32 %v600, %v600
      %v603 = vsel %vm583, %v601, 0.0
      %604 = vadd.xlane.f32.xlu0 %v603
      %v605 = vpop.xlane.xlu0 %604
      %v606 = vsel %vm583, %v602, 0.0
      %607 = vadd.xlane.f32.xlu0 %v606
      %v608 = vpop.xlane.xlu0 %607
      %v609 = vmul.f32 %v605, %v596
      %v610 = vmul.f32 %v608, %v596
      %v611 = vadd.f32 %v609, 1e-05
      %v612 = vadd.f32 %v610, 1e-05
      %v613 = vrsqrt.pop %v611
      %v614 = vmul.f32 %v613, %v611
      %v615 = vmul.f32 %v614, %v613
      %v616 = vmul.f32 0.5, %v615
      %v617 = vsub.f32 1.5, %v616
      %v618 = vmul.f32 %v613, %v617
      %vm619 = vweird.f32 %v611
      %vm620 = vweird.f32 %v613
      %vm621 = vmor %vm619, %vm620
      %v622 = vsel %vm621, %v613, %v618
      %v623 = vrsqrt.pop %v612
      %v624 = vmul.f32 %v623, %v612
      %v625 = vmul.f32 %v624, %v623
      %v626 = vmul.f32 0.5, %v625
      %v627 = vsub.f32 1.5, %v626
      %v628 = vmul.f32 %v623, %v627
      %vm629 = vweird.f32 %v612
      %vm630 = vweird.f32 %v623
      %vm631 = vmor %vm629, %vm630
      %v632 = vsel %vm631, %v623, %v628
      %v633 = vmul.f32 %v599, %v622
      %v634 = vmul.f32 %v600, %v632
      %v636 = vperm.slane %v581, 0
      %v638 = vmul.f32 %v633, %v636
      %v639 = vmul.f32 %v634, %v636
      %v641 = vperm.slane %v582, 0
      %v643 = vadd.f32 %v638, %v641
      %v644 = vadd.f32 %v639, %v641
      %v645 = vld [vmem:[%s4] sm:$0xf]
      %v646 = vld [vmem:[%s4 + $0x4] sm:$0xf]
      %v647 = vld [vmem:[%s4 + $0x8] sm:$0xf]
      %v648 = vld [vmem:[%s4 + $0xc] sm:$0xf]
      %v649 = vpack.c.bf16 %v644, %v643
      %v650 = vld [vmem:[%s5] sm:$0x1]
      %v652 = vperm.slane %v650, 0
      %v658 = vunpack.c.l.b16 %v645
      %v659 = vunpack.c.l.b16 %v646
      %v660 = vunpack.c.l.b16 %v647
      %v661 = vunpack.c.l.b16 %v648
      %v662 = vpack.c.b16 %v659, %v658
      %v663 = vpack.c.b16 %v661, %v660
      %v667 = vsel %vm583, %v649, 0
      %669 = vmatpush.bf16.msra.mxu0 0
      %670 = vmatpush.bf16.msra.mxu0 0
      %671 = vmatpush.bf16.msra.mxu0 0
      %672 = vmatpush.bf16.msra.mxu0 0
      %673 = vmatpush.bf16.msra.mxu0 0
      %674 = vmatpush.bf16.msra.mxu0 0
      %675 = vmatpush.bf16.msra.mxu0 %v663
      %676 = vmatpush.bf16.msra.mxu0 %v662
      %677 = vmatmul.bf16.gmra.mxu0 %v667
      %v678 = vpop.f32.mrf.mxu0
      %v679 = vadd.f32 %v652, %v678
      %v680 = vpop.f32.mrf.mxu0
      %v681 = vadd.f32 %v652, %v680
      %682 = vdwg.mxu0
      %v683 = vld [vmem:[%s6] sm:$0xf]
      %v684 = vld [vmem:[%s6 + $0x4] sm:$0xf]
      %v685 = vld [vmem:[%s6 + $0x8] sm:$0xf]
      %v686 = vld [vmem:[%s6 + $0xc] sm:$0xf]
      %v687 = vpack.c.bf16 %v681, %v679
      %v688 = vld [vmem:[%s7] sm:$0x1]
      %v690 = vperm.slane %v688, 0
      %v696 = vunpack.c.l.b16 %v683
      %v697 = vunpack.c.l.b16 %v684
      %v698 = vunpack.c.l.b16 %v685
      %v699 = vunpack.c.l.b16 %v686
      %v700 = vpack.c.b16 %v697, %v696
      %v701 = vpack.c.b16 %v699, %v698
      %v705 = vsel %vm583, %v687, 0
      %707 = vmatpush.bf16.msra.mxu0 0
      %708 = vmatpush.bf16.msra.mxu0 0
      %709 = vmatpush.bf16.msra.mxu0 0
      %710 = vmatpush.bf16.msra.mxu0 0
      %711 = vmatpush.bf16.msra.mxu0 0
      %712 = vmatpush.bf16.msra.mxu0 0
      %713 = vmatpush.bf16.msra.mxu0 %v701
      %714 = vmatpush.bf16.msra.mxu0 %v700
      %715 = vmatmul.bf16.gmra.mxu0 %v705
      %v716 = vpop.f32.mrf.mxu0
      %v717 = vadd.f32 %v690, %v716
      %v718 = vpop.f32.mrf.mxu0
      %v719 = vadd.f32 %v690, %v718
      %720 = vdwg.mxu0
      %v721 = vld [vmem:[%s8] sm:$0xf]
      %v722 = vld [vmem:[%s8 + $0x4] sm:$0xf]
      %v723 = vld [vmem:[%s8 + $0x8] sm:$0xf]
      %v724 = vld [vmem:[%s8 + $0xc] sm:$0xf]
      %v725 = vld [vmem:[%s9] sm:$0x1]
      %v727 = vperm.slane %v725, 0
      %730 = vrot.lane.b32.xlu0 %v687, 96
      %v731 = vpop.permute.xlu0 %730
      %v736 = vunpack.c.l.b16 %v721
      %v737 = vunpack.c.l.b16 %v722
      %v738 = vunpack.c.l.b16 %v723
      %v739 = vunpack.c.l.b16 %v724
      %v740 = vpack.c.b16 %v737, %v736
      %v741 = vpack.c.b16 %v739, %v738
      %v745 = vsel %vm583, %v731, 0
      %747 = vmatpush.bf16.msra.mxu0 0
      %748 = vmatpush.bf16.msra.mxu0 0
      %749 = vmatpush.bf16.msra.mxu0 0
      %750 = vmatpush.bf16.msra.mxu0 0
      %751 = vmatpush.bf16.msra.mxu0 0
      %752 = vmatpush.bf16.msra.mxu0 0
      %753 = vmatpush.bf16.msra.mxu0 %v741
      %754 = vmatpush.bf16.msra.mxu0 %v740
      %755 = vmatmul.bf16.gmra.mxu0 %v745
      %v756 = vpop.f32.mrf.mxu0
      %v757 = vadd.f32 %v727, %v756
      %v758 = vpop.f32.mrf.mxu0
      %v759 = vadd.f32 %v727, %v758
      %760 = vdwg.mxu0
      %v761 = vld [vmem:[%s10] sm:$0xf]
      %v762 = vld [vmem:[%s10 + $0x4] sm:$0xf]
      %v763 = vld [vmem:[%s10 + $0x8] sm:$0xf]
      %v764 = vld [vmem:[%s10 + $0xc] sm:$0xf]
      %v765 = vpack.c.bf16 %v580, %v579
      %v766 = vld [vmem:[%s11] sm:$0x1]
      %v768 = vperm.slane %v766, 0
      %v774 = vunpack.c.l.b16 %v761
      %v775 = vunpack.c.l.b16 %v762
      %v776 = vunpack.c.l.b16 %v763
      %v777 = vunpack.c.l.b16 %v764
      %v778 = vpack.c.b16 %v775, %v774
      %v779 = vpack.c.b16 %v777, %v776
      %v783 = vsel %vm583, %v765, 0
      %785 = vmatpush.bf16.msra.mxu0 0
      %786 = vmatpush.bf16.msra.mxu0 0
      %787 = vmatpush.bf16.msra.mxu0 0
      %788 = vmatpush.bf16.msra.mxu0 0
      %789 = vmatpush.bf16.msra.mxu0 0
      %790 = vmatpush.bf16.msra.mxu0 0
      %791 = vmatpush.bf16.msra.mxu0 %v779
      %792 = vmatpush.bf16.msra.mxu0 %v778
      %793 = vmatmul.bf16.gmra.mxu0 %v783
      %v794 = vpop.f32.mrf.mxu0
      %v795 = vadd.f32 %v768, %v794
      %v796 = vpop.f32.mrf.mxu0
      %v797 = vadd.f32 %v768, %v796
      %798 = vdwg.mxu0
      %v799 = vpack.c.bf16 %v797, %v795
      %v800 = vpack.c.bf16 %v719, %v717
      %vm801 = vcmask 64512
      %v803 = vsel %vm801, %v799, 0
      %v806 = vsel %vm801, %v800, 0
      %808 = vmatpush.bf16.xpose.msra.mxu0 0
      %809 = vmatpush.bf16.xpose.msra.mxu0 0
      %810 = vmatpush.bf16.xpose.msra.mxu0 0
      %811 = vmatpush.bf16.xpose.msra.mxu0 0
      %812 = vmatpush.bf16.xpose.msra.mxu0 0
      %813 = vmatpush.bf16.xpose.msra.mxu0 0
      %814 = vmatpush.bf16.xpose.msra.mxu0 0
      %815 = vmatpush.bf16.xpose.msra.mxu0 %v806
      %816 = vmatmul.bf16.gmra.mxu0 %v803
      %v817 = vpop.f32.mrf.mxu0
      %v818 = vadd.f32 0.0, %v817
      %v819 = vpop.f32.mrf.mxu0
      %v820 = vadd.f32 0.0, %v819
      %821 = vdwg.mxu0
      %v822 = vmul.f32 %v818, 0.35355338
      %v823 = vmul.f32 %v820, 0.35355338
      %vm824 = vcmask 130048
      %v825 = vsel %vm824, %v822, -inf
      %826 = vmax.xlane.f32.xlu0 %v825
      %v827 = vpop.xlane.xlu0 %826
      %v828 = vsel %vm824, %v823, -inf
      %829 = vmax.xlane.f32.xlu0 %v828
      %v830 = vpop.xlane.xlu0 %829
      %v831 = vsub.f32 %v822, %v827
      %v832 = vsub.f32 %v823, %v830
      %v833 = vmul.f32 %v831, 1.442695
      %v834 = vpow.pop %v833
      %v835 = vmul.f32 %v832, 1.442695
      %v836 = vpow.pop %v835
      %v837 = vsel %vm824, %v834, 0.0
      %838 = vadd.xlane.f32.xlu0 %v837
      %v839 = vpop.xlane.xlu0 %838
      %v840 = vsel %vm824, %v836, 0.0
      %841 = vadd.xlane.f32.xlu0 %v840
      %v842 = vpop.xlane.xlu0 %841
      %v843 = vrcp.pop %v839
      %v844 = vrcp.pop %v842
      %v845 = vmul.f32 %v834, %v843
      %v846 = vmul.f32 %v836, %v844
      %v847 = vpack.c.bf16 %v846, %v845
      %v848 = vpack.c.bf16 %v759, %v757
      %v850 = vsel %vm824, %v847, 0
      %852 = vmatpush.bf16.msra.mxu0 0
      %853 = vmatpush.bf16.msra.mxu0 0
      %854 = vmatpush.bf16.msra.mxu0 0
      %855 = vmatpush.bf16.msra.mxu0 0
      %856 = vmatpush.bf16.msra.mxu0 0
      %857 = vmatpush.bf16.msra.mxu0 0
      %858 = vmatpush.bf16.msra.mxu0 0
      %859 = vmatpush.bf16.msra.mxu0 %v848
      %860 = vmatmul.bf16.gmra.mxu0 %v850
      %v861 = vpop.f32.mrf.mxu0
      %v862 = vadd.f32 0.0, %v861
      %v863 = vpop.f32.mrf.mxu0
      %v864 = vadd.f32 0.0, %v863
      %865 = vdwg.mxu0
      %867 = vrot.lane.b32.xlu0 %v799, 120
      %v868 = vpop.permute.xlu0 %867
      %870 = vrot.lane.b32.xlu0 %v800, 120
      %v871 = vpop.permute.xlu0 %870
      %v873 = vsel %vm801, %v868, 0
      %v876 = vsel %vm801, %v871, 0
      %878 = vmatpush.bf16.xpose.msra.mxu0 0
      %879 = vmatpush.bf16.xpose.msra.mxu0 0
      %880 = vmatpush.bf16.xpose.msra.mxu0 0
      %881 = vmatpush.bf16.xpose.msra.mxu0 0
      %882 = vmatpush.bf16.xpose.msra.mxu0 0
      %883 = vmatpush.bf16.xpose.msra.mxu0 0
      %884 = vmatpush.bf16.xpose.msra.mxu0 0
      %885 = vmatpush.bf16.xpose.msra.mxu0 %v876
      %886 = vmatmul.bf16.gmra.mxu0 %v873
      %v887 = vpop.f32.mrf.mxu0
      %v888 = vadd.f32 0.0, %v887
      %v889 = vpop.f32.mrf.mxu0
      %v890 = vadd.f32 0.0, %v889
      %891 = vdwg.mxu0
      %v892 = vmul.f32 %v888, 0.35355338
      %v893 = vmul.f32 %v890, 0.35355338
      %v894 = vsel %vm824, %v892, -inf
      %895 = vmax.xlane.f32.xlu0 %v894
      %v896 = vpop.xlane.xlu0 %895
      %v897 = vsel %vm824, %v893, -inf
      %898 = vmax.xlane.f32.xlu0 %v897
      %v899 = vpop.xlane.xlu0 %898
      %v900 = vsub.f32 %v892, %v896
      %v901 = vsub.f32 %v893, %v899
      %v902 = vmul.f32 %v900, 1.442695
      %v903 = vpow.pop %v902
      %v904 = vmul.f32 %v901, 1.442695
      %v905 = vpow.pop %v904
      %v906 = vsel %vm824, %v903, 0.0
      %907 = vadd.xlane.f32.xlu0 %v906
      %v908 = vpop.xlane.xlu0 %907
      %v909 = vsel %vm824, %v905, 0.0
      %910 = vadd.xlane.f32.xlu0 %v909
      %v911 = vpop.xlane.xlu0 %910
      %v912 = vrcp.pop %v908
      %v913 = vrcp.pop %v911
      %v914 = vmul.f32 %v903, %v912
      %v915 = vmul.f32 %v905, %v913
      %v916 = vpack.c.bf16 %v915, %v914
      %918 = vrot.lane.b32.xlu0 %v848, 120
      %v919 = vpop.permute.xlu0 %918
      %v922 = vsel %vm824, %v916, 0
      %924 = vmatpush.bf16.msra.mxu0 0
      %925 = vmatpush.bf16.msra.mxu0 0
      %926 = vmatpush.bf16.msra.mxu0 0
      %927 = vmatpush.bf16.msra.mxu0 0
      %928 = vmatpush.bf16.msra.mxu0 0
      %929 = vmatpush.bf16.msra.mxu0 0
      %930 = vmatpush.bf16.msra.mxu0 0
      %931 = vmatpush.bf16.msra.mxu0 %v919
      %932 = vmatmul.bf16.gmra.mxu0 %v922
      %v933 = vpop.f32.mrf.mxu0
      %v934 = vadd.f32 0.0, %v933
      %v935 = vpop.f32.mrf.mxu0
      %v936 = vadd.f32 0.0, %v935
      %937 = vdwg.mxu0
      %938 = vrot.lane.b32.xlu0 %v799, 112
      %v939 = vpop.permute.xlu0 %938
      %940 = vrot.lane.b32.xlu0 %v800, 112
      %v941 = vpop.permute.xlu0 %940
      %v943 = vsel %vm801, %v939, 0
      %v946 = vsel %vm801, %v941, 0
      %948 = vmatpush.bf16.xpose.msra.mxu0 0
      %949 = vmatpush.bf16.xpose.msra.mxu0 0
      %950 = vmatpush.bf16.xpose.msra.mxu0 0
      %951 = vmatpush.bf16.xpose.msra.mxu0 0
      %952 = vmatpush.bf16.xpose.msra.mxu0 0
      %953 = vmatpush.bf16.xpose.msra.mxu0 0
      %954 = vmatpush.bf16.xpose.msra.mxu0 0
      %955 = vmatpush.bf16.xpose.msra.mxu0 %v946
      %956 = vmatmul.bf16.gmra.mxu0 %v943
      %v957 = vpop.f32.mrf.mxu0
      %v958 = vadd.f32 0.0, %v957
      %v959 = vpop.f32.mrf.mxu0
      %v960 = vadd.f32 0.0, %v959
      %961 = vdwg.mxu0
      %v962 = vmul.f32 %v958, 0.35355338
      %v963 = vmul.f32 %v960, 0.35355338
      %v964 = vsel %vm824, %v962, -inf
      %965 = vmax.xlane.f32.xlu0 %v964
      %v966 = vpop.xlane.xlu0 %965
      %v967 = vsel %vm824, %v963, -inf
      %968 = vmax.xlane.f32.xlu0 %v967
      %v969 = vpop.xlane.xlu0 %968
      %v970 = vsub.f32 %v962, %v966
      %v971 = vsub.f32 %v963, %v969
      %v972 = vmul.f32 %v970, 1.442695
      %v973 = vpow.pop %v972
      %v974 = vmul.f32 %v971, 1.442695
      %v975 = vpow.pop %v974
      %v976 = vsel %vm824, %v973, 0.0
      %977 = vadd.xlane.f32.xlu0 %v976
      %v978 = vpop.xlane.xlu0 %977
      %v979 = vsel %vm824, %v975, 0.0
      %980 = vadd.xlane.f32.xlu0 %v979
      %v981 = vpop.xlane.xlu0 %980
      %v982 = vrcp.pop %v978
      %v983 = vrcp.pop %v981
      %v984 = vmul.f32 %v973, %v982
      %v985 = vmul.f32 %v975, %v983
      %v986 = vpack.c.bf16 %v985, %v984
      %987 = vrot.lane.b32.xlu0 %v848, 112
      %v988 = vpop.permute.xlu0 %987
      %v991 = vsel %vm824, %v986, 0
      %993 = vmatpush.bf16.msra.mxu0 0
      %994 = vmatpush.bf16.msra.mxu0 0
      %995 = vmatpush.bf16.msra.mxu0 0
      %996 = vmatpush.bf16.msra.mxu0 0
      %997 = vmatpush.bf16.msra.mxu0 0
      %998 = vmatpush.bf16.msra.mxu0 0
      %999 = vmatpush.bf16.msra.mxu0 0
      %1000 = vmatpush.bf16.msra.mxu0 %v988
      %1001 = vmatmul.bf16.gmra.mxu0 %v991
      %v1002 = vpop.f32.mrf.mxu0
      %v1003 = vadd.f32 0.0, %v1002
      %v1004 = vpop.f32.mrf.mxu0
      %v1005 = vadd.f32 0.0, %v1004
      %1006 = vdwg.mxu0
      %1007 = vrot.lane.b32.xlu0 %v799, 104
      %v1008 = vpop.permute.xlu0 %1007
      %1009 = vrot.lane.b32.xlu0 %v800, 104
      %v1010 = vpop.permute.xlu0 %1009
      %v1012 = vsel %vm801, %v1008, 0
      %v1015 = vsel %vm801, %v1010, 0
      %1017 = vmatpush.bf16.xpose.msra.mxu0 0
      %1018 = vmatpush.bf16.xpose.msra.mxu0 0
      %1019 = vmatpush.bf16.xpose.msra.mxu0 0
      %1020 = vmatpush.bf16.xpose.msra.mxu0 0
      %1021 = vmatpush.bf16.xpose.msra.mxu0 0
      %1022 = vmatpush.bf16.xpose.msra.mxu0 0
      %1023 = vmatpush.bf16.xpose.msra.mxu0 0
      %1024 = vmatpush.bf16.xpose.msra.mxu0 %v1015
      %1025 = vmatmul.bf16.gmra.mxu0 %v1012
      %v1026 = vpop.f32.mrf.mxu0
      %v1027 = vadd.f32 0.0, %v1026
      %v1028 = vpop.f32.mrf.mxu0
      %v1029 = vadd.f32 0.0, %v1028
      %1030 = vdwg.mxu0
      %v1031 = vmul.f32 %v1027, 0.35355338
      %v1032 = vmul.f32 %v1029, 0.35355338
      %v1033 = vsel %vm824, %v1031, -inf
      %1034 = vmax.xlane.f32.xlu0 %v1033
      %v1035 = vpop.xlane.xlu0 %1034
      %v1036 = vsel %vm824, %v1032, -inf
      %1037 = vmax.xlane.f32.xlu0 %v1036
      %v1038 = vpop.xlane.xlu0 %1037
      %v1039 = vsub.f32 %v1031, %v1035
      %v1040 = vsub.f32 %v1032, %v1038
      %v1041 = vmul.f32 %v1039, 1.442695
      %v1042 = vpow.pop %v1041
      %v1043 = vmul.f32 %v1040, 1.442695
      %v1044 = vpow.pop %v1043
      %v1045 = vsel %vm824, %v1042, 0.0
      %1046 = vadd.xlane.f32.xlu0 %v1045
      %v1047 = vpop.xlane.xlu0 %1046
      %v1048 = vsel %vm824, %v1044, 0.0
      %1049 = vadd.xlane.f32.xlu0 %v1048
      %v1050 = vpop.xlane.xlu0 %1049
      %v1051 = vrcp.pop %v1047
      %v1052 = vrcp.pop %v1050
      %v1053 = vmul.f32 %v1042, %v1051
      %v1054 = vmul.f32 %v1044, %v1052
      %v1055 = vpack.c.bf16 %v1054, %v1053
      %1056 = vrot.lane.b32.xlu0 %v848, 104
      %v1057 = vpop.permute.xlu0 %1056
      %v1060 = vsel %vm824, %v1055, 0
      %1062 = vmatpush.bf16.msra.mxu0 0
      %1063 = vmatpush.bf16.msra.mxu0 0
      %1064 = vmatpush.bf16.msra.mxu0 0
      %1065 = vmatpush.bf16.msra.mxu0 0
      %1066 = vmatpush.bf16.msra.mxu0 0
      %1067 = vmatpush.bf16.msra.mxu0 0
      %1068 = vmatpush.bf16.msra.mxu0 0
      %1069 = vmatpush.bf16.msra.mxu0 %v1057
      %1070 = vmatmul.bf16.gmra.mxu0 %v1060
      %v1071 = vpop.f32.mrf.mxu0
      %v1072 = vadd.f32 0.0, %v1071
      %v1073 = vpop.f32.mrf.mxu0
      %v1074 = vadd.f32 0.0, %v1073
      %1075 = vdwg.mxu0
      %1078 = vrot.lane.b32.xlu0 %v934, 8
      %v1079 = vpop.permute.xlu0 %1078
      %1080 = vrot.lane.b32.xlu0 %v936, 8
      %v1081 = vpop.permute.xlu0 %1080
      %1086 = vrot.lane.b32.xlu0 %v1003, 16
      %v1087 = vpop.permute.xlu0 %1086
      %1088 = vrot.lane.b32.xlu0 %v1005, 16
      %v1089 = vpop.permute.xlu0 %1088
      %1094 = vrot.lane.b32.xlu0 %v1072, 24
      %v1095 = vpop.permute.xlu0 %1094
      %1096 = vrot.lane.b32.xlu0 %v1074, 24
      %v1097 = vpop.permute.xlu0 %1096
      %v1100 = vsel %vm801, %v862, %v1079
      %v1101 = vsel %vm801, %v864, %v1081
      %v1102 = vsel %vm824, %v1100, %v1087
      %v1103 = vsel %vm824, %v1101, %v1089
      %vm1104 = vcmask 195584
      %v1105 = vsel %vm1104, %v1102, %v1095
      %v1106 = vsel %vm1104, %v1103, %v1097
      %v1107 = vld [vmem:[%s12] sm:$0xf]
      %v1108 = vld [vmem:[%s12 + $0x4] sm:$0xf]
      %v1109 = vld [vmem:[%s12 + $0x8] sm:$0xf]
      %v1110 = vld [vmem:[%s12 + $0xc] sm:$0xf]
      %v1111 = vpack.c.bf16 %v1106, %v1105
      %v1112 = vld [vmem:[%s13] sm:$0x1]
      %v1114 = vperm.slane %v1112, 0
      %v1120 = vunpack.c.l.b16 %v1107
      %v1121 = vunpack.c.l.b16 %v1108
      %v1122 = vunpack.c.l.b16 %v1109
      %v1123 = vunpack.c.l.b16 %v1110
      %v1124 = vpack.c.b16 %v1121, %v1120
      %v1125 = vpack.c.b16 %v1123, %v1122
      %v1129 = vsel %vm583, %v1111, 0
      %1131 = vmatpush.bf16.msra.mxu0 0
      %1132 = vmatpush.bf16.msra.mxu0 0
      %1133 = vmatpush.bf16.msra.mxu0 0
      %1134 = vmatpush.bf16.msra.mxu0 0
      %1135 = vmatpush.bf16.msra.mxu0 0
      %1136 = vmatpush.bf16.msra.mxu0 0
      %1137 = vmatpush.bf16.msra.mxu0 %v1125
      %1138 = vmatpush.bf16.msra.mxu0 %v1124
      %1139 = vmatmul.bf16.gmra.mxu0 %v1129
      %v1140 = vpop.f32.mrf.mxu0
      %v1141 = vadd.f32 %v1114, %v1140
      %v1142 = vpop.f32.mrf.mxu0
      %v1143 = vadd.f32 %v1114, %v1142
      %1144 = vdwg.mxu0
      %v1145 = vld [vmem:[%s14] sm:$0xf]
      %v1146 = vld [vmem:[%s14 + $0x4] sm:$0xf]
      %v1147 = vld [vmem:[%s14 + $0x8] sm:$0xf]
      %v1148 = vld [vmem:[%s14 + $0xc] sm:$0xf]
      %v1149 = vpack.c.bf16 %v1143, %v1141
      %v1150 = vld [vmem:[%s15] sm:$0x1]
      %v1152 = vperm.slane %v1150, 0
      %v1158 = vunpack.c.l.b16 %v1145
      %v1159 = vunpack.c.l.b16 %v1146
      %v1160 = vunpack.c.l.b16 %v1147
      %v1161 = vunpack.c.l.b16 %v1148
      %v1162 = vpack.c.b16 %v1159, %v1158
      %v1163 = vpack.c.b16 %v1161, %v1160
      %v1167 = vsel %vm583, %v1149, 0
      %1169 = vmatpush.bf16.msra.mxu0 0
      %1170 = vmatpush.bf16.msra.mxu0 0
      %1171 = vmatpush.bf16.msra.mxu0 0
      %1172 = vmatpush.bf16.msra.mxu0 0
      %1173 = vmatpush.bf16.msra.mxu0 0
      %1174 = vmatpush.bf16.msra.mxu0 0
      %1175 = vmatpush.bf16.msra.mxu0 %v1163
      %1176 = vmatpush.bf16.msra.mxu0 %v1162
      %1177 = vmatmul.bf16.gmra.mxu0 %v1167
      %v1178 = vpop.f32.mrf.mxu0
      %v1179 = vadd.f32 %v1152, %v1178
      %v1180 = vpop.f32.mrf.mxu0
      %v1181 = vadd.f32 %v1152, %v1180
      %1182 = vdwg.mxu0
      %v1183 = vadd.f32 %v1179, %v579
      %v1184 = vadd.f32 %v1181, %v580
      %v1185 = vld [vmem:[%s16] sm:$0x1]
      %v1186 = vld [vmem:[%s17] sm:$0x1]
      %v1187 = vsel %vm583, %v1183, 0.0
      %1188 = vadd.xlane.f32.xlu0 %v1187
      %v1189 = vpop.xlane.xlu0 %1188
      %v1190 = vsel %vm583, %v1184, 0.0
      %1191 = vadd.xlane.f32.xlu0 %v1190
      %v1192 = vpop.xlane.xlu0 %1191
      %v1193 = vmul.f32 %v1189, %v596
      %v1194 = vmul.f32 %v1192, %v596
      %v1195 = vsub.f32 %v1183, %v1193
      %v1196 = vsub.f32 %v1184, %v1194
      %v1197 = vmul.f32 %v1195, %v1195
      %v1198 = vmul.f32 %v1196, %v1196
      %v1199 = vsel %vm583, %v1197, 0.0
      %1200 = vadd.xlane.f32.xlu0 %v1199
      %v1201 = vpop.xlane.xlu0 %1200
      %v1202 = vsel %vm583, %v1198, 0.0
      %1203 = vadd.xlane.f32.xlu0 %v1202
      %v1204 = vpop.xlane.xlu0 %1203
      %v1205 = vmul.f32 %v1201, %v596
      %v1206 = vmul.f32 %v1204, %v596
      %v1207 = vadd.f32 %v1205, 1e-05
      %v1208 = vadd.f32 %v1206, 1e-05
      %v1209 = vrsqrt.pop %v1207
      %v1210 = vmul.f32 %v1209, %v1207
      %v1211 = vmul.f32 %v1210, %v1209
      %v1212 = vmul.f32 0.5, %v1211
      %v1213 = vsub.f32 1.5, %v1212
      %v1214 = vmul.f32 %v1209, %v1213
      %vm1215 = vweird.f32 %v1207
      %vm1216 = vweird.f32 %v1209
      %vm1217 = vmor %vm1215, %vm1216
      %v1218 = vsel %vm1217, %v1209, %v1214
      %v1219 = vrsqrt.pop %v1208
      %v1220 = vmul.f32 %v1219, %v1208
      %v1221 = vmul.f32 %v1220, %v1219
      %v1222 = vmul.f32 0.5, %v1221
      %v1223 = vsub.f32 1.5, %v1222
      %v1224 = vmul.f32 %v1219, %v1223
      %vm1225 = vweird.f32 %v1208
      %vm1226 = vweird.f32 %v1219
      %vm1227 = vmor %vm1225, %vm1226
      %v1228 = vsel %vm1227, %v1219, %v1224
      %v1229 = vmul.f32 %v1195, %v1218
      %v1230 = vmul.f32 %v1196, %v1228
      %v1232 = vperm.slane %v1185, 0
      %v1234 = vmul.f32 %v1229, %v1232
      %v1235 = vmul.f32 %v1230, %v1232
      %v1237 = vperm.slane %v1186, 0
      %v1239 = vadd.f32 %v1234, %v1237
      %v1240 = vadd.f32 %v1235, %v1237
      %1241 = vst.msk [vmem:[%s575] sm:$0xff] %vm583, %v1239
      %1242 = vst.msk [vmem:[%s575 + $0x8] sm:$0xff] %vm583, %v1240
      %p1243 = scmp.lt.s32.totalorder %s29, 1
      %s1244 = scalar_select %p1243, %s29, 1
      %s1245 = smul.addr %s1244, 2
      %s1246 = smul.addr %s1245, 8
      %s1247 = scalar_lea.vmem %s18, %s1246
      // Predicated region
      $region93: #{hama_block_forward.4} parent=91 // pred_check
        %p1248 = pneg %p430
      $region94: #{hama_block_forward.4} parent=91 // pred_check_branch
        %1250 = sbr.rel (%p1248) target = $region96
      $region95: #{hama_block_forward.4} parent=91 // pred_region
        _
      $region96: #{hama_block_forward.4} parent=91 // pred_fallthru
        _
    $region92: #{hama_block_forward.4} parent=5 // pred_fallthru
      _
    %p1251 = scmp.le.s32.totalorder 2, %s24
    // Predicated region
    $region97: #{hama_block_forward.4} parent=5 // pred_check
      %p1252 = pneg %p1251
    $region98: #{hama_block_forward.4} parent=5 // pred_check_branch
      %1254 = sbr.rel (%p1252) target = $region100
    $region99: #{hama_block_forward.4} parent=5 // pred_region
      %s1255 = ssub.s32 %s24, 2
      // Predicated region
      $region101: #{hama_block_forward.4} parent=99 // pred_check
        %p1256 = pneg %p436
      $region102: #{hama_block_forward.4} parent=99 // pred_check_branch
        %1258 = sbr.rel (%p1256) target = $region104
      $region103: #{hama_block_forward.4} parent=99 // pred_region
        %p1259 = scmp.lt.s32.totalorder %s30, 1
        %s1260 = scalar_select %p1259, %s30, 1
        %s1261 = smul.addr %s1260, 2
        %s1262 = smul.addr %s1261, 8
        %s1263 = scalar_lea.vmem %s18, %s1262
      $region104: #{hama_block_forward.4} parent=99 // pred_fallthru
        _
    $region100: #{hama_block_forward.4} parent=5 // pred_fallthru
      _
  $region6: #{hama_block_forward.4} parent=0 // loop_footer
    %s28 = sadd.s32 1, %s24
  $region7: #{hama_block_forward.4} parent=0 // loop_footer_branch
    %23 = sbr.rel target = $region3
  $region8: #{hama_block_forward.4} parent=0 // loop_exit
    _

// kernel: hama_block_forward.5
$region0: #{hama_block_forward.5}
  #allocation0 [shape = 'u32[]', space=smem, size = 0x4, offset = 0x4, fixed_abs, tag = 'smem constant byte address 0x4 - core index']
  #allocation1 [shape = 'u32[72,128]{1,0:T(1,128)}', space=vmem, size = 0x9000, scoped, tag = 'internal scratch']
  %s0 = inlined_call_operand.vmem [shape: f32[2,2,8,32], index: 0, kind: input, shape index: {}]
  %s1 = inlined_call_operand.vmem [shape: f32[8,32], index: 1, kind: input, shape index: {}]
  %s2 = inlined_call_operand.vmem [shape: bf16[2,32,96], index: 2, kind: input, shape index: {}]
  %s3 = inlined_call_operand.vmem [shape: f32[2,1,96], index: 3, kind: input, shape index: {}]
  %s4 = inlined_call_operand.vmem [shape: bf16[2,32,32], index: 4, kind: input, shape index: {}]
  %s5 = inlined_call_operand.vmem [shape: f32[2,1,32], index: 5, kind: input, shape index: {}]
  %s6 = inlined_call_operand.vmem [shape: f32[2,1,32], index: 6, kind: input, shape index: {}]
  %s7 = inlined_call_operand.vmem [shape: f32[2,1,32], index: 7, kind: input, shape index: {}]
  %s8 = inlined_call_operand.vmem [shape: bf16[2,32,2048], index: 8, kind: input, shape index: {}]
  %s9 = inlined_call_operand.vmem [shape: f32[2,1,2048], index: 9, kind: input, shape index: {}]
  %s10 = inlined_call_operand.vmem [shape: bf16[2,2048,32], index: 10, kind: input, shape index: {}]
  %s11 = inlined_call_operand.vmem [shape: f32[2,1,32], index: 11, kind: input, shape index: {}]
  %s12 = inlined_call_operand.vmem [shape: f32[2,1,32], index: 12, kind: input, shape index: {}]
  %s13 = inlined_call_operand.vmem [shape: f32[2,1,32], index: 13, kind: input, shape index: {}]
  %s14 = inlined_call_operand.vmem [shape: f32[2,2,8,32], index: 14, kind: output, shape index: {}]
  %s15 = sld [smem:[#allocation0]]
  $region161: #{hama_block_forward.5} parent=0
    _
  %s17 = ssub.s32 1, %s15
  %s18 = scalar_select 0, %s17, %s15
  $region1: #{hama_block_forward.5} parent=0
    #allocation2 [shape = 'u8[16384]{0}', space=vmem, size = 0x4000, scoped, tag = 'input window, operand 0']
    #allocation3 [shape = 'u8[16384]{0}', space=vmem, size = 0x4000, scoped, tag = 'output window, operand 0']
    loop: start=0, step=1, limit=4
    $region2: #{hama_block_forward.5} parent=1 // loop_pre_header
      _
    $region3: #{hama_block_forward.5} parent=1 // loop_header
      %s20 = sphi 0, %s24
      %p21 = scmp.ge.s32.totalorder %s20, 4
      %s30 = sphi 0, %s32
      %s33 = sphi 0, %s30
      %s34 = sphi 0, %s33
      %s50 = sphi 0, %s34
      %s54 = sphi 0, %s54
      %s56 = sphi 0, %s54
      %s57 = sphi 0, %s56
      %s71 = sphi 0, %s57
      %s77 = sphi 0, %s79
      %s80 = sphi 0, %s77
      %s81 = sphi 0, %s80
      %s97 = sphi 0, %s81
      %s103 = sphi 0, %s105
      %s106 = sphi 0, %s103
      %s107 = sphi 0, %s106
      %s123 = sphi 0, %s107
      %s129 = sphi 0, %s131
      %s132 = sphi 0, %s129
      %s133 = sphi 0, %s132
      %s149 = sphi 0, %s133
      %s155 = sphi 0, %s157
      %s158 = sphi 0, %s155
      %s159 = sphi 0, %s158
      %s175 = sphi 0, %s159
      %s181 = sphi 0, %s183
      %s184 = sphi 0, %s181
      %s185 = sphi 0, %s184
      %s201 = sphi 0, %s185
      %s207 = sphi 0, %s209
      %s210 = sphi 0, %s207
      %s211 = sphi 0, %s210
      %s227 = sphi 0, %s211
      %s233 = sphi 0, %s235
      %s236 = sphi 0, %s233
      %s237 = sphi 0, %s236
      %s253 = sphi 0, %s237
      %s259 = sphi 0, %s261
      %s262 = sphi 0, %s259
      %s263 = sphi 0, %s262
      %s279 = sphi 0, %s263
      %s285 = sphi 0, %s287
      %s288 = sphi 0, %s285
      %s289 = sphi 0, %s288
      %s305 = sphi 0, %s289
      %s311 = sphi 0, %s313
      %s314 = sphi 0, %s311
      %s315 = sphi 0, %s314
      %s331 = sphi 0, %s315
      %s337 = sphi 0, %s339
      %s340 = sphi 0, %s337
      %s341 = sphi 0, %s340
      %s357 = sphi 0, %s341
      %s363 = sphi 0, %s365
      %s366 = sphi 0, %s363
      %s367 = sphi 0, %s366
      %s383 = sphi 0, %s367
      %s389 = sphi 0, %s391
      %s392 = sphi 0, %s389
      %s393 = sphi 0, %s392
      %s409 = sphi 0, %s393
    $region4: #{hama_block_forward.5} parent=1 // loop_header_branch
      %23 = sbr.rel (%p21) target = $region8
    $region5: #{hama_block_forward.5} parent=1 // loop_body
      %s25 = ssub.s32 %s20, 1
      %s26 = ssub.s32 %s20, 2
      %s27 = sadd.s32 %s20, 1
      %s28 = ssub.s32 %s20, %s27
      %p29 = scmp.eq.s32.totalorder %s28, 0
      %s31 = sadd.s32 %s30, 1
      %s32 = scalar_select %p29, %s30, %s31
      %p35 = pneg %p29
      %p36 = scmp.eq.s32.totalorder %s20, 1
      %p37 = por %p35, %p36
      %p38 = scmp.ne.s32.totalorder %s30, %s33
      %p39 = scmp.eq.s32.totalorder %s20, 0
      %p40 = por %p38, %p39
      %p41 = scmp.ne.s32.totalorder %s30, %s33
      %p42 = scmp.eq.s32.totalorder %s25, 1
      %p43 = por %p41, %p42
      %p44 = scmp.ne.s32.totalorder %s33, %s34
      %p45 = scmp.eq.s32.totalorder %s25, 0
      %p46 = por %p44, %p45
      %p47 = scmp.ne.s32.totalorder %s33, %s34
      %p48 = scmp.eq.s32.totalorder %s26, 1
      %p49 = por %p47, %p48
      %p51 = scmp.ne.s32.totalorder %s34, %s50
      %p52 = scmp.eq.s32.totalorder %s26, 0
      %p53 = por %p51, %p52
      %s55 = sadd.s32 %s54, 1
      %p58 = scmp.eq.s32.totalorder %s20, 1
      %p59 = scmp.ne.s32.totalorder %s54, %s56
      %p60 = scmp.eq.s32.totalorder %s20, 0
      %p61 = por %p59, %p60
      %p62 = scmp.ne.s32.totalorder %s54, %s56
      %p63 = scmp.eq.s32.totalorder %s25, 1
      %p64 = por %p62, %p63
      %p65 = scmp.ne.s32.totalorder %s56, %s57
      %p66 = scmp.eq.s32.totalorder %s25, 0
      %p67 = por %p65, %p66
      %p68 = scmp.ne.s32.totalorder %s56, %s57
      %p69 = scmp.eq.s32.totalorder %s26, 1
      %p70 = por %p68, %p69
      %p72 = scmp.ne.s32.totalorder %s57, %s71
      %p73 = scmp.eq.s32.totalorder %s26, 0
      %p74 = por %p72, %p73
      %s75 = ssub.s32 %s20, %s27
      %p76 = scmp.eq.s32.totalorder %s75, 0
      %s78 = sadd.s32 %s77, 1
      %s79 = scalar_select %p76, %s77, %s78
      %p82 = pneg %p76
      %p83 = scmp.eq.s32.totalorder %s20, 1
      %p84 = por %p82, %p83
      %p85 = scmp.ne.s32.totalorder %s77, %s80
      %p86 = scmp.eq.s32.totalorder %s20, 0
      %p87 = por %p85, %p86
      %p88 = scmp.ne.s32.totalorder %s77, %s80
      %p89 = scmp.eq.s32.totalorder %s25, 1
      %p90 = por %p88, %p89
      %p91 = scmp.ne.s32.totalorder %s80, %s81
      %p92 = scmp.eq.s32.totalorder %s25, 0
      %p93 = por %p91, %p92
      %p94 = scmp.ne.s32.totalorder %s80, %s81
      %p95 = scmp.eq.s32.totalorder %s26, 1
      %p96 = por %p94, %p95
      %p98 = scmp.ne.s32.totalorder %s81, %s97
      %p99 = scmp.eq.s32.totalorder %s26, 0
      %p100 = por %p98, %p99
      %s101 = ssub.s32 %s20, %s27
      %p102 = scmp.eq.s32.totalorder %s101, 0
      %s104 = sadd.s32 %s103, 1
      %s105 = scalar_select %p102, %s103, %s104
      %p108 = pneg %p102
      %p109 = scmp.eq.s32.totalorder %s20, 1
      %p110 = por %p108, %p109
      %p111 = scmp.ne.s32.totalorder %s103, %s106
      %p112 = scmp.eq.s32.totalorder %s20, 0
      %p113 = por %p111, %p112
      %p114 = scmp.ne.s32.totalorder %s103, %s106
      %p115 = scmp.eq.s32.totalorder %s25, 1
      %p116 = por %p114, %p115
      %p117 = scmp.ne.s32.totalorder %s106, %s107
      %p118 = scmp.eq.s32.totalorder %s25, 0
      %p119 = por %p117, %p118
      %p120 = scmp.ne.s32.totalorder %s106, %s107
      %p121 = scmp.eq.s32.totalorder %s26, 1
      %p122 = por %p120, %p121
      %p124 = scmp.ne.s32.totalorder %s107, %s123
      %p125 = scmp.eq.s32.totalorder %s26, 0
      %p126 = por %p124, %p125
      %s127 = ssub.s32 %s20, %s27
      %p128 = scmp.eq.s32.totalorder %s127, 0
      %s130 = sadd.s32 %s129, 1
      %s131 = scalar_select %p128, %s129, %s130
      %p134 = pneg %p128
      %p135 = scmp.eq.s32.totalorder %s20, 1
      %p136 = por %p134, %p135
      %p137 = scmp.ne.s32.totalorder %s129, %s132
      %p138 = scmp.eq.s32.totalorder %s20, 0
      %p139 = por %p137, %p138
      %p140 = scmp.ne.s32.totalorder %s129, %s132
      %p141 = scmp.eq.s32.totalorder %s25, 1
      %p142 = por %p140, %p141
      %p143 = scmp.ne.s32.totalorder %s132, %s133
      %p144 = scmp.eq.s32.totalorder %s25, 0
      %p145 = por %p143, %p144
      %p146 = scmp.ne.s32.totalorder %s132, %s133
      %p147 = scmp.eq.s32.totalorder %s26, 1
      %p148 = por %p146, %p147
      %p150 = scmp.ne.s32.totalorder %s133, %s149
      %p151 = scmp.eq.s32.totalorder %s26, 0
      %p152 = por %p150, %p151
      %s153 = ssub.s32 %s20, %s27
      %p154 = scmp.eq.s32.totalorder %s153, 0
      %s156 = sadd.s32 %s155, 1
      %s157 = scalar_select %p154, %s155, %s156
      %p160 = pneg %p154
      %p161 = scmp.eq.s32.totalorder %s20, 1
      %p162 = por %p160, %p161
      %p163 = scmp.ne.s32.totalorder %s155, %s158
      %p164 = scmp.eq.s32.totalorder %s20, 0
      %p165 = por %p163, %p164
      %p166 = scmp.ne.s32.totalorder %s155, %s158
      %p167 = scmp.eq.s32.totalorder %s25, 1
      %p168 = por %p166, %p167
      %p169 = scmp.ne.s32.totalorder %s158, %s159
      %p170 = scmp.eq.s32.totalorder %s25, 0
      %p171 = por %p169, %p170
      %p172 = scmp.ne.s32.totalorder %s158, %s159
      %p173 = scmp.eq.s32.totalorder %s26, 1
      %p174 = por %p172, %p173
      %p176 = scmp.ne.s32.totalorder %s159, %s175
      %p177 = scmp.eq.s32.totalorder %s26, 0
      %p178 = por %p176, %p177
      %s179 = ssub.s32 %s20, %s27
      %p180 = scmp.eq.s32.totalorder %s179, 0
      %s182 = sadd.s32 %s181, 1
      %s183 = scalar_select %p180, %s181, %s182
      %p186 = pneg %p180
      %p187 = scmp.eq.s32.totalorder %s20, 1
      %p188 = por %p186, %p187
      %p189 = scmp.ne.s32.totalorder %s181, %s184
      %p190 = scmp.eq.s32.totalorder %s20, 0
      %p191 = por %p189, %p190
      %p192 = scmp.ne.s32.totalorder %s181, %s184
      %p193 = scmp.eq.s32.totalorder %s25, 1
      %p194 = por %p192, %p193
      %p195 = scmp.ne.s32.totalorder %s184, %s185
      %p196 = scmp.eq.s32.totalorder %s25, 0
      %p197 = por %p195, %p196
      %p198 = scmp.ne.s32.totalorder %s184, %s185
      %p199 = scmp.eq.s32.totalorder %s26, 1
      %p200 = por %p198, %p199
      %p202 = scmp.ne.s32.totalorder %s185, %s201
      %p203 = scmp.eq.s32.totalorder %s26, 0
      %p204 = por %p202, %p203
      %s205 = ssub.s32 %s20, %s27
      %p206 = scmp.eq.s32.totalorder %s205, 0
      %s208 = sadd.s32 %s207, 1
      %s209 = scalar_select %p206, %s207, %s208
      %p212 = pneg %p206
      %p213 = scmp.eq.s32.totalorder %s20, 1
      %p214 = por %p212, %p213
      %p215 = scmp.ne.s32.totalorder %s207, %s210
      %p216 = scmp.eq.s32.totalorder %s20, 0
      %p217 = por %p215, %p216
      %p218 = scmp.ne.s32.totalorder %s207, %s210
      %p219 = scmp.eq.s32.totalorder %s25, 1
      %p220 = por %p218, %p219
      %p221 = scmp.ne.s32.totalorder %s210, %s211
      %p222 = scmp.eq.s32.totalorder %s25, 0
      %p223 = por %p221, %p222
      %p224 = scmp.ne.s32.totalorder %s210, %s211
      %p225 = scmp.eq.s32.totalorder %s26, 1
      %p226 = por %p224, %p225
      %p228 = scmp.ne.s32.totalorder %s211, %s227
      %p229 = scmp.eq.s32.totalorder %s26, 0
      %p230 = por %p228, %p229
      %s231 = ssub.s32 %s20, %s27
      %p232 = scmp.eq.s32.totalorder %s231, 0
      %s234 = sadd.s32 %s233, 1
      %s235 = scalar_select %p232, %s233, %s234
      %p238 = pneg %p232
      %p239 = scmp.eq.s32.totalorder %s20, 1
      %p240 = por %p238, %p239
      %p241 = scmp.ne.s32.totalorder %s233, %s236
      %p242 = scmp.eq.s32.totalorder %s20, 0
      %p243 = por %p241, %p242
      %p244 = scmp.ne.s32.totalorder %s233, %s236
      %p245 = scmp.eq.s32.totalorder %s25, 1
      %p246 = por %p244, %p245
      %p247 = scmp.ne.s32.totalorder %s236, %s237
      %p248 = scmp.eq.s32.totalorder %s25, 0
      %p249 = por %p247, %p248
      %p250 = scmp.ne.s32.totalorder %s236, %s237
      %p251 = scmp.eq.s32.totalorder %s26, 1
      %p252 = por %p250, %p251
      %p254 = scmp.ne.s32.totalorder %s237, %s253
      %p255 = scmp.eq.s32.totalorder %s26, 0
      %p256 = por %p254, %p255
      %s257 = ssub.s32 %s20, %s27
      %p258 = scmp.eq.s32.totalorder %s257, 0
      %s260 = sadd.s32 %s259, 1
      %s261 = scalar_select %p258, %s259, %s260
      %p264 = pneg %p258
      %p265 = scmp.eq.s32.totalorder %s20, 1
      %p266 = por %p264, %p265
      %p267 = scmp.ne.s32.totalorder %s259, %s262
      %p268 = scmp.eq.s32.totalorder %s20, 0
      %p269 = por %p267, %p268
      %p270 = scmp.ne.s32.totalorder %s259, %s262
      %p271 = scmp.eq.s32.totalorder %s25, 1
      %p272 = por %p270, %p271
      %p273 = scmp.ne.s32.totalorder %s262, %s263
      %p274 = scmp.eq.s32.totalorder %s25, 0
      %p275 = por %p273, %p274
      %p276 = scmp.ne.s32.totalorder %s262, %s263
      %p277 = scmp.eq.s32.totalorder %s26, 1
      %p278 = por %p276, %p277
      %p280 = scmp.ne.s32.totalorder %s263, %s279
      %p281 = scmp.eq.s32.totalorder %s26, 0
      %p282 = por %p280, %p281
      %s283 = ssub.s32 %s20, %s27
      %p284 = scmp.eq.s32.totalorder %s283, 0
      %s286 = sadd.s32 %s285, 1
      %s287 = scalar_select %p284, %s285, %s286
      %p290 = pneg %p284
      %p291 = scmp.eq.s32.totalorder %s20, 1
      %p292 = por %p290, %p291
      %p293 = scmp.ne.s32.totalorder %s285, %s288
      %p294 = scmp.eq.s32.totalorder %s20, 0
      %p295 = por %p293, %p294
      %p296 = scmp.ne.s32.totalorder %s285, %s288
      %p297 = scmp.eq.s32.totalorder %s25, 1
      %p298 = por %p296, %p297
      %p299 = scmp.ne.s32.totalorder %s288, %s289
      %p300 = scmp.eq.s32.totalorder %s25, 0
      %p301 = por %p299, %p300
      %p302 = scmp.ne.s32.totalorder %s288, %s289
      %p303 = scmp.eq.s32.totalorder %s26, 1
      %p304 = por %p302, %p303
      %p306 = scmp.ne.s32.totalorder %s289, %s305
      %p307 = scmp.eq.s32.totalorder %s26, 0
      %p308 = por %p306, %p307
      %s309 = ssub.s32 %s20, %s27
      %p310 = scmp.eq.s32.totalorder %s309, 0
      %s312 = sadd.s32 %s311, 1
      %s313 = scalar_select %p310, %s311, %s312
      %p316 = pneg %p310
      %p317 = scmp.eq.s32.totalorder %s20, 1
      %p318 = por %p316, %p317
      %p319 = scmp.ne.s32.totalorder %s311, %s314
      %p320 = scmp.eq.s32.totalorder %s20, 0
      %p321 = por %p319, %p320
      %p322 = scmp.ne.s32.totalorder %s311, %s314
      %p323 = scmp.eq.s32.totalorder %s25, 1
      %p324 = por %p322, %p323
      %p325 = scmp.ne.s32.totalorder %s314, %s315
      %p326 = scmp.eq.s32.totalorder %s25, 0
      %p327 = por %p325, %p326
      %p328 = scmp.ne.s32.totalorder %s314, %s315
      %p329 = scmp.eq.s32.totalorder %s26, 1
      %p330 = por %p328, %p329
      %p332 = scmp.ne.s32.totalorder %s315, %s331
      %p333 = scmp.eq.s32.totalorder %s26, 0
      %p334 = por %p332, %p333
      %s335 = ssub.s32 %s20, %s27
      %p336 = scmp.eq.s32.totalorder %s335, 0
      %s338 = sadd.s32 %s337, 1
      %s339 = scalar_select %p336, %s337, %s338
      %p342 = pneg %p336
      %p343 = scmp.eq.s32.totalorder %s20, 1
      %p344 = por %p342, %p343
      %p345 = scmp.ne.s32.totalorder %s337, %s340
      %p346 = scmp.eq.s32.totalorder %s20, 0
      %p347 = por %p345, %p346
      %p348 = scmp.ne.s32.totalorder %s337, %s340
      %p349 = scmp.eq.s32.totalorder %s25, 1
      %p350 = por %p348, %p349
      %p351 = scmp.ne.s32.totalorder %s340, %s341
      %p352 = scmp.eq.s32.totalorder %s25, 0
      %p353 = por %p351, %p352
      %p354 = scmp.ne.s32.totalorder %s340, %s341
      %p355 = scmp.eq.s32.totalorder %s26, 1
      %p356 = por %p354, %p355
      %p358 = scmp.ne.s32.totalorder %s341, %s357
      %p359 = scmp.eq.s32.totalorder %s26, 0
      %p360 = por %p358, %p359
      %s361 = ssub.s32 %s20, %s27
      %p362 = scmp.eq.s32.totalorder %s361, 0
      %s364 = sadd.s32 %s363, 1
      %s365 = scalar_select %p362, %s363, %s364
      %p368 = pneg %p362
      %p369 = scmp.eq.s32.totalorder %s20, 1
      %p370 = por %p368, %p369
      %p371 = scmp.ne.s32.totalorder %s363, %s366
      %p372 = scmp.eq.s32.totalorder %s20, 0
      %p373 = por %p371, %p372
      %p374 = scmp.ne.s32.totalorder %s363, %s366
      %p375 = scmp.eq.s32.totalorder %s25, 1
      %p376 = por %p374, %p375
      %p377 = scmp.ne.s32.totalorder %s366, %s367
      %p378 = scmp.eq.s32.totalorder %s25, 0
      %p379 = por %p377, %p378
      %p380 = scmp.ne.s32.totalorder %s366, %s367
      %p381 = scmp.eq.s32.totalorder %s26, 1
      %p382 = por %p380, %p381
      %p384 = scmp.ne.s32.totalorder %s367, %s383
      %p385 = scmp.eq.s32.totalorder %s26, 0
      %p386 = por %p384, %p385
      %s387 = ssub.s32 %s20, %s27
      %p388 = scmp.eq.s32.totalorder %s387, 0
      %s390 = sadd.s32 %s389, 1
      %s391 = scalar_select %p388, %s389, %s390
      %p394 = pneg %p388
      %p395 = scmp.eq.s32.totalorder %s20, 1
      %p396 = por %p394, %p395
      %p397 = scmp.ne.s32.totalorder %s389, %s392
      %p398 = scmp.eq.s32.totalorder %s20, 0
      %p399 = por %p397, %p398
      %p400 = scmp.ne.s32.totalorder %s389, %s392
      %p401 = scmp.eq.s32.totalorder %s25, 1
      %p402 = por %p400, %p401
      %p403 = scmp.ne.s32.totalorder %s392, %s393
      %p404 = scmp.eq.s32.totalorder %s25, 0
      %p405 = por %p403, %p404
      %p406 = scmp.ne.s32.totalorder %s392, %s393
      %p407 = scmp.eq.s32.totalorder %s26, 1
      %p408 = por %p406, %p407
      %p410 = scmp.ne.s32.totalorder %s393, %s409
      %p411 = scmp.eq.s32.totalorder %s26, 0
      %p412 = por %p410, %p411
      %p413 = scmp.le.s32.totalorder 1, %s20
      %p414 = scmp.lt.s32.totalorder %s20, 3
      %p415 = pnand %p413, %p414
      %p416 = pneg %p415
      // Predicated region
      $region9: #{hama_block_forward.5} parent=5 // pred_check
        _
      $region10: #{hama_block_forward.5} parent=5 // pred_check_branch
        %418 = sbr.rel (%p415) target = $region12
      $region11: #{hama_block_forward.5} parent=5 // pred_region
        %s419 = ssub.s32 %s20, 1
        // Predicated region
        $region13: #{hama_block_forward.5} parent=11 // pred_check
          %p420 = pneg %p67
        $region14: #{hama_block_forward.5} parent=11 // pred_check_branch
          %422 = sbr.rel (%p420) target = $region16
        $region15: #{hama_block_forward.5} parent=11 // pred_region
          _
        $region16: #{hama_block_forward.5} parent=11 // pred_fallthru
          _
      $region12: #{hama_block_forward.5} parent=5 // pred_fallthru
        _
      %p423 = scmp.lt.s32.totalorder %s20, 2
      // Predicated region
      $region17: #{hama_block_forward.5} parent=5 // pred_check
        %p424 = pneg %p423
      $region18: #{hama_block_forward.5} parent=5 // pred_check_branch
        %426 = sbr.rel (%p424) target = $region20
      $region19: #{hama_block_forward.5} parent=5 // pred_region
        // Predicated region
        $region21: #{hama_block_forward.5} parent=19 // pred_check
          %p427 = pneg %p40
        $region22: #{hama_block_forward.5} parent=19 // pred_check_branch
          %429 = sbr.rel (%p427) target = $region24
        $region23: #{hama_block_forward.5} parent=19 // pred_region
          %s430 = sand.u32 %s30, 1
          %s431 = sand.u32 %s30, 1
          %s432 = smul.addr %s431, 16
          %s433 = scalar_lea.vmem [#allocation2], %s432
          %s434 = smul.addr %s20, 8
          %s435 = scalar_lea.vmem %s0, %s434
          // Predicated region
          $region25: #{hama_block_forward.5} parent=23 // pred_check
            _
          $region26: #{hama_block_forward.5} parent=23 // pred_check_branch
            %437 = sbr.rel (0) target = $region28
          $region27: #{hama_block_forward.5} parent=23 // pred_region
            // Predicated region
            $region29: #{hama_block_forward.5} parent=27 // pred_check
              _
            $region30: #{hama_block_forward.5} parent=27 // pred_check_branch
              %439 = sbr.rel (0) target = $region32
            $region31: #{hama_block_forward.5} parent=27 // pred_region
              // Predicated region
              $region44: #{hama_block_forward.5} parent=31 // pred_check
                _
              $region45: #{hama_block_forward.5} parent=31 // pred_check_branch
                %457 = sbr.rel (0) target = $region47
              $region46: #{hama_block_forward.5} parent=31 // pred_region
                loop: start=0, step=1, limit=1
                $region48: #{hama_block_forward.5} parent=46 // loop_pre_header
                  _
                $region49: #{hama_block_forward.5} parent=46 // loop_header
                  %s459 = sphi 0, %s463
                  %p460 = scmp.ge.s32.totalorder %s459, 1
                  %s464 = sphi %s435, %s435
                  %s465 = sphi %s433, %s433
                $region50: #{hama_block_forward.5} parent=46 // loop_header_branch
                  %462 = sbr.rel (%p460) target = $region54
                $region51: #{hama_block_forward.5} parent=46 // loop_body
                  %v466 = vld [vmem:[%s464] sm:$0xff]
                  %467 = vst [vmem:[%s465] sm:$0xff] %v466
                  %v468 = vld [vmem:[%s464 + $0x10] sm:$0xff]
                  %469 = vst [vmem:[%s465 + $0x8] sm:$0xff] %v468
                $region52: #{hama_block_forward.5} parent=46 // loop_footer
                  %s463 = sadd.s32 1, %s459
                $region53: #{hama_block_forward.5} parent=46 // loop_footer_branch
                  %458 = sbr.rel target = $region49
                $region54: #{hama_block_forward.5} parent=46 // loop_exit
                  _
              $region47: #{hama_block_forward.5} parent=31 // pred_fallthru
                _
              // Predicated region
              $region55: #{hama_block_forward.5} parent=31 // pred_check
                _
              $region56: #{hama_block_forward.5} parent=31 // pred_check_branch
                %471 = sbr.rel target = $region58
              $region57: #{hama_block_forward.5} parent=31 // pred_region
                _
              $region58: #{hama_block_forward.5} parent=31 // pred_fallthru
                _
            $region32: #{hama_block_forward.5} parent=27 // pred_fallthru
              _
            // Predicated region
            $region33: #{hama_block_forward.5} parent=27 // pred_check
              _
            $region34: #{hama_block_forward.5} parent=27 // pred_check_branch
              %441 = sbr.rel target = $region36
            $region35: #{hama_block_forward.5} parent=27 // pred_region
              %s443 = ssub.s32 256, 1
              loop: start=0, step=1, limit=1
              $region37: #{hama_block_forward.5} parent=35 // loop_pre_header
                _
              $region38: #{hama_block_forward.5} parent=35 // loop_header
                %s445 = sphi 0, %s449
                %p446 = scmp.ge.s32.totalorder %s445, 1
                %s450 = sphi %s435, %s435
                %s451 = sphi %s433, %s433
              $region39: #{hama_block_forward.5} parent=35 // loop_header_branch
                %448 = sbr.rel (%p446) target = $region43
              $region40: #{hama_block_forward.5} parent=35 // loop_body
                %v452 = vld [vmem:[%s450] sm:%s443]
                %453 = vst [vmem:[%s451] sm:%s443] %v452
                %v454 = vld [vmem:[%s450 + $0x10] sm:%s443]
                %455 = vst [vmem:[%s451 + $0x8] sm:%s443] %v454
              $region41: #{hama_block_forward.5} parent=35 // loop_footer
                %s449 = sadd.s32 1, %s445
              $region42: #{hama_block_forward.5} parent=35 // loop_footer_branch
                %444 = sbr.rel target = $region38
              $region43: #{hama_block_forward.5} parent=35 // loop_exit
                _
            $region36: #{hama_block_forward.5} parent=27 // pred_fallthru
              _
          $region28: #{hama_block_forward.5} parent=23 // pred_fallthru
            _
          %472 = vnop
        $region24: #{hama_block_forward.5} parent=19 // pred_fallthru
          _
        // Predicated region
        $region59: #{hama_block_forward.5} parent=19 // pred_check
          %p473 = pneg %p87
        $region60: #{hama_block_forward.5} parent=19 // pred_check_branch
          %475 = sbr.rel (%p473) target = $region62
        $region61: #{hama_block_forward.5} parent=19 // pred_region
          %p476 = scmp.lt.s32.totalorder %s20, 1
          %s477 = scalar_select %p476, %s20, 1
          %s478 = smul.addr %s477, 4
          %s479 = smul.addr %s478, 4
          %s480 = scalar_lea.vmem %s2, %s479
        $region62: #{hama_block_forward.5} parent=19 // pred_fallthru
          _
        // Predicated region
        $region63: #{hama_block_forward.5} parent=19 // pred_check
          %p481 = pneg %p113
        $region64: #{hama_block_forward.5} parent=19 // pred_check_branch
          %483 = sbr.rel (%p481) target = $region66
        $region65: #{hama_block_forward.5} parent=19 // pred_region
          %p484 = scmp.lt.s32.totalorder %s20, 1
          %s485 = scalar_select %p484, %s20, 1
          %s486 = scalar_lea.vmem %s3, %s485
        $region66: #{hama_block_forward.5} parent=19 // pred_fallthru
          _
        // Predicated region
        $region67: #{hama_block_forward.5} parent=19 // pred_check
          %p487 = pneg %p139
        $region68: #{hama_block_forward.5} parent=19 // pred_check_branch
          %489 = sbr.rel (%p487) target = $region70
        $region69: #{hama_block_forward.5} parent=19 // pred_region
          %p490 = scmp.lt.s32.totalorder %s20, 1
          %s491 = scalar_select %p490, %s20, 1
          %s492 = smul.addr %s491, 4
          %s493 = smul.addr %s492, 4
          %s494 = scalar_lea.vmem %s4, %s493
        $region70: #{hama_block_forward.5} parent=19 // pred_fallthru
          _
        // Predicated region
        $region71: #{hama_block_forward.5} parent=19 // pred_check
          %p495 = pneg %p165
        $region72: #{hama_block_forward.5} parent=19 // pred_check_branch
          %497 = sbr.rel (%p495) target = $region74
        $region73: #{hama_block_forward.5} parent=19 // pred_region
          %p498 = scmp.lt.s32.totalorder %s20, 1
          %s499 = scalar_select %p498, %s20, 1
          %s500 = scalar_lea.vmem %s5, %s499
        $region74: #{hama_block_forward.5} parent=19 // pred_fallthru
          _
        // Predicated region
        $region75: #{hama_block_forward.5} parent=19 // pred_check
          %p501 = pneg %p191
        $region76: #{hama_block_forward.5} parent=19 // pred_check_branch
          %503 = sbr.rel (%p501) target = $region78
        $region77: #{hama_block_forward.5} parent=19 // pred_region
          %p504 = scmp.lt.s32.totalorder %s20, 1
          %s505 = scalar_select %p504, %s20, 1
          %s506 = scalar_lea.vmem %s6, %s505
        $region78: #{hama_block_forward.5} parent=19 // pred_fallthru
          _
        // Predicated region
        $region79: #{hama_block_forward.5} parent=19 // pred_check
          %p507 = pneg %p217
        $region80: #{hama_block_forward.5} parent=19 // pred_check_branch
          %509 = sbr.rel (%p507) target = $region82
        $region81: #{hama_block_forward.5} parent=19 // pred_region
          %p510 = scmp.lt.s32.totalorder %s20, 1
          %s511 = scalar_select %p510, %s20, 1
          %s512 = scalar_lea.vmem %s7, %s511
        $region82: #{hama_block_forward.5} parent=19 // pred_fallthru
          _
        // Predicated region
        $region83: #{hama_block_forward.5} parent=19 // pred_check
          %p513 = pneg %p243
        $region84: #{hama_block_forward.5} parent=19 // pred_check_branch
          %515 = sbr.rel (%p513) target = $region86
        $region85: #{hama_block_forward.5} parent=19 // pred_region
          %p516 = scmp.lt.s32.totalorder %s20, 1
          %s517 = scalar_select %p516, %s20, 1
          %s518 = smul.addr %s517, 64
          %s519 = smul.addr %s518, 4
          %s520 = scalar_lea.vmem %s8, %s519
        $region86: #{hama_block_forward.5} parent=19 // pred_fallthru
          _
        // Predicated region
        $region87: #{hama_block_forward.5} parent=19 // pred_check
          %p521 = pneg %p269
        $region88: #{hama_block_forward.5} parent=19 // pred_check_branch
          %523 = sbr.rel (%p521) target = $region90
        $region89: #{hama_block_forward.5} parent=19 // pred_region
          %p524 = scmp.lt.s32.totalorder %s20, 1
          %s525 = scalar_select %p524, %s20, 1
          %s526 = smul.addr %s525, 16
          %s527 = scalar_lea.vmem %s9, %s526
        $region90: #{hama_block_forward.5} parent=19 // pred_fallthru
          _
        // Predicated region
        $region91: #{hama_block_forward.5} parent=19 // pred_check
          %p528 = pneg %p295
        $region92: #{hama_block_forward.5} parent=19 // pred_check_branch
          %530 = sbr.rel (%p528) target = $region94
        $region93: #{hama_block_forward.5} parent=19 // pred_region
          %p531 = scmp.lt.s32.totalorder %s20, 1
          %s532 = scalar_select %p531, %s20, 1
          %s533 = smul.addr %s532, 256
          %s534 = smul.addr %s533, 4
          %s535 = scalar_lea.vmem %s10, %s534
        $region94: #{hama_block_forward.5} parent=19 // pred_fallthru
          _
        // Predicated region
        $region95: #{hama_block_forward.5} parent=19 // pred_check
          %p536 = pneg %p321
        $region96: #{hama_block_forward.5} parent=19 // pred_check_branch
          %538 = sbr.rel (%p536) target = $region98
        $region97: #{hama_block_forward.5} parent=19 // pred_region
          %p539 = scmp.lt.s32.totalorder %s20, 1
          %s540 = scalar_select %p539, %s20, 1
          %s541 = scalar_lea.vmem %s11, %s540
        $region98: #{hama_block_forward.5} parent=19 // pred_fallthru
          _
        // Predicated region
        $region99: #{hama_block_forward.5} parent=19 // pred_check
          %p542 = pneg %p347
        $region100: #{hama_block_forward.5} parent=19 // pred_check_branch
          %544 = sbr.rel (%p542) target = $region102
        $region101: #{hama_block_forward.5} parent=19 // pred_region
          %p545 = scmp.lt.s32.totalorder %s20, 1
          %s546 = scalar_select %p545, %s20, 1
          %s547 = scalar_lea.vmem %s12, %s546
        $region102: #{hama_block_forward.5} parent=19 // pred_fallthru
          _
        // Predicated region
        $region103: #{hama_block_forward.5} parent=19 // pred_check
          %p548 = pneg %p373
        $region104: #{hama_block_forward.5} parent=19 // pred_check_branch
          %550 = sbr.rel (%p548) target = $region106
        $region105: #{hama_block_forward.5} parent=19 // pred_region
          %p551 = scmp.lt.s32.totalorder %s20, 1
          %s552 = scalar_select %p551, %s20, 1
          %s553 = scalar_lea.vmem %s13, %s552
        $region106: #{hama_block_forward.5} parent=19 // pred_fallthru
          _
      $region20: #{hama_block_forward.5} parent=5 // pred_fallthru
        _
      %p554 = scmp.le.s32.totalorder 1, %s20
      %p555 = scmp.lt.s32.totalorder %s20, 3
      %p556 = pnand %p554, %p555
      %p557 = pneg %p556
      // Predicated region
      $region107: #{hama_block_forward.5} parent=5 // pred_check
        _
      $region108: #{hama_block_forward.5} parent=5 // pred_check_branch
        %559 = sbr.rel (%p556) target = $region110
      $region109: #{hama_block_forward.5} parent=5 // pred_region
        %s560 = ssub.s32 %s20, 1
        %s561 = sand.u32 %s33, 1
        %s562 = sand.u32 %s33, 1
        %s563 = smul.addr %s562, 16
        %s564 = scalar_lea.vmem [#allocation2], %s563
        // Predicated region
        $region111: #{hama_block_forward.5} parent=109 // pred_check
          %p565 = pneg %p46
        $region112: #{hama_block_forward.5} parent=109 // pred_check_branch
          %567 = sbr.rel (%p565) target = $region114
        $region113: #{hama_block_forward.5} parent=109 // pred_region
          _
        $region114: #{hama_block_forward.5} parent=109 // pred_fallthru
          _
        %s568 = sand.u32 %s33, 1
        %s569 = sand.u32 %s33, 1
        %s570 = smul.addr %s569, 16
        %s571 = scalar_lea.vmem [#allocation2], %s570
        %p572 = pneg %p46
        %p573 = pneg %p43
        %p574 = pneg %p67
        %p575 = pneg %p64
        %p576 = scmp.lt.s32.totalorder %s25, 1
        %s577 = scalar_select %p576, %s25, 1
        %s578 = smul.addr %s577, 4
        %s579 = smul.addr %s578, 4
        %s580 = scalar_lea.vmem %s2, %s579
        %p581 = pneg %p93
        %p582 = pneg %p90
        %p583 = scmp.lt.s32.totalorder %s25, 1
        %s584 = scalar_select %p583, %s25, 1
        %s585 = scalar_lea.vmem %s3, %s584
        %p586 = pneg %p119
        %p587 = pneg %p116
        %p588 = scmp.lt.s32.totalorder %s25, 1
        %s589 = scalar_select %p588, %s25, 1
        %s590 = smul.addr %s589, 4
        %s591 = smul.addr %s590, 4
        %s592 = scalar_lea.vmem %s4, %s591
        %p593 = pneg %p145
        %p594 = pneg %p142
        %p595 = scmp.lt.s32.totalorder %s25, 1
        %s596 = scalar_select %p595, %s25, 1
        %s597 = scalar_lea.vmem %s5, %s596
        %p598 = pneg %p171
        %p599 = pneg %p168
        %p600 = scmp.lt.s32.totalorder %s25, 1
        %s601 = scalar_select %p600, %s25, 1
        %s602 = scalar_lea.vmem %s6, %s601
        %p603 = pneg %p197
        %p604 = pneg %p194
        %p605 = scmp.lt.s32.totalorder %s25, 1
        %s606 = scalar_select %p605, %s25, 1
        %s607 = scalar_lea.vmem %s7, %s606
        %p608 = pneg %p223
        %p609 = pneg %p220
        %p610 = scmp.lt.s32.totalorder %s25, 1
        %s611 = scalar_select %p610, %s25, 1
        %s612 = smul.addr %s611, 64
        %s613 = smul.addr %s612, 4
        %s614 = scalar_lea.vmem %s8, %s613
        %p615 = pneg %p249
        %p616 = pneg %p246
        %p617 = scmp.lt.s32.totalorder %s25, 1
        %s618 = scalar_select %p617, %s25, 1
        %s619 = smul.addr %s618, 16
        %s620 = scalar_lea.vmem %s9, %s619
        %p621 = pneg %p275
        %p622 = pneg %p272
        %p623 = scmp.lt.s32.totalorder %s25, 1
        %s624 = scalar_select %p623, %s25, 1
        %s625 = smul.addr %s624, 256
        %s626 = smul.addr %s625, 4
        %s627 = scalar_lea.vmem %s10, %s626
        %p628 = pneg %p301
        %p629 = pneg %p298
        %p630 = scmp.lt.s32.totalorder %s25, 1
        %s631 = scalar_select %p630, %s25, 1
        %s632 = scalar_lea.vmem %s11, %s631
        %p633 = pneg %p327
        %p634 = pneg %p324
        %p635 = scmp.lt.s32.totalorder %s25, 1
        %s636 = scalar_select %p635, %s25, 1
        %s637 = scalar_lea.vmem %s12, %s636
        %p638 = pneg %p353
        %p639 = pneg %p350
        %p640 = scmp.lt.s32.totalorder %s25, 1
        %s641 = scalar_select %p640, %s25, 1
        %s642 = scalar_lea.vmem %s13, %s641
        %p643 = pneg %p379
        %p644 = pneg %p376
        %p645 = pneg %p405
        %p646 = pneg %p402
        %s647 = sand.u32 %s392, 1
        %s648 = sand.u32 %s392, 1
        %s649 = smul.addr %s648, 16
        %s650 = scalar_lea.vmem [#allocation3], %s649
        %p651 = scmp.lt.s32.totalorder %s25, 1
        %s652 = scalar_select %p651, %s25, 1
        %s653 = smul.addr %s652, 4
        %s654 = smul.addr %s653, 4
        %s655 = scalar_lea.vmem %s2, %s654
        %p656 = scmp.lt.s32.totalorder %s25, 1
        %s657 = scalar_select %p656, %s25, 1
        %s658 = scalar_lea.vmem %s3, %s657
        %p659 = scmp.lt.s32.totalorder %s25, 1
        %s660 = scalar_select %p659, %s25, 1
        %s661 = smul.addr %s660, 4
        %s662 = smul.addr %s661, 4
        %s663 = scalar_lea.vmem %s4, %s662
        %p664 = scmp.lt.s32.totalorder %s25, 1
        %s665 = scalar_select %p664, %s25, 1
        %s666 = scalar_lea.vmem %s5, %s665
        %p667 = scmp.lt.s32.totalorder %s25, 1
        %s668 = scalar_select %p667, %s25, 1
        %s669 = scalar_lea.vmem %s6, %s668
        %p670 = scmp.lt.s32.totalorder %s25, 1
        %s671 = scalar_select %p670, %s25, 1
        %s672 = scalar_lea.vmem %s7, %s671
        %p673 = scmp.lt.s32.totalorder %s25, 1
        %s674 = scalar_select %p673, %s25, 1
        %s675 = smul.addr %s674, 64
        %s676 = smul.addr %s675, 4
        %s677 = scalar_lea.vmem %s8, %s676
        %p678 = scmp.lt.s32.totalorder %s25, 1
        %s679 = scalar_select %p678, %s25, 1
        %s680 = smul.addr %s679, 16
        %s681 = scalar_lea.vmem %s9, %s680
        %p682 = scmp.lt.s32.totalorder %s25, 1
        %s683 = scalar_select %p682, %s25, 1
        %s684 = smul.addr %s683, 256
        %s685 = smul.addr %s684, 4
        %s686 = scalar_lea.vmem %s10, %s685
        %p687 = scmp.lt.s32.totalorder %s25, 1
        %s688 = scalar_select %p687, %s25, 1
        %s689 = scalar_lea.vmem %s11, %s688
        %p690 = scmp.lt.s32.totalorder %s25, 1
        %s691 = scalar_select %p690, %s25, 1
        %s692 = scalar_lea.vmem %s12, %s691
        %p693 = scmp.lt.s32.totalorder %s25, 1
        %s694 = scalar_select %p693, %s25, 1
        %s695 = scalar_lea.vmem %s13, %s694
        %v697 = vld [vmem:[%s564] sm:$0xff]
        %v698 = vld [vmem:[%s564 + $0x8] sm:$0xff]
        %v699 = vld [vmem:[%s1] sm:$0xff]
        %v700 = vadd.f32 %v697, %v699
        %v701 = vadd.f32 %v698, %v699
        %v702 = vld [vmem:[%s655] sm:$0xf]
        %v703 = vld [vmem:[%s655 + $0x4] sm:$0xf]
        %v704 = vld [vmem:[%s655 + $0x8] sm:$0xf]
        %v705 = vld [vmem:[%s655 + $0xc] sm:$0xf]
        %v706 = vpack.c.bf16 %v701, %v700
        %v707 = vld [vmem:[%s658] sm:$0x1]
        %v709 = vperm.slane %v707, 0
        %v715 = vunpack.c.l.b16 %v702
        %v716 = vunpack.c.l.b16 %v703
        %v717 = vunpack.c.l.b16 %v704
        %v718 = vunpack.c.l.b16 %v705
        %v719 = vpack.c.b16 %v716, %v715
        %v720 = vpack.c.b16 %v718, %v717
        %vm723 = vcmask 261120
        %v725 = vsel %vm723, %v706, 0
        %727 = vmatpush.bf16.msra.mxu0 0
        %728 = vmatpush.bf16.msra.mxu0 0
        %729 = vmatpush.bf16.msra.mxu0 0
        %730 = vmatpush.bf16.msra.mxu0 0
        %731 = vmatpush.bf16.msra.mxu0 0
        %732 = vmatpush.bf16.msra.mxu0 0
        %733 = vmatpush.bf16.msra.mxu0 %v720
        %734 = vmatpush.bf16.msra.mxu0 %v719
        %735 = vmatmul.bf16.gmra.mxu0 %v725
        %v736 = vpop.f32.mrf.mxu0
        %v737 = vadd.f32 %v709, %v736
        %v738 = vpop.f32.mrf.mxu0
        %v739 = vadd.f32 %v709, %v738
        %740 = vdwg.mxu0
        %v741 = vpack.c.bf16 %v737, %v737
        %v742 = vpack.c.bf16 %v739, %v739
        %v744 = vunpack.c.l.b16 %v741
        %v745 = vpack.c.b16 %v744, %v744
        %746 = vrot.lane.b32.xlu0 %v745, 96
        %v747 = vpop.permute.xlu0 %746
        %vm748 = vcmask 64512
        %v750 = vsel %vm748, %v741, 0
        %v753 = vsel %vm748, %v747, 0
        %755 = vmatpush.bf16.xpose.msra.mxu0 0
        %756 = vmatpush.bf16.xpose.msra.mxu0 0
        %757 = vmatpush.bf16.xpose.msra.mxu0 0
        %758 = vmatpush.bf16.xpose.msra.mxu0 0
        %759 = vmatpush.bf16.xpose.msra.mxu0 0
        %760 = vmatpush.bf16.xpose.msra.mxu0 0
        %761 = vmatpush.bf16.xpose.msra.mxu0 0
        %762 = vmatpush.bf16.xpose.msra.mxu0 %v753
        %763 = vmatmul.bf16.gmra.mxu0 %v750
        %v764 = vpop.f32.mrf.mxu0
        %v765 = vadd.f32 0.0, %v764
        %v766 = vpop.f32.mrf.mxu0
        %767 = vdwg.mxu0
        %v769 = vunpack.c.l.b16 %v742
        %v770 = vpack.c.b16 %v769, %v769
        %771 = vrot.lane.b32.xlu0 %v770, 96
        %v772 = vpop.permute.xlu0 %771
        %v774 = vsel %vm748, %v742, 0
        %v777 = vsel %vm748, %v772, 0
        %779 = vmatpush.bf16.xpose.msra.mxu0 0
        %780 = vmatpush.bf16.xpose.msra.mxu0 0
        %781 = vmatpush.bf16.xpose.msra.mxu0 0
        %782 = vmatpush.bf16.xpose.msra.mxu0 0
        %783 = vmatpush.bf16.xpose.msra.mxu0 0
        %784 = vmatpush.bf16.xpose.msra.mxu0 0
        %785 = vmatpush.bf16.xpose.msra.mxu0 0
        %786 = vmatpush.bf16.xpose.msra.mxu0 %v777
        %787 = vmatmul.bf16.gmra.mxu0 %v774
        %v788 = vpop.f32.mrf.mxu0
        %v789 = vadd.f32 0.0, %v788
        %v790 = vpop.f32.mrf.mxu0
        %791 = vdwg.mxu0
        %v792 = vmul.f32 %v765, 0.35355338
        %v793 = vmul.f32 %v789, 0.35355338
        %v794 = vsel %vm748, %v792, -inf
        %795 = vmax.xlane.f32.xlu0 %v794
        %v796 = vpop.xlane.xlu0 %795
        %v797 = vsel %vm748, %v793, -inf
        %798 = vmax.xlane.f32.xlu0 %v797
        %v799 = vpop.xlane.xlu0 %798
        %v800 = vsub.f32 %v792, %v796
        %v801 = vsub.f32 %v793, %v799
        %v802 = vmul.f32 %v800, 1.442695
        %v803 = vpow.pop %v802
        %v804 = vmul.f32 %v801, 1.442695
        %v805 = vpow.pop %v804
        %v806 = vsel %vm748, %v803, 0.0
        %807 = vadd.xlane.f32.xlu0 %v806
        %v808 = vpop.xlane.xlu0 %807
        %v809 = vsel %vm748, %v805, 0.0
        %810 = vadd.xlane.f32.xlu0 %v809
        %v811 = vpop.xlane.xlu0 %810
        %v812 = vrcp.pop %v808
        %v813 = vrcp.pop %v811
        %v814 = vmul.f32 %v803, %v812
        %v815 = vmul.f32 %v805, %v813
        %v816 = vpack.c.bf16 %v814, %v814
        %v817 = vpack.c.bf16 %v815, %v815
        %818 = vrot.lane.b32.xlu0 %v745, 64
        %v819 = vpop.permute.xlu0 %818
        %v821 = vsel %vm748, %v816, 0
        %vm823 = vcmask 1043456
        %v825 = vsel %vm823, %v819, 0
        %827 = vmatpush.bf16.msra.mxu0 0
        %828 = vmatpush.bf16.msra.mxu0 0
        %829 = vmatpush.bf16.msra.mxu0 0
        %830 = vmatpush.bf16.msra.mxu0 0
        %831 = vmatpush.bf16.msra.mxu0 0
        %832 = vmatpush.bf16.msra.mxu0 0
        %833 = vmatpush.bf16.msra.mxu0 0
        %834 = vmatpush.bf16.msra.mxu0 %v825
        %835 = vmatmul.bf16.gmra.mxu0 %v821
        %v836 = vpop.f32.mrf.mxu0
        %v837 = vadd.f32 0.0, %v836
        %v838 = vpop.f32.mrf.mxu0
        %839 = vdwg.mxu0
        %840 = vrot.lane.b32.xlu0 %v770, 64
        %v841 = vpop.permute.xlu0 %840
        %v843 = vsel %vm748, %v817, 0
        %v846 = vsel %vm823, %v841, 0
        %848 = vmatpush.bf16.msra.mxu0 0
        %849 = vmatpush.bf16.msra.mxu0 0
        %850 = vmatpush.bf16.msra.mxu0 0
        %851 = vmatpush.bf16.msra.mxu0 0
        %852 = vmatpush.bf16.msra.mxu0 0
        %853 = vmatpush.bf16.msra.mxu0 0
        %854 = vmatpush.bf16.msra.mxu0 0
        %855 = vmatpush.bf16.msra.mxu0 %v846
        %856 = vmatmul.bf16.gmra.mxu0 %v843
        %v857 = vpop.f32.mrf.mxu0
        %v858 = vadd.f32 0.0, %v857
        %v859 = vpop.f32.mrf.mxu0
        %860 = vdwg.mxu0
        %861 = vrot.lane.b32.xlu0 %v745, 120
        %v862 = vpop.permute.xlu0 %861
        %863 = vrot.lane.b32.xlu0 %v745, 88
        %v864 = vpop.permute.xlu0 %863
        %v866 = vsel %vm748, %v862, 0
        %v869 = vsel %vm748, %v864, 0
        %871 = vmatpush.bf16.xpose.msra.mxu0 0
        %872 = vmatpush.bf16.xpose.msra.mxu0 0
        %873 = vmatpush.bf16.xpose.msra.mxu0 0
        %874 = vmatpush.bf16.xpose.msra.mxu0 0
        %875 = vmatpush.bf16.xpose.msra.mxu0 0
        %876 = vmatpush.bf16.xpose.msra.mxu0 0
        %877 = vmatpush.bf16.xpose.msra.mxu0 0
        %878 = vmatpush.bf16.xpose.msra.mxu0 %v869
        %879 = vmatmul.bf16.gmra.mxu0 %v866
        %v880 = vpop.f32.mrf.mxu0
        %v881 = vadd.f32 0.0, %v880
        %v882 = vpop.f32.mrf.mxu0
        %883 = vdwg.mxu0
        %884 = vrot.lane.b32.xlu0 %v770, 120
        %v885 = vpop.permute.xlu0 %884
        %886 = vrot.lane.b32.xlu0 %v770, 88
        %v887 = vpop.permute.xlu0 %886
        %v889 = vsel %vm748, %v885, 0
        %v892 = vsel %vm748, %v887, 0
        %894 = vmatpush.bf16.xpose.msra.mxu0 0
        %895 = vmatpush.bf16.xpose.msra.mxu0 0
        %896 = vmatpush.bf16.xpose.msra.mxu0 0
        %897 = vmatpush.bf16.xpose.msra.mxu0 0
        %898 = vmatpush.bf16.xpose.msra.mxu0 0
        %899 = vmatpush.bf16.xpose.msra.mxu0 0
        %900 = vmatpush.bf16.xpose.msra.mxu0 0
        %901 = vmatpush.bf16.xpose.msra.mxu0 %v892
        %902 = vmatmul.bf16.gmra.mxu0 %v889
        %v903 = vpop.f32.mrf.mxu0
        %v904 = vadd.f32 0.0, %v903
        %v905 = vpop.f32.mrf.mxu0
        %906 = vdwg.mxu0
        %v907 = vmul.f32 %v881, 0.35355338
        %v908 = vmul.f32 %v904, 0.35355338
        %v909 = vsel %vm748, %v907, -inf
        %910 = vmax.xlane.f32.xlu0 %v909
        %v911 = vpop.xlane.xlu0 %910
        %v912 = vsel %vm748, %v908, -inf
        %913 = vmax.xlane.f32.xlu0 %v912
        %v914 = vpop.xlane.xlu0 %913
        %v915 = vsub.f32 %v907, %v911
        %v916 = vsub.f32 %v908, %v914
        %v917 = vmul.f32 %v915, 1.442695
        %v918 = vpow.pop %v917
        %v919 = vmul.f32 %v916, 1.442695
        %v920 = vpow.pop %v919
        %v921 = vsel %vm748, %v918, 0.0
        %922 = vadd.xlane.f32.xlu0 %v921
        %v923 = vpop.xlane.xlu0 %922
        %v924 = vsel %vm748, %v920, 0.0
        %925 = vadd.xlane.f32.xlu0 %v924
        %v926 = vpop.xlane.xlu0 %925
        %v927 = vrcp.pop %v923
        %v928 = vrcp.pop %v926
        %v929 = vmul.f32 %v918, %v927
        %v930 = vmul.f32 %v920, %v928
        %v931 = vpack.c.bf16 %v929, %v929
        %v932 = vpack.c.bf16 %v930, %v930
        %933 = vrot.lane.b32.xlu0 %v745, 56
        %v934 = vpop.permute.xlu0 %933
        %v936 = vsel %vm748, %v931, 0
        %v939 = vsel %vm823, %v934, 0
        %941 = vmatpush.bf16.msra.mxu0 0
        %942 = vmatpush.bf16.msra.mxu0 0
        %943 = vmatpush.bf16.msra.mxu0 0
        %944 = vmatpush.bf16.msra.mxu0 0
        %945 = vmatpush.bf16.msra.mxu0 0
        %946 = vmatpush.bf16.msra.mxu0 0
        %947 = vmatpush.bf16.msra.mxu0 0
        %948 = vmatpush.bf16.msra.mxu0 %v939
        %949 = vmatmul.bf16.gmra.mxu0 %v936
        %v950 = vpop.f32.mrf.mxu0
        %v951 = vadd.f32 0.0, %v950
        %v952 = vpop.f32.mrf.mxu0
        %953 = vdwg.mxu0
        %954 = vrot.lane.b32.xlu0 %v770, 56
        %v955 = vpop.permute.xlu0 %954
        %v957 = vsel %vm748, %v932, 0
        %v960 = vsel %vm823, %v955, 0
        %962 = vmatpush.bf16.msra.mxu0 0
        %963 = vmatpush.bf16.msra.mxu0 0
        %964 = vmatpush.bf16.msra.mxu0 0
        %965 = vmatpush.bf16.msra.mxu0 0
        %966 = vmatpush.bf16.msra.mxu0 0
        %967 = vmatpush.bf16.msra.mxu0 0
        %968 = vmatpush.bf16.msra.mxu0 0
        %969 = vmatpush.bf16.msra.mxu0 %v960
        %970 = vmatmul.bf16.gmra.mxu0 %v957
        %v971 = vpop.f32.mrf.mxu0
        %v972 = vadd.f32 0.0, %v971
        %v973 = vpop.f32.mrf.mxu0
        %974 = vdwg.mxu0
        %975 = vrot.lane.b32.xlu0 %v745, 112
        %v976 = vpop.permute.xlu0 %975
        %977 = vrot.lane.b32.xlu0 %v745, 80
        %v978 = vpop.permute.xlu0 %977
        %v980 = vsel %vm748, %v976, 0
        %v983 = vsel %vm748, %v978, 0
        %985 = vmatpush.bf16.xpose.msra.mxu0 0
        %986 = vmatpush.bf16.xpose.msra.mxu0 0
        %987 = vmatpush.bf16.xpose.msra.mxu0 0
        %988 = vmatpush.bf16.xpose.msra.mxu0 0
        %989 = vmatpush.bf16.xpose.msra.mxu0 0
        %990 = vmatpush.bf16.xpose.msra.mxu0 0
        %991 = vmatpush.bf16.xpose.msra.mxu0 0
        %992 = vmatpush.bf16.xpose.msra.mxu0 %v983
        %993 = vmatmul.bf16.gmra.mxu0 %v980
        %v994 = vpop.f32.mrf.mxu0
        %v995 = vadd.f32 0.0, %v994
        %v996 = vpop.f32.mrf.mxu0
        %997 = vdwg.mxu0
        %998 = vrot.lane.b32.xlu0 %v770, 112
        %v999 = vpop.permute.xlu0 %998
        %1000 = vrot.lane.b32.xlu0 %v770, 80
        %v1001 = vpop.permute.xlu0 %1000
        %v1003 = vsel %vm748, %v999, 0
        %v1006 = vsel %vm748, %v1001, 0
        %1008 = vmatpush.bf16.xpose.msra.mxu0 0
        %1009 = vmatpush.bf16.xpose.msra.mxu0 0
        %1010 = vmatpush.bf16.xpose.msra.mxu0 0
        %1011 = vmatpush.bf16.xpose.msra.mxu0 0
        %1012 = vmatpush.bf16.xpose.msra.mxu0 0
        %1013 = vmatpush.bf16.xpose.msra.mxu0 0
        %1014 = vmatpush.bf16.xpose.msra.mxu0 0
        %1015 = vmatpush.bf16.xpose.msra.mxu0 %v1006
        %1016 = vmatmul.bf16.gmra.mxu0 %v1003
        %v1017 = vpop.f32.mrf.mxu0
        %v1018 = vadd.f32 0.0, %v1017
        %v1019 = vpop.f32.mrf.mxu0
        %1020 = vdwg.mxu0
        %v1021 = vmul.f32 %v995, 0.35355338
        %v1022 = vmul.f32 %v1018, 0.35355338
        %v1023 = vsel %vm748, %v1021, -inf
        %1024 = vmax.xlane.f32.xlu0 %v1023
        %v1025 = vpop.xlane.xlu0 %1024
        %v1026 = vsel %vm748, %v1022, -inf
        %1027 = vmax.xlane.f32.xlu0 %v1026
        %v1028 = vpop.xlane.xlu0 %1027
        %v1029 = vsub.f32 %v1021, %v1025
        %v1030 = vsub.f32 %v1022, %v1028
        %v1031 = vmul.f32 %v1029, 1.442695
        %v1032 = vpow.pop %v1031
        %v1033 = vmul.f32 %v1030, 1.442695
        %v1034 = vpow.pop %v1033
        %v1035 = vsel %vm748, %v1032, 0.0
        %1036 = vadd.xlane.f32.xlu0 %v1035
        %v1037 = vpop.xlane.xlu0 %1036
        %v1038 = vsel %vm748, %v1034, 0.0
        %1039 = vadd.xlane.f32.xlu0 %v1038
        %v1040 = vpop.xlane.xlu0 %1039
        %v1041 = vrcp.pop %v1037
        %v1042 = vrcp.pop %v1040
        %v1043 = vmul.f32 %v1032, %v1041
        %v1044 = vmul.f32 %v1034, %v1042
        %v1045 = vpack.c.bf16 %v1043, %v1043
        %v1046 = vpack.c.bf16 %v1044, %v1044
        %1047 = vrot.lane.b32.xlu0 %v745, 48
        %v1048 = vpop.permute.xlu0 %1047
        %v1050 = vsel %vm748, %v1045, 0
        %v1053 = vsel %vm823, %v1048, 0
        %1055 = vmatpush.bf16.msra.mxu0 0
        %1056 = vmatpush.bf16.msra.mxu0 0
        %1057 = vmatpush.bf16.msra.mxu0 0
        %1058 = vmatpush.bf16.msra.mxu0 0
        %1059 = vmatpush.bf16.msra.mxu0 0
        %1060 = vmatpush.bf16.msra.mxu0 0
        %1061 = vmatpush.bf16.msra.mxu0 0
        %1062 = vmatpush.bf16.msra.mxu0 %v1053
        %1063 = vmatmul.bf16.gmra.mxu0 %v1050
        %v1064 = vpop.f32.mrf.mxu0
        %v1065 = vadd.f32 0.0, %v1064
        %v1066 = vpop.f32.mrf.mxu0
        %1067 = vdwg.mxu0
        %1068 = vrot.lane.b32.xlu0 %v770, 48
        %v1069 = vpop.permute.xlu0 %1068
        %v1071 = vsel %vm748, %v1046, 0
        %v1074 = vsel %vm823, %v1069, 0
        %1076 = vmatpush.bf16.msra.mxu0 0
        %1077 = vmatpush.bf16.msra.mxu0 0
        %1078 = vmatpush.bf16.msra.mxu0 0
        %1079 = vmatpush.bf16.msra.mxu0 0
        %1080 = vmatpush.bf16.msra.mxu0 0
        %1081 = vmatpush.bf16.msra.mxu0 0
        %1082 = vmatpush.bf16.msra.mxu0 0
        %1083 = vmatpush.bf16.msra.mxu0 %v1074
        %1084 = vmatmul.bf16.gmra.mxu0 %v1071
        %v1085 = vpop.f32.mrf.mxu0
        %v1086 = vadd.f32 0.0, %v1085
        %v1087 = vpop.f32.mrf.mxu0
        %1088 = vdwg.mxu0
        %1089 = vrot.lane.b32.xlu0 %v745, 104
        %v1090 = vpop.permute.xlu0 %1089
        %1091 = vrot.lane.b32.xlu0 %v745, 72
        %v1092 = vpop.permute.xlu0 %1091
        %v1094 = vsel %vm748, %v1090, 0
        %v1097 = vsel %vm748, %v1092, 0
        %1099 = vmatpush.bf16.xpose.msra.mxu0 0
        %1100 = vmatpush.bf16.xpose.msra.mxu0 0
        %1101 = vmatpush.bf16.xpose.msra.mxu0 0
        %1102 = vmatpush.bf16.xpose.msra.mxu0 0
        %1103 = vmatpush.bf16.xpose.msra.mxu0 0
        %1104 = vmatpush.bf16.xpose.msra.mxu0 0
        %1105 = vmatpush.bf16.xpose.msra.mxu0 0
        %1106 = vmatpush.bf16.xpose.msra.mxu0 %v1097
        %1107 = vmatmul.bf16.gmra.mxu0 %v1094
        %v1108 = vpop.f32.mrf.mxu0
        %v1109 = vadd.f32 0.0, %v1108
        %v1110 = vpop.f32.mrf.mxu0
        %1111 = vdwg.mxu0
        %1112 = vrot.lane.b32.xlu0 %v770, 104
        %v1113 = vpop.permute.xlu0 %1112
        %1114 = vrot.lane.b32.xlu0 %v770, 72
        %v1115 = vpop.permute.xlu0 %1114
        %v1117 = vsel %vm748, %v1113, 0
        %v1120 = vsel %vm748, %v1115, 0
        %1122 = vmatpush.bf16.xpose.msra.mxu0 0
        %1123 = vmatpush.bf16.xpose.msra.mxu0 0
        %1124 = vmatpush.bf16.xpose.msra.mxu0 0
        %1125 = vmatpush.bf16.xpose.msra.mxu0 0
        %1126 = vmatpush.bf16.xpose.msra.mxu0 0
        %1127 = vmatpush.bf16.xpose.msra.mxu0 0
        %1128 = vmatpush.bf16.xpose.msra.mxu0 0
        %1129 = vmatpush.bf16.xpose.msra.mxu0 %v1120
        %1130 = vmatmul.bf16.gmra.mxu0 %v1117
        %v1131 = vpop.f32.mrf.mxu0
        %v1132 = vadd.f32 0.0, %v1131
        %v1133 = vpop.f32.mrf.mxu0
        %1134 = vdwg.mxu0
        %v1135 = vmul.f32 %v1109, 0.35355338
        %v1136 = vmul.f32 %v1132, 0.35355338
        %v1137 = vsel %vm748, %v1135, -inf
        %1138 = vmax.xlane.f32.xlu0 %v1137
        %v1139 = vpop.xlane.xlu0 %1138
        %v1140 = vsel %vm748, %v1136, -inf
        %1141 = vmax.xlane.f32.xlu0 %v1140
        %v1142 = vpop.xlane.xlu0 %1141
        %v1143 = vsub.f32 %v1135, %v1139
        %v1144 = vsub.f32 %v1136, %v1142
        %v1145 = vmul.f32 %v1143, 1.442695
        %v1146 = vpow.pop %v1145
        %v1147 = vmul.f32 %v1144, 1.442695
        %v1148 = vpow.pop %v1147
        %v1149 = vsel %vm748, %v1146, 0.0
        %1150 = vadd.xlane.f32.xlu0 %v1149
        %v1151 = vpop.xlane.xlu0 %1150
        %v1152 = vsel %vm748, %v1148, 0.0
        %1153 = vadd.xlane.f32.xlu0 %v1152
        %v1154 = vpop.xlane.xlu0 %1153
        %v1155 = vrcp.pop %v1151
        %v1156 = vrcp.pop %v1154
        %v1157 = vmul.f32 %v1146, %v1155
        %v1158 = vmul.f32 %v1148, %v1156
        %v1159 = vpack.c.bf16 %v1157, %v1157
        %v1160 = vpack.c.bf16 %v1158, %v1158
        %1161 = vrot.lane.b32.xlu0 %v745, 40
        %v1162 = vpop.permute.xlu0 %1161
        %v1164 = vsel %vm748, %v1159, 0
        %v1167 = vsel %vm823, %v1162, 0
        %1169 = vmatpush.bf16.msra.mxu0 0
        %1170 = vmatpush.bf16.msra.mxu0 0
        %1171 = vmatpush.bf16.msra.mxu0 0
        %1172 = vmatpush.bf16.msra.mxu0 0
        %1173 = vmatpush.bf16.msra.mxu0 0
        %1174 = vmatpush.bf16.msra.mxu0 0
        %1175 = vmatpush.bf16.msra.mxu0 0
        %1176 = vmatpush.bf16.msra.mxu0 %v1167
        %1177 = vmatmul.bf16.gmra.mxu0 %v1164
        %v1178 = vpop.f32.mrf.mxu0
        %v1179 = vadd.f32 0.0, %v1178
        %v1180 = vpop.f32.mrf.mxu0
        %1181 = vdwg.mxu0
        %1182 = vrot.lane.b32.xlu0 %v770, 40
        %v1183 = vpop.permute.xlu0 %1182
        %v1185 = vsel %vm748, %v1160, 0
        %v1188 = vsel %vm823, %v1183, 0
        %1190 = vmatpush.bf16.msra.mxu0 0
        %1191 = vmatpush.bf16.msra.mxu0 0
        %1192 = vmatpush.bf16.msra.mxu0 0
        %1193 = vmatpush.bf16.msra.mxu0 0
        %1194 = vmatpush.bf16.msra.mxu0 0
        %1195 = vmatpush.bf16.msra.mxu0 0
        %1196 = vmatpush.bf16.msra.mxu0 0
        %1197 = vmatpush.bf16.msra.mxu0 %v1188
        %1198 = vmatmul.bf16.gmra.mxu0 %v1185
        %v1199 = vpop.f32.mrf.mxu0
        %v1200 = vadd.f32 0.0, %v1199
        %v1201 = vpop.f32.mrf.mxu0
        %1202 = vdwg.mxu0
        %1205 = vrot.lane.b32.xlu0 %v951, 8
        %v1206 = vpop.permute.xlu0 %1205
        %1207 = vrot.lane.b32.xlu0 %v972, 8
        %v1208 = vpop.permute.xlu0 %1207
        %1213 = vrot.lane.b32.xlu0 %v1065, 16
        %v1214 = vpop.permute.xlu0 %1213
        %1215 = vrot.lane.b32.xlu0 %v1086, 16
        %v1216 = vpop.permute.xlu0 %1215
        %1221 = vrot.lane.b32.xlu0 %v1179, 24
        %v1222 = vpop.permute.xlu0 %1221
        %1223 = vrot.lane.b32.xlu0 %v1200, 24
        %v1224 = vpop.permute.xlu0 %1223
        %v1227 = vsel %vm748, %v837, %v1206
        %v1228 = vsel %vm748, %v858, %v1208
        %vm1229 = vcmask 130048
        %v1230 = vsel %vm1229, %v1227, %v1214
        %v1231 = vsel %vm1229, %v1228, %v1216
        %vm1232 = vcmask 195584
        %v1233 = vsel %vm1232, %v1230, %v1222
        %v1234 = vsel %vm1232, %v1231, %v1224
        %v1235 = vld [vmem:[%s663] sm:$0xf]
        %v1236 = vld [vmem:[%s663 + $0x4] sm:$0xf]
        %v1237 = vld [vmem:[%s663 + $0x8] sm:$0xf]
        %v1238 = vld [vmem:[%s663 + $0xc] sm:$0xf]
        %v1239 = vpack.c.bf16 %v1234, %v1233
        %v1240 = vld [vmem:[%s666] sm:$0x1]
        %v1242 = vperm.slane %v1240, 0
        %v1248 = vunpack.c.l.b16 %v1235
        %v1249 = vunpack.c.l.b16 %v1236
        %v1250 = vunpack.c.l.b16 %v1237
        %v1251 = vunpack.c.l.b16 %v1238
        %v1252 = vpack.c.b16 %v1249, %v1248
        %v1253 = vpack.c.b16 %v1251, %v1250
        %v1257 = vsel %vm723, %v1239, 0
        %1259 = vmatpush.bf16.msra.mxu0 0
        %1260 = vmatpush.bf16.msra.mxu0 0
        %1261 = vmatpush.bf16.msra.mxu0 0
        %1262 = vmatpush.bf16.msra.mxu0 0
        %1263 = vmatpush.bf16.msra.mxu0 0
        %1264 = vmatpush.bf16.msra.mxu0 0
        %1265 = vmatpush.bf16.msra.mxu0 %v1253
        %1266 = vmatpush.bf16.msra.mxu0 %v1252
        %1267 = vmatmul.bf16.gmra.mxu0 %v1257
        %v1268 = vpop.f32.mrf.mxu0
        %v1269 = vadd.f32 %v1242, %v1268
        %v1270 = vpop.f32.mrf.mxu0
        %v1271 = vadd.f32 %v1242, %v1270
        %1272 = vdwg.mxu0
        %v1273 = vadd.f32 %v700, %v1269
        %v1274 = vadd.f32 %v701, %v1271
        %v1275 = vld [vmem:[%s669] sm:$0x1]
        %v1276 = vld [vmem:[%s672] sm:$0x1]
        %v1277 = vsel %vm723, %v1273, 0.0
        %1278 = vadd.xlane.f32.xlu0 %v1277
        %v1279 = vpop.xlane.xlu0 %1278
        %v1280 = vsel %vm723, %v1274, 0.0
        %1281 = vadd.xlane.f32.xlu0 %v1280
        %v1282 = vpop.xlane.xlu0 %1281
        %v1283 = vrcp.pop 32.0
        %v1284 = vmul.f32 32.0, %v1283
        %v1285 = vsub.f32 1.0, %v1284
        %v1286 = vmul.f32 %v1283, %v1285
        %v1287 = vadd.f32 %v1283, %v1286
        %vm1288 = vweird.f32 %v1283
        %v1289 = vsel %vm1288, %v1283, %v1287
        %v1290 = vmul.f32 %v1279, %v1289
        %v1291 = vmul.f32 %v1282, %v1289
        %v1292 = vsub.f32 %v1273, %v1290
        %v1293 = vsub.f32 %v1274, %v1291
        %v1294 = vmul.f32 %v1292, %v1292
        %v1295 = vmul.f32 %v1293, %v1293
        %v1296 = vsel %vm723, %v1294, 0.0
        %1297 = vadd.xlane.f32.xlu0 %v1296
        %v1298 = vpop.xlane.xlu0 %1297
        %v1299 = vsel %vm723, %v1295, 0.0
        %1300 = vadd.xlane.f32.xlu0 %v1299
        %v1301 = vpop.xlane.xlu0 %1300
        %v1302 = vmul.f32 %v1298, %v1289
        %v1303 = vmul.f32 %v1301, %v1289
        %v1304 = vadd.f32 %v1302, 1e-05
        %v1305 = vadd.f32 %v1303, 1e-05
        %v1306 = vrsqrt.pop %v1304
        %v1307 = vmul.f32 %v1306, %v1304
        %v1308 = vmul.f32 %v1307, %v1306
        %v1309 = vmul.f32 0.5, %v1308
        %v1310 = vsub.f32 1.5, %v1309
        %v1311 = vmul.f32 %v1306, %v1310
        %vm1312 = vweird.f32 %v1304
        %vm1313 = vweird.f32 %v1306
        %vm1314 = vmor %vm1312, %vm1313
        %v1315 = vsel %vm1314, %v1306, %v1311
        %v1316 = vrsqrt.pop %v1305
        %v1317 = vmul.f32 %v1316, %v1305
        %v1318 = vmul.f32 %v1317, %v1316
        %v1319 = vmul.f32 0.5, %v1318
        %v1320 = vsub.f32 1.5, %v1319
        %v1321 = vmul.f32 %v1316, %v1320
        %vm1322 = vweird.f32 %v1305
        %vm1323 = vweird.f32 %v1316
        %vm1324 = vmor %vm1322, %vm1323
        %v1325 = vsel %vm1324, %v1316, %v1321
        %v1326 = vmul.f32 %v1292, %v1315
        %v1327 = vmul.f32 %v1293, %v1325
        %v1329 = vperm.slane %v1275, 0
        %v1331 = vmul.f32 %v1326, %v1329
        %v1332 = vmul.f32 %v1327, %v1329
        %v1334 = vperm.slane %v1276, 0
        %v1336 = vadd.f32 %v1331, %v1334
        %v1337 = vadd.f32 %v1332, %v1334
        %v1338 = vld [vmem:[%s677] sm:$0xff]
        %v1339 = vld [vmem:[%s677 + $0x8] sm:$0xff]
        %v1340 = vld [vmem:[%s677 + $0x10] sm:$0xff]
        %v1341 = vld [vmem:[%s677 + $0x18] sm:$0xff]
        %v1342 = vld [vmem:[%s677 + $0x20] sm:$0xff]
        %v1343 = vld [vmem:[%s677 + $0x28] sm:$0xff]
        %v1344 = vld [vmem:[%s677 + $0x30] sm:$0xff]
        %v1345 = vld [vmem:[%s677 + $0x38] sm:$0xff]
        %v1346 = vld [vmem:[%s677 + $0x40] sm:$0xff]
        %v1347 = vld [vmem:[%s677 + $0x48] sm:$0xff]
        %v1348 = vld [vmem:[%s677 + $0x50] sm:$0xff]
        %v1349 = vld [vmem:[%s677 + $0x58] sm:$0xff]
        %v1350 = vld [vmem:[%s677 + $0x60] sm:$0xff]
        %v1351 = vld [vmem:[%s677 + $0x68] sm:$0xff]
        %v1352 = vld [vmem:[%s677 + $0x70] sm:$0xff]
        %v1353 = vld [vmem:[%s677 + $0x78] sm:$0xff]
        %v1354 = vld [vmem:[%s677 + $0x80] sm:$0xff]
        %v1355 = vld [vmem:[%s677 + $0x88] sm:$0xff]
        %v1356 = vld [vmem:[%s677 + $0x90] sm:$0xff]
        %v1357 = vld [vmem:[%s677 + $0x98] sm:$0xff]
        %v1358 = vld [vmem:[%s677 + $0xa0] sm:$0xff]
        %v1359 = vld [vmem:[%s677 + $0xa8] sm:$0xff]
        %v1360 = vld [vmem:[%s677 + $0xb0] sm:$0xff]
        %v1361 = vld [vmem:[%s677 + $0xb8] sm:$0xff]
        %v1362 = vld [vmem:[%s677 + $0xc0] sm:$0xff]
        %v1363 = vld [vmem:[%s677 + $0xc8] sm:$0xff]
        %v1364 = vld [vmem:[%s677 + $0xd0] sm:$0xff]
        %v1365 = vld [vmem:[%s677 + $0xd8] sm:$0xff]
        %v1366 = vld [vmem:[%s677 + $0xe0] sm:$0xff]
        %v1367 = vld [vmem:[%s677 + $0xe8] sm:$0xff]
        %v1368 = vld [vmem:[%s677 + $0xf0] sm:$0xff]
        %v1369 = vld [vmem:[%s677 + $0xf8] sm:$0xff]
        %v1370 = vpack.c.bf16 %v1337, %v1336
        %v1371 = vld [vmem:[%s681] sm:$0xff]
        %v1372 = vld [vmem:[%s681 + $0x8] sm:$0xff]
        %v1375 = vperm.slane %v1371, 0
        %v1376 = vperm.slane %v1371, 1
        %v1377 = vperm.slane %v1371, 2
        %v1378 = vperm.slane %v1371, 3
        %v1379 = vperm.slane %v1371, 4
        %v1380 = vperm.slane %v1371, 5
        %v1381 = vperm.slane %v1371, 6
        %v1382 = vperm.slane %v1371, 7
        %v1383 = vperm.slane %v1372, 0
        %v1384 = vperm.slane %v1372, 1
        %v1385 = vperm.slane %v1372, 2
        %v1386 = vperm.slane %v1372, 3
        %v1387 = vperm.slane %v1372, 4
        %v1388 = vperm.slane %v1372, 5
        %v1389 = vperm.slane %v1372, 6
        %v1390 = vperm.slane %v1372, 7
        %v1439 = vunpack.c.l.b16 %v1338
        %v1440 = vunpack.c.h.b16 %v1338
        %v1441 = vunpack.c.l.b16 %v1339
        %v1442 = vunpack.c.h.b16 %v1339
        %v1443 = vunpack.c.l.b16 %v1340
        %v1444 = vunpack.c.h.b16 %v1340
        %v1445 = vunpack.c.l.b16 %v1341
        %v1446 = vunpack.c.h.b16 %v1341
        %v1447 = vunpack.c.l.b16 %v1342
        %v1448 = vunpack.c.h.b16 %v1342
        %v1449 = vunpack.c.l.b16 %v1343
        %v1450 = vunpack.c.h.b16 %v1343
        %v1451 = vunpack.c.l.b16 %v1344
        %v1452 = vunpack.c.h.b16 %v1344
        %v1453 = vunpack.c.l.b16 %v1345
        %v1454 = vunpack.c.h.b16 %v1345
        %v1455 = vunpack.c.l.b16 %v1346
        %v1456 = vunpack.c.h.b16 %v1346
        %v1457 = vunpack.c.l.b16 %v1347
        %v1458 = vunpack.c.h.b16 %v1347
        %v1459 = vunpack.c.l.b16 %v1348
        %v1460 = vunpack.c.h.b16 %v1348
        %v1461 = vunpack.c.l.b16 %v1349
        %v1462 = vunpack.c.h.b16 %v1349
        %v1463 = vunpack.c.l.b16 %v1350
        %v1464 = vunpack.c.h.b16 %v1350
        %v1465 = vunpack.c.l.b16 %v1351
        %v1466 = vunpack.c.h.b16 %v1351
        %v1467 = vunpack.c.l.b16 %v1352
        %v1468 = vunpack.c.h.b16 %v1352
        %v1469 = vunpack.c.l.b16 %v1353
        %v1470 = vunpack.c.h.b16 %v1353
        %v1471 = vunpack.c.l.b16 %v1354
        %v1472 = vunpack.c.h.b16 %v1354
        %v1473 = vunpack.c.l.b16 %v1355
        %v1474 = vunpack.c.h.b16 %v1355
        %v1475 = vunpack.c.l.b16 %v1356
        %v1476 = vunpack.c.h.b16 %v1356
        %v1477 = vunpack.c.l.b16 %v1357
        %v1478 = vunpack.c.h.b16 %v1357
        %v1479 = vunpack.c.l.b16 %v1358
        %v1480 = vunpack.c.h.b16 %v1358
        %v1481 = vunpack.c.l.b16 %v1359
        %v1482 = vunpack.c.h.b16 %v1359
        %v1483 = vunpack.c.l.b16 %v1360
        %v1484 = vunpack.c.h.b16 %v1360
        %v1485 = vunpack.c.l.b16 %v1361
        %v1486 = vunpack.c.h.b16 %v1361
        %v1487 = vunpack.c.l.b16 %v1362
        %v1488 = vunpack.c.h.b16 %v1362
        %v1489 = vunpack.c.l.b16 %v1363
        %v1490 = vunpack.c.h.b16 %v1363
        %v1491 = vunpack.c.l.b16 %v1364
        %v1492 = vunpack.c.h.b16 %v1364
        %v1493 = vunpack.c.l.b16 %v1365
        %v1494 = vunpack.c.h.b16 %v1365
        %v1495 = vunpack.c.l.b16 %v1366
        %v1496 = vunpack.c.h.b16 %v1366
        %v1497 = vunpack.c.l.b16 %v1367
        %v1498 = vunpack.c.h.b16 %v1367
        %v1499 = vunpack.c.l.b16 %v1368
        %v1500 = vunpack.c.h.b16 %v1368
        %v1501 = vunpack.c.l.b16 %v1369
        %v1502 = vunpack.c.h.b16 %v1369
        %v1503 = vpack.c.b16 %v1455, %v1439
        %v1504 = vpack.c.b16 %v1456, %v1440
        %v1505 = vpack.c.b16 %v1457, %v1441
        %v1506 = vpack.c.b16 %v1458, %v1442
        %v1507 = vpack.c.b16 %v1459, %v1443
        %v1508 = vpack.c.b16 %v1460, %v1444
        %v1509 = vpack.c.b16 %v1461, %v1445
        %v1510 = vpack.c.b16 %v1462, %v1446
        %v1511 = vpack.c.b16 %v1463, %v1447
        %v1512 = vpack.c.b16 %v1464, %v1448
        %v1513 = vpack.c.b16 %v1465, %v1449
        %v1514 = vpack.c.b16 %v1466, %v1450
        %v1515 = vpack.c.b16 %v1467, %v1451
        %v1516 = vpack.c.b16 %v1468, %v1452
        %v1517 = vpack.c.b16 %v1469, %v1453
        %v1518 = vpack.c.b16 %v1470, %v1454
        %v1519 = vpack.c.b16 %v1487, %v1471
        %v1520 = vpack.c.b16 %v1488, %v1472
        %v1521 = vpack.c.b16 %v1489, %v1473
        %v1522 = vpack.c.b16 %v1490, %v1474
        %v1523 = vpack.c.b16 %v1491, %v1475
        %v1524 = vpack.c.b16 %v1492, %v1476
        %v1525 = vpack.c.b16 %v1493, %v1477
        %v1526 = vpack.c.b16 %v1494, %v1478
        %v1527 = vpack.c.b16 %v1495, %v1479
        %v1528 = vpack.c.b16 %v1496, %v1480
        %v1529 = vpack.c.b16 %v1497, %v1481
        %v1530 = vpack.c.b16 %v1498, %v1482
        %v1531 = vpack.c.b16 %v1499, %v1483
        %v1532 = vpack.c.b16 %v1500, %v1484
        %v1533 = vpack.c.b16 %v1501, %v1485
        %v1534 = vpack.c.b16 %v1502, %v1486
        %v1568 = vsel %vm723, %v1370, 0
        %1570 = vmatpush.bf16.msra.mxu0 0
        %1571 = vmatpush.bf16.msra.mxu0 0
        %1572 = vmatpush.bf16.msra.mxu0 0
        %1573 = vmatpush.bf16.msra.mxu0 0
        %1574 = vmatpush.bf16.msra.mxu0 0
        %1575 = vmatpush.bf16.msra.mxu0 0
        %1576 = vmatpush.bf16.msra.mxu0 %v1519
        %1577 = vmatpush.bf16.msra.mxu0 %v1503
        %1578 = vmatmul.bf16.gmra.mxu0 %v1568
        %v1579 = vpop.f32.mrf.mxu0
        %v1580 = vadd.f32 %v1375, %v1579
        %v1581 = vpop.f32.mrf.mxu0
        %v1582 = vadd.f32 %v1375, %v1581
        %1583 = vdwg.mxu0
        %1584 = vmatpush.bf16.msra.mxu0 0
        %1585 = vmatpush.bf16.msra.mxu0 0
        %1586 = vmatpush.bf16.msra.mxu0 0
        %1587 = vmatpush.bf16.msra.mxu0 0
        %1588 = vmatpush.bf16.msra.mxu0 0
        %1589 = vmatpush.bf16.msra.mxu0 0
        %1590 = vmatpush.bf16.msra.mxu0 %v1520
        %1591 = vmatpush.bf16.msra.mxu0 %v1504
        %1592 = vmatmul.bf16.gmra.mxu0 %v1568
        %v1593 = vpop.f32.mrf.mxu0
        %v1594 = vadd.f32 %v1376, %v1593
        %v1595 = vpop.f32.mrf.mxu0
        %v1596 = vadd.f32 %v1376, %v1595
        %1597 = vdwg.mxu0
        %1598 = vmatpush.bf16.msra.mxu0 0
        %1599 = vmatpush.bf16.msra.mxu0 0
        %1600 = vmatpush.bf16.msra.mxu0 0
        %1601 = vmatpush.bf16.msra.mxu0 0
        %1602 = vmatpush.bf16.msra.mxu0 0
        %1603 = vmatpush.bf16.msra.mxu0 0
        %1604 = vmatpush.bf16.msra.mxu0 %v1521
        %1605 = vmatpush.bf16.msra.mxu0 %v1505
        %1606 = vmatmul.bf16.gmra.mxu0 %v1568
        %v1607 = vpop.f32.mrf.mxu0
        %v1608 = vadd.f32 %v1377, %v1607
        %v1609 = vpop.f32.mrf.mxu0
        %v1610 = vadd.f32 %v1377, %v1609
        %1611 = vdwg.mxu0
        %1612 = vmatpush.bf16.msra.mxu0 0
        %1613 = vmatpush.bf16.msra.mxu0 0
        %1614 = vmatpush.bf16.msra.mxu0 0
        %1615 = vmatpush.bf16.msra.mxu0 0
        %1616 = vmatpush.bf16.msra.mxu0 0
        %1617 = vmatpush.bf16.msra.mxu0 0
        %1618 = vmatpush.bf16.msra.mxu0 %v1522
        %1619 = vmatpush.bf16.msra.mxu0 %v1506
        %1620 = vmatmul.bf16.gmra.mxu0 %v1568
        %v1621 = vpop.f32.mrf.mxu0
        %v1622 = vadd.f32 %v1378, %v1621
        %v1623 = vpop.f32.mrf.mxu0
        %v1624 = vadd.f32 %v1378, %v1623
        %1625 = vdwg.mxu0
        %1626 = vmatpush.bf16.msra.mxu0 0
        %1627 = vmatpush.bf16.msra.mxu0 0
        %1628 = vmatpush.bf16.msra.mxu0 0
        %1629 = vmatpush.bf16.msra.mxu0 0
        %1630 = vmatpush.bf16.msra.mxu0 0
        %1631 = vmatpush.bf16.msra.mxu0 0
        %1632 = vmatpush.bf16.msra.mxu0 %v1523
        %1633 = vmatpush.bf16.msra.mxu0 %v1507
        %1634 = vmatmul.bf16.gmra.mxu0 %v1568
        %v1635 = vpop.f32.mrf.mxu0
        %v1636 = vadd.f32 %v1379, %v1635
        %v1637 = vpop.f32.mrf.mxu0
        %v1638 = vadd.f32 %v1379, %v1637
        %1639 = vdwg.mxu0
        %1640 = vmatpush.bf16.msra.mxu0 0
        %1641 = vmatpush.bf16.msra.mxu0 0
        %1642 = vmatpush.bf16.msra.mxu0 0
        %1643 = vmatpush.bf16.msra.mxu0 0
        %1644 = vmatpush.bf16.msra.mxu0 0
        %1645 = vmatpush.bf16.msra.mxu0 0
        %1646 = vmatpush.bf16.msra.mxu0 %v1524
        %1647 = vmatpush.bf16.msra.mxu0 %v1508
        %1648 = vmatmul.bf16.gmra.mxu0 %v1568
        %v1649 = vpop.f32.mrf.mxu0
        %v1650 = vadd.f32 %v1380, %v1649
        %v1651 = vpop.f32.mrf.mxu0
        %v1652 = vadd.f32 %v1380, %v1651
        %1653 = vdwg.mxu0
        %1654 = vmatpush.bf16.msra.mxu0 0
        %1655 = vmatpush.bf16.msra.mxu0 0
        %1656 = vmatpush.bf16.msra.mxu0 0
        %1657 = vmatpush.bf16.msra.mxu0 0
        %1658 = vmatpush.bf16.msra.mxu0 0
        %1659 = vmatpush.bf16.msra.mxu0 0
        %1660 = vmatpush.bf16.msra.mxu0 %v1525
        %1661 = vmatpush.bf16.msra.mxu0 %v1509
        %1662 = vmatmul.bf16.gmra.mxu0 %v1568
        %v1663 = vpop.f32.mrf.mxu0
        %v1664 = vadd.f32 %v1381, %v1663
        %v1665 = vpop.f32.mrf.mxu0
        %v1666 = vadd.f32 %v1381, %v1665
        %1667 = vdwg.mxu0
        %1668 = vmatpush.bf16.msra.mxu0 0
        %1669 = vmatpush.bf16.msra.mxu0 0
        %1670 = vmatpush.bf16.msra.mxu0 0
        %1671 = vmatpush.bf16.msra.mxu0 0
        %1672 = vmatpush.bf16.msra.mxu0 0
        %1673 = vmatpush.bf16.msra.mxu0 0
        %1674 = vmatpush.bf16.msra.mxu0 %v1526
        %1675 = vmatpush.bf16.msra.mxu0 %v1510
        %1676 = vmatmul.bf16.gmra.mxu0 %v1568
        %v1677 = vpop.f32.mrf.mxu0
        %v1678 = vadd.f32 %v1382, %v1677
        %v1679 = vpop.f32.mrf.mxu0
        %v1680 = vadd.f32 %v1382, %v1679
        %1681 = vdwg.mxu0
        %1682 = vmatpush.bf16.msra.mxu0 0
        %1683 = vmatpush.bf16.msra.mxu0 0
        %1684 = vmatpush.bf16.msra.mxu0 0
        %1685 = vmatpush.bf16.msra.mxu0 0
        %1686 = vmatpush.bf16.msra.mxu0 0
        %1687 = vmatpush.bf16.msra.mxu0 0
        %1688 = vmatpush.bf16.msra.mxu0 %v1527
        %1689 = vmatpush.bf16.msra.mxu0 %v1511
        %1690 = vmatmul.bf16.gmra.mxu0 %v1568
        %v1691 = vpop.f32.mrf.mxu0
        %v1692 = vadd.f32 %v1383, %v1691
        %v1693 = vpop.f32.mrf.mxu0
        %v1694 = vadd.f32 %v1383, %v1693
        %1695 = vdwg.mxu0
        %1696 = vmatpush.bf16.msra.mxu0 0
        %1697 = vmatpush.bf16.msra.mxu0 0
        %1698 = vmatpush.bf16.msra.mxu0 0
        %1699 = vmatpush.bf16.msra.mxu0 0
        %1700 = vmatpush.bf16.msra.mxu0 0
        %1701 = vmatpush.bf16.msra.mxu0 0
        %1702 = vmatpush.bf16.msra.mxu0 %v1528
        %1703 = vmatpush.bf16.msra.mxu0 %v1512
        %1704 = vmatmul.bf16.gmra.mxu0 %v1568
        %v1705 = vpop.f32.mrf.mxu0
        %v1706 = vadd.f32 %v1384, %v1705
        %v1707 = vpop.f32.mrf.mxu0
        %v1708 = vadd.f32 %v1384, %v1707
        %1709 = vdwg.mxu0
        %1710 = vmatpush.bf16.msra.mxu0 0
        %1711 = vmatpush.bf16.msra.mxu0 0
        %1712 = vmatpush.bf16.msra.mxu0 0
        %1713 = vmatpush.bf16.msra.mxu0 0
        %1714 = vmatpush.bf16.msra.mxu0 0
        %1715 = vmatpush.bf16.msra.mxu0 0
        %1716 = vmatpush.bf16.msra.mxu0 %v1529
        %1717 = vmatpush.bf16.msra.mxu0 %v1513
        %1718 = vmatmul.bf16.gmra.mxu0 %v1568
        %v1719 = vpop.f32.mrf.mxu0
        %v1720 = vadd.f32 %v1385, %v1719
        %v1721 = vpop.f32.mrf.mxu0
        %v1722 = vadd.f32 %v1385, %v1721
        %1723 = vdwg.mxu0
        %1724 = vmatpush.bf16.msra.mxu0 0
        %1725 = vmatpush.bf16.msra.mxu0 0
        %1726 = vmatpush.bf16.msra.mxu0 0
        %1727 = vmatpush.bf16.msra.mxu0 0
        %1728 = vmatpush.bf16.msra.mxu0 0
        %1729 = vmatpush.bf16.msra.mxu0 0
        %1730 = vmatpush.bf16.msra.mxu0 %v1530
        %1731 = vmatpush.bf16.msra.mxu0 %v1514
        %1732 = vmatmul.bf16.gmra.mxu0 %v1568
        %v1733 = vpop.f32.mrf.mxu0
        %v1734 = vadd.f32 %v1386, %v1733
        %v1735 = vpop.f32.mrf.mxu0
        %v1736 = vadd.f32 %v1386, %v1735
        %1737 = vdwg.mxu0
        %1738 = vmatpush.bf16.msra.mxu0 0
        %1739 = vmatpush.bf16.msra.mxu0 0
        %1740 = vmatpush.bf16.msra.mxu0 0
        %1741 = vmatpush.bf16.msra.mxu0 0
        %1742 = vmatpush.bf16.msra.mxu0 0
        %1743 = vmatpush.bf16.msra.mxu0 0
        %1744 = vmatpush.bf16.msra.mxu0 %v1531
        %1745 = vmatpush.bf16.msra.mxu0 %v1515
        %1746 = vmatmul.bf16.gmra.mxu0 %v1568
        %v1747 = vpop.f32.mrf.mxu0
        %v1748 = vadd.f32 %v1387, %v1747
        %v1749 = vpop.f32.mrf.mxu0
        %v1750 = vadd.f32 %v1387, %v1749
        %1751 = vdwg.mxu0
        %1752 = vmatpush.bf16.msra.mxu0 0
        %1753 = vmatpush.bf16.msra.mxu0 0
        %1754 = vmatpush.bf16.msra.mxu0 0
        %1755 = vmatpush.bf16.msra.mxu0 0
        %1756 = vmatpush.bf16.msra.mxu0 0
        %1757 = vmatpush.bf16.msra.mxu0 0
        %1758 = vmatpush.bf16.msra.mxu0 %v1532
        %1759 = vmatpush.bf16.msra.mxu0 %v1516
        %1760 = vmatmul.bf16.gmra.mxu0 %v1568
        %v1761 = vpop.f32.mrf.mxu0
        %v1762 = vadd.f32 %v1388, %v1761
        %v1763 = vpop.f32.mrf.mxu0
        %v1764 = vadd.f32 %v1388, %v1763
        %1765 = vdwg.mxu0
        %1766 = vmatpush.bf16.msra.mxu0 0
        %1767 = vmatpush.bf16.msra.mxu0 0
        %1768 = vmatpush.bf16.msra.mxu0 0
        %1769 = vmatpush.bf16.msra.mxu0 0
        %1770 = vmatpush.bf16.msra.mxu0 0
        %1771 = vmatpush.bf16.msra.mxu0 0
        %1772 = vmatpush.bf16.msra.mxu0 %v1533
        %1773 = vmatpush.bf16.msra.mxu0 %v1517
        %1774 = vmatmul.bf16.gmra.mxu0 %v1568
        %v1775 = vpop.f32.mrf.mxu0
        %v1776 = vadd.f32 %v1389, %v1775
        %v1777 = vpop.f32.mrf.mxu0
        %v1778 = vadd.f32 %v1389, %v1777
        %1779 = vdwg.mxu0
        %1780 = vmatpush.bf16.msra.mxu0 0
        %1781 = vmatpush.bf16.msra.mxu0 0
        %1782 = vmatpush.bf16.msra.mxu0 0
        %1783 = vmatpush.bf16.msra.mxu0 0
        %1784 = vmatpush.bf16.msra.mxu0 0
        %1785 = vmatpush.bf16.msra.mxu0 0
        %1786 = vmatpush.bf16.msra.mxu0 %v1534
        %1787 = vmatpush.bf16.msra.mxu0 %v1518
        %1788 = vmatmul.bf16.gmra.mxu0 %v1568
        %v1789 = vpop.f32.mrf.mxu0
        %v1790 = vadd.f32 %v1390, %v1789
        %v1791 = vpop.f32.mrf.mxu0
        %v1792 = vadd.f32 %v1390, %v1791
        %1793 = vdwg.mxu0
        %v1794 = vmax.f32 %v1580, 0.0
        %v1795 = vmax.f32 %v1594, 0.0
        %v1796 = vmax.f32 %v1608, 0.0
        %v1797 = vmax.f32 %v1622, 0.0
        %v1798 = vmax.f32 %v1636, 0.0
        %v1799 = vmax.f32 %v1650, 0.0
        %v1800 = vmax.f32 %v1664, 0.0
        %v1801 = vmax.f32 %v1678, 0.0
        %v1802 = vmax.f32 %v1692, 0.0
        %v1803 = vmax.f32 %v1706, 0.0
        %v1804 = vmax.f32 %v1720, 0.0
        %v1805 = vmax.f32 %v1734, 0.0
        %v1806 = vmax.f32 %v1748, 0.0
        %v1807 = vmax.f32 %v1762, 0.0
        %v1808 = vmax.f32 %v1776, 0.0
        %v1809 = vmax.f32 %v1790, 0.0
        %v1810 = vmax.f32 %v1582, 0.0
        %v1811 = vmax.f32 %v1596, 0.0
        %v1812 = vmax.f32 %v1610, 0.0
        %v1813 = vmax.f32 %v1624, 0.0
        %v1814 = vmax.f32 %v1638, 0.0
        %v1815 = vmax.f32 %v1652, 0.0
        %v1816 = vmax.f32 %v1666, 0.0
        %v1817 = vmax.f32 %v1680, 0.0
        %v1818 = vmax.f32 %v1694, 0.0
        %v1819 = vmax.f32 %v1708, 0.0
        %v1820 = vmax.f32 %v1722, 0.0
        %v1821 = vmax.f32 %v1736, 0.0
        %v1822 = vmax.f32 %v1750, 0.0
        %v1823 = vmax.f32 %v1764, 0.0
        %v1824 = vmax.f32 %v1778, 0.0
        %v1825 = vmax.f32 %v1792, 0.0
        %v1826 = vld [vmem:[%s686] sm:$0xf]
        %v1827 = vld [vmem:[%s686 + $0x4] sm:$0xf]
        %v1828 = vld [vmem:[%s686 + $0x8] sm:$0xf]
        %v1829 = vld [vmem:[%s686 + $0xc] sm:$0xf]
        %v1830 = vld [vmem:[%s686 + $0x10] sm:$0xf]
        %v1831 = vld [vmem:[%s686 + $0x14] sm:$0xf]
        %v1832 = vld [vmem:[%s686 + $0x18] sm:$0xf]
        %v1833 = vld [vmem:[%s686 + $0x1c] sm:$0xf]
        %v1834 = vld [vmem:[%s686 + $0x20] sm:$0xf]
        %v1835 = vld [vmem:[%s686 + $0x24] sm:$0xf]
        %v1836 = vld [vmem:[%s686 + $0x28] sm:$0xf]
        %v1837 = vld [vmem:[%s686 + $0x2c] sm:$0xf]
        %v1838 = vld [vmem:[%s686 + $0x30] sm:$0xf]
        %v1839 = vld [vmem:[%s686 + $0x34] sm:$0xf]
        %v1840 = vld [vmem:[%s686 + $0x38] sm:$0xf]
        %v1841 = vld [vmem:[%s686 + $0x3c] sm:$0xf]
        %v1842 = vld [vmem:[%s686 + $0x40] sm:$0xf]
        %v1843 = vld [vmem:[%s686 + $0x44] sm:$0xf]
        %v1844 = vld [vmem:[%s686 + $0x48] sm:$0xf]
        %v1845 = vld [vmem:[%s686 + $0x4c] sm:$0xf]
        %v1846 = vld [vmem:[%s686 + $0x50] sm:$0xf]
        %v1847 = vld [vmem:[%s686 + $0x54] sm:$0xf]
        %v1848 = vld [vmem:[%s686 + $0x58] sm:$0xf]
        %v1849 = vld [vmem:[%s686 + $0x5c] sm:$0xf]
        %v1850 = vld [vmem:[%s686 + $0x60] sm:$0xf]
        %v1851 = vld [vmem:[%s686 + $0x64] sm:$0xf]
        %v1852 = vld [vmem:[%s686 + $0x68] sm:$0xf]
        %v1853 = vld [vmem:[%s686 + $0x6c] sm:$0xf]
        %v1854 = vld [vmem:[%s686 + $0x70] sm:$0xf]
        %v1855 = vld [vmem:[%s686 + $0x74] sm:$0xf]
        %v1856 = vld [vmem:[%s686 + $0x78] sm:$0xf]
        %v1857 = vld [vmem:[%s686 + $0x7c] sm:$0xf]
        %v1858 = vld [vmem:[%s686 + $0x80] sm:$0xf]
        %v1859 = vld [vmem:[%s686 + $0x84] sm:$0xf]
        %v1860 = vld [vmem:[%s686 + $0x88] sm:$0xf]
        %v1861 = vld [vmem:[%s686 + $0x8c] sm:$0xf]
        %v1862 = vld [vmem:[%s686 + $0x90] sm:$0xf]
        %v1863 = vld [vmem:[%s686 + $0x94] sm:$0xf]
        %v1864 = vld [vmem:[%s686 + $0x98] sm:$0xf]
        %v1865 = vld [vmem:[%s686 + $0x9c] sm:$0xf]
        %v1866 = vld [vmem:[%s686 + $0xa0] sm:$0xf]
        %v1867 = vld [vmem:[%s686 + $0xa4] sm:$0xf]
        %v1868 = vld [vmem:[%s686 + $0xa8] sm:$0xf]
        %v1869 = vld [vmem:[%s686 + $0xac] sm:$0xf]
        %v1870 = vld [vmem:[%s686 + $0xb0] sm:$0xf]
        %v1871 = vld [vmem:[%s686 + $0xb4] sm:$0xf]
        %v1872 = vld [vmem:[%s686 + $0xb8] sm:$0xf]
        %v1873 = vld [vmem:[%s686 + $0xbc] sm:$0xf]
        %v1874 = vld [vmem:[%s686 + $0xc0] sm:$0xf]
        %v1875 = vld [vmem:[%s686 + $0xc4] sm:$0xf]
        %v1876 = vld [vmem:[%s686 + $0xc8] sm:$0xf]
        %v1877 = vld [vmem:[%s686 + $0xcc] sm:$0xf]
        %v1878 = vld [vmem:[%s686 + $0xd0] sm:$0xf]
        %v1879 = vld [vmem:[%s686 + $0xd4] sm:$0xf]
        %v1880 = vld [vmem:[%s686 + $0xd8] sm:$0xf]
        %v1881 = vld [vmem:[%s686 + $0xdc] sm:$0xf]
        %v1882 = vld [vmem:[%s686 + $0xe0] sm:$0xf]
        %v1883 = vld [vmem:[%s686 + $0xe4] sm:$0xf]
        %v1884 = vld [vmem:[%s686 + $0xe8] sm:$0xf]
        %v1885 = vld [vmem:[%s686 + $0xec] sm:$0xf]
        %v1886 = vld [vmem:[%s686 + $0xf0] sm:$0xf]
        %v1887 = vld [vmem:[%s686 + $0xf4] sm:$0xf]
        %v1888 = vld [vmem:[%s686 + $0xf8] sm:$0xf]
        %v1889 = vld [vmem:[%s686 + $0xfc] sm:$0xf]
        %v1890 = vld [vmem:[%s686 + $0x100] sm:$0xf]
        %v1891 = vld [vmem:[%s686 + $0x104] sm:$0xf]
        %v1892 = vld [vmem:[%s686 + $0x108] sm:$0xf]
        %v1893 = vld [vmem:[%s686 + $0x10c] sm:$0xf]
        %v1894 = vld [vmem:[%s686 + $0x110] sm:$0xf]
        %v1895 = vld [vmem:[%s686 + $0x114] sm:$0xf]
        %v1896 = vld [vmem:[%s686 + $0x118] sm:$0xf]
        %v1897 = vld [vmem:[%s686 + $0x11c] sm:$0xf]
        %v1898 = vld [vmem:[%s686 + $0x120] sm:$0xf]
        %v1899 = vld [vmem:[%s686 + $0x124] sm:$0xf]
        %v1900 = vld [vmem:[%s686 + $0x128] sm:$0xf]
        %v1901 = vld [vmem:[%s686 + $0x12c] sm:$0xf]
        %v1902 = vld [vmem:[%s686 + $0x130] sm:$0xf]
        %v1903 = vld [vmem:[%s686 + $0x134] sm:$0xf]
        %v1904 = vld [vmem:[%s686 + $0x138] sm:$0xf]
        %v1905 = vld [vmem:[%s686 + $0x13c] sm:$0xf]
        %v1906 = vld [vmem:[%s686 + $0x140] sm:$0xf]
        %v1907 = vld [vmem:[%s686 + $0x144] sm:$0xf]
        %v1908 = vld [vmem:[%s686 + $0x148] sm:$0xf]
        %v1909 = vld [vmem:[%s686 + $0x14c] sm:$0xf]
        %v1910 = vld [vmem:[%s686 + $0x150] sm:$0xf]
        %v1911 = vld [vmem:[%s686 + $0x154] sm:$0xf]
        %v1912 = vld [vmem:[%s686 + $0x158] sm:$0xf]
        %v1913 = vld [vmem:[%s686 + $0x15c] sm:$0xf]
        %v1914 = vld [vmem:[%s686 + $0x160] sm:$0xf]
        %v1915 = vld [vmem:[%s686 + $0x164] sm:$0xf]
        %v1916 = vld [vmem:[%s686 + $0x168] sm:$0xf]
        %v1917 = vld [vmem:[%s686 + $0x16c] sm:$0xf]
        %v1918 = vld [vmem:[%s686 + $0x170] sm:$0xf]
        %v1919 = vld [vmem:[%s686 + $0x174] sm:$0xf]
        %v1920 = vld [vmem:[%s686 + $0x178] sm:$0xf]
        %v1921 = vld [vmem:[%s686 + $0x17c] sm:$0xf]
        %v1922 = vld [vmem:[%s686 + $0x180] sm:$0xf]
        %v1923 = vld [vmem:[%s686 + $0x184] sm:$0xf]
        %v1924 = vld [vmem:[%s686 + $0x188] sm:$0xf]
        %v1925 = vld [vmem:[%s686 + $0x18c] sm:$0xf]
        %v1926 = vld [vmem:[%s686 + $0x190] sm:$0xf]
        %v1927 = vld [vmem:[%s686 + $0x194] sm:$0xf]
        %v1928 = vld [vmem:[%s686 + $0x198] sm:$0xf]
        %v1929 = vld [vmem:[%s686 + $0x19c] sm:$0xf]
        %v1930 = vld [vmem:[%s686 + $0x1a0] sm:$0xf]
        %v1931 = vld [vmem:[%s686 + $0x1a4] sm:$0xf]
        %v1932 = vld [vmem:[%s686 + $0x1a8] sm:$0xf]
        %v1933 = vld [vmem:[%s686 + $0x1ac] sm:$0xf]
        %v1934 = vld [vmem:[%s686 + $0x1b0] sm:$0xf]
        %v1935 = vld [vmem:[%s686 + $0x1b4] sm:$0xf]
        %v1936 = vld [vmem:[%s686 + $0x1b8] sm:$0xf]
        %v1937 = vld [vmem:[%s686 + $0x1bc] sm:$0xf]
        %v1938 = vld [vmem:[%s686 + $0x1c0] sm:$0xf]
        %v1939 = vld [vmem:[%s686 + $0x1c4] sm:$0xf]
        %v1940 = vld [vmem:[%s686 + $0x1c8] sm:$0xf]
        %v1941 = vld [vmem:[%s686 + $0x1cc] sm:$0xf]
        %v1942 = vld [vmem:[%s686 + $0x1d0] sm:$0xf]
        %v1943 = vld [vmem:[%s686 + $0x1d4] sm:$0xf]
        %v1944 = vld [vmem:[%s686 + $0x1d8] sm:$0xf]
        %v1945 = vld [vmem:[%s686 + $0x1dc] sm:$0xf]
        %v1946 = vld [vmem:[%s686 + $0x1e0] sm:$0xf]
        %v1947 = vld [vmem:[%s686 + $0x1e4] sm:$0xf]
        %v1948 = vld [vmem:[%s686 + $0x1e8] sm:$0xf]
        %v1949 = vld [vmem:[%s686 + $0x1ec] sm:$0xf]
        %v1950 = vld [vmem:[%s686 + $0x1f0] sm:$0xf]
        %v1951 = vld [vmem:[%s686 + $0x1f4] sm:$0xf]
        %v1952 = vld [vmem:[%s686 + $0x1f8] sm:$0xf]
        %v1953 = vld [vmem:[%s686 + $0x1fc] sm:$0xf]
        %v1954 = vld [vmem:[%s686 + $0x200] sm:$0xf]
        %v1955 = vld [vmem:[%s686 + $0x204] sm:$0xf]
        %v1956 = vld [vmem:[%s686 + $0x208] sm:$0xf]
        %v1957 = vld [vmem:[%s686 + $0x20c] sm:$0xf]
        %v1958 = vld [vmem:[%s686 + $0x210] sm:$0xf]
        %v1959 = vld [vmem:[%s686 + $0x214] sm:$0xf]
        %v1960 = vld [vmem:[%s686 + $0x218] sm:$0xf]
        %v1961 = vld [vmem:[%s686 + $0x21c] sm:$0xf]
        %v1962 = vld [vmem:[%s686 + $0x220] sm:$0xf]
        %v1963 = vld [vmem:[%s686 + $0x224] sm:$0xf]
        %v1964 = vld [vmem:[%s686 + $0x228] sm:$0xf]
        %v1965 = vld [vmem:[%s686 + $0x22c] sm:$0xf]
        %v1966 = vld [vmem:[%s686 + $0x230] sm:$0xf]
        %v1967 = vld [vmem:[%s686 + $0x234] sm:$0xf]
        %v1968 = vld [vmem:[%s686 + $0x238] sm:$0xf]
        %v1969 = vld [vmem:[%s686 + $0x23c] sm:$0xf]
        %v1970 = vld [vmem:[%s686 + $0x240] sm:$0xf]
        %v1971 = vld [vmem:[%s686 + $0x244] sm:$0xf]
        %v1972 = vld [vmem:[%s686 + $0x248] sm:$0xf]
        %v1973 = vld [vmem:[%s686 + $0x24c] sm:$0xf]
        %v1974 = vld [vmem:[%s686 + $0x250] sm:$0xf]
        %v1975 = vld [vmem:[%s686 + $0x254] sm:$0xf]
        %v1976 = vld [vmem:[%s686 + $0x258] sm:$0xf]
        %v1977 = vld [vmem:[%s686 + $0x25c] sm:$0xf]
        %v1978 = vld [vmem:[%s686 + $0x260] sm:$0xf]
        %v1979 = vld [vmem:[%s686 + $0x264] sm:$0xf]
        %v1980 = vld [vmem:[%s686 + $0x268] sm:$0xf]
        %v1981 = vld [vmem:[%s686 + $0x26c] sm:$0xf]
        %v1982 = vld [vmem:[%s686 + $0x270] sm:$0xf]
        %v1983 = vld [vmem:[%s686 + $0x274] sm:$0xf]
        %v1984 = vld [vmem:[%s686 + $0x278] sm:$0xf]
        %v1985 = vld [vmem:[%s686 + $0x27c] sm:$0xf]
        %v1986 = vld [vmem:[%s686 + $0x280] sm:$0xf]
        %v1987 = vld [vmem:[%s686 + $0x284] sm:$0xf]
        %v1988 = vld [vmem:[%s686 + $0x288] sm:$0xf]
        %v1989 = vld [vmem:[%s686 + $0x28c] sm:$0xf]
        %v1990 = vld [vmem:[%s686 + $0x290] sm:$0xf]
        %v1991 = vld [vmem:[%s686 + $0x294] sm:$0xf]
        %v1992 = vld [vmem:[%s686 + $0x298] sm:$0xf]
        %v1993 = vld [vmem:[%s686 + $0x29c] sm:$0xf]
        %v1994 = vld [vmem:[%s686 + $0x2a0] sm:$0xf]
        %v1995 = vld [vmem:[%s686 + $0x2a4] sm:$0xf]
        %v1996 = vld [vmem:[%s686 + $0x2a8] sm:$0xf]
        %v1997 = vld [vmem:[%s686 + $0x2ac] sm:$0xf]
        %v1998 = vld [vmem:[%s686 + $0x2b0] sm:$0xf]
        %v1999 = vld [vmem:[%s686 + $0x2b4] sm:$0xf]
        %v2000 = vld [vmem:[%s686 + $0x2b8] sm:$0xf]
        %v2001 = vld [vmem:[%s686 + $0x2bc] sm:$0xf]
        %v2002 = vld [vmem:[%s686 + $0x2c0] sm:$0xf]
        %v2003 = vld [vmem:[%s686 + $0x2c4] sm:$0xf]
        %v2004 = vld [vmem:[%s686 + $0x2c8] sm:$0xf]
        %v2005 = vld [vmem:[%s686 + $0x2cc] sm:$0xf]
        %v2006 = vld [vmem:[%s686 + $0x2d0] sm:$0xf]
        %v2007 = vld [vmem:[%s686 + $0x2d4] sm:$0xf]
        %v2008 = vld [vmem:[%s686 + $0x2d8] sm:$0xf]
        %v2009 = vld [vmem:[%s686 + $0x2dc] sm:$0xf]
        %v2010 = vld [vmem:[%s686 + $0x2e0] sm:$0xf]
        %v2011 = vld [vmem:[%s686 + $0x2e4] sm:$0xf]
        %v2012 = vld [vmem:[%s686 + $0x2e8] sm:$0xf]
        %v2013 = vld [vmem:[%s686 + $0x2ec] sm:$0xf]
        %v2014 = vld [vmem:[%s686 + $0x2f0] sm:$0xf]
        %v2015 = vld [vmem:[%s686 + $0x2f4] sm:$0xf]
        %v2016 = vld [vmem:[%s686 + $0x2f8] sm:$0xf]
        %v2017 = vld [vmem:[%s686 + $0x2fc] sm:$0xf]
        %v2018 = vld [vmem:[%s686 + $0x300] sm:$0xf]
        %v2019 = vld [vmem:[%s686 + $0x304] sm:$0xf]
        %v2020 = vld [vmem:[%s686 + $0x308] sm:$0xf]
        %v2021 = vld [vmem:[%s686 + $0x30c] sm:$0xf]
        %v2022 = vld [vmem:[%s686 + $0x310] sm:$0xf]
        %v2023 = vld [vmem:[%s686 + $0x314] sm:$0xf]
        %v2024 = vld [vmem:[%s686 + $0x318] sm:$0xf]
        %v2025 = vld [vmem:[%s686 + $0x31c] sm:$0xf]
        %v2026 = vld [vmem:[%s686 + $0x320] sm:$0xf]
        %v2027 = vld [vmem:[%s686 + $0x324] sm:$0xf]
        %v2028 = vld [vmem:[%s686 + $0x328] sm:$0xf]
        %v2029 = vld [vmem:[%s686 + $0x32c] sm:$0xf]
        %v2030 = vld [vmem:[%s686 + $0x330] sm:$0xf]
        %v2031 = vld [vmem:[%s686 + $0x334] sm:$0xf]
        %v2032 = vld [vmem:[%s686 + $0x338] sm:$0xf]
        %v2033 = vld [vmem:[%s686 + $0x33c] sm:$0xf]
        %v2034 = vld [vmem:[%s686 + $0x340] sm:$0xf]
        %v2035 = vld [vmem:[%s686 + $0x344] sm:$0xf]
        %v2036 = vld [vmem:[%s686 + $0x348] sm:$0xf]
        %v2037 = vld [vmem:[%s686 + $0x34c] sm:$0xf]
        %v2038 = vld [vmem:[%s686 + $0x350] sm:$0xf]
        %v2039 = vld [vmem:[%s686 + $0x354] sm:$0xf]
        %v2040 = vld [vmem:[%s686 + $0x358] sm:$0xf]
        %v2041 = vld [vmem:[%s686 + $0x35c] sm:$0xf]
        %v2042 = vld [vmem:[%s686 + $0x360] sm:$0xf]
        %v2043 = vld [vmem:[%s686 + $0x364] sm:$0xf]
        %v2044 = vld [vmem:[%s686 + $0x368] sm:$0xf]
        %v2045 = vld [vmem:[%s686 + $0x36c] sm:$0xf]
        %v2046 = vld [vmem:[%s686 + $0x370] sm:$0xf]
        %v2047 = vld [vmem:[%s686 + $0x374] sm:$0xf]
        %v2048 = vld [vmem:[%s686 + $0x378] sm:$0xf]
        %v2049 = vld [vmem:[%s686 + $0x37c] sm:$0xf]
        %v2050 = vld [vmem:[%s686 + $0x380] sm:$0xf]
        %v2051 = vld [vmem:[%s686 + $0x384] sm:$0xf]
        %v2052 = vld [vmem:[%s686 + $0x388] sm:$0xf]
        %v2053 = vld [vmem:[%s686 + $0x38c] sm:$0xf]
        %v2054 = vld [vmem:[%s686 + $0x390] sm:$0xf]
        %v2055 = vld [vmem:[%s686 + $0x394] sm:$0xf]
        %v2056 = vld [vmem:[%s686 + $0x398] sm:$0xf]
        %v2057 = vld [vmem:[%s686 + $0x39c] sm:$0xf]
        %v2058 = vld [vmem:[%s686 + $0x3a0] sm:$0xf]
        %v2059 = vld [vmem:[%s686 + $0x3a4] sm:$0xf]
        %v2060 = vld [vmem:[%s686 + $0x3a8] sm:$0xf]
        %v2061 = vld [vmem:[%s686 + $0x3ac] sm:$0xf]
        %v2062 = vld [vmem:[%s686 + $0x3b0] sm:$0xf]
        %v2063 = vld [vmem:[%s686 + $0x3b4] sm:$0xf]
        %v2064 = vld [vmem:[%s686 + $0x3b8] sm:$0xf]
        %v2065 = vld [vmem:[%s686 + $0x3bc] sm:$0xf]
        %v2066 = vld [vmem:[%s686 + $0x3c0] sm:$0xf]
        %v2067 = vld [vmem:[%s686 + $0x3c4] sm:$0xf]
        %v2068 = vld [vmem:[%s686 + $0x3c8] sm:$0xf]
        %v2069 = vld [vmem:[%s686 + $0x3cc] sm:$0xf]
        %v2070 = vld [vmem:[%s686 + $0x3d0] sm:$0xf]
        %v2071 = vld [vmem:[%s686 + $0x3d4] sm:$0xf]
        %v2072 = vld [vmem:[%s686 + $0x3d8] sm:$0xf]
        %v2073 = vld [vmem:[%s686 + $0x3dc] sm:$0xf]
        %v2074 = vld [vmem:[%s686 + $0x3e0] sm:$0xf]
        %v2075 = vld [vmem:[%s686 + $0x3e4] sm:$0xf]
        %v2076 = vld [vmem:[%s686 + $0x3e8] sm:$0xf]
        %v2077 = vld [vmem:[%s686 + $0x3ec] sm:$0xf]
        %v2078 = vld [vmem:[%s686 + $0x3f0] sm:$0xf]
        %v2079 = vld [vmem:[%s686 + $0x3f4] sm:$0xf]
        %v2080 = vld [vmem:[%s686 + $0x3f8] sm:$0xf]
        %v2081 = vld [vmem:[%s686 + $0x3fc] sm:$0xf]
        %v2082 = vpack.c.bf16 %v1810, %v1794
        %v2083 = vpack.c.bf16 %v1811, %v1795
        %v2084 = vpack.c.bf16 %v1812, %v1796
        %v2085 = vpack.c.bf16 %v1813, %v1797
        %v2086 = vpack.c.bf16 %v1814, %v1798
        %v2087 = vpack.c.bf16 %v1815, %v1799
        %v2088 = vpack.c.bf16 %v1816, %v1800
        %v2089 = vpack.c.bf16 %v1817, %v1801
        %v2090 = vpack.c.bf16 %v1818, %v1802
        %v2091 = vpack.c.bf16 %v1819, %v1803
        %v2092 = vpack.c.bf16 %v1820, %v1804
        %v2093 = vpack.c.bf16 %v1821, %v1805
        %v2094 = vpack.c.bf16 %v1822, %v1806
        %v2095 = vpack.c.bf16 %v1823, %v1807
        %v2096 = vpack.c.bf16 %v1824, %v1808
        %v2097 = vpack.c.bf16 %v1825, %v1809
        %v2098 = vld [vmem:[%s689] sm:$0x1]
        %v2100 = vperm.slane %v2098, 0
        %v2358 = vunpack.c.l.b16 %v1826
        %v2359 = vunpack.c.l.b16 %v1827
        %v2360 = vunpack.c.l.b16 %v1828
        %v2361 = vunpack.c.l.b16 %v1829
        %v2362 = vunpack.c.l.b16 %v1830
        %v2363 = vunpack.c.l.b16 %v1831
        %v2364 = vunpack.c.l.b16 %v1832
        %v2365 = vunpack.c.l.b16 %v1833
        %v2366 = vunpack.c.l.b16 %v1834
        %v2367 = vunpack.c.l.b16 %v1835
        %v2368 = vunpack.c.l.b16 %v1836
        %v2369 = vunpack.c.l.b16 %v1837
        %v2370 = vunpack.c.l.b16 %v1838
        %v2371 = vunpack.c.l.b16 %v1839
        %v2372 = vunpack.c.l.b16 %v1840
        %v2373 = vunpack.c.l.b16 %v1841
        %v2374 = vunpack.c.l.b16 %v1842
        %v2375 = vunpack.c.l.b16 %v1843
        %v2376 = vunpack.c.l.b16 %v1844
        %v2377 = vunpack.c.l.b16 %v1845
        %v2378 = vunpack.c.l.b16 %v1846
        %v2379 = vunpack.c.l.b16 %v1847
        %v2380 = vunpack.c.l.b16 %v1848
        %v2381 = vunpack.c.l.b16 %v1849
        %v2382 = vunpack.c.l.b16 %v1850
        %v2383 = vunpack.c.l.b16 %v1851
        %v2384 = vunpack.c.l.b16 %v1852
        %v2385 = vunpack.c.l.b16 %v1853
        %v2386 = vunpack.c.l.b16 %v1854
        %v2387 = vunpack.c.l.b16 %v1855
        %v2388 = vunpack.c.l.b16 %v1856
        %v2389 = vunpack.c.l.b16 %v1857
        %v2390 = vunpack.c.l.b16 %v1858
        %v2391 = vunpack.c.l.b16 %v1859
        %v2392 = vunpack.c.l.b16 %v1860
        %v2393 = vunpack.c.l.b16 %v1861
        %v2394 = vunpack.c.l.b16 %v1862
        %v2395 = vunpack.c.l.b16 %v1863
        %v2396 = vunpack.c.l.b16 %v1864
        %v2397 = vunpack.c.l.b16 %v1865
        %v2398 = vunpack.c.l.b16 %v1866
        %v2399 = vunpack.c.l.b16 %v1867
        %v2400 = vunpack.c.l.b16 %v1868
        %v2401 = vunpack.c.l.b16 %v1869
        %v2402 = vunpack.c.l.b16 %v1870
        %v2403 = vunpack.c.l.b16 %v1871
        %v2404 = vunpack.c.l.b16 %v1872
        %v2405 = vunpack.c.l.b16 %v1873
        %v2406 = vunpack.c.l.b16 %v1874
        %v2407 = vunpack.c.l.b16 %v1875
        %v2408 = vunpack.c.l.b16 %v1876
        %v2409 = vunpack.c.l.b16 %v1877
        %v2410 = vunpack.c.l.b16 %v1878
        %v2411 = vunpack.c.l.b16 %v1879
        %v2412 = vunpack.c.l.b16 %v1880
        %v2413 = vunpack.c.l.b16 %v1881
        %v2414 = vunpack.c.l.b16 %v1882
        %v2415 = vunpack.c.l.b16 %v1883
        %v2416 = vunpack.c.l.b16 %v1884
        %v2417 = vunpack.c.l.b16 %v1885
        %v2418 = vunpack.c.l.b16 %v1886
        %v2419 = vunpack.c.l.b16 %v1887
        %v2420 = vunpack.c.l.b16 %v1888
        %v2421 = vunpack.c.l.b16 %v1889
        %v2422 = vunpack.c.l.b16 %v1890
        %v2423 = vunpack.c.l.b16 %v1891
        %v2424 = vunpack.c.l.b16 %v1892
        %v2425 = vunpack.c.l.b16 %v1893
        %v2426 = vunpack.c.l.b16 %v1894
        %v2427 = vunpack.c.l.b16 %v1895
        %v2428 = vunpack.c.l.b16 %v1896
        %v2429 = vunpack.c.l.b16 %v1897
        %v2430 = vunpack.c.l.b16 %v1898
        %v2431 = vunpack.c.l.b16 %v1899
        %v2432 = vunpack.c.l.b16 %v1900
        %v2433 = vunpack.c.l.b16 %v1901
        %v2434 = vunpack.c.l.b16 %v1902
        %v2435 = vunpack.c.l.b16 %v1903
        %v2436 = vunpack.c.l.b16 %v1904
        %v2437 = vunpack.c.l.b16 %v1905
        %v2438 = vunpack.c.l.b16 %v1906
        %v2439 = vunpack.c.l.b16 %v1907
        %v2440 = vunpack.c.l.b16 %v1908
        %v2441 = vunpack.c.l.b16 %v1909
        %v2442 = vunpack.c.l.b16 %v1910
        %v2443 = vunpack.c.l.b16 %v1911
        %v2444 = vunpack.c.l.b16 %v1912
        %v2445 = vunpack.c.l.b16 %v1913
        %v2446 = vunpack.c.l.b16 %v1914
        %v2447 = vunpack.c.l.b16 %v1915
        %v2448 = vunpack.c.l.b16 %v1916
        %v2449 = vunpack.c.l.b16 %v1917
        %v2450 = vunpack.c.l.b16 %v1918
        %v2451 = vunpack.c.l.b16 %v1919
        %v2452 = vunpack.c.l.b16 %v1920
        %v2453 = vunpack.c.l.b16 %v1921
        %v2454 = vunpack.c.l.b16 %v1922
        %v2455 = vunpack.c.l.b16 %v1923
        %v2456 = vunpack.c.l.b16 %v1924
        %v2457 = vunpack.c.l.b16 %v1925
        %v2458 = vunpack.c.l.b16 %v1926
        %v2459 = vunpack.c.l.b16 %v1927
        %v2460 = vunpack.c.l.b16 %v1928
        %v2461 = vunpack.c.l.b16 %v1929
        %v2462 = vunpack.c.l.b16 %v1930
        %v2463 = vunpack.c.l.b16 %v1931
        %v2464 = vunpack.c.l.b16 %v1932
        %v2465 = vunpack.c.l.b16 %v1933
        %v2466 = vunpack.c.l.b16 %v1934
        %v2467 = vunpack.c.l.b16 %v1935
        %v2468 = vunpack.c.l.b16 %v1936
        %v2469 = vunpack.c.l.b16 %v1937
        %v2470 = vunpack.c.l.b16 %v1938
        %v2471 = vunpack.c.l.b16 %v1939
        %v2472 = vunpack.c.l.b16 %v1940
        %v2473 = vunpack.c.l.b16 %v1941
        %v2474 = vunpack.c.l.b16 %v1942
        %v2475 = vunpack.c.l.b16 %v1943
        %v2476 = vunpack.c.l.b16 %v1944
        %v2477 = vunpack.c.l.b16 %v1945
        %v2478 = vunpack.c.l.b16 %v1946
        %v2479 = vunpack.c.l.b16 %v1947
        %v2480 = vunpack.c.l.b16 %v1948
        %v2481 = vunpack.c.l.b16 %v1949
        %v2482 = vunpack.c.l.b16 %v1950
        %v2483 = vunpack.c.l.b16 %v1951
        %v2484 = vunpack.c.l.b16 %v1952
        %v2485 = vunpack.c.l.b16 %v1953
        %v2486 = vunpack.c.l.b16 %v1954
        %v2487 = vunpack.c.l.b16 %v1955
        %v2488 = vunpack.c.l.b16 %v1956
        %v2489 = vunpack.c.l.b16 %v1957
        %v2490 = vunpack.c.l.b16 %v1958
        %v2491 = vunpack.c.l.b16 %v1959
        %v2492 = vunpack.c.l.b16 %v1960
        %v2493 = vunpack.c.l.b16 %v1961
        %v2494 = vunpack.c.l.b16 %v1962
        %v2495 = vunpack.c.l.b16 %v1963
        %v2496 = vunpack.c.l.b16 %v1964
        %v2497 = vunpack.c.l.b16 %v1965
        %v2498 = vunpack.c.l.b16 %v1966
        %v2499 = vunpack.c.l.b16 %v1967
        %v2500 = vunpack.c.l.b16 %v1968
        %v2501 = vunpack.c.l.b16 %v1969
        %v2502 = vunpack.c.l.b16 %v1970
        %v2503 = vunpack.c.l.b16 %v1971
        %v2504 = vunpack.c.l.b16 %v1972
        %v2505 = vunpack.c.l.b16 %v1973
        %v2506 = vunpack.c.l.b16 %v1974
        %v2507 = vunpack.c.l.b16 %v1975
        %v2508 = vunpack.c.l.b16 %v1976
        %v2509 = vunpack.c.l.b16 %v1977
        %v2510 = vunpack.c.l.b16 %v1978
        %v2511 = vunpack.c.l.b16 %v1979
        %v2512 = vunpack.c.l.b16 %v1980
        %v2513 = vunpack.c.l.b16 %v1981
        %v2514 = vunpack.c.l.b16 %v1982
        %v2515 = vunpack.c.l.b16 %v1983
        %v2516 = vunpack.c.l.b16 %v1984
        %v2517 = vunpack.c.l.b16 %v1985
        %v2518 = vunpack.c.l.b16 %v1986
        %v2519 = vunpack.c.l.b16 %v1987
        %v2520 = vunpack.c.l.b16 %v1988
        %v2521 = vunpack.c.l.b16 %v1989
        %v2522 = vunpack.c.l.b16 %v1990
        %v2523 = vunpack.c.l.b16 %v1991
        %v2524 = vunpack.c.l.b16 %v1992
        %v2525 = vunpack.c.l.b16 %v1993
        %v2526 = vunpack.c.l.b16 %v1994
        %v2527 = vunpack.c.l.b16 %v1995
        %v2528 = vunpack.c.l.b16 %v1996
        %v2529 = vunpack.c.l.b16 %v1997
        %v2530 = vunpack.c.l.b16 %v1998
        %v2531 = vunpack.c.l.b16 %v1999
        %v2532 = vunpack.c.l.b16 %v2000
        %v2533 = vunpack.c.l.b16 %v2001
        %v2534 = vunpack.c.l.b16 %v2002
        %v2535 = vunpack.c.l.b16 %v2003
        %v2536 = vunpack.c.l.b16 %v2004
        %v2537 = vunpack.c.l.b16 %v2005
        %v2538 = vunpack.c.l.b16 %v2006
        %v2539 = vunpack.c.l.b16 %v2007
        %v2540 = vunpack.c.l.b16 %v2008
        %v2541 = vunpack.c.l.b16 %v2009
        %v2542 = vunpack.c.l.b16 %v2010
        %v2543 = vunpack.c.l.b16 %v2011
        %v2544 = vunpack.c.l.b16 %v2012
        %v2545 = vunpack.c.l.b16 %v2013
        %v2546 = vunpack.c.l.b16 %v2014
        %v2547 = vunpack.c.l.b16 %v2015
        %v2548 = vunpack.c.l.b16 %v2016
        %v2549 = vunpack.c.l.b16 %v2017
        %v2550 = vunpack.c.l.b16 %v2018
        %v2551 = vunpack.c.l.b16 %v2019
        %v2552 = vunpack.c.l.b16 %v2020
        %v2553 = vunpack.c.l.b16 %v2021
        %v2554 = vunpack.c.l.b16 %v2022
        %v2555 = vunpack.c.l.b16 %v2023
        %v2556 = vunpack.c.l.b16 %v2024
        %v2557 = vunpack.c.l.b16 %v2025
        %v2558 = vunpack.c.l.b16 %v2026
        %v2559 = vunpack.c.l.b16 %v2027
        %v2560 = vunpack.c.l.b16 %v2028
        %v2561 = vunpack.c.l.b16 %v2029
        %v2562 = vunpack.c.l.b16 %v2030
        %v2563 = vunpack.c.l.b16 %v2031
        %v2564 = vunpack.c.l.b16 %v2032
        %v2565 = vunpack.c.l.b16 %v2033
        %v2566 = vunpack.c.l.b16 %v2034
        %v2567 = vunpack.c.l.b16 %v2035
        %v2568 = vunpack.c.l.b16 %v2036
        %v2569 = vunpack.c.l.b16 %v2037
        %v2570 = vunpack.c.l.b16 %v2038
        %v2571 = vunpack.c.l.b16 %v2039
        %v2572 = vunpack.c.l.b16 %v2040
        %v2573 = vunpack.c.l.b16 %v2041
        %v2574 = vunpack.c.l.b16 %v2042
        %v2575 = vunpack.c.l.b16 %v2043
        %v2576 = vunpack.c.l.b16 %v2044
        %v2577 = vunpack.c.l.b16 %v2045
        %v2578 = vunpack.c.l.b16 %v2046
        %v2579 = vunpack.c.l.b16 %v2047
        %v2580 = vunpack.c.l.b16 %v2048
        %v2581 = vunpack.c.l.b16 %v2049
        %v2582 = vunpack.c.l.b16 %v2050
        %v2583 = vunpack.c.l.b16 %v2051
        %v2584 = vunpack.c.l.b16 %v2052
        %v2585 = vunpack.c.l.b16 %v2053
        %v2586 = vunpack.c.l.b16 %v2054
        %v2587 = vunpack.c.l.b16 %v2055
        %v2588 = vunpack.c.l.b16 %v2056
        %v2589 = vunpack.c.l.b16 %v2057
        %v2590 = vunpack.c.l.b16 %v2058
        %v2591 = vunpack.c.l.b16 %v2059
        %v2592 = vunpack.c.l.b16 %v2060
        %v2593 = vunpack.c.l.b16 %v2061
        %v2594 = vunpack.c.l.b16 %v2062
        %v2595 = vunpack.c.l.b16 %v2063
        %v2596 = vunpack.c.l.b16 %v2064
        %v2597 = vunpack.c.l.b16 %v2065
        %v2598 = vunpack.c.l.b16 %v2066
        %v2599 = vunpack.c.l.b16 %v2067
        %v2600 = vunpack.c.l.b16 %v2068
        %v2601 = vunpack.c.l.b16 %v2069
        %v2602 = vunpack.c.l.b16 %v2070
        %v2603 = vunpack.c.l.b16 %v2071
        %v2604 = vunpack.c.l.b16 %v2072
        %v2605 = vunpack.c.l.b16 %v2073
        %v2606 = vunpack.c.l.b16 %v2074
        %v2607 = vunpack.c.l.b16 %v2075
        %v2608 = vunpack.c.l.b16 %v2076
        %v2609 = vunpack.c.l.b16 %v2077
        %v2610 = vunpack.c.l.b16 %v2078
        %v2611 = vunpack.c.l.b16 %v2079
        %v2612 = vunpack.c.l.b16 %v2080
        %v2613 = vunpack.c.l.b16 %v2081
        %v2614 = vpack.c.b16 %v2359, %v2358
        %v2615 = vpack.c.b16 %v2361, %v2360
        %v2616 = vpack.c.b16 %v2363, %v2362
        %v2617 = vpack.c.b16 %v2365, %v2364
        %v2618 = vpack.c.b16 %v2367, %v2366
        %v2619 = vpack.c.b16 %v2369, %v2368
        %v2620 = vpack.c.b16 %v2371, %v2370
        %v2621 = vpack.c.b16 %v2373, %v2372
        %v2622 = vpack.c.b16 %v2375, %v2374
        %v2623 = vpack.c.b16 %v2377, %v2376
        %v2624 = vpack.c.b16 %v2379, %v2378
        %v2625 = vpack.c.b16 %v2381, %v2380
        %v2626 = vpack.c.b16 %v2383, %v2382
        %v2627 = vpack.c.b16 %v2385, %v2384
        %v2628 = vpack.c.b16 %v2387, %v2386
        %v2629 = vpack.c.b16 %v2389, %v2388
        %v2630 = vpack.c.b16 %v2391, %v2390
        %v2631 = vpack.c.b16 %v2393, %v2392
        %v2632 = vpack.c.b16 %v2395, %v2394
        %v2633 = vpack.c.b16 %v2397, %v2396
        %v2634 = vpack.c.b16 %v2399, %v2398
        %v2635 = vpack.c.b16 %v2401, %v2400
        %v2636 = vpack.c.b16 %v2403, %v2402
        %v2637 = vpack.c.b16 %v2405, %v2404
        %v2638 = vpack.c.b16 %v2407, %v2406
        %v2639 = vpack.c.b16 %v2409, %v2408
        %v2640 = vpack.c.b16 %v2411, %v2410
        %v2641 = vpack.c.b16 %v2413, %v2412
        %v2642 = vpack.c.b16 %v2415, %v2414
        %v2643 = vpack.c.b16 %v2417, %v2416
        %v2644 = vpack.c.b16 %v2419, %v2418
        %v2645 = vpack.c.b16 %v2421, %v2420
        %v2646 = vpack.c.b16 %v2423, %v2422
        %v2647 = vpack.c.b16 %v2425, %v2424
        %v2648 = vpack.c.b16 %v2427, %v2426
        %v2649 = vpack.c.b16 %v2429, %v2428
        %v2650 = vpack.c.b16 %v2431, %v2430
        %v2651 = vpack.c.b16 %v2433, %v2432
        %v2652 = vpack.c.b16 %v2435, %v2434
        %v2653 = vpack.c.b16 %v2437, %v2436
        %v2654 = vpack.c.b16 %v2439, %v2438
        %v2655 = vpack.c.b16 %v2441, %v2440
        %v2656 = vpack.c.b16 %v2443, %v2442
        %v2657 = vpack.c.b16 %v2445, %v2444
        %v2658 = vpack.c.b16 %v2447, %v2446
        %v2659 = vpack.c.b16 %v2449, %v2448
        %v2660 = vpack.c.b16 %v2451, %v2450
        %v2661 = vpack.c.b16 %v2453, %v2452
        %v2662 = vpack.c.b16 %v2455, %v2454
        %v2663 = vpack.c.b16 %v2457, %v2456
        %v2664 = vpack.c.b16 %v2459, %v2458
        %v2665 = vpack.c.b16 %v2461, %v2460
        %v2666 = vpack.c.b16 %v2463, %v2462
        %v2667 = vpack.c.b16 %v2465, %v2464
        %v2668 = vpack.c.b16 %v2467, %v2466
        %v2669 = vpack.c.b16 %v2469, %v2468
        %v2670 = vpack.c.b16 %v2471, %v2470
        %v2671 = vpack.c.b16 %v2473, %v2472
        %v2672 = vpack.c.b16 %v2475, %v2474
        %v2673 = vpack.c.b16 %v2477, %v2476
        %v2674 = vpack.c.b16 %v2479, %v2478
        %v2675 = vpack.c.b16 %v2481, %v2480
        %v2676 = vpack.c.b16 %v2483, %v2482
        %v2677 = vpack.c.b16 %v2485, %v2484
        %v2678 = vpack.c.b16 %v2487, %v2486
        %v2679 = vpack.c.b16 %v2489, %v2488
        %v2680 = vpack.c.b16 %v2491, %v2490
        %v2681 = vpack.c.b16 %v2493, %v2492
        %v2682 = vpack.c.b16 %v2495, %v2494
        %v2683 = vpack.c.b16 %v2497, %v2496
        %v2684 = vpack.c.b16 %v2499, %v2498
        %v2685 = vpack.c.b16 %v2501, %v2500
        %v2686 = vpack.c.b16 %v2503, %v2502
        %v2687 = vpack.c.b16 %v2505, %v2504
        %v2688 = vpack.c.b16 %v2507, %v2506
        %v2689 = vpack.c.b16 %v2509, %v2508
        %v2690 = vpack.c.b16 %v2511, %v2510
        %v2691 = vpack.c.b16 %v2513, %v2512
        %v2692 = vpack.c.b16 %v2515, %v2514
        %v2693 = vpack.c.b16 %v2517, %v2516
        %v2694 = vpack.c.b16 %v2519, %v2518
        %v2695 = vpack.c.b16 %v2521, %v2520
        %v2696 = vpack.c.b16 %v2523, %v2522
        %v2697 = vpack.c.b16 %v2525, %v2524
        %v2698 = vpack.c.b16 %v2527, %v2526
        %v2699 = vpack.c.b16 %v2529, %v2528
        %v2700 = vpack.c.b16 %v2531, %v2530
        %v2701 = vpack.c.b16 %v2533, %v2532
        %v2702 = vpack.c.b16 %v2535, %v2534
        %v2703 = vpack.c.b16 %v2537, %v2536
        %v2704 = vpack.c.b16 %v2539, %v2538
        %v2705 = vpack.c.b16 %v2541, %v2540
        %v2706 = vpack.c.b16 %v2543, %v2542
        %v2707 = vpack.c.b16 %v2545, %v2544
        %v2708 = vpack.c.b16 %v2547, %v2546
        %v2709 = vpack.c.b16 %v2549, %v2548
        %v2710 = vpack.c.b16 %v2551, %v2550
        %v2711 = vpack.c.b16 %v2553, %v2552
        %v2712 = vpack.c.b16 %v2555, %v2554
        %v2713 = vpack.c.b16 %v2557, %v2556
        %v2714 = vpack.c.b16 %v2559, %v2558
        %v2715 = vpack.c.b16 %v2561, %v2560
        %v2716 = vpack.c.b16 %v2563, %v2562
        %v2717 = vpack.c.b16 %v2565, %v2564
        %v2718 = vpack.c.b16 %v2567, %v2566
        %v2719 = vpack.c.b16 %v2569, %v2568
        %v2720 = vpack.c.b16 %v2571, %v2570
        %v2721 = vpack.c.b16 %v2573, %v2572
        %v2722 = vpack.c.b16 %v2575, %v2574
        %v2723 = vpack.c.b16 %v2577, %v2576
        %v2724 = vpack.c.b16 %v2579, %v2578
        %v2725 = vpack.c.b16 %v2581, %v2580
        %v2726 = vpack.c.b16 %v2583, %v2582
        %v2727 = vpack.c.b16 %v2585, %v2584
        %v2728 = vpack.c.b16 %v2587, %v2586
        %v2729 = vpack.c.b16 %v2589, %v2588
        %v2730 = vpack.c.b16 %v2591, %v2590
        %v2731 = vpack.c.b16 %v2593, %v2592
        %v2732 = vpack.c.b16 %v2595, %v2594
        %v2733 = vpack.c.b16 %v2597, %v2596
        %v2734 = vpack.c.b16 %v2599, %v2598
        %v2735 = vpack.c.b16 %v2601, %v2600
        %v2736 = vpack.c.b16 %v2603, %v2602
        %v2737 = vpack.c.b16 %v2605, %v2604
        %v2738 = vpack.c.b16 %v2607, %v2606
        %v2739 = vpack.c.b16 %v2609, %v2608
        %v2740 = vpack.c.b16 %v2611, %v2610
        %v2741 = vpack.c.b16 %v2613, %v2612
        %2870 = vmatpush.bf16.msra.mxu0 %v2621
        %2871 = vmatpush.bf16.msra.mxu0 %v2620
        %2872 = vmatpush.bf16.msra.mxu0 %v2619
        %2873 = vmatpush.bf16.msra.mxu0 %v2618
        %2874 = vmatpush.bf16.msra.mxu0 %v2617
        %2875 = vmatpush.bf16.msra.mxu0 %v2616
        %2876 = vmatpush.bf16.msra.mxu0 %v2615
        %2877 = vmatpush.bf16.msra.mxu0 %v2614
        %2878 = vmatmul.bf16.gmra.mxu0 %v2082
        %v2879 = vpop.f32.mrf.mxu0
        %v2880 = vadd.f32 %v2100, %v2879
        %v2881 = vpop.f32.mrf.mxu0
        %v2882 = vadd.f32 %v2100, %v2881
        %2883 = vdwg.mxu0
        %2884 = vmatpush.bf16.msra.mxu0 %v2629
        %2885 = vmatpush.bf16.msra.mxu0 %v2628
        %2886 = vmatpush.bf16.msra.mxu0 %v2627
        %2887 = vmatpush.bf16.msra.mxu0 %v2626
        %2888 = vmatpush.bf16.msra.mxu0 %v2625
        %2889 = vmatpush.bf16.msra.mxu0 %v2624
        %2890 = vmatpush.bf16.msra.mxu0 %v2623
        %2891 = vmatpush.bf16.msra.mxu0 %v2622
        %2892 = vmatmul.bf16.gmra.mxu0 %v2083
        %v2893 = vpop.f32.mrf.mxu0
        %v2894 = vadd.f32 %v2880, %v2893
        %v2895 = vpop.f32.mrf.mxu0
        %v2896 = vadd.f32 %v2882, %v2895
        %2897 = vdwg.mxu0
        %2898 = vmatpush.bf16.msra.mxu0 %v2637
        %2899 = vmatpush.bf16.msra.mxu0 %v2636
        %2900 = vmatpush.bf16.msra.mxu0 %v2635
        %2901 = vmatpush.bf16.msra.mxu0 %v2634
        %2902 = vmatpush.bf16.msra.mxu0 %v2633
        %2903 = vmatpush.bf16.msra.mxu0 %v2632
        %2904 = vmatpush.bf16.msra.mxu0 %v2631
        %2905 = vmatpush.bf16.msra.mxu0 %v2630
        %2906 = vmatmul.bf16.gmra.mxu0 %v2084
        %v2907 = vpop.f32.mrf.mxu0
        %v2908 = vadd.f32 %v2894, %v2907
        %v2909 = vpop.f32.mrf.mxu0
        %v2910 = vadd.f32 %v2896, %v2909
        %2911 = vdwg.mxu0
        %2912 = vmatpush.bf16.msra.mxu0 %v2645
        %2913 = vmatpush.bf16.msra.mxu0 %v2644
        %2914 = vmatpush.bf16.msra.mxu0 %v2643
        %2915 = vmatpush.bf16.msra.mxu0 %v2642
        %2916 = vmatpush.bf16.msra.mxu0 %v2641
        %2917 = vmatpush.bf16.msra.mxu0 %v2640
        %2918 = vmatpush.bf16.msra.mxu0 %v2639
        %2919 = vmatpush.bf16.msra.mxu0 %v2638
        %2920 = vmatmul.bf16.gmra.mxu0 %v2085
        %v2921 = vpop.f32.mrf.mxu0
        %v2922 = vadd.f32 %v2908, %v2921
        %v2923 = vpop.f32.mrf.mxu0
        %v2924 = vadd.f32 %v2910, %v2923
        %2925 = vdwg.mxu0
        %2926 = vmatpush.bf16.msra.mxu0 %v2653
        %2927 = vmatpush.bf16.msra.mxu0 %v2652
        %2928 = vmatpush.bf16.msra.mxu0 %v2651
        %2929 = vmatpush.bf16.msra.mxu0 %v2650
        %2930 = vmatpush.bf16.msra.mxu0 %v2649
        %2931 = vmatpush.bf16.msra.mxu0 %v2648
        %2932 = vmatpush.bf16.msra.mxu0 %v2647
        %2933 = vmatpush.bf16.msra.mxu0 %v2646
        %2934 = vmatmul.bf16.gmra.mxu0 %v2086
        %v2935 = vpop.f32.mrf.mxu0
        %v2936 = vadd.f32 %v2922, %v2935
        %v2937 = vpop.f32.mrf.mxu0
        %v2938 = vadd.f32 %v2924, %v2937
        %2939 = vdwg.mxu0
        %2940 = vmatpush.bf16.msra.mxu0 %v2661
        %2941 = vmatpush.bf16.msra.mxu0 %v2660
        %2942 = vmatpush.bf16.msra.mxu0 %v2659
        %2943 = vmatpush.bf16.msra.mxu0 %v2658
        %2944 = vmatpush.bf16.msra.mxu0 %v2657
        %2945 = vmatpush.bf16.msra.mxu0 %v2656
        %2946 = vmatpush.bf16.msra.mxu0 %v2655
        %2947 = vmatpush.bf16.msra.mxu0 %v2654
        %2948 = vmatmul.bf16.gmra.mxu0 %v2087
        %v2949 = vpop.f32.mrf.mxu0
        %v2950 = vadd.f32 %v2936, %v2949
        %v2951 = vpop.f32.mrf.mxu0
        %v2952 = vadd.f32 %v2938, %v2951
        %2953 = vdwg.mxu0
        %2954 = vmatpush.bf16.msra.mxu0 %v2669
        %2955 = vmatpush.bf16.msra.mxu0 %v2668
        %2956 = vmatpush.bf16.msra.mxu0 %v2667
        %2957 = vmatpush.bf16.msra.mxu0 %v2666
        %2958 = vmatpush.bf16.msra.mxu0 %v2665
        %2959 = vmatpush.bf16.msra.mxu0 %v2664
        %2960 = vmatpush.bf16.msra.mxu0 %v2663
        %2961 = vmatpush.bf16.msra.mxu0 %v2662
        %2962 = vmatmul.bf16.gmra.mxu0 %v2088
        %v2963 = vpop.f32.mrf.mxu0
        %v2964 = vadd.f32 %v2950, %v2963
        %v2965 = vpop.f32.mrf.mxu0
        %v2966 = vadd.f32 %v2952, %v2965
        %2967 = vdwg.mxu0
        %2968 = vmatpush.bf16.msra.mxu0 %v2677
        %2969 = vmatpush.bf16.msra.mxu0 %v2676
        %2970 = vmatpush.bf16.msra.mxu0 %v2675
        %2971 = vmatpush.bf16.msra.mxu0 %v2674
        %2972 = vmatpush.bf16.msra.mxu0 %v2673
        %2973 = vmatpush.bf16.msra.mxu0 %v2672
        %2974 = vmatpush.bf16.msra.mxu0 %v2671
        %2975 = vmatpush.bf16.msra.mxu0 %v2670
        %2976 = vmatmul.bf16.gmra.mxu0 %v2089
        %v2977 = vpop.f32.mrf.mxu0
        %v2978 = vadd.f32 %v2964, %v2977
        %v2979 = vpop.f32.mrf.mxu0
        %v2980 = vadd.f32 %v2966, %v2979
        %2981 = vdwg.mxu0
        %2982 = vmatpush.bf16.msra.mxu0 %v2685
        %2983 = vmatpush.bf16.msra.mxu0 %v2684
        %2984 = vmatpush.bf16.msra.mxu0 %v2683
        %2985 = vmatpush.bf16.msra.mxu0 %v2682
        %2986 = vmatpush.bf16.msra.mxu0 %v2681
        %2987 = vmatpush.bf16.msra.mxu0 %v2680
        %2988 = vmatpush.bf16.msra.mxu0 %v2679
        %2989 = vmatpush.bf16.msra.mxu0 %v2678
        %2990 = vmatmul.bf16.gmra.mxu0 %v2090
        %v2991 = vpop.f32.mrf.mxu0
        %v2992 = vadd.f32 %v2978, %v2991
        %v2993 = vpop.f32.mrf.mxu0
        %v2994 = vadd.f32 %v2980, %v2993
        %2995 = vdwg.mxu0
        %2996 = vmatpush.bf16.msra.mxu0 %v2693
        %2997 = vmatpush.bf16.msra.mxu0 %v2692
        %2998 = vmatpush.bf16.msra.mxu0 %v2691
        %2999 = vmatpush.bf16.msra.mxu0 %v2690
        %3000 = vmatpush.bf16.msra.mxu0 %v2689
        %3001 = vmatpush.bf16.msra.mxu0 %v2688
        %3002 = vmatpush.bf16.msra.mxu0 %v2687
        %3003 = vmatpush.bf16.msra.mxu0 %v2686
        %3004 = vmatmul.bf16.gmra.mxu0 %v2091
        %v3005 = vpop.f32.mrf.mxu0
        %v3006 = vadd.f32 %v2992, %v3005
        %v3007 = vpop.f32.mrf.mxu0
        %v3008 = vadd.f32 %v2994, %v3007
        %3009 = vdwg.mxu0
        %3010 = vmatpush.bf16.msra.mxu0 %v2701
        %3011 = vmatpush.bf16.msra.mxu0 %v2700
        %3012 = vmatpush.bf16.msra.mxu0 %v2699
        %3013 = vmatpush.bf16.msra.mxu0 %v2698
        %3014 = vmatpush.bf16.msra.mxu0 %v2697
        %3015 = vmatpush.bf16.msra.mxu0 %v2696
        %3016 = vmatpush.bf16.msra.mxu0 %v2695
        %3017 = vmatpush.bf16.msra.mxu0 %v2694
        %3018 = vmatmul.bf16.gmra.mxu0 %v2092
        %v3019 = vpop.f32.mrf.mxu0
        %v3020 = vadd.f32 %v3006, %v3019
        %v3021 = vpop.f32.mrf.mxu0
        %v3022 = vadd.f32 %v3008, %v3021
        %3023 = vdwg.mxu0
        %3024 = vmatpush.bf16.msra.mxu0 %v2709
        %3025 = vmatpush.bf16.msra.mxu0 %v2708
        %3026 = vmatpush.bf16.msra.mxu0 %v2707
        %3027 = vmatpush.bf16.msra.mxu0 %v2706
        %3028 = vmatpush.bf16.msra.mxu0 %v2705
        %3029 = vmatpush.bf16.msra.mxu0 %v2704
        %3030 = vmatpush.bf16.msra.mxu0 %v2703
        %3031 = vmatpush.bf16.msra.mxu0 %v2702
        %3032 = vmatmul.bf16.gmra.mxu0 %v2093
        %v3033 = vpop.f32.mrf.mxu0
        %v3034 = vadd.f32 %v3020, %v3033
        %v3035 = vpop.f32.mrf.mxu0
        %v3036 = vadd.f32 %v3022, %v3035
        %3037 = vdwg.mxu0
        %3038 = vmatpush.bf16.msra.mxu0 %v2717
        %3039 = vmatpush.bf16.msra.mxu0 %v2716
        %3040 = vmatpush.bf16.msra.mxu0 %v2715
        %3041 = vmatpush.bf16.msra.mxu0 %v2714
        %3042 = vmatpush.bf16.msra.mxu0 %v2713
        %3043 = vmatpush.bf16.msra.mxu0 %v2712
        %3044 = vmatpush.bf16.msra.mxu0 %v2711
        %3045 = vmatpush.bf16.msra.mxu0 %v2710
        %3046 = vmatmul.bf16.gmra.mxu0 %v2094
        %v3047 = vpop.f32.mrf.mxu0
        %v3048 = vadd.f32 %v3034, %v3047
        %v3049 = vpop.f32.mrf.mxu0
        %v3050 = vadd.f32 %v3036, %v3049
        %3051 = vdwg.mxu0
        %3052 = vmatpush.bf16.msra.mxu0 %v2725
        %3053 = vmatpush.bf16.msra.mxu0 %v2724
        %3054 = vmatpush.bf16.msra.mxu0 %v2723
        %3055 = vmatpush.bf16.msra.mxu0 %v2722
        %3056 = vmatpush.bf16.msra.mxu0 %v2721
        %3057 = vmatpush.bf16.msra.mxu0 %v2720
        %3058 = vmatpush.bf16.msra.mxu0 %v2719
        %3059 = vmatpush.bf16.msra.mxu0 %v2718
        %3060 = vmatmul.bf16.gmra.mxu0 %v2095
        %v3061 = vpop.f32.mrf.mxu0
        %v3062 = vadd.f32 %v3048, %v3061
        %v3063 = vpop.f32.mrf.mxu0
        %v3064 = vadd.f32 %v3050, %v3063
        %3065 = vdwg.mxu0
        %3066 = vmatpush.bf16.msra.mxu0 %v2733
        %3067 = vmatpush.bf16.msra.mxu0 %v2732
        %3068 = vmatpush.bf16.msra.mxu0 %v2731
        %3069 = vmatpush.bf16.msra.mxu0 %v2730
        %3070 = vmatpush.bf16.msra.mxu0 %v2729
        %3071 = vmatpush.bf16.msra.mxu0 %v2728
        %3072 = vmatpush.bf16.msra.mxu0 %v2727
        %3073 = vmatpush.bf16.msra.mxu0 %v2726
        %3074 = vmatmul.bf16.gmra.mxu0 %v2096
        %v3075 = vpop.f32.mrf.mxu0
        %v3076 = vadd.f32 %v3062, %v3075
        %v3077 = vpop.f32.mrf.mxu0
        %v3078 = vadd.f32 %v3064, %v3077
        %3079 = vdwg.mxu0
        %3080 = vmatpush.bf16.msra.mxu0 %v2741
        %3081 = vmatpush.bf16.msra.mxu0 %v2740
        %3082 = vmatpush.bf16.msra.mxu0 %v2739
        %3083 = vmatpush.bf16.msra.mxu0 %v2738
        %3084 = vmatpush.bf16.msra.mxu0 %v2737
        %3085 = vmatpush.bf16.msra.mxu0 %v2736
        %3086 = vmatpush.bf16.msra.mxu0 %v2735
        %3087 = vmatpush.bf16.msra.mxu0 %v2734
        %3088 = vmatmul.bf16.gmra.mxu0 %v2097
        %v3089 = vpop.f32.mrf.mxu0
        %v3090 = vadd.f32 %v3076, %v3089
        %v3091 = vpop.f32.mrf.mxu0
        %v3092 = vadd.f32 %v3078, %v3091
        %3093 = vdwg.mxu0
        %v3094 = vadd.f32 %v1336, %v3090
        %v3095 = vadd.f32 %v1337, %v3092
        %v3096 = vld [vmem:[%s692] sm:$0x1]
        %v3097 = vld [vmem:[%s695] sm:$0x1]
        %v3098 = vsel %vm723, %v3094, 0.0
        %3099 = vadd.xlane.f32.xlu0 %v3098
        %v3100 = vpop.xlane.xlu0 %3099
        %v3101 = vsel %vm723, %v3095, 0.0
        %3102 = vadd.xlane.f32.xlu0 %v3101
        %v3103 = vpop.xlane.xlu0 %3102
        %v3104 = vmul.f32 %v3100, %v1289
        %v3105 = vmul.f32 %v3103, %v1289
        %v3106 = vsub.f32 %v3094, %v3104
        %v3107 = vsub.f32 %v3095, %v3105
        %v3108 = vmul.f32 %v3106, %v3106
        %v3109 = vmul.f32 %v3107, %v3107
        %v3110 = vsel %vm723, %v3108, 0.0
        %3111 = vadd.xlane.f32.xlu0 %v3110
        %v3112 = vpop.xlane.xlu0 %3111
        %v3113 = vsel %vm723, %v3109, 0.0
        %3114 = vadd.xlane.f32.xlu0 %v3113
        %v3115 = vpop.xlane.xlu0 %3114
        %v3116 = vmul.f32 %v3112, %v1289
        %v3117 = vmul.f32 %v3115, %v1289
        %v3118 = vadd.f32 %v3116, 1e-05
        %v3119 = vadd.f32 %v3117, 1e-05
        %v3120 = vrsqrt.pop %v3118
        %v3121 = vmul.f32 %v3120, %v3118
        %v3122 = vmul.f32 %v3121, %v3120
        %v3123 = vmul.f32 0.5, %v3122
        %v3124 = vsub.f32 1.5, %v3123
        %v3125 = vmul.f32 %v3120, %v3124
        %vm3126 = vweird.f32 %v3118
        %vm3127 = vweird.f32 %v3120
        %vm3128 = vmor %vm3126, %vm3127
        %v3129 = vsel %vm3128, %v3120, %v3125
        %v3130 = vrsqrt.pop %v3119
        %v3131 = vmul.f32 %v3130, %v3119
        %v3132 = vmul.f32 %v3131, %v3130
        %v3133 = vmul.f32 0.5, %v3132
        %v3134 = vsub.f32 1.5, %v3133
        %v3135 = vmul.f32 %v3130, %v3134
        %vm3136 = vweird.f32 %v3119
        %vm3137 = vweird.f32 %v3130
        %vm3138 = vmor %vm3136, %vm3137
        %v3139 = vsel %vm3138, %v3130, %v3135
        %v3140 = vmul.f32 %v3106, %v3129
        %v3141 = vmul.f32 %v3107, %v3139
        %v3143 = vperm.slane %v3096, 0
        %v3145 = vmul.f32 %v3140, %v3143
        %v3146 = vmul.f32 %v3141, %v3143
        %v3148 = vperm.slane %v3097, 0
        %v3150 = vadd.f32 %v3145, %v3148
        %v3151 = vadd.f32 %v3146, %v3148
        %v3152 = vtanh.pop %v3150
        %v3153 = vtanh.pop %v3151
        %3154 = vst.msk [vmem:[%s650] sm:$0xff] %vm723, %v3152
        %3155 = vst.msk [vmem:[%s650 + $0x8] sm:$0xff] %vm723, %v3153
        %s3156 = sand.u32 %s392, 1
        %s3157 = sand.u32 %s392, 1
        %s3158 = smul.addr %s3157, 16
        %s3159 = scalar_lea.vmem [#allocation3], %s3158
        // Predicated region
        $region115: #{hama_block_forward.5} parent=109 // pred_check
          %p3160 = pneg %p402
        $region116: #{hama_block_forward.5} parent=109 // pred_check_branch
          %3162 = sbr.rel (%p3160) target = $region118
        $region117: #{hama_block_forward.5} parent=109 // pred_region
          %s3163 = smul.addr %s25, 8
          %s3164 = scalar_lea.vmem %s14, %s3163
          // Predicated region
          $region119: #{hama_block_forward.5} parent=117 // pred_check
            _
          $region120: #{hama_block_forward.5} parent=117 // pred_check_branch
            %3166 = sbr.rel (0) target = $region122
          $region121: #{hama_block_forward.5} parent=117 // pred_region
            // Predicated region
            $region123: #{hama_block_forward.5} parent=121 // pred_check
              _
            $region124: #{hama_block_forward.5} parent=121 // pred_check_branch
              %3168 = sbr.rel (0) target = $region126
            $region125: #{hama_block_forward.5} parent=121 // pred_region
              // Predicated region
              $region138: #{hama_block_forward.5} parent=125 // pred_check
                _
              $region139: #{hama_block_forward.5} parent=125 // pred_check_branch
                %3186 = sbr.rel (0) target = $region141
              $region140: #{hama_block_forward.5} parent=125 // pred_region
                loop: start=0, step=1, limit=1
                $region142: #{hama_block_forward.5} parent=140 // loop_pre_header
                  _
                $region143: #{hama_block_forward.5} parent=140 // loop_header
                  %s3188 = sphi 0, %s3192
                  %p3189 = scmp.ge.s32.totalorder %s3188, 1
                  %s3193 = sphi %s3159, %s3159
                  %s3194 = sphi %s3164, %s3164
                $region144: #{hama_block_forward.5} parent=140 // loop_header_branch
                  %3191 = sbr.rel (%p3189) target = $region148
                $region145: #{hama_block_forward.5} parent=140 // loop_body
                  %v3195 = vld [vmem:[%s3193] sm:$0xff]
                  %3196 = vst [vmem:[%s3194] sm:$0xff] %v3195
                  %v3197 = vld [vmem:[%s3193 + $0x8] sm:$0xff]
                  %3198 = vst [vmem:[%s3194 + $0x10] sm:$0xff] %v3197
                $region146: #{hama_block_forward.5} parent=140 // loop_footer
                  %s3192 = sadd.s32 1, %s3188
                $region147: #{hama_block_forward.5} parent=140 // loop_footer_branch
                  %3187 = sbr.rel target = $region143
                $region148: #{hama_block_forward.5} parent=140 // loop_exit
                  _
              $region141: #{hama_block_forward.5} parent=125 // pred_fallthru
                _
              // Predicated region
              $region149: #{hama_block_forward.5} parent=125 // pred_check
                _
              $region150: #{hama_block_forward.5} parent=125 // pred_check_branch
                %3200 = sbr.rel target = $region152
              $region151: #{hama_block_forward.5} parent=125 // pred_region
                _
              $region152: #{hama_block_forward.5} parent=125 // pred_fallthru
                _
            $region126: #{hama_block_forward.5} parent=121 // pred_fallthru
              _
            // Predicated region
            $region127: #{hama_block_forward.5} parent=121 // pred_check
              _
            $region128: #{hama_block_forward.5} parent=121 // pred_check_branch
              %3170 = sbr.rel target = $region130
            $region129: #{hama_block_forward.5} parent=121 // pred_region
              %s3172 = ssub.s32 256, 1
              loop: start=0, step=1, limit=1
              $region131: #{hama_block_forward.5} parent=129 // loop_pre_header
                _
              $region132: #{hama_block_forward.5} parent=129 // loop_header
                %s3174 = sphi 0, %s3178
                %p3175 = scmp.ge.s32.totalorder %s3174, 1
                %s3179 = sphi %s3159, %s3159
                %s3180 = sphi %s3164, %s3164
              $region133: #{hama_block_forward.5} parent=129 // loop_header_branch
                %3177 = sbr.rel (%p3175) target = $region137
              $region134: #{hama_block_forward.5} parent=129 // loop_body
                %v3181 = vld [vmem:[%s3179] sm:%s3172]
                %3182 = vst [vmem:[%s3180] sm:%s3172] %v3181
                %v3183 = vld [vmem:[%s3179 + $0x8] sm:%s3172]
                %3184 = vst [vmem:[%s3180 + $0x10] sm:%s3172] %v3183
              $region135: #{hama_block_forward.5} parent=129 // loop_footer
                %s3178 = sadd.s32 1, %s3174
              $region136: #{hama_block_forward.5} parent=129 // loop_footer_branch
                %3173 = sbr.rel target = $region132
              $region137: #{hama_block_forward.5} parent=129 // loop_exit
                _
            $region130: #{hama_block_forward.5} parent=121 // pred_fallthru
              _
          $region122: #{hama_block_forward.5} parent=117 // pred_fallthru
            _
          %3201 = vnop
        $region118: #{hama_block_forward.5} parent=109 // pred_fallthru
          _
      $region110: #{hama_block_forward.5} parent=5 // pred_fallthru
        _
      %p3202 = scmp.le.s32.totalorder 2, %s20
      // Predicated region
      $region153: #{hama_block_forward.5} parent=5 // pred_check
        %p3203 = pneg %p3202
      $region154: #{hama_block_forward.5} parent=5 // pred_check_branch
        %3205 = sbr.rel (%p3203) target = $region156
      $region155: #{hama_block_forward.5} parent=5 // pred_region
        %s3206 = ssub.s32 %s20, 2
        // Predicated region
        $region157: #{hama_block_forward.5} parent=155 // pred_check
          %p3207 = pneg %p408
        $region158: #{hama_block_forward.5} parent=155 // pred_check_branch
          %3209 = sbr.rel (%p3207) target = $region160
        $region159: #{hama_block_forward.5} parent=155 // pred_region
          %s3210 = sand.u32 %s393, 1
          %s3211 = sand.u32 %s393, 1
          %s3212 = smul.addr %s3211, 16
          %s3213 = scalar_lea.vmem [#allocation3], %s3212
        $region160: #{hama_block_forward.5} parent=155 // pred_fallthru
          _
      $region156: #{hama_block_forward.5} parent=5 // pred_fallthru
        _
    $region6: #{hama_block_forward.5} parent=1 // loop_footer
      %s24 = sadd.s32 1, %s20
    $region7: #{hama_block_forward.5} parent=1 // loop_footer_branch
      %19 = sbr.rel target = $region3
    $region8: #{hama_block_forward.5} parent=1 // loop_exit
      _

// kernel: hama_block_forward.7
$region0: #{hama_block_forward.7}
  #allocation0 [shape = 'u32[]', space=smem, size = 0x4, offset = 0x4, fixed_abs, tag = 'smem constant byte address 0x4 - core index']
  #allocation1 [shape = 'u32[72,128]{1,0:T(1,128)}', space=vmem, size = 0x9000, scoped, tag = 'internal scratch']
  %s0 = inlined_call_operand.vmem [shape: f32[2,16,32], index: 0, kind: input, shape index: {}]
  %s1 = inlined_call_operand.vmem [shape: f32[16,32], index: 1, kind: input, shape index: {}]
  %s2 = inlined_call_operand.vmem [shape: f32[1,32], index: 2, kind: input, shape index: {}]
  %s3 = inlined_call_operand.vmem [shape: f32[1,32], index: 3, kind: input, shape index: {}]
  %s4 = inlined_call_operand.vmem [shape: bf16[32,64], index: 4, kind: input, shape index: {}]
  %s5 = inlined_call_operand.vmem [shape: f32[1,64], index: 5, kind: input, shape index: {}]
  %s6 = inlined_call_operand.vmem [shape: bf16[32,32], index: 6, kind: input, shape index: {}]
  %s7 = inlined_call_operand.vmem [shape: f32[1,32], index: 7, kind: input, shape index: {}]
  %s8 = inlined_call_operand.vmem [shape: bf16[32,32], index: 8, kind: input, shape index: {}]
  %s9 = inlined_call_operand.vmem [shape: f32[1,32], index: 9, kind: input, shape index: {}]
  %s10 = inlined_call_operand.vmem [shape: bf16[32,32], index: 10, kind: input, shape index: {}]
  %s11 = inlined_call_operand.vmem [shape: f32[1,32], index: 11, kind: input, shape index: {}]
  %s12 = inlined_call_operand.vmem [shape: bf16[32,32], index: 12, kind: input, shape index: {}]
  %s13 = inlined_call_operand.vmem [shape: f32[1,32], index: 13, kind: input, shape index: {}]
  %s14 = inlined_call_operand.vmem [shape: bf16[32,32], index: 14, kind: input, shape index: {}]
  %s15 = inlined_call_operand.vmem [shape: f32[1,32], index: 15, kind: input, shape index: {}]
  %s16 = inlined_call_operand.vmem [shape: f32[1,32], index: 16, kind: input, shape index: {}]
  %s17 = inlined_call_operand.vmem [shape: f32[1,32], index: 17, kind: input, shape index: {}]
  %s18 = inlined_call_operand.hbm [shape: f32[2,16,32], index: 18, kind: output, shape index: {}]
  %s19 = sld [smem:[#allocation0]]
  $region105: #{hama_block_forward.7} parent=0
    _
  %s21 = ssub.s32 1, %s19
  %s22 = scalar_select 0, %s21, %s19
  $region1: #{hama_block_forward.7} parent=0
    #allocation2 [shape = 'u8[16384]{0}', space=vmem, size = 0x4000, scoped, tag = 'output window, operand 0']
    #allocation3 [shape = 's32[2]{0}', space=sflag, size = 0x8, scoped, tag = 'scoped memory for hama_block_forward.7']
    %23 = vsyncpa [#allocation3], 0
    %s24 = scalar_lea.sflag [#allocation3], 1
    %25 = vsyncpa %s24, 0
    loop: start=0, step=1, limit=4
    $region2: #{hama_block_forward.7} parent=1 // loop_pre_header
      _
    $region3: #{hama_block_forward.7} parent=1 // loop_header
      %s27 = sphi 0, %s31
      %p28 = scmp.ge.s32.totalorder %s27, 4
      %s37 = sphi 0, %s39
      %s40 = sphi 0, %s37
      %s41 = sphi 0, %s40
      %s57 = sphi 0, %s41
      %s61 = sphi 0, %s61
      %s63 = sphi 0, %s61
      %s64 = sphi 0, %s63
      %s78 = sphi 0, %s64
      %s82 = sphi 0, %s82
      %s84 = sphi 0, %s82
      %s85 = sphi 0, %s84
      %s99 = sphi 0, %s85
      %s103 = sphi 0, %s103
      %s105 = sphi 0, %s103
      %s106 = sphi 0, %s105
      %s120 = sphi 0, %s106
      %s124 = sphi 0, %s124
      %s126 = sphi 0, %s124
      %s127 = sphi 0, %s126
      %s141 = sphi 0, %s127
      %s145 = sphi 0, %s145
      %s147 = sphi 0, %s145
      %s148 = sphi 0, %s147
      %s162 = sphi 0, %s148
      %s166 = sphi 0, %s166
      %s168 = sphi 0, %s166
      %s169 = sphi 0, %s168
      %s183 = sphi 0, %s169
      %s187 = sphi 0, %s187
      %s189 = sphi 0, %s187
      %s190 = sphi 0, %s189
      %s204 = sphi 0, %s190
      %s208 = sphi 0, %s208
      %s210 = sphi 0, %s208
      %s211 = sphi 0, %s210
      %s225 = sphi 0, %s211
      %s229 = sphi 0, %s229
      %s231 = sphi 0, %s229
      %s232 = sphi 0, %s231
      %s246 = sphi 0, %s232
      %s250 = sphi 0, %s250
      %s252 = sphi 0, %s250
      %s253 = sphi 0, %s252
      %s267 = sphi 0, %s253
      %s271 = sphi 0, %s271
      %s273 = sphi 0, %s271
      %s274 = sphi 0, %s273
      %s288 = sphi 0, %s274
      %s292 = sphi 0, %s292
      %s294 = sphi 0, %s292
      %s295 = sphi 0, %s294
      %s309 = sphi 0, %s295
      %s313 = sphi 0, %s313
      %s315 = sphi 0, %s313
      %s316 = sphi 0, %s315
      %s330 = sphi 0, %s316
      %s334 = sphi 0, %s334
      %s336 = sphi 0, %s334
      %s337 = sphi 0, %s336
      %s351 = sphi 0, %s337
      %s355 = sphi 0, %s355
      %s357 = sphi 0, %s355
      %s358 = sphi 0, %s357
      %s372 = sphi 0, %s358
      %s376 = sphi 0, %s376
      %s378 = sphi 0, %s376
      %s379 = sphi 0, %s378
      %s393 = sphi 0, %s379
      %s397 = sphi 0, %s397
      %s399 = sphi 0, %s397
      %s400 = sphi 0, %s399
      %s414 = sphi 0, %s400
      %s420 = sphi 0, %s422
      %s423 = sphi 0, %s420
      %s424 = sphi 0, %s423
      %s440 = sphi 0, %s424
    $region4: #{hama_block_forward.7} parent=1 // loop_header_branch
      %30 = sbr.rel (%p28) target = $region8
    $region5: #{hama_block_forward.7} parent=1 // loop_body
      %s32 = ssub.s32 %s27, 1
      %s33 = ssub.s32 %s27, 2
      %s34 = sadd.s32 %s27, 1
      %s35 = ssub.s32 %s27, %s34
      %p36 = scmp.eq.s32.totalorder %s35, 0
      %s38 = sadd.s32 %s37, 1
      %s39 = scalar_select %p36, %s37, %s38
      %p42 = pneg %p36
      %p43 = scmp.eq.s32.totalorder %s27, 1
      %p44 = por %p42, %p43
      %p45 = scmp.ne.s32.totalorder %s37, %s40
      %p46 = scmp.eq.s32.totalorder %s27, 0
      %p47 = por %p45, %p46
      %p48 = scmp.ne.s32.totalorder %s37, %s40
      %p49 = scmp.eq.s32.totalorder %s32, 1
      %p50 = por %p48, %p49
      %p51 = scmp.ne.s32.totalorder %s40, %s41
      %p52 = scmp.eq.s32.totalorder %s32, 0
      %p53 = por %p51, %p52
      %p54 = scmp.ne.s32.totalorder %s40, %s41
      %p55 = scmp.eq.s32.totalorder %s33, 1
      %p56 = por %p54, %p55
      %p58 = scmp.ne.s32.totalorder %s41, %s57
      %p59 = scmp.eq.s32.totalorder %s33, 0
      %p60 = por %p58, %p59
      %s62 = sadd.s32 %s61, 1
      %p65 = scmp.eq.s32.totalorder %s27, 1
      %p66 = scmp.ne.s32.totalorder %s61, %s63
      %p67 = scmp.eq.s32.totalorder %s27, 0
      %p68 = por %p66, %p67
      %p69 = scmp.ne.s32.totalorder %s61, %s63
      %p70 = scmp.eq.s32.totalorder %s32, 1
      %p71 = por %p69, %p70
      %p72 = scmp.ne.s32.totalorder %s63, %s64
      %p73 = scmp.eq.s32.totalorder %s32, 0
      %p74 = por %p72, %p73
      %p75 = scmp.ne.s32.totalorder %s63, %s64
      %p76 = scmp.eq.s32.totalorder %s33, 1
      %p77 = por %p75, %p76
      %p79 = scmp.ne.s32.totalorder %s64, %s78
      %p80 = scmp.eq.s32.totalorder %s33, 0
      %p81 = por %p79, %p80
      %s83 = sadd.s32 %s82, 1
      %p86 = scmp.eq.s32.totalorder %s27, 1
      %p87 = scmp.ne.s32.totalorder %s82, %s84
      %p88 = scmp.eq.s32.totalorder %s27, 0
      %p89 = por %p87, %p88
      %p90 = scmp.ne.s32.totalorder %s82, %s84
      %p91 = scmp.eq.s32.totalorder %s32, 1
      %p92 = por %p90, %p91
      %p93 = scmp.ne.s32.totalorder %s84, %s85
      %p94 = scmp.eq.s32.totalorder %s32, 0
      %p95 = por %p93, %p94
      %p96 = scmp.ne.s32.totalorder %s84, %s85
      %p97 = scmp.eq.s32.totalorder %s33, 1
      %p98 = por %p96, %p97
      %p100 = scmp.ne.s32.totalorder %s85, %s99
      %p101 = scmp.eq.s32.totalorder %s33, 0
      %p102 = por %p100, %p101
      %s104 = sadd.s32 %s103, 1
      %p107 = scmp.eq.s32.totalorder %s27, 1
      %p108 = scmp.ne.s32.totalorder %s103, %s105
      %p109 = scmp.eq.s32.totalorder %s27, 0
      %p110 = por %p108, %p109
      %p111 = scmp.ne.s32.totalorder %s103, %s105
      %p112 = scmp.eq.s32.totalorder %s32, 1
      %p113 = por %p111, %p112
      %p114 = scmp.ne.s32.totalorder %s105, %s106
      %p115 = scmp.eq.s32.totalorder %s32, 0
      %p116 = por %p114, %p115
      %p117 = scmp.ne.s32.totalorder %s105, %s106
      %p118 = scmp.eq.s32.totalorder %s33, 1
      %p119 = por %p117, %p118
      %p121 = scmp.ne.s32.totalorder %s106, %s120
      %p122 = scmp.eq.s32.totalorder %s33, 0
      %p123 = por %p121, %p122
      %s125 = sadd.s32 %s124, 1
      %p128 = scmp.eq.s32.totalorder %s27, 1
      %p129 = scmp.ne.s32.totalorder %s124, %s126
      %p130 = scmp.eq.s32.totalorder %s27, 0
      %p131 = por %p129, %p130
      %p132 = scmp.ne.s32.totalorder %s124, %s126
      %p133 = scmp.eq.s32.totalorder %s32, 1
      %p134 = por %p132, %p133
      %p135 = scmp.ne.s32.totalorder %s126, %s127
      %p136 = scmp.eq.s32.totalorder %s32, 0
      %p137 = por %p135, %p136
      %p138 = scmp.ne.s32.totalorder %s126, %s127
      %p139 = scmp.eq.s32.totalorder %s33, 1
      %p140 = por %p138, %p139
      %p142 = scmp.ne.s32.totalorder %s127, %s141
      %p143 = scmp.eq.s32.totalorder %s33, 0
      %p144 = por %p142, %p143
      %s146 = sadd.s32 %s145, 1
      %p149 = scmp.eq.s32.totalorder %s27, 1
      %p150 = scmp.ne.s32.totalorder %s145, %s147
      %p151 = scmp.eq.s32.totalorder %s27, 0
      %p152 = por %p150, %p151
      %p153 = scmp.ne.s32.totalorder %s145, %s147
      %p154 = scmp.eq.s32.totalorder %s32, 1
      %p155 = por %p153, %p154
      %p156 = scmp.ne.s32.totalorder %s147, %s148
      %p157 = scmp.eq.s32.totalorder %s32, 0
      %p158 = por %p156, %p157
      %p159 = scmp.ne.s32.totalorder %s147, %s148
      %p160 = scmp.eq.s32.totalorder %s33, 1
      %p161 = por %p159, %p160
      %p163 = scmp.ne.s32.totalorder %s148, %s162
      %p164 = scmp.eq.s32.totalorder %s33, 0
      %p165 = por %p163, %p164
      %s167 = sadd.s32 %s166, 1
      %p170 = scmp.eq.s32.totalorder %s27, 1
      %p171 = scmp.ne.s32.totalorder %s166, %s168
      %p172 = scmp.eq.s32.totalorder %s27, 0
      %p173 = por %p171, %p172
      %p174 = scmp.ne.s32.totalorder %s166, %s168
      %p175 = scmp.eq.s32.totalorder %s32, 1
      %p176 = por %p174, %p175
      %p177 = scmp.ne.s32.totalorder %s168, %s169
      %p178 = scmp.eq.s32.totalorder %s32, 0
      %p179 = por %p177, %p178
      %p180 = scmp.ne.s32.totalorder %s168, %s169
      %p181 = scmp.eq.s32.totalorder %s33, 1
      %p182 = por %p180, %p181
      %p184 = scmp.ne.s32.totalorder %s169, %s183
      %p185 = scmp.eq.s32.totalorder %s33, 0
      %p186 = por %p184, %p185
      %s188 = sadd.s32 %s187, 1
      %p191 = scmp.eq.s32.totalorder %s27, 1
      %p192 = scmp.ne.s32.totalorder %s187, %s189
      %p193 = scmp.eq.s32.totalorder %s27, 0
      %p194 = por %p192, %p193
      %p195 = scmp.ne.s32.totalorder %s187, %s189
      %p196 = scmp.eq.s32.totalorder %s32, 1
      %p197 = por %p195, %p196
      %p198 = scmp.ne.s32.totalorder %s189, %s190
      %p199 = scmp.eq.s32.totalorder %s32, 0
      %p200 = por %p198, %p199
      %p201 = scmp.ne.s32.totalorder %s189, %s190
      %p202 = scmp.eq.s32.totalorder %s33, 1
      %p203 = por %p201, %p202
      %p205 = scmp.ne.s32.totalorder %s190, %s204
      %p206 = scmp.eq.s32.totalorder %s33, 0
      %p207 = por %p205, %p206
      %s209 = sadd.s32 %s208, 1
      %p212 = scmp.eq.s32.totalorder %s27, 1
      %p213 = scmp.ne.s32.totalorder %s208, %s210
      %p214 = scmp.eq.s32.totalorder %s27, 0
      %p215 = por %p213, %p214
      %p216 = scmp.ne.s32.totalorder %s208, %s210
      %p217 = scmp.eq.s32.totalorder %s32, 1
      %p218 = por %p216, %p217
      %p219 = scmp.ne.s32.totalorder %s210, %s211
      %p220 = scmp.eq.s32.totalorder %s32, 0
      %p221 = por %p219, %p220
      %p222 = scmp.ne.s32.totalorder %s210, %s211
      %p223 = scmp.eq.s32.totalorder %s33, 1
      %p224 = por %p222, %p223
      %p226 = scmp.ne.s32.totalorder %s211, %s225
      %p227 = scmp.eq.s32.totalorder %s33, 0
      %p228 = por %p226, %p227
      %s230 = sadd.s32 %s229, 1
      %p233 = scmp.eq.s32.totalorder %s27, 1
      %p234 = scmp.ne.s32.totalorder %s229, %s231
      %p235 = scmp.eq.s32.totalorder %s27, 0
      %p236 = por %p234, %p235
      %p237 = scmp.ne.s32.totalorder %s229, %s231
      %p238 = scmp.eq.s32.totalorder %s32, 1
      %p239 = por %p237, %p238
      %p240 = scmp.ne.s32.totalorder %s231, %s232
      %p241 = scmp.eq.s32.totalorder %s32, 0
      %p242 = por %p240, %p241
      %p243 = scmp.ne.s32.totalorder %s231, %s232
      %p244 = scmp.eq.s32.totalorder %s33, 1
      %p245 = por %p243, %p244
      %p247 = scmp.ne.s32.totalorder %s232, %s246
      %p248 = scmp.eq.s32.totalorder %s33, 0
      %p249 = por %p247, %p248
      %s251 = sadd.s32 %s250, 1
      %p254 = scmp.eq.s32.totalorder %s27, 1
      %p255 = scmp.ne.s32.totalorder %s250, %s252
      %p256 = scmp.eq.s32.totalorder %s27, 0
      %p257 = por %p255, %p256
      %p258 = scmp.ne.s32.totalorder %s250, %s252
      %p259 = scmp.eq.s32.totalorder %s32, 1
      %p260 = por %p258, %p259
      %p261 = scmp.ne.s32.totalorder %s252, %s253
      %p262 = scmp.eq.s32.totalorder %s32, 0
      %p263 = por %p261, %p262
      %p264 = scmp.ne.s32.totalorder %s252, %s253
      %p265 = scmp.eq.s32.totalorder %s33, 1
      %p266 = por %p264, %p265
      %p268 = scmp.ne.s32.totalorder %s253, %s267
      %p269 = scmp.eq.s32.totalorder %s33, 0
      %p270 = por %p268, %p269
      %s272 = sadd.s32 %s271, 1
      %p275 = scmp.eq.s32.totalorder %s27, 1
      %p276 = scmp.ne.s32.totalorder %s271, %s273
      %p277 = scmp.eq.s32.totalorder %s27, 0
      %p278 = por %p276, %p277
      %p279 = scmp.ne.s32.totalorder %s271, %s273
      %p280 = scmp.eq.s32.totalorder %s32, 1
      %p281 = por %p279, %p280
      %p282 = scmp.ne.s32.totalorder %s273, %s274
      %p283 = scmp.eq.s32.totalorder %s32, 0
      %p284 = por %p282, %p283
      %p285 = scmp.ne.s32.totalorder %s273, %s274
      %p286 = scmp.eq.s32.totalorder %s33, 1
      %p287 = por %p285, %p286
      %p289 = scmp.ne.s32.totalorder %s274, %s288
      %p290 = scmp.eq.s32.totalorder %s33, 0
      %p291 = por %p289, %p290
      %s293 = sadd.s32 %s292, 1
      %p296 = scmp.eq.s32.totalorder %s27, 1
      %p297 = scmp.ne.s32.totalorder %s292, %s294
      %p298 = scmp.eq.s32.totalorder %s27, 0
      %p299 = por %p297, %p298
      %p300 = scmp.ne.s32.totalorder %s292, %s294
      %p301 = scmp.eq.s32.totalorder %s32, 1
      %p302 = por %p300, %p301
      %p303 = scmp.ne.s32.totalorder %s294, %s295
      %p304 = scmp.eq.s32.totalorder %s32, 0
      %p305 = por %p303, %p304
      %p306 = scmp.ne.s32.totalorder %s294, %s295
      %p307 = scmp.eq.s32.totalorder %s33, 1
      %p308 = por %p306, %p307
      %p310 = scmp.ne.s32.totalorder %s295, %s309
      %p311 = scmp.eq.s32.totalorder %s33, 0
      %p312 = por %p310, %p311
      %s314 = sadd.s32 %s313, 1
      %p317 = scmp.eq.s32.totalorder %s27, 1
      %p318 = scmp.ne.s32.totalorder %s313, %s315
      %p319 = scmp.eq.s32.totalorder %s27, 0
      %p320 = por %p318, %p319
      %p321 = scmp.ne.s32.totalorder %s313, %s315
      %p322 = scmp.eq.s32.totalorder %s32, 1
      %p323 = por %p321, %p322
      %p324 = scmp.ne.s32.totalorder %s315, %s316
      %p325 = scmp.eq.s32.totalorder %s32, 0
      %p326 = por %p324, %p325
      %p327 = scmp.ne.s32.totalorder %s315, %s316
      %p328 = scmp.eq.s32.totalorder %s33, 1
      %p329 = por %p327, %p328
      %p331 = scmp.ne.s32.totalorder %s316, %s330
      %p332 = scmp.eq.s32.totalorder %s33, 0
      %p333 = por %p331, %p332
      %s335 = sadd.s32 %s334, 1
      %p338 = scmp.eq.s32.totalorder %s27, 1
      %p339 = scmp.ne.s32.totalorder %s334, %s336
      %p340 = scmp.eq.s32.totalorder %s27, 0
      %p341 = por %p339, %p340
      %p342 = scmp.ne.s32.totalorder %s334, %s336
      %p343 = scmp.eq.s32.totalorder %s32, 1
      %p344 = por %p342, %p343
      %p345 = scmp.ne.s32.totalorder %s336, %s337
      %p346 = scmp.eq.s32.totalorder %s32, 0
      %p347 = por %p345, %p346
      %p348 = scmp.ne.s32.totalorder %s336, %s337
      %p349 = scmp.eq.s32.totalorder %s33, 1
      %p350 = por %p348, %p349
      %p352 = scmp.ne.s32.totalorder %s337, %s351
      %p353 = scmp.eq.s32.totalorder %s33, 0
      %p354 = por %p352, %p353
      %s356 = sadd.s32 %s355, 1
      %p359 = scmp.eq.s32.totalorder %s27, 1
      %p360 = scmp.ne.s32.totalorder %s355, %s357
      %p361 = scmp.eq.s32.totalorder %s27, 0
      %p362 = por %p360, %p361
      %p363 = scmp.ne.s32.totalorder %s355, %s357
      %p364 = scmp.eq.s32.totalorder %s32, 1
      %p365 = por %p363, %p364
      %p366 = scmp.ne.s32.totalorder %s357, %s358
      %p367 = scmp.eq.s32.totalorder %s32, 0
      %p368 = por %p366, %p367
      %p369 = scmp.ne.s32.totalorder %s357, %s358
      %p370 = scmp.eq.s32.totalorder %s33, 1
      %p371 = por %p369, %p370
      %p373 = scmp.ne.s32.totalorder %s358, %s372
      %p374 = scmp.eq.s32.totalorder %s33, 0
      %p375 = por %p373, %p374
      %s377 = sadd.s32 %s376, 1
      %p380 = scmp.eq.s32.totalorder %s27, 1
      %p381 = scmp.ne.s32.totalorder %s376, %s378
      %p382 = scmp.eq.s32.totalorder %s27, 0
      %p383 = por %p381, %p382
      %p384 = scmp.ne.s32.totalorder %s376, %s378
      %p385 = scmp.eq.s32.totalorder %s32, 1
      %p386 = por %p384, %p385
      %p387 = scmp.ne.s32.totalorder %s378, %s379
      %p388 = scmp.eq.s32.totalorder %s32, 0
      %p389 = por %p387, %p388
      %p390 = scmp.ne.s32.totalorder %s378, %s379
      %p391 = scmp.eq.s32.totalorder %s33, 1
      %p392 = por %p390, %p391
      %p394 = scmp.ne.s32.totalorder %s379, %s393
      %p395 = scmp.eq.s32.totalorder %s33, 0
      %p396 = por %p394, %p395
      %s398 = sadd.s32 %s397, 1
      %p401 = scmp.eq.s32.totalorder %s27, 1
      %p402 = scmp.ne.s32.totalorder %s397, %s399
      %p403 = scmp.eq.s32.totalorder %s27, 0
      %p404 = por %p402, %p403
      %p405 = scmp.ne.s32.totalorder %s397, %s399
      %p406 = scmp.eq.s32.totalorder %s32, 1
      %p407 = por %p405, %p406
      %p408 = scmp.ne.s32.totalorder %s399, %s400
      %p409 = scmp.eq.s32.totalorder %s32, 0
      %p410 = por %p408, %p409
      %p411 = scmp.ne.s32.totalorder %s399, %s400
      %p412 = scmp.eq.s32.totalorder %s33, 1
      %p413 = por %p411, %p412
      %p415 = scmp.ne.s32.totalorder %s400, %s414
      %p416 = scmp.eq.s32.totalorder %s33, 0
      %p417 = por %p415, %p416
      %s418 = ssub.s32 %s27, %s34
      %p419 = scmp.eq.s32.totalorder %s418, 0
      %s421 = sadd.s32 %s420, 1
      %s422 = scalar_select %p419, %s420, %s421
      %p425 = pneg %p419
      %p426 = scmp.eq.s32.totalorder %s27, 1
      %p427 = por %p425, %p426
      %p428 = scmp.ne.s32.totalorder %s420, %s423
      %p429 = scmp.eq.s32.totalorder %s27, 0
      %p430 = por %p428, %p429
      %p431 = scmp.ne.s32.totalorder %s420, %s423
      %p432 = scmp.eq.s32.totalorder %s32, 1
      %p433 = por %p431, %p432
      %p434 = scmp.ne.s32.totalorder %s423, %s424
      %p435 = scmp.eq.s32.totalorder %s32, 0
      %p436 = por %p434, %p435
      %p437 = scmp.ne.s32.totalorder %s423, %s424
      %p438 = scmp.eq.s32.totalorder %s33, 1
      %p439 = por %p437, %p438
      %p441 = scmp.ne.s32.totalorder %s424, %s440
      %p442 = scmp.eq.s32.totalorder %s33, 0
      %p443 = por %p441, %p442
      %p444 = scmp.le.s32.totalorder 1, %s27
      %p445 = scmp.lt.s32.totalorder %s27, 3
      %p446 = pnand %p444, %p445
      %p447 = pneg %p446
      // Predicated region
      $region9: #{hama_block_forward.7} parent=5 // pred_check
        _
      $region10: #{hama_block_forward.7} parent=5 // pred_check_branch
        %449 = sbr.rel (%p446) target = $region12
      $region11: #{hama_block_forward.7} parent=5 // pred_region
        %s450 = ssub.s32 %s27, 1
        // Predicated region
        $region13: #{hama_block_forward.7} parent=11 // pred_check
          %p451 = pneg %p74
        $region14: #{hama_block_forward.7} parent=11 // pred_check_branch
          %453 = sbr.rel (%p451) target = $region16
        $region15: #{hama_block_forward.7} parent=11 // pred_region
          _
        $region16: #{hama_block_forward.7} parent=11 // pred_fallthru
          _
        // Predicated region
        $region17: #{hama_block_forward.7} parent=11 // pred_check
          %p454 = pneg %p95
        $region18: #{hama_block_forward.7} parent=11 // pred_check_branch
          %456 = sbr.rel (%p454) target = $region20
        $region19: #{hama_block_forward.7} parent=11 // pred_region
          _
        $region20: #{hama_block_forward.7} parent=11 // pred_fallthru
          _
        // Predicated region
        $region21: #{hama_block_forward.7} parent=11 // pred_check
          %p457 = pneg %p116
        $region22: #{hama_block_forward.7} parent=11 // pred_check_branch
          %459 = sbr.rel (%p457) target = $region24
        $region23: #{hama_block_forward.7} parent=11 // pred_region
          _
        $region24: #{hama_block_forward.7} parent=11 // pred_fallthru
          _
        // Predicated region
        $region25: #{hama_block_forward.7} parent=11 // pred_check
          %p460 = pneg %p137
        $region26: #{hama_block_forward.7} parent=11 // pred_check_branch
          %462 = sbr.rel (%p460) target = $region28
        $region27: #{hama_block_forward.7} parent=11 // pred_region
          _
        $region28: #{hama_block_forward.7} parent=11 // pred_fallthru
          _
        // Predicated region
        $region29: #{hama_block_forward.7} parent=11 // pred_check
          %p463 = pneg %p158
        $region30: #{hama_block_forward.7} parent=11 // pred_check_branch
          %465 = sbr.rel (%p463) target = $region32
        $region31: #{hama_block_forward.7} parent=11 // pred_region
          _
        $region32: #{hama_block_forward.7} parent=11 // pred_fallthru
          _
        // Predicated region
        $region33: #{hama_block_forward.7} parent=11 // pred_check
          %p466 = pneg %p179
        $region34: #{hama_block_forward.7} parent=11 // pred_check_branch
          %468 = sbr.rel (%p466) target = $region36
        $region35: #{hama_block_forward.7} parent=11 // pred_region
          _
        $region36: #{hama_block_forward.7} parent=11 // pred_fallthru
          _
        // Predicated region
        $region37: #{hama_block_forward.7} parent=11 // pred_check
          %p469 = pneg %p200
        $region38: #{hama_block_forward.7} parent=11 // pred_check_branch
          %471 = sbr.rel (%p469) target = $region40
        $region39: #{hama_block_forward.7} parent=11 // pred_region
          _
        $region40: #{hama_block_forward.7} parent=11 // pred_fallthru
          _
        // Predicated region
        $region41: #{hama_block_forward.7} parent=11 // pred_check
          %p472 = pneg %p221
        $region42: #{hama_block_forward.7} parent=11 // pred_check_branch
          %474 = sbr.rel (%p472) target = $region44
        $region43: #{hama_block_forward.7} parent=11 // pred_region
          _
        $region44: #{hama_block_forward.7} parent=11 // pred_fallthru
          _
        // Predicated region
        $region45: #{hama_block_forward.7} parent=11 // pred_check
          %p475 = pneg %p242
        $region46: #{hama_block_forward.7} parent=11 // pred_check_branch
          %477 = sbr.rel (%p475) target = $region48
        $region47: #{hama_block_forward.7} parent=11 // pred_region
          _
        $region48: #{hama_block_forward.7} parent=11 // pred_fallthru
          _
        // Predicated region
        $region49: #{hama_block_forward.7} parent=11 // pred_check
          %p478 = pneg %p263
        $region50: #{hama_block_forward.7} parent=11 // pred_check_branch
          %480 = sbr.rel (%p478) target = $region52
        $region51: #{hama_block_forward.7} parent=11 // pred_region
          _
        $region52: #{hama_block_forward.7} parent=11 // pred_fallthru
          _
        // Predicated region
        $region53: #{hama_block_forward.7} parent=11 // pred_check
          %p481 = pneg %p284
        $region54: #{hama_block_forward.7} parent=11 // pred_check_branch
          %483 = sbr.rel (%p481) target = $region56
        $region55: #{hama_block_forward.7} parent=11 // pred_region
          _
        $region56: #{hama_block_forward.7} parent=11 // pred_fallthru
          _
        // Predicated region
        $region57: #{hama_block_forward.7} parent=11 // pred_check
          %p484 = pneg %p305
        $region58: #{hama_block_forward.7} parent=11 // pred_check_branch
          %486 = sbr.rel (%p484) target = $region60
        $region59: #{hama_block_forward.7} parent=11 // pred_region
          _
        $region60: #{hama_block_forward.7} parent=11 // pred_fallthru
          _
        // Predicated region
        $region61: #{hama_block_forward.7} parent=11 // pred_check
          %p487 = pneg %p326
        $region62: #{hama_block_forward.7} parent=11 // pred_check_branch
          %489 = sbr.rel (%p487) target = $region64
        $region63: #{hama_block_forward.7} parent=11 // pred_region
          _
        $region64: #{hama_block_forward.7} parent=11 // pred_fallthru
          _
        // Predicated region
        $region65: #{hama_block_forward.7} parent=11 // pred_check
          %p490 = pneg %p347
        $region66: #{hama_block_forward.7} parent=11 // pred_check_branch
          %492 = sbr.rel (%p490) target = $region68
        $region67: #{hama_block_forward.7} parent=11 // pred_region
          _
        $region68: #{hama_block_forward.7} parent=11 // pred_fallthru
          _
        // Predicated region
        $region69: #{hama_block_forward.7} parent=11 // pred_check
          %p493 = pneg %p368
        $region70: #{hama_block_forward.7} parent=11 // pred_check_branch
          %495 = sbr.rel (%p493) target = $region72
        $region71: #{hama_block_forward.7} parent=11 // pred_region
          _
        $region72: #{hama_block_forward.7} parent=11 // pred_fallthru
          _
        // Predicated region
        $region73: #{hama_block_forward.7} parent=11 // pred_check
          %p496 = pneg %p389
        $region74: #{hama_block_forward.7} parent=11 // pred_check_branch
          %498 = sbr.rel (%p496) target = $region76
        $region75: #{hama_block_forward.7} parent=11 // pred_region
          _
        $region76: #{hama_block_forward.7} parent=11 // pred_fallthru
          _
        // Predicated region
        $region77: #{hama_block_forward.7} parent=11 // pred_check
          %p499 = pneg %p410
        $region78: #{hama_block_forward.7} parent=11 // pred_check_branch
          %501 = sbr.rel (%p499) target = $region80
        $region79: #{hama_block_forward.7} parent=11 // pred_region
          _
        $region80: #{hama_block_forward.7} parent=11 // pred_fallthru
          _
      $region12: #{hama_block_forward.7} parent=5 // pred_fallthru
        _
      %p502 = scmp.lt.s32.totalorder %s27, 2
      // Predicated region
      $region81: #{hama_block_forward.7} parent=5 // pred_check
        %p503 = pneg %p502
      $region82: #{hama_block_forward.7} parent=5 // pred_check_branch
        %505 = sbr.rel (%p503) target = $region84
      $region83: #{hama_block_forward.7} parent=5 // pred_region
        // Predicated region
        $region85: #{hama_block_forward.7} parent=83 // pred_check
          %p506 = pneg %p47
        $region86: #{hama_block_forward.7} parent=83 // pred_check_branch
          %508 = sbr.rel (%p506) target = $region88
        $region87: #{hama_block_forward.7} parent=83 // pred_region
          %p509 = scmp.lt.s32.totalorder %s27, 1
          %s510 = scalar_select %p509, %s27, 1
          %s511 = smul.addr %s510, 2
          %s512 = smul.addr %s511, 8
          %s513 = scalar_lea.vmem %s0, %s512
        $region88: #{hama_block_forward.7} parent=83 // pred_fallthru
          _
      $region84: #{hama_block_forward.7} parent=5 // pred_fallthru
        _
      %p514 = scmp.le.s32.totalorder 1, %s27
      %p515 = scmp.lt.s32.totalorder %s27, 3
      %p516 = pnand %p514, %p515
      %p517 = pneg %p516
      // Predicated region
      $region89: #{hama_block_forward.7} parent=5 // pred_check
        _
      $region90: #{hama_block_forward.7} parent=5 // pred_check_branch
        %519 = sbr.rel (%p516) target = $region92
      $region91: #{hama_block_forward.7} parent=5 // pred_region
        %s520 = ssub.s32 %s27, 1
        %p521 = scmp.lt.s32.totalorder %s32, 1
        %s522 = scalar_select %p521, %s32, 1
        %s523 = smul.addr %s522, 2
        %s524 = smul.addr %s523, 8
        %s525 = scalar_lea.vmem %s0, %s524
        %p526 = pneg %p53
        %p527 = pneg %p50
        %p528 = pneg %p74
        %p529 = pneg %p71
        %p530 = pneg %p95
        %p531 = pneg %p92
        %p532 = pneg %p116
        %p533 = pneg %p113
        %p534 = pneg %p137
        %p535 = pneg %p134
        %p536 = pneg %p158
        %p537 = pneg %p155
        %p538 = pneg %p179
        %p539 = pneg %p176
        %p540 = pneg %p200
        %p541 = pneg %p197
        %p542 = pneg %p221
        %p543 = pneg %p218
        %p544 = pneg %p242
        %p545 = pneg %p239
        %p546 = pneg %p263
        %p547 = pneg %p260
        %p548 = pneg %p284
        %p549 = pneg %p281
        %p550 = pneg %p305
        %p551 = pneg %p302
        %p552 = pneg %p326
        %p553 = pneg %p323
        %p554 = pneg %p347
        %p555 = pneg %p344
        %p556 = pneg %p368
        %p557 = pneg %p365
        %p558 = pneg %p389
        %p559 = pneg %p386
        %p560 = pneg %p410
        %p561 = pneg %p407
        %p562 = pneg %p436
        %p563 = pneg %p433
        %s564 = sand.u32 %s423, 1
        %s565 = scalar_lea.sflag [#allocation3], %s564
        %s566 = sand.u32 %s423, 1
        %s567 = smul.addr %s566, 16
        %s568 = scalar_lea.vmem [#allocation2], %s567
        %p569 = scmp.lt.s32.totalorder %s32, 1
        %s570 = scalar_select %p569, %s32, 1
        %s571 = smul.addr %s570, 2
        %s572 = smul.addr %s571, 8
        %s573 = scalar_lea.vmem %s0, %s572
        %v575 = vld [vmem:[%s573] sm:$0xff]
        %v576 = vld [vmem:[%s573 + $0x8] sm:$0xff]
        %v577 = vld [vmem:[%s1] sm:$0xff]
        %v578 = vld [vmem:[%s1 + $0x8] sm:$0xff]
        %v579 = vld [vmem:[%s2] sm:$0x1]
        %v580 = vld [vmem:[%s3] sm:$0x1]
        %vm581 = vcmask 261120
        %v582 = vsel %vm581, %v575, 0.0
        %583 = vadd.xlane.f32.xlu0 %v582
        %v584 = vpop.xlane.xlu0 %583
        %v585 = vsel %vm581, %v576, 0.0
        %586 = vadd.xlane.f32.xlu0 %v585
        %v587 = vpop.xlane.xlu0 %586
        %v588 = vrcp.pop 32.0
        %v589 = vmul.f32 32.0, %v588
        %v590 = vsub.f32 1.0, %v589
        %v591 = vmul.f32 %v588, %v590
        %v592 = vadd.f32 %v588, %v591
        %vm593 = vweird.f32 %v588
        %v594 = vsel %vm593, %v588, %v592
        %v595 = vmul.f32 %v584, %v594
        %v596 = vmul.f32 %v587, %v594
        %v597 = vsub.f32 %v575, %v595
        %v598 = vsub.f32 %v576, %v596
        %v599 = vmul.f32 %v597, %v597
        %v600 = vmul.f32 %v598, %v598
        %v601 = vsel %vm581, %v599, 0.0
        %602 = vadd.xlane.f32.xlu0 %v601
        %v603 = vpop.xlane.xlu0 %602
        %v604 = vsel %vm581, %v600, 0.0
        %605 = vadd.xlane.f32.xlu0 %v604
        %v606 = vpop.xlane.xlu0 %605
        %v607 = vmul.f32 %v603, %v594
        %v608 = vmul.f32 %v606, %v594
        %v609 = vadd.f32 %v607, 1e-05
        %v610 = vadd.f32 %v608, 1e-05
        %v611 = vrsqrt.pop %v609
        %v612 = vmul.f32 %v611, %v609
        %v613 = vmul.f32 %v612, %v611
        %v614 = vmul.f32 0.5, %v613
        %v615 = vsub.f32 1.5, %v614
        %v616 = vmul.f32 %v611, %v615
        %vm617 = vweird.f32 %v609
        %vm618 = vweird.f32 %v611
        %vm619 = vmor %vm617, %vm618
        %v620 = vsel %vm619, %v611, %v616
        %v621 = vrsqrt.pop %v610
        %v622 = vmul.f32 %v621, %v610
        %v623 = vmul.f32 %v622, %v621
        %v624 = vmul.f32 0.5, %v623
        %v625 = vsub.f32 1.5, %v624
        %v626 = vmul.f32 %v621, %v625
        %vm627 = vweird.f32 %v610
        %vm628 = vweird.f32 %v621
        %vm629 = vmor %vm627, %vm628
        %v630 = vsel %vm629, %v621, %v626
        %v631 = vmul.f32 %v597, %v620
        %v632 = vmul.f32 %v598, %v630
        %v634 = vperm.slane %v579, 0
        %v636 = vmul.f32 %v631, %v634
        %v637 = vmul.f32 %v632, %v634
        %v639 = vperm.slane %v580, 0
        %v641 = vadd.f32 %v636, %v639
        %v642 = vadd.f32 %v637, %v639
        %v643 = vld [vmem:[%s4] sm:$0xf]
        %v644 = vld [vmem:[%s4 + $0x4] sm:$0xf]
        %v645 = vld [vmem:[%s4 + $0x8] sm:$0xf]
        %v646 = vld [vmem:[%s4 + $0xc] sm:$0xf]
        %v647 = vpack.c.bf16 %v642, %v641
        %v648 = vld [vmem:[%s5] sm:$0x1]
        %v650 = vperm.slane %v648, 0
        %v656 = vunpack.c.l.b16 %v643
        %v657 = vunpack.c.l.b16 %v644
        %v658 = vunpack.c.l.b16 %v645
        %v659 = vunpack.c.l.b16 %v646
        %v660 = vpack.c.b16 %v657, %v656
        %v661 = vpack.c.b16 %v659, %v658
        %v665 = vsel %vm581, %v647, 0
        %667 = vmatpush.bf16.msra.mxu0 0
        %668 = vmatpush.bf16.msra.mxu0 0
        %669 = vmatpush.bf16.msra.mxu0 0
        %670 = vmatpush.bf16.msra.mxu0 0
        %671 = vmatpush.bf16.msra.mxu0 0
        %672 = vmatpush.bf16.msra.mxu0 0
        %673 = vmatpush.bf16.msra.mxu0 %v661
        %674 = vmatpush.bf16.msra.mxu0 %v660
        %675 = vmatmul.bf16.gmra.mxu0 %v665
        %v676 = vpop.f32.mrf.mxu0
        %v677 = vadd.f32 %v650, %v676
        %v678 = vpop.f32.mrf.mxu0
        %v679 = vadd.f32 %v650, %v678
        %680 = vdwg.mxu0
        %v681 = vld [vmem:[%s6] sm:$0xf]
        %v682 = vld [vmem:[%s6 + $0x4] sm:$0xf]
        %v683 = vld [vmem:[%s6 + $0x8] sm:$0xf]
        %v684 = vld [vmem:[%s6 + $0xc] sm:$0xf]
        %v685 = vpack.c.bf16 %v679, %v677
        %v686 = vld [vmem:[%s7] sm:$0x1]
        %v688 = vperm.slane %v686, 0
        %v694 = vunpack.c.l.b16 %v681
        %v695 = vunpack.c.l.b16 %v682
        %v696 = vunpack.c.l.b16 %v683
        %v697 = vunpack.c.l.b16 %v684
        %v698 = vpack.c.b16 %v695, %v694
        %v699 = vpack.c.b16 %v697, %v696
        %v703 = vsel %vm581, %v685, 0
        %705 = vmatpush.bf16.msra.mxu0 0
        %706 = vmatpush.bf16.msra.mxu0 0
        %707 = vmatpush.bf16.msra.mxu0 0
        %708 = vmatpush.bf16.msra.mxu0 0
        %709 = vmatpush.bf16.msra.mxu0 0
        %710 = vmatpush.bf16.msra.mxu0 0
        %711 = vmatpush.bf16.msra.mxu0 %v699
        %712 = vmatpush.bf16.msra.mxu0 %v698
        %713 = vmatmul.bf16.gmra.mxu0 %v703
        %v714 = vpop.f32.mrf.mxu0
        %v715 = vadd.f32 %v688, %v714
        %v716 = vpop.f32.mrf.mxu0
        %v717 = vadd.f32 %v688, %v716
        %718 = vdwg.mxu0
        %v719 = vld [vmem:[%s8] sm:$0xf]
        %v720 = vld [vmem:[%s8 + $0x4] sm:$0xf]
        %v721 = vld [vmem:[%s8 + $0x8] sm:$0xf]
        %v722 = vld [vmem:[%s8 + $0xc] sm:$0xf]
        %v723 = vld [vmem:[%s9] sm:$0x1]
        %v725 = vperm.slane %v723, 0
        %728 = vrot.lane.b32.xlu0 %v685, 96
        %v729 = vpop.permute.xlu0 %728
        %v734 = vunpack.c.l.b16 %v719
        %v735 = vunpack.c.l.b16 %v720
        %v736 = vunpack.c.l.b16 %v721
        %v737 = vunpack.c.l.b16 %v722
        %v738 = vpack.c.b16 %v735, %v734
        %v739 = vpack.c.b16 %v737, %v736
        %v743 = vsel %vm581, %v729, 0
        %745 = vmatpush.bf16.msra.mxu0 0
        %746 = vmatpush.bf16.msra.mxu0 0
        %747 = vmatpush.bf16.msra.mxu0 0
        %748 = vmatpush.bf16.msra.mxu0 0
        %749 = vmatpush.bf16.msra.mxu0 0
        %750 = vmatpush.bf16.msra.mxu0 0
        %751 = vmatpush.bf16.msra.mxu0 %v739
        %752 = vmatpush.bf16.msra.mxu0 %v738
        %753 = vmatmul.bf16.gmra.mxu0 %v743
        %v754 = vpop.f32.mrf.mxu0
        %v755 = vadd.f32 %v725, %v754
        %v756 = vpop.f32.mrf.mxu0
        %v757 = vadd.f32 %v725, %v756
        %758 = vdwg.mxu0
        %v759 = vld [vmem:[%s10] sm:$0xf]
        %v760 = vld [vmem:[%s10 + $0x4] sm:$0xf]
        %v761 = vld [vmem:[%s10 + $0x8] sm:$0xf]
        %v762 = vld [vmem:[%s10 + $0xc] sm:$0xf]
        %v763 = vpack.c.bf16 %v578, %v577
        %v764 = vld [vmem:[%s11] sm:$0x1]
        %v766 = vperm.slane %v764, 0
        %v772 = vunpack.c.l.b16 %v759
        %v773 = vunpack.c.l.b16 %v760
        %v774 = vunpack.c.l.b16 %v761
        %v775 = vunpack.c.l.b16 %v762
        %v776 = vpack.c.b16 %v773, %v772
        %v777 = vpack.c.b16 %v775, %v774
        %v781 = vsel %vm581, %v763, 0
        %783 = vmatpush.bf16.msra.mxu0 0
        %784 = vmatpush.bf16.msra.mxu0 0
        %785 = vmatpush.bf16.msra.mxu0 0
        %786 = vmatpush.bf16.msra.mxu0 0
        %787 = vmatpush.bf16.msra.mxu0 0
        %788 = vmatpush.bf16.msra.mxu0 0
        %789 = vmatpush.bf16.msra.mxu0 %v777
        %790 = vmatpush.bf16.msra.mxu0 %v776
        %791 = vmatmul.bf16.gmra.mxu0 %v781
        %v792 = vpop.f32.mrf.mxu0
        %v793 = vadd.f32 %v766, %v792
        %v794 = vpop.f32.mrf.mxu0
        %v795 = vadd.f32 %v766, %v794
        %796 = vdwg.mxu0
        %v797 = vpack.c.bf16 %v795, %v793
        %v798 = vpack.c.bf16 %v717, %v715
        %vm799 = vcmask 64512
        %v801 = vsel %vm799, %v797, 0
        %v804 = vsel %vm799, %v798, 0
        %806 = vmatpush.bf16.xpose.msra.mxu0 0
        %807 = vmatpush.bf16.xpose.msra.mxu0 0
        %808 = vmatpush.bf16.xpose.msra.mxu0 0
        %809 = vmatpush.bf16.xpose.msra.mxu0 0
        %810 = vmatpush.bf16.xpose.msra.mxu0 0
        %811 = vmatpush.bf16.xpose.msra.mxu0 0
        %812 = vmatpush.bf16.xpose.msra.mxu0 0
        %813 = vmatpush.bf16.xpose.msra.mxu0 %v804
        %814 = vmatmul.bf16.gmra.mxu0 %v801
        %v815 = vpop.f32.mrf.mxu0
        %v816 = vadd.f32 0.0, %v815
        %v817 = vpop.f32.mrf.mxu0
        %v818 = vadd.f32 0.0, %v817
        %819 = vdwg.mxu0
        %v820 = vmul.f32 %v816, 0.35355338
        %v821 = vmul.f32 %v818, 0.35355338
        %vm822 = vcmask 130048
        %v823 = vsel %vm822, %v820, -inf
        %824 = vmax.xlane.f32.xlu0 %v823
        %v825 = vpop.xlane.xlu0 %824
        %v826 = vsel %vm822, %v821, -inf
        %827 = vmax.xlane.f32.xlu0 %v826
        %v828 = vpop.xlane.xlu0 %827
        %v829 = vsub.f32 %v820, %v825
        %v830 = vsub.f32 %v821, %v828
        %v831 = vmul.f32 %v829, 1.442695
        %v832 = vpow.pop %v831
        %v833 = vmul.f32 %v830, 1.442695
        %v834 = vpow.pop %v833
        %v835 = vsel %vm822, %v832, 0.0
        %836 = vadd.xlane.f32.xlu0 %v835
        %v837 = vpop.xlane.xlu0 %836
        %v838 = vsel %vm822, %v834, 0.0
        %839 = vadd.xlane.f32.xlu0 %v838
        %v840 = vpop.xlane.xlu0 %839
        %v841 = vrcp.pop %v837
        %v842 = vrcp.pop %v840
        %v843 = vmul.f32 %v832, %v841
        %v844 = vmul.f32 %v834, %v842
        %v845 = vpack.c.bf16 %v844, %v843
        %v846 = vpack.c.bf16 %v757, %v755
        %v848 = vsel %vm822, %v845, 0
        %850 = vmatpush.bf16.msra.mxu0 0
        %851 = vmatpush.bf16.msra.mxu0 0
        %852 = vmatpush.bf16.msra.mxu0 0
        %853 = vmatpush.bf16.msra.mxu0 0
        %854 = vmatpush.bf16.msra.mxu0 0
        %855 = vmatpush.bf16.msra.mxu0 0
        %856 = vmatpush.bf16.msra.mxu0 0
        %857 = vmatpush.bf16.msra.mxu0 %v846
        %858 = vmatmul.bf16.gmra.mxu0 %v848
        %v859 = vpop.f32.mrf.mxu0
        %v860 = vadd.f32 0.0, %v859
        %v861 = vpop.f32.mrf.mxu0
        %v862 = vadd.f32 0.0, %v861
        %863 = vdwg.mxu0
        %865 = vrot.lane.b32.xlu0 %v797, 120
        %v866 = vpop.permute.xlu0 %865
        %868 = vrot.lane.b32.xlu0 %v798, 120
        %v869 = vpop.permute.xlu0 %868
        %v871 = vsel %vm799, %v866, 0
        %v874 = vsel %vm799, %v869, 0
        %876 = vmatpush.bf16.xpose.msra.mxu0 0
        %877 = vmatpush.bf16.xpose.msra.mxu0 0
        %878 = vmatpush.bf16.xpose.msra.mxu0 0
        %879 = vmatpush.bf16.xpose.msra.mxu0 0
        %880 = vmatpush.bf16.xpose.msra.mxu0 0
        %881 = vmatpush.bf16.xpose.msra.mxu0 0
        %882 = vmatpush.bf16.xpose.msra.mxu0 0
        %883 = vmatpush.bf16.xpose.msra.mxu0 %v874
        %884 = vmatmul.bf16.gmra.mxu0 %v871
        %v885 = vpop.f32.mrf.mxu0
        %v886 = vadd.f32 0.0, %v885
        %v887 = vpop.f32.mrf.mxu0
        %v888 = vadd.f32 0.0, %v887
        %889 = vdwg.mxu0
        %v890 = vmul.f32 %v886, 0.35355338
        %v891 = vmul.f32 %v888, 0.35355338
        %v892 = vsel %vm822, %v890, -inf
        %893 = vmax.xlane.f32.xlu0 %v892
        %v894 = vpop.xlane.xlu0 %893
        %v895 = vsel %vm822, %v891, -inf
        %896 = vmax.xlane.f32.xlu0 %v895
        %v897 = vpop.xlane.xlu0 %896
        %v898 = vsub.f32 %v890, %v894
        %v899 = vsub.f32 %v891, %v897
        %v900 = vmul.f32 %v898, 1.442695
        %v901 = vpow.pop %v900
        %v902 = vmul.f32 %v899, 1.442695
        %v903 = vpow.pop %v902
        %v904 = vsel %vm822, %v901, 0.0
        %905 = vadd.xlane.f32.xlu0 %v904
        %v906 = vpop.xlane.xlu0 %905
        %v907 = vsel %vm822, %v903, 0.0
        %908 = vadd.xlane.f32.xlu0 %v907
        %v909 = vpop.xlane.xlu0 %908
        %v910 = vrcp.pop %v906
        %v911 = vrcp.pop %v909
        %v912 = vmul.f32 %v901, %v910
        %v913 = vmul.f32 %v903, %v911
        %v914 = vpack.c.bf16 %v913, %v912
        %916 = vrot.lane.b32.xlu0 %v846, 120
        %v917 = vpop.permute.xlu0 %916
        %v920 = vsel %vm822, %v914, 0
        %922 = vmatpush.bf16.msra.mxu0 0
        %923 = vmatpush.bf16.msra.mxu0 0
        %924 = vmatpush.bf16.msra.mxu0 0
        %925 = vmatpush.bf16.msra.mxu0 0
        %926 = vmatpush.bf16.msra.mxu0 0
        %927 = vmatpush.bf16.msra.mxu0 0
        %928 = vmatpush.bf16.msra.mxu0 0
        %929 = vmatpush.bf16.msra.mxu0 %v917
        %930 = vmatmul.bf16.gmra.mxu0 %v920
        %v931 = vpop.f32.mrf.mxu0
        %v932 = vadd.f32 0.0, %v931
        %v933 = vpop.f32.mrf.mxu0
        %v934 = vadd.f32 0.0, %v933
        %935 = vdwg.mxu0
        %936 = vrot.lane.b32.xlu0 %v797, 112
        %v937 = vpop.permute.xlu0 %936
        %938 = vrot.lane.b32.xlu0 %v798, 112
        %v939 = vpop.permute.xlu0 %938
        %v941 = vsel %vm799, %v937, 0
        %v944 = vsel %vm799, %v939, 0
        %946 = vmatpush.bf16.xpose.msra.mxu0 0
        %947 = vmatpush.bf16.xpose.msra.mxu0 0
        %948 = vmatpush.bf16.xpose.msra.mxu0 0
        %949 = vmatpush.bf16.xpose.msra.mxu0 0
        %950 = vmatpush.bf16.xpose.msra.mxu0 0
        %951 = vmatpush.bf16.xpose.msra.mxu0 0
        %952 = vmatpush.bf16.xpose.msra.mxu0 0
        %953 = vmatpush.bf16.xpose.msra.mxu0 %v944
        %954 = vmatmul.bf16.gmra.mxu0 %v941
        %v955 = vpop.f32.mrf.mxu0
        %v956 = vadd.f32 0.0, %v955
        %v957 = vpop.f32.mrf.mxu0
        %v958 = vadd.f32 0.0, %v957
        %959 = vdwg.mxu0
        %v960 = vmul.f32 %v956, 0.35355338
        %v961 = vmul.f32 %v958, 0.35355338
        %v962 = vsel %vm822, %v960, -inf
        %963 = vmax.xlane.f32.xlu0 %v962
        %v964 = vpop.xlane.xlu0 %963
        %v965 = vsel %vm822, %v961, -inf
        %966 = vmax.xlane.f32.xlu0 %v965
        %v967 = vpop.xlane.xlu0 %966
        %v968 = vsub.f32 %v960, %v964
        %v969 = vsub.f32 %v961, %v967
        %v970 = vmul.f32 %v968, 1.442695
        %v971 = vpow.pop %v970
        %v972 = vmul.f32 %v969, 1.442695
        %v973 = vpow.pop %v972
        %v974 = vsel %vm822, %v971, 0.0
        %975 = vadd.xlane.f32.xlu0 %v974
        %v976 = vpop.xlane.xlu0 %975
        %v977 = vsel %vm822, %v973, 0.0
        %978 = vadd.xlane.f32.xlu0 %v977
        %v979 = vpop.xlane.xlu0 %978
        %v980 = vrcp.pop %v976
        %v981 = vrcp.pop %v979
        %v982 = vmul.f32 %v971, %v980
        %v983 = vmul.f32 %v973, %v981
        %v984 = vpack.c.bf16 %v983, %v982
        %985 = vrot.lane.b32.xlu0 %v846, 112
        %v986 = vpop.permute.xlu0 %985
        %v989 = vsel %vm822, %v984, 0
        %991 = vmatpush.bf16.msra.mxu0 0
        %992 = vmatpush.bf16.msra.mxu0 0
        %993 = vmatpush.bf16.msra.mxu0 0
        %994 = vmatpush.bf16.msra.mxu0 0
        %995 = vmatpush.bf16.msra.mxu0 0
        %996 = vmatpush.bf16.msra.mxu0 0
        %997 = vmatpush.bf16.msra.mxu0 0
        %998 = vmatpush.bf16.msra.mxu0 %v986
        %999 = vmatmul.bf16.gmra.mxu0 %v989
        %v1000 = vpop.f32.mrf.mxu0
        %v1001 = vadd.f32 0.0, %v1000
        %v1002 = vpop.f32.mrf.mxu0
        %v1003 = vadd.f32 0.0, %v1002
        %1004 = vdwg.mxu0
        %1005 = vrot.lane.b32.xlu0 %v797, 104
        %v1006 = vpop.permute.xlu0 %1005
        %1007 = vrot.lane.b32.xlu0 %v798, 104
        %v1008 = vpop.permute.xlu0 %1007
        %v1010 = vsel %vm799, %v1006, 0
        %v1013 = vsel %vm799, %v1008, 0
        %1015 = vmatpush.bf16.xpose.msra.mxu0 0
        %1016 = vmatpush.bf16.xpose.msra.mxu0 0
        %1017 = vmatpush.bf16.xpose.msra.mxu0 0
        %1018 = vmatpush.bf16.xpose.msra.mxu0 0
        %1019 = vmatpush.bf16.xpose.msra.mxu0 0
        %1020 = vmatpush.bf16.xpose.msra.mxu0 0
        %1021 = vmatpush.bf16.xpose.msra.mxu0 0
        %1022 = vmatpush.bf16.xpose.msra.mxu0 %v1013
        %1023 = vmatmul.bf16.gmra.mxu0 %v1010
        %v1024 = vpop.f32.mrf.mxu0
        %v1025 = vadd.f32 0.0, %v1024
        %v1026 = vpop.f32.mrf.mxu0
        %v1027 = vadd.f32 0.0, %v1026
        %1028 = vdwg.mxu0
        %v1029 = vmul.f32 %v1025, 0.35355338
        %v1030 = vmul.f32 %v1027, 0.35355338
        %v1031 = vsel %vm822, %v1029, -inf
        %1032 = vmax.xlane.f32.xlu0 %v1031
        %v1033 = vpop.xlane.xlu0 %1032
        %v1034 = vsel %vm822, %v1030, -inf
        %1035 = vmax.xlane.f32.xlu0 %v1034
        %v1036 = vpop.xlane.xlu0 %1035
        %v1037 = vsub.f32 %v1029, %v1033
        %v1038 = vsub.f32 %v1030, %v1036
        %v1039 = vmul.f32 %v1037, 1.442695
        %v1040 = vpow.pop %v1039
        %v1041 = vmul.f32 %v1038, 1.442695
        %v1042 = vpow.pop %v1041
        %v1043 = vsel %vm822, %v1040, 0.0
        %1044 = vadd.xlane.f32.xlu0 %v1043
        %v1045 = vpop.xlane.xlu0 %1044
        %v1046 = vsel %vm822, %v1042, 0.0
        %1047 = vadd.xlane.f32.xlu0 %v1046
        %v1048 = vpop.xlane.xlu0 %1047
        %v1049 = vrcp.pop %v1045
        %v1050 = vrcp.pop %v1048
        %v1051 = vmul.f32 %v1040, %v1049
        %v1052 = vmul.f32 %v1042, %v1050
        %v1053 = vpack.c.bf16 %v1052, %v1051
        %1054 = vrot.lane.b32.xlu0 %v846, 104
        %v1055 = vpop.permute.xlu0 %1054
        %v1058 = vsel %vm822, %v1053, 0
        %1060 = vmatpush.bf16.msra.mxu0 0
        %1061 = vmatpush.bf16.msra.mxu0 0
        %1062 = vmatpush.bf16.msra.mxu0 0
        %1063 = vmatpush.bf16.msra.mxu0 0
        %1064 = vmatpush.bf16.msra.mxu0 0
        %1065 = vmatpush.bf16.msra.mxu0 0
        %1066 = vmatpush.bf16.msra.mxu0 0
        %1067 = vmatpush.bf16.msra.mxu0 %v1055
        %1068 = vmatmul.bf16.gmra.mxu0 %v1058
        %v1069 = vpop.f32.mrf.mxu0
        %v1070 = vadd.f32 0.0, %v1069
        %v1071 = vpop.f32.mrf.mxu0
        %v1072 = vadd.f32 0.0, %v1071
        %1073 = vdwg.mxu0
        %1076 = vrot.lane.b32.xlu0 %v932, 8
        %v1077 = vpop.permute.xlu0 %1076
        %1078 = vrot.lane.b32.xlu0 %v934, 8
        %v1079 = vpop.permute.xlu0 %1078
        %1084 = vrot.lane.b32.xlu0 %v1001, 16
        %v1085 = vpop.permute.xlu0 %1084
        %1086 = vrot.lane.b32.xlu0 %v1003, 16
        %v1087 = vpop.permute.xlu0 %1086
        %1092 = vrot.lane.b32.xlu0 %v1070, 24
        %v1093 = vpop.permute.xlu0 %1092
        %1094 = vrot.lane.b32.xlu0 %v1072, 24
        %v1095 = vpop.permute.xlu0 %1094
        %v1098 = vsel %vm799, %v860, %v1077
        %v1099 = vsel %vm799, %v862, %v1079
        %v1100 = vsel %vm822, %v1098, %v1085
        %v1101 = vsel %vm822, %v1099, %v1087
        %vm1102 = vcmask 195584
        %v1103 = vsel %vm1102, %v1100, %v1093
        %v1104 = vsel %vm1102, %v1101, %v1095
        %v1105 = vld [vmem:[%s12] sm:$0xf]
        %v1106 = vld [vmem:[%s12 + $0x4] sm:$0xf]
        %v1107 = vld [vmem:[%s12 + $0x8] sm:$0xf]
        %v1108 = vld [vmem:[%s12 + $0xc] sm:$0xf]
        %v1109 = vpack.c.bf16 %v1104, %v1103
        %v1110 = vld [vmem:[%s13] sm:$0x1]
        %v1112 = vperm.slane %v1110, 0
        %v1118 = vunpack.c.l.b16 %v1105
        %v1119 = vunpack.c.l.b16 %v1106
        %v1120 = vunpack.c.l.b16 %v1107
        %v1121 = vunpack.c.l.b16 %v1108
        %v1122 = vpack.c.b16 %v1119, %v1118
        %v1123 = vpack.c.b16 %v1121, %v1120
        %v1127 = vsel %vm581, %v1109, 0
        %1129 = vmatpush.bf16.msra.mxu0 0
        %1130 = vmatpush.bf16.msra.mxu0 0
        %1131 = vmatpush.bf16.msra.mxu0 0
        %1132 = vmatpush.bf16.msra.mxu0 0
        %1133 = vmatpush.bf16.msra.mxu0 0
        %1134 = vmatpush.bf16.msra.mxu0 0
        %1135 = vmatpush.bf16.msra.mxu0 %v1123
        %1136 = vmatpush.bf16.msra.mxu0 %v1122
        %1137 = vmatmul.bf16.gmra.mxu0 %v1127
        %v1138 = vpop.f32.mrf.mxu0
        %v1139 = vadd.f32 %v1112, %v1138
        %v1140 = vpop.f32.mrf.mxu0
        %v1141 = vadd.f32 %v1112, %v1140
        %1142 = vdwg.mxu0
        %v1143 = vld [vmem:[%s14] sm:$0xf]
        %v1144 = vld [vmem:[%s14 + $0x4] sm:$0xf]
        %v1145 = vld [vmem:[%s14 + $0x8] sm:$0xf]
        %v1146 = vld [vmem:[%s14 + $0xc] sm:$0xf]
        %v1147 = vpack.c.bf16 %v1141, %v1139
        %v1148 = vld [vmem:[%s15] sm:$0x1]
        %v1150 = vperm.slane %v1148, 0
        %v1156 = vunpack.c.l.b16 %v1143
        %v1157 = vunpack.c.l.b16 %v1144
        %v1158 = vunpack.c.l.b16 %v1145
        %v1159 = vunpack.c.l.b16 %v1146
        %v1160 = vpack.c.b16 %v1157, %v1156
        %v1161 = vpack.c.b16 %v1159, %v1158
        %v1165 = vsel %vm581, %v1147, 0
        %1167 = vmatpush.bf16.msra.mxu0 0
        %1168 = vmatpush.bf16.msra.mxu0 0
        %1169 = vmatpush.bf16.msra.mxu0 0
        %1170 = vmatpush.bf16.msra.mxu0 0
        %1171 = vmatpush.bf16.msra.mxu0 0
        %1172 = vmatpush.bf16.msra.mxu0 0
        %1173 = vmatpush.bf16.msra.mxu0 %v1161
        %1174 = vmatpush.bf16.msra.mxu0 %v1160
        %1175 = vmatmul.bf16.gmra.mxu0 %v1165
        %v1176 = vpop.f32.mrf.mxu0
        %v1177 = vadd.f32 %v1150, %v1176
        %v1178 = vpop.f32.mrf.mxu0
        %v1179 = vadd.f32 %v1150, %v1178
        %1180 = vdwg.mxu0
        %v1181 = vadd.f32 %v1177, %v577
        %v1182 = vadd.f32 %v1179, %v578
        %v1183 = vld [vmem:[%s16] sm:$0x1]
        %v1184 = vld [vmem:[%s17] sm:$0x1]
        %v1185 = vsel %vm581, %v1181, 0.0
        %1186 = vadd.xlane.f32.xlu0 %v1185
        %v1187 = vpop.xlane.xlu0 %1186
        %v1188 = vsel %vm581, %v1182, 0.0
        %1189 = vadd.xlane.f32.xlu0 %v1188
        %v1190 = vpop.xlane.xlu0 %1189
        %v1191 = vmul.f32 %v1187, %v594
        %v1192 = vmul.f32 %v1190, %v594
        %v1193 = vsub.f32 %v1181, %v1191
        %v1194 = vsub.f32 %v1182, %v1192
        %v1195 = vmul.f32 %v1193, %v1193
        %v1196 = vmul.f32 %v1194, %v1194
        %v1197 = vsel %vm581, %v1195, 0.0
        %1198 = vadd.xlane.f32.xlu0 %v1197
        %v1199 = vpop.xlane.xlu0 %1198
        %v1200 = vsel %vm581, %v1196, 0.0
        %1201 = vadd.xlane.f32.xlu0 %v1200
        %v1202 = vpop.xlane.xlu0 %1201
        %v1203 = vmul.f32 %v1199, %v594
        %v1204 = vmul.f32 %v1202, %v594
        %v1205 = vadd.f32 %v1203, 1e-05
        %v1206 = vadd.f32 %v1204, 1e-05
        %v1207 = vrsqrt.pop %v1205
        %v1208 = vmul.f32 %v1207, %v1205
        %v1209 = vmul.f32 %v1208, %v1207
        %v1210 = vmul.f32 0.5, %v1209
        %v1211 = vsub.f32 1.5, %v1210
        %v1212 = vmul.f32 %v1207, %v1211
        %vm1213 = vweird.f32 %v1205
        %vm1214 = vweird.f32 %v1207
        %vm1215 = vmor %vm1213, %vm1214
        %v1216 = vsel %vm1215, %v1207, %v1212
        %v1217 = vrsqrt.pop %v1206
        %v1218 = vmul.f32 %v1217, %v1206
        %v1219 = vmul.f32 %v1218, %v1217
        %v1220 = vmul.f32 0.5, %v1219
        %v1221 = vsub.f32 1.5, %v1220
        %v1222 = vmul.f32 %v1217, %v1221
        %vm1223 = vweird.f32 %v1206
        %vm1224 = vweird.f32 %v1217
        %vm1225 = vmor %vm1223, %vm1224
        %v1226 = vsel %vm1225, %v1217, %v1222
        %v1227 = vmul.f32 %v1193, %v1216
        %v1228 = vmul.f32 %v1194, %v1226
        %v1230 = vperm.slane %v1183, 0
        %v1232 = vmul.f32 %v1227, %v1230
        %v1233 = vmul.f32 %v1228, %v1230
        %v1235 = vperm.slane %v1184, 0
        %v1237 = vadd.f32 %v1232, %v1235
        %v1238 = vadd.f32 %v1233, %v1235
        %1239 = vst.msk [vmem:[%s568] sm:$0xff] %vm581, %v1237
        %1240 = vst.msk [vmem:[%s568 + $0x8] sm:$0xff] %vm581, %v1238
        %s1241 = sand.u32 %s423, 1
        %s1242 = scalar_lea.sflag [#allocation3], %s1241
        %s1243 = sand.u32 %s423, 1
        %s1244 = smul.addr %s1243, 16
        %s1245 = scalar_lea.vmem [#allocation2], %s1244
        // Predicated region
        $region93: #{hama_block_forward.7} parent=91 // pred_check
          %p1246 = pneg %p433
        $region94: #{hama_block_forward.7} parent=91 // pred_check_branch
          %1248 = sbr.rel (%p1246) target = $region96
        $region95: #{hama_block_forward.7} parent=91 // pred_region
          %1250 = vsyncadd %s1242, 0
          %s1251 = smul.addr %s32, 2
          %s1252 = smul.addr %s1251, 8
          %s1253 = scalar_lea.hbm %s18, %s1252
          %s1254 = sshll.u32 %s1245, 4
          %s1255 = int_to_ptr.vmem [resolvable:$true] %s1254
          %s1256 = sshll.u32 %s1253, 4
          %s1257 = int_to_ptr.hbm [resolvable:$true] %s1256
          %1262 = dma.vmem_to_hbm [thread:$0]  %s1255, 256, %s1257, %s1242, 128, 128, 8
        $region96: #{hama_block_forward.7} parent=91 // pred_fallthru
          _
      $region92: #{hama_block_forward.7} parent=5 // pred_fallthru
        _
      %p1263 = scmp.le.s32.totalorder 2, %s27
      // Predicated region
      $region97: #{hama_block_forward.7} parent=5 // pred_check
        %p1264 = pneg %p1263
      $region98: #{hama_block_forward.7} parent=5 // pred_check_branch
        %1266 = sbr.rel (%p1264) target = $region100
      $region99: #{hama_block_forward.7} parent=5 // pred_region
        %s1267 = ssub.s32 %s27, 2
        // Predicated region
        $region101: #{hama_block_forward.7} parent=99 // pred_check
          %p1268 = pneg %p439
        $region102: #{hama_block_forward.7} parent=99 // pred_check_branch
          %1270 = sbr.rel (%p1268) target = $region104
        $region103: #{hama_block_forward.7} parent=99 // pred_region
          %s1271 = sand.u32 %s424, 1
          %s1272 = scalar_lea.sflag [#allocation3], %s1271
          %s1273 = sand.u32 %s424, 1
          %s1274 = smul.addr %s1273, 16
          %s1275 = scalar_lea.vmem [#allocation2], %s1274
          %1277 = dma.done %s1272, 256
        $region104: #{hama_block_forward.7} parent=99 // pred_fallthru
          _
      $region100: #{hama_block_forward.7} parent=5 // pred_fallthru
        _
    $region6: #{hama_block_forward.7} parent=1 // loop_footer
      %s31 = sadd.s32 1, %s27
    $region7: #{hama_block_forward.7} parent=1 // loop_footer_branch
      %26 = sbr.rel target = $region3
    $region8: #{hama_block_forward.7} parent=1 // loop_exit
      _
    %1278 = vsyncpa [#allocation3], 1
    %s1279 = scalar_lea.sflag [#allocation3], 1
    %1280 = vsyncpa %s1279, 1

// kernel: hama_block_forward.6
$region0: #{hama_block_forward.6}
  #allocation0 [shape = 'u32[]', space=smem, size = 0x4, offset = 0x4, fixed_abs, tag = 'smem constant byte address 0x4 - core index']
  #allocation1 [shape = 'u32[72,128]{1,0:T(1,128)}', space=vmem, size = 0x9000, scoped, tag = 'internal scratch']
  %s0 = inlined_call_operand.vmem [shape: f32[2,2,8,32], index: 0, kind: input, shape index: {}]
  %s1 = inlined_call_operand.vmem [shape: f32[8,32], index: 1, kind: input, shape index: {}]
  %s2 = inlined_call_operand.vmem [shape: bf16[2,32,96], index: 2, kind: input, shape index: {}]
  %s3 = inlined_call_operand.vmem [shape: f32[2,1,96], index: 3, kind: input, shape index: {}]
  %s4 = inlined_call_operand.vmem [shape: bf16[2,32,32], index: 4, kind: input, shape index: {}]
  %s5 = inlined_call_operand.vmem [shape: f32[2,1,32], index: 5, kind: input, shape index: {}]
  %s6 = inlined_call_operand.vmem [shape: f32[2,1,32], index: 6, kind: input, shape index: {}]
  %s7 = inlined_call_operand.vmem [shape: f32[2,1,32], index: 7, kind: input, shape index: {}]
  %s8 = inlined_call_operand.vmem [shape: bf16[2,32,2048], index: 8, kind: input, shape index: {}]
  %s9 = inlined_call_operand.vmem [shape: f32[2,1,2048], index: 9, kind: input, shape index: {}]
  %s10 = inlined_call_operand.vmem [shape: bf16[2,2048,32], index: 10, kind: input, shape index: {}]
  %s11 = inlined_call_operand.vmem [shape: f32[2,1,32], index: 11, kind: input, shape index: {}]
  %s12 = inlined_call_operand.vmem [shape: f32[2,1,32], index: 12, kind: input, shape index: {}]
  %s13 = inlined_call_operand.vmem [shape: f32[2,1,32], index: 13, kind: input, shape index: {}]
  %s14 = inlined_call_operand.vmem [shape: f32[2,2,8,32], index: 14, kind: output, shape index: {}]
  %s15 = sld [smem:[#allocation0]]
  $region161: #{hama_block_forward.6} parent=0
    _
  %s17 = ssub.s32 1, %s15
  %s18 = scalar_select 0, %s17, %s15
  $region1: #{hama_block_forward.6} parent=0
    #allocation2 [shape = 'u8[16384]{0}', space=vmem, size = 0x4000, scoped, tag = 'input window, operand 0']
    #allocation3 [shape = 'u8[16384]{0}', space=vmem, size = 0x4000, scoped, tag = 'output window, operand 0']
    loop: start=0, step=1, limit=4
    $region2: #{hama_block_forward.6} parent=1 // loop_pre_header
      _
    $region3: #{hama_block_forward.6} parent=1 // loop_header
      %s20 = sphi 0, %s24
      %p21 = scmp.ge.s32.totalorder %s20, 4
      %s30 = sphi 0, %s32
      %s33 = sphi 0, %s30
      %s34 = sphi 0, %s33
      %s50 = sphi 0, %s34
      %s54 = sphi 0, %s54
      %s56 = sphi 0, %s54
      %s57 = sphi 0, %s56
      %s71 = sphi 0, %s57
      %s77 = sphi 0, %s79
      %s80 = sphi 0, %s77
      %s81 = sphi 0, %s80
      %s97 = sphi 0, %s81
      %s103 = sphi 0, %s105
      %s106 = sphi 0, %s103
      %s107 = sphi 0, %s106
      %s123 = sphi 0, %s107
      %s129 = sphi 0, %s131
      %s132 = sphi 0, %s129
      %s133 = sphi 0, %s132
      %s149 = sphi 0, %s133
      %s155 = sphi 0, %s157
      %s158 = sphi 0, %s155
      %s159 = sphi 0, %s158
      %s175 = sphi 0, %s159
      %s181 = sphi 0, %s183
      %s184 = sphi 0, %s181
      %s185 = sphi 0, %s184
      %s201 = sphi 0, %s185
      %s207 = sphi 0, %s209
      %s210 = sphi 0, %s207
      %s211 = sphi 0, %s210
      %s227 = sphi 0, %s211
      %s233 = sphi 0, %s235
      %s236 = sphi 0, %s233
      %s237 = sphi 0, %s236
      %s253 = sphi 0, %s237
      %s259 = sphi 0, %s261
      %s262 = sphi 0, %s259
      %s263 = sphi 0, %s262
      %s279 = sphi 0, %s263
      %s285 = sphi 0, %s287
      %s288 = sphi 0, %s285
      %s289 = sphi 0, %s288
      %s305 = sphi 0, %s289
      %s311 = sphi 0, %s313
      %s314 = sphi 0, %s311
      %s315 = sphi 0, %s314
      %s331 = sphi 0, %s315
      %s337 = sphi 0, %s339
      %s340 = sphi 0, %s337
      %s341 = sphi 0, %s340
      %s357 = sphi 0, %s341
      %s363 = sphi 0, %s365
      %s366 = sphi 0, %s363
      %s367 = sphi 0, %s366
      %s383 = sphi 0, %s367
      %s389 = sphi 0, %s391
      %s392 = sphi 0, %s389
      %s393 = sphi 0, %s392
      %s409 = sphi 0, %s393
    $region4: #{hama_block_forward.6} parent=1 // loop_header_branch
      %23 = sbr.rel (%p21) target = $region8
    $region5: #{hama_block_forward.6} parent=1 // loop_body
      %s25 = ssub.s32 %s20, 1
      %s26 = ssub.s32 %s20, 2
      %s27 = sadd.s32 %s20, 1
      %s28 = ssub.s32 %s20, %s27
      %p29 = scmp.eq.s32.totalorder %s28, 0
      %s31 = sadd.s32 %s30, 1
      %s32 = scalar_select %p29, %s30, %s31
      %p35 = pneg %p29
      %p36 = scmp.eq.s32.totalorder %s20, 1
      %p37 = por %p35, %p36
      %p38 = scmp.ne.s32.totalorder %s30, %s33
      %p39 = scmp.eq.s32.totalorder %s20, 0
      %p40 = por %p38, %p39
      %p41 = scmp.ne.s32.totalorder %s30, %s33
      %p42 = scmp.eq.s32.totalorder %s25, 1
      %p43 = por %p41, %p42
      %p44 = scmp.ne.s32.totalorder %s33, %s34
      %p45 = scmp.eq.s32.totalorder %s25, 0
      %p46 = por %p44, %p45
      %p47 = scmp.ne.s32.totalorder %s33, %s34
      %p48 = scmp.eq.s32.totalorder %s26, 1
      %p49 = por %p47, %p48
      %p51 = scmp.ne.s32.totalorder %s34, %s50
      %p52 = scmp.eq.s32.totalorder %s26, 0
      %p53 = por %p51, %p52
      %s55 = sadd.s32 %s54, 1
      %p58 = scmp.eq.s32.totalorder %s20, 1
      %p59 = scmp.ne.s32.totalorder %s54, %s56
      %p60 = scmp.eq.s32.totalorder %s20, 0
      %p61 = por %p59, %p60
      %p62 = scmp.ne.s32.totalorder %s54, %s56
      %p63 = scmp.eq.s32.totalorder %s25, 1
      %p64 = por %p62, %p63
      %p65 = scmp.ne.s32.totalorder %s56, %s57
      %p66 = scmp.eq.s32.totalorder %s25, 0
      %p67 = por %p65, %p66
      %p68 = scmp.ne.s32.totalorder %s56, %s57
      %p69 = scmp.eq.s32.totalorder %s26, 1
      %p70 = por %p68, %p69
      %p72 = scmp.ne.s32.totalorder %s57, %s71
      %p73 = scmp.eq.s32.totalorder %s26, 0
      %p74 = por %p72, %p73
      %s75 = ssub.s32 %s20, %s27
      %p76 = scmp.eq.s32.totalorder %s75, 0
      %s78 = sadd.s32 %s77, 1
      %s79 = scalar_select %p76, %s77, %s78
      %p82 = pneg %p76
      %p83 = scmp.eq.s32.totalorder %s20, 1
      %p84 = por %p82, %p83
      %p85 = scmp.ne.s32.totalorder %s77, %s80
      %p86 = scmp.eq.s32.totalorder %s20, 0
      %p87 = por %p85, %p86
      %p88 = scmp.ne.s32.totalorder %s77, %s80
      %p89 = scmp.eq.s32.totalorder %s25, 1
      %p90 = por %p88, %p89
      %p91 = scmp.ne.s32.totalorder %s80, %s81
      %p92 = scmp.eq.s32.totalorder %s25, 0
      %p93 = por %p91, %p92
      %p94 = scmp.ne.s32.totalorder %s80, %s81
      %p95 = scmp.eq.s32.totalorder %s26, 1
      %p96 = por %p94, %p95
      %p98 = scmp.ne.s32.totalorder %s81, %s97
      %p99 = scmp.eq.s32.totalorder %s26, 0
      %p100 = por %p98, %p99
      %s101 = ssub.s32 %s20, %s27
      %p102 = scmp.eq.s32.totalorder %s101, 0
      %s104 = sadd.s32 %s103, 1
      %s105 = scalar_select %p102, %s103, %s104
      %p108 = pneg %p102
      %p109 = scmp.eq.s32.totalorder %s20, 1
      %p110 = por %p108, %p109
      %p111 = scmp.ne.s32.totalorder %s103, %s106
      %p112 = scmp.eq.s32.totalorder %s20, 0
      %p113 = por %p111, %p112
      %p114 = scmp.ne.s32.totalorder %s103, %s106
      %p115 = scmp.eq.s32.totalorder %s25, 1
      %p116 = por %p114, %p115
      %p117 = scmp.ne.s32.totalorder %s106, %s107
      %p118 = scmp.eq.s32.totalorder %s25, 0
      %p119 = por %p117, %p118
      %p120 = scmp.ne.s32.totalorder %s106, %s107
      %p121 = scmp.eq.s32.totalorder %s26, 1
      %p122 = por %p120, %p121
      %p124 = scmp.ne.s32.totalorder %s107, %s123
      %p125 = scmp.eq.s32.totalorder %s26, 0
      %p126 = por %p124, %p125
      %s127 = ssub.s32 %s20, %s27
      %p128 = scmp.eq.s32.totalorder %s127, 0
      %s130 = sadd.s32 %s129, 1
      %s131 = scalar_select %p128, %s129, %s130
      %p134 = pneg %p128
      %p135 = scmp.eq.s32.totalorder %s20, 1
      %p136 = por %p134, %p135
      %p137 = scmp.ne.s32.totalorder %s129, %s132
      %p138 = scmp.eq.s32.totalorder %s20, 0
      %p139 = por %p137, %p138
      %p140 = scmp.ne.s32.totalorder %s129, %s132
      %p141 = scmp.eq.s32.totalorder %s25, 1
      %p142 = por %p140, %p141
      %p143 = scmp.ne.s32.totalorder %s132, %s133
      %p144 = scmp.eq.s32.totalorder %s25, 0
      %p145 = por %p143, %p144
      %p146 = scmp.ne.s32.totalorder %s132, %s133
      %p147 = scmp.eq.s32.totalorder %s26, 1
      %p148 = por %p146, %p147
      %p150 = scmp.ne.s32.totalorder %s133, %s149
      %p151 = scmp.eq.s32.totalorder %s26, 0
      %p152 = por %p150, %p151
      %s153 = ssub.s32 %s20, %s27
      %p154 = scmp.eq.s32.totalorder %s153, 0
      %s156 = sadd.s32 %s155, 1
      %s157 = scalar_select %p154, %s155, %s156
      %p160 = pneg %p154
      %p161 = scmp.eq.s32.totalorder %s20, 1
      %p162 = por %p160, %p161
      %p163 = scmp.ne.s32.totalorder %s155, %s158
      %p164 = scmp.eq.s32.totalorder %s20, 0
      %p165 = por %p163, %p164
      %p166 = scmp.ne.s32.totalorder %s155, %s158
      %p167 = scmp.eq.s32.totalorder %s25, 1
      %p168 = por %p166, %p167
      %p169 = scmp.ne.s32.totalorder %s158, %s159
      %p170 = scmp.eq.s32.totalorder %s25, 0
      %p171 = por %p169, %p170
      %p172 = scmp.ne.s32.totalorder %s158, %s159
      %p173 = scmp.eq.s32.totalorder %s26, 1
      %p174 = por %p172, %p173
      %p176 = scmp.ne.s32.totalorder %s159, %s175
      %p177 = scmp.eq.s32.totalorder %s26, 0
      %p178 = por %p176, %p177
      %s179 = ssub.s32 %s20, %s27
      %p180 = scmp.eq.s32.totalorder %s179, 0
      %s182 = sadd.s32 %s181, 1
      %s183 = scalar_select %p180, %s181, %s182
      %p186 = pneg %p180
      %p187 = scmp.eq.s32.totalorder %s20, 1
      %p188 = por %p186, %p187
      %p189 = scmp.ne.s32.totalorder %s181, %s184
      %p190 = scmp.eq.s32.totalorder %s20, 0
      %p191 = por %p189, %p190
      %p192 = scmp.ne.s32.totalorder %s181, %s184
      %p193 = scmp.eq.s32.totalorder %s25, 1
      %p194 = por %p192, %p193
      %p195 = scmp.ne.s32.totalorder %s184, %s185
      %p196 = scmp.eq.s32.totalorder %s25, 0
      %p197 = por %p195, %p196
      %p198 = scmp.ne.s32.totalorder %s184, %s185
      %p199 = scmp.eq.s32.totalorder %s26, 1
      %p200 = por %p198, %p199
      %p202 = scmp.ne.s32.totalorder %s185, %s201
      %p203 = scmp.eq.s32.totalorder %s26, 0
      %p204 = por %p202, %p203
      %s205 = ssub.s32 %s20, %s27
      %p206 = scmp.eq.s32.totalorder %s205, 0
      %s208 = sadd.s32 %s207, 1
      %s209 = scalar_select %p206, %s207, %s208
      %p212 = pneg %p206
      %p213 = scmp.eq.s32.totalorder %s20, 1
      %p214 = por %p212, %p213
      %p215 = scmp.ne.s32.totalorder %s207, %s210
      %p216 = scmp.eq.s32.totalorder %s20, 0
      %p217 = por %p215, %p216
      %p218 = scmp.ne.s32.totalorder %s207, %s210
      %p219 = scmp.eq.s32.totalorder %s25, 1
      %p220 = por %p218, %p219
      %p221 = scmp.ne.s32.totalorder %s210, %s211
      %p222 = scmp.eq.s32.totalorder %s25, 0
      %p223 = por %p221, %p222
      %p224 = scmp.ne.s32.totalorder %s210, %s211
      %p225 = scmp.eq.s32.totalorder %s26, 1
      %p226 = por %p224, %p225
      %p228 = scmp.ne.s32.totalorder %s211, %s227
      %p229 = scmp.eq.s32.totalorder %s26, 0
      %p230 = por %p228, %p229
      %s231 = ssub.s32 %s20, %s27
      %p232 = scmp.eq.s32.totalorder %s231, 0
      %s234 = sadd.s32 %s233, 1
      %s235 = scalar_select %p232, %s233, %s234
      %p238 = pneg %p232
      %p239 = scmp.eq.s32.totalorder %s20, 1
      %p240 = por %p238, %p239
      %p241 = scmp.ne.s32.totalorder %s233, %s236
      %p242 = scmp.eq.s32.totalorder %s20, 0
      %p243 = por %p241, %p242
      %p244 = scmp.ne.s32.totalorder %s233, %s236
      %p245 = scmp.eq.s32.totalorder %s25, 1
      %p246 = por %p244, %p245
      %p247 = scmp.ne.s32.totalorder %s236, %s237
      %p248 = scmp.eq.s32.totalorder %s25, 0
      %p249 = por %p247, %p248
      %p250 = scmp.ne.s32.totalorder %s236, %s237
      %p251 = scmp.eq.s32.totalorder %s26, 1
      %p252 = por %p250, %p251
      %p254 = scmp.ne.s32.totalorder %s237, %s253
      %p255 = scmp.eq.s32.totalorder %s26, 0
      %p256 = por %p254, %p255
      %s257 = ssub.s32 %s20, %s27
      %p258 = scmp.eq.s32.totalorder %s257, 0
      %s260 = sadd.s32 %s259, 1
      %s261 = scalar_select %p258, %s259, %s260
      %p264 = pneg %p258
      %p265 = scmp.eq.s32.totalorder %s20, 1
      %p266 = por %p264, %p265
      %p267 = scmp.ne.s32.totalorder %s259, %s262
      %p268 = scmp.eq.s32.totalorder %s20, 0
      %p269 = por %p267, %p268
      %p270 = scmp.ne.s32.totalorder %s259, %s262
      %p271 = scmp.eq.s32.totalorder %s25, 1
      %p272 = por %p270, %p271
      %p273 = scmp.ne.s32.totalorder %s262, %s263
      %p274 = scmp.eq.s32.totalorder %s25, 0
      %p275 = por %p273, %p274
      %p276 = scmp.ne.s32.totalorder %s262, %s263
      %p277 = scmp.eq.s32.totalorder %s26, 1
      %p278 = por %p276, %p277
      %p280 = scmp.ne.s32.totalorder %s263, %s279
      %p281 = scmp.eq.s32.totalorder %s26, 0
      %p282 = por %p280, %p281
      %s283 = ssub.s32 %s20, %s27
      %p284 = scmp.eq.s32.totalorder %s283, 0
      %s286 = sadd.s32 %s285, 1
      %s287 = scalar_select %p284, %s285, %s286
      %p290 = pneg %p284
      %p291 = scmp.eq.s32.totalorder %s20, 1
      %p292 = por %p290, %p291
      %p293 = scmp.ne.s32.totalorder %s285, %s288
      %p294 = scmp.eq.s32.totalorder %s20, 0
      %p295 = por %p293, %p294
      %p296 = scmp.ne.s32.totalorder %s285, %s288
      %p297 = scmp.eq.s32.totalorder %s25, 1
      %p298 = por %p296, %p297
      %p299 = scmp.ne.s32.totalorder %s288, %s289
      %p300 = scmp.eq.s32.totalorder %s25, 0
      %p301 = por %p299, %p300
      %p302 = scmp.ne.s32.totalorder %s288, %s289
      %p303 = scmp.eq.s32.totalorder %s26, 1
      %p304 = por %p302, %p303
      %p306 = scmp.ne.s32.totalorder %s289, %s305
      %p307 = scmp.eq.s32.totalorder %s26, 0
      %p308 = por %p306, %p307
      %s309 = ssub.s32 %s20, %s27
      %p310 = scmp.eq.s32.totalorder %s309, 0
      %s312 = sadd.s32 %s311, 1
      %s313 = scalar_select %p310, %s311, %s312
      %p316 = pneg %p310
      %p317 = scmp.eq.s32.totalorder %s20, 1
      %p318 = por %p316, %p317
      %p319 = scmp.ne.s32.totalorder %s311, %s314
      %p320 = scmp.eq.s32.totalorder %s20, 0
      %p321 = por %p319, %p320
      %p322 = scmp.ne.s32.totalorder %s311, %s314
      %p323 = scmp.eq.s32.totalorder %s25, 1
      %p324 = por %p322, %p323
      %p325 = scmp.ne.s32.totalorder %s314, %s315
      %p326 = scmp.eq.s32.totalorder %s25, 0
      %p327 = por %p325, %p326
      %p328 = scmp.ne.s32.totalorder %s314, %s315
      %p329 = scmp.eq.s32.totalorder %s26, 1
      %p330 = por %p328, %p329
      %p332 = scmp.ne.s32.totalorder %s315, %s331
      %p333 = scmp.eq.s32.totalorder %s26, 0
      %p334 = por %p332, %p333
      %s335 = ssub.s32 %s20, %s27
      %p336 = scmp.eq.s32.totalorder %s335, 0
      %s338 = sadd.s32 %s337, 1
      %s339 = scalar_select %p336, %s337, %s338
      %p342 = pneg %p336
      %p343 = scmp.eq.s32.totalorder %s20, 1
      %p344 = por %p342, %p343
      %p345 = scmp.ne.s32.totalorder %s337, %s340
      %p346 = scmp.eq.s32.totalorder %s20, 0
      %p347 = por %p345, %p346
      %p348 = scmp.ne.s32.totalorder %s337, %s340
      %p349 = scmp.eq.s32.totalorder %s25, 1
      %p350 = por %p348, %p349
      %p351 = scmp.ne.s32.totalorder %s340, %s341
      %p352 = scmp.eq.s32.totalorder %s25, 0
      %p353 = por %p351, %p352
      %p354 = scmp.ne.s32.totalorder %s340, %s341
      %p355 = scmp.eq.s32.totalorder %s26, 1
      %p356 = por %p354, %p355
      %p358 = scmp.ne.s32.totalorder %s341, %s357
      %p359 = scmp.eq.s32.totalorder %s26, 0
      %p360 = por %p358, %p359
      %s361 = ssub.s32 %s20, %s27
      %p362 = scmp.eq.s32.totalorder %s361, 0
      %s364 = sadd.s32 %s363, 1
      %s365 = scalar_select %p362, %s363, %s364
      %p368 = pneg %p362
      %p369 = scmp.eq.s32.totalorder %s20, 1
      %p370 = por %p368, %p369
      %p371 = scmp.ne.s32.totalorder %s363, %s366
      %p372 = scmp.eq.s32.totalorder %s20, 0
      %p373 = por %p371, %p372
      %p374 = scmp.ne.s32.totalorder %s363, %s366
      %p375 = scmp.eq.s32.totalorder %s25, 1
      %p376 = por %p374, %p375
      %p377 = scmp.ne.s32.totalorder %s366, %s367
      %p378 = scmp.eq.s32.totalorder %s25, 0
      %p379 = por %p377, %p378
      %p380 = scmp.ne.s32.totalorder %s366, %s367
      %p381 = scmp.eq.s32.totalorder %s26, 1
      %p382 = por %p380, %p381
      %p384 = scmp.ne.s32.totalorder %s367, %s383
      %p385 = scmp.eq.s32.totalorder %s26, 0
      %p386 = por %p384, %p385
      %s387 = ssub.s32 %s20, %s27
      %p388 = scmp.eq.s32.totalorder %s387, 0
      %s390 = sadd.s32 %s389, 1
      %s391 = scalar_select %p388, %s389, %s390
      %p394 = pneg %p388
      %p395 = scmp.eq.s32.totalorder %s20, 1
      %p396 = por %p394, %p395
      %p397 = scmp.ne.s32.totalorder %s389, %s392
      %p398 = scmp.eq.s32.totalorder %s20, 0
      %p399 = por %p397, %p398
      %p400 = scmp.ne.s32.totalorder %s389, %s392
      %p401 = scmp.eq.s32.totalorder %s25, 1
      %p402 = por %p400, %p401
      %p403 = scmp.ne.s32.totalorder %s392, %s393
      %p404 = scmp.eq.s32.totalorder %s25, 0
      %p405 = por %p403, %p404
      %p406 = scmp.ne.s32.totalorder %s392, %s393
      %p407 = scmp.eq.s32.totalorder %s26, 1
      %p408 = por %p406, %p407
      %p410 = scmp.ne.s32.totalorder %s393, %s409
      %p411 = scmp.eq.s32.totalorder %s26, 0
      %p412 = por %p410, %p411
      %p413 = scmp.le.s32.totalorder 1, %s20
      %p414 = scmp.lt.s32.totalorder %s20, 3
      %p415 = pnand %p413, %p414
      %p416 = pneg %p415
      // Predicated region
      $region9: #{hama_block_forward.6} parent=5 // pred_check
        _
      $region10: #{hama_block_forward.6} parent=5 // pred_check_branch
        %418 = sbr.rel (%p415) target = $region12
      $region11: #{hama_block_forward.6} parent=5 // pred_region
        %s419 = ssub.s32 %s20, 1
        // Predicated region
        $region13: #{hama_block_forward.6} parent=11 // pred_check
          %p420 = pneg %p67
        $region14: #{hama_block_forward.6} parent=11 // pred_check_branch
          %422 = sbr.rel (%p420) target = $region16
        $region15: #{hama_block_forward.6} parent=11 // pred_region
          _
        $region16: #{hama_block_forward.6} parent=11 // pred_fallthru
          _
      $region12: #{hama_block_forward.6} parent=5 // pred_fallthru
        _
      %p423 = scmp.lt.s32.totalorder %s20, 2
      // Predicated region
      $region17: #{hama_block_forward.6} parent=5 // pred_check
        %p424 = pneg %p423
      $region18: #{hama_block_forward.6} parent=5 // pred_check_branch
        %426 = sbr.rel (%p424) target = $region20
      $region19: #{hama_block_forward.6} parent=5 // pred_region
        // Predicated region
        $region21: #{hama_block_forward.6} parent=19 // pred_check
          %p427 = pneg %p40
        $region22: #{hama_block_forward.6} parent=19 // pred_check_branch
          %429 = sbr.rel (%p427) target = $region24
        $region23: #{hama_block_forward.6} parent=19 // pred_region
          %s430 = sand.u32 %s30, 1
          %s431 = sand.u32 %s30, 1
          %s432 = smul.addr %s431, 16
          %s433 = scalar_lea.vmem [#allocation2], %s432
          %s434 = smul.addr %s20, 8
          %s435 = scalar_lea.vmem %s0, %s434
          // Predicated region
          $region25: #{hama_block_forward.6} parent=23 // pred_check
            _
          $region26: #{hama_block_forward.6} parent=23 // pred_check_branch
            %437 = sbr.rel (0) target = $region28
          $region27: #{hama_block_forward.6} parent=23 // pred_region
            // Predicated region
            $region29: #{hama_block_forward.6} parent=27 // pred_check
              _
            $region30: #{hama_block_forward.6} parent=27 // pred_check_branch
              %439 = sbr.rel (0) target = $region32
            $region31: #{hama_block_forward.6} parent=27 // pred_region
              // Predicated region
              $region44: #{hama_block_forward.6} parent=31 // pred_check
                _
              $region45: #{hama_block_forward.6} parent=31 // pred_check_branch
                %457 = sbr.rel (0) target = $region47
              $region46: #{hama_block_forward.6} parent=31 // pred_region
                loop: start=0, step=1, limit=1
                $region48: #{hama_block_forward.6} parent=46 // loop_pre_header
                  _
                $region49: #{hama_block_forward.6} parent=46 // loop_header
                  %s459 = sphi 0, %s463
                  %p460 = scmp.ge.s32.totalorder %s459, 1
                  %s464 = sphi %s435, %s435
                  %s465 = sphi %s433, %s433
                $region50: #{hama_block_forward.6} parent=46 // loop_header_branch
                  %462 = sbr.rel (%p460) target = $region54
                $region51: #{hama_block_forward.6} parent=46 // loop_body
                  %v466 = vld [vmem:[%s464] sm:$0xff]
                  %467 = vst [vmem:[%s465] sm:$0xff] %v466
                  %v468 = vld [vmem:[%s464 + $0x10] sm:$0xff]
                  %469 = vst [vmem:[%s465 + $0x8] sm:$0xff] %v468
                $region52: #{hama_block_forward.6} parent=46 // loop_footer
                  %s463 = sadd.s32 1, %s459
                $region53: #{hama_block_forward.6} parent=46 // loop_footer_branch
                  %458 = sbr.rel target = $region49
                $region54: #{hama_block_forward.6} parent=46 // loop_exit
                  _
              $region47: #{hama_block_forward.6} parent=31 // pred_fallthru
                _
              // Predicated region
              $region55: #{hama_block_forward.6} parent=31 // pred_check
                _
              $region56: #{hama_block_forward.6} parent=31 // pred_check_branch
                %471 = sbr.rel target = $region58
              $region57: #{hama_block_forward.6} parent=31 // pred_region
                _
              $region58: #{hama_block_forward.6} parent=31 // pred_fallthru
                _
            $region32: #{hama_block_forward.6} parent=27 // pred_fallthru
              _
            // Predicated region
            $region33: #{hama_block_forward.6} parent=27 // pred_check
              _
            $region34: #{hama_block_forward.6} parent=27 // pred_check_branch
              %441 = sbr.rel target = $region36
            $region35: #{hama_block_forward.6} parent=27 // pred_region
              %s443 = ssub.s32 256, 1
              loop: start=0, step=1, limit=1
              $region37: #{hama_block_forward.6} parent=35 // loop_pre_header
                _
              $region38: #{hama_block_forward.6} parent=35 // loop_header
                %s445 = sphi 0, %s449
                %p446 = scmp.ge.s32.totalorder %s445, 1
                %s450 = sphi %s435, %s435
                %s451 = sphi %s433, %s433
              $region39: #{hama_block_forward.6} parent=35 // loop_header_branch
                %448 = sbr.rel (%p446) target = $region43
              $region40: #{hama_block_forward.6} parent=35 // loop_body
                %v452 = vld [vmem:[%s450] sm:%s443]
                %453 = vst [vmem:[%s451] sm:%s443] %v452
                %v454 = vld [vmem:[%s450 + $0x10] sm:%s443]
                %455 = vst [vmem:[%s451 + $0x8] sm:%s443] %v454
              $region41: #{hama_block_forward.6} parent=35 // loop_footer
                %s449 = sadd.s32 1, %s445
              $region42: #{hama_block_forward.6} parent=35 // loop_footer_branch
                %444 = sbr.rel target = $region38
              $region43: #{hama_block_forward.6} parent=35 // loop_exit
                _
            $region36: #{hama_block_forward.6} parent=27 // pred_fallthru
              _
          $region28: #{hama_block_forward.6} parent=23 // pred_fallthru
            _
          %472 = vnop
        $region24: #{hama_block_forward.6} parent=19 // pred_fallthru
          _
        // Predicated region
        $region59: #{hama_block_forward.6} parent=19 // pred_check
          %p473 = pneg %p87
        $region60: #{hama_block_forward.6} parent=19 // pred_check_branch
          %475 = sbr.rel (%p473) target = $region62
        $region61: #{hama_block_forward.6} parent=19 // pred_region
          %p476 = scmp.lt.s32.totalorder %s20, 1
          %s477 = scalar_select %p476, %s20, 1
          %s478 = smul.addr %s477, 4
          %s479 = smul.addr %s478, 4
          %s480 = scalar_lea.vmem %s2, %s479
        $region62: #{hama_block_forward.6} parent=19 // pred_fallthru
          _
        // Predicated region
        $region63: #{hama_block_forward.6} parent=19 // pred_check
          %p481 = pneg %p113
        $region64: #{hama_block_forward.6} parent=19 // pred_check_branch
          %483 = sbr.rel (%p481) target = $region66
        $region65: #{hama_block_forward.6} parent=19 // pred_region
          %p484 = scmp.lt.s32.totalorder %s20, 1
          %s485 = scalar_select %p484, %s20, 1
          %s486 = scalar_lea.vmem %s3, %s485
        $region66: #{hama_block_forward.6} parent=19 // pred_fallthru
          _
        // Predicated region
        $region67: #{hama_block_forward.6} parent=19 // pred_check
          %p487 = pneg %p139
        $region68: #{hama_block_forward.6} parent=19 // pred_check_branch
          %489 = sbr.rel (%p487) target = $region70
        $region69: #{hama_block_forward.6} parent=19 // pred_region
          %p490 = scmp.lt.s32.totalorder %s20, 1
          %s491 = scalar_select %p490, %s20, 1
          %s492 = smul.addr %s491, 4
          %s493 = smul.addr %s492, 4
          %s494 = scalar_lea.vmem %s4, %s493
        $region70: #{hama_block_forward.6} parent=19 // pred_fallthru
          _
        // Predicated region
        $region71: #{hama_block_forward.6} parent=19 // pred_check
          %p495 = pneg %p165
        $region72: #{hama_block_forward.6} parent=19 // pred_check_branch
          %497 = sbr.rel (%p495) target = $region74
        $region73: #{hama_block_forward.6} parent=19 // pred_region
          %p498 = scmp.lt.s32.totalorder %s20, 1
          %s499 = scalar_select %p498, %s20, 1
          %s500 = scalar_lea.vmem %s5, %s499
        $region74: #{hama_block_forward.6} parent=19 // pred_fallthru
          _
        // Predicated region
        $region75: #{hama_block_forward.6} parent=19 // pred_check
          %p501 = pneg %p191
        $region76: #{hama_block_forward.6} parent=19 // pred_check_branch
          %503 = sbr.rel (%p501) target = $region78
        $region77: #{hama_block_forward.6} parent=19 // pred_region
          %p504 = scmp.lt.s32.totalorder %s20, 1
          %s505 = scalar_select %p504, %s20, 1
          %s506 = scalar_lea.vmem %s6, %s505
        $region78: #{hama_block_forward.6} parent=19 // pred_fallthru
          _
        // Predicated region
        $region79: #{hama_block_forward.6} parent=19 // pred_check
          %p507 = pneg %p217
        $region80: #{hama_block_forward.6} parent=19 // pred_check_branch
          %509 = sbr.rel (%p507) target = $region82
        $region81: #{hama_block_forward.6} parent=19 // pred_region
          %p510 = scmp.lt.s32.totalorder %s20, 1
          %s511 = scalar_select %p510, %s20, 1
          %s512 = scalar_lea.vmem %s7, %s511
        $region82: #{hama_block_forward.6} parent=19 // pred_fallthru
          _
        // Predicated region
        $region83: #{hama_block_forward.6} parent=19 // pred_check
          %p513 = pneg %p243
        $region84: #{hama_block_forward.6} parent=19 // pred_check_branch
          %515 = sbr.rel (%p513) target = $region86
        $region85: #{hama_block_forward.6} parent=19 // pred_region
          %p516 = scmp.lt.s32.totalorder %s20, 1
          %s517 = scalar_select %p516, %s20, 1
          %s518 = smul.addr %s517, 64
          %s519 = smul.addr %s518, 4
          %s520 = scalar_lea.vmem %s8, %s519
        $region86: #{hama_block_forward.6} parent=19 // pred_fallthru
          _
        // Predicated region
        $region87: #{hama_block_forward.6} parent=19 // pred_check
          %p521 = pneg %p269
        $region88: #{hama_block_forward.6} parent=19 // pred_check_branch
          %523 = sbr.rel (%p521) target = $region90
        $region89: #{hama_block_forward.6} parent=19 // pred_region
          %p524 = scmp.lt.s32.totalorder %s20, 1
          %s525 = scalar_select %p524, %s20, 1
          %s526 = smul.addr %s525, 16
          %s527 = scalar_lea.vmem %s9, %s526
        $region90: #{hama_block_forward.6} parent=19 // pred_fallthru
          _
        // Predicated region
        $region91: #{hama_block_forward.6} parent=19 // pred_check
          %p528 = pneg %p295
        $region92: #{hama_block_forward.6} parent=19 // pred_check_branch
          %530 = sbr.rel (%p528) target = $region94
        $region93: #{hama_block_forward.6} parent=19 // pred_region
          %p531 = scmp.lt.s32.totalorder %s20, 1
          %s532 = scalar_select %p531, %s20, 1
          %s533 = smul.addr %s532, 256
          %s534 = smul.addr %s533, 4
          %s535 = scalar_lea.vmem %s10, %s534
        $region94: #{hama_block_forward.6} parent=19 // pred_fallthru
          _
        // Predicated region
        $region95: #{hama_block_forward.6} parent=19 // pred_check
          %p536 = pneg %p321
        $region96: #{hama_block_forward.6} parent=19 // pred_check_branch
          %538 = sbr.rel (%p536) target = $region98
        $region97: #{hama_block_forward.6} parent=19 // pred_region
          %p539 = scmp.lt.s32.totalorder %s20, 1
          %s540 = scalar_select %p539, %s20, 1
          %s541 = scalar_lea.vmem %s11, %s540
        $region98: #{hama_block_forward.6} parent=19 // pred_fallthru
          _
        // Predicated region
        $region99: #{hama_block_forward.6} parent=19 // pred_check
          %p542 = pneg %p347
        $region100: #{hama_block_forward.6} parent=19 // pred_check_branch
          %544 = sbr.rel (%p542) target = $region102
        $region101: #{hama_block_forward.6} parent=19 // pred_region
          %p545 = scmp.lt.s32.totalorder %s20, 1
          %s546 = scalar_select %p545, %s20, 1
          %s547 = scalar_lea.vmem %s12, %s546
        $region102: #{hama_block_forward.6} parent=19 // pred_fallthru
          _
        // Predicated region
        $region103: #{hama_block_forward.6} parent=19 // pred_check
          %p548 = pneg %p373
        $region104: #{hama_block_forward.6} parent=19 // pred_check_branch
          %550 = sbr.rel (%p548) target = $region106
        $region105: #{hama_block_forward.6} parent=19 // pred_region
          %p551 = scmp.lt.s32.totalorder %s20, 1
          %s552 = scalar_select %p551, %s20, 1
          %s553 = scalar_lea.vmem %s13, %s552
        $region106: #{hama_block_forward.6} parent=19 // pred_fallthru
          _
      $region20: #{hama_block_forward.6} parent=5 // pred_fallthru
        _
      %p554 = scmp.le.s32.totalorder 1, %s20
      %p555 = scmp.lt.s32.totalorder %s20, 3
      %p556 = pnand %p554, %p555
      %p557 = pneg %p556
      // Predicated region
      $region107: #{hama_block_forward.6} parent=5 // pred_check
        _
      $region108: #{hama_block_forward.6} parent=5 // pred_check_branch
        %559 = sbr.rel (%p556) target = $region110
      $region109: #{hama_block_forward.6} parent=5 // pred_region
        %s560 = ssub.s32 %s20, 1
        %s561 = sand.u32 %s33, 1
        %s562 = sand.u32 %s33, 1
        %s563 = smul.addr %s562, 16
        %s564 = scalar_lea.vmem [#allocation2], %s563
        // Predicated region
        $region111: #{hama_block_forward.6} parent=109 // pred_check
          %p565 = pneg %p46
        $region112: #{hama_block_forward.6} parent=109 // pred_check_branch
          %567 = sbr.rel (%p565) target = $region114
        $region113: #{hama_block_forward.6} parent=109 // pred_region
          _
        $region114: #{hama_block_forward.6} parent=109 // pred_fallthru
          _
        %s568 = sand.u32 %s33, 1
        %s569 = sand.u32 %s33, 1
        %s570 = smul.addr %s569, 16
        %s571 = scalar_lea.vmem [#allocation2], %s570
        %p572 = pneg %p46
        %p573 = pneg %p43
        %p574 = pneg %p67
        %p575 = pneg %p64
        %p576 = scmp.lt.s32.totalorder %s25, 1
        %s577 = scalar_select %p576, %s25, 1
        %s578 = smul.addr %s577, 4
        %s579 = smul.addr %s578, 4
        %s580 = scalar_lea.vmem %s2, %s579
        %p581 = pneg %p93
        %p582 = pneg %p90
        %p583 = scmp.lt.s32.totalorder %s25, 1
        %s584 = scalar_select %p583, %s25, 1
        %s585 = scalar_lea.vmem %s3, %s584
        %p586 = pneg %p119
        %p587 = pneg %p116
        %p588 = scmp.lt.s32.totalorder %s25, 1
        %s589 = scalar_select %p588, %s25, 1
        %s590 = smul.addr %s589, 4
        %s591 = smul.addr %s590, 4
        %s592 = scalar_lea.vmem %s4, %s591
        %p593 = pneg %p145
        %p594 = pneg %p142
        %p595 = scmp.lt.s32.totalorder %s25, 1
        %s596 = scalar_select %p595, %s25, 1
        %s597 = scalar_lea.vmem %s5, %s596
        %p598 = pneg %p171
        %p599 = pneg %p168
        %p600 = scmp.lt.s32.totalorder %s25, 1
        %s601 = scalar_select %p600, %s25, 1
        %s602 = scalar_lea.vmem %s6, %s601
        %p603 = pneg %p197
        %p604 = pneg %p194
        %p605 = scmp.lt.s32.totalorder %s25, 1
        %s606 = scalar_select %p605, %s25, 1
        %s607 = scalar_lea.vmem %s7, %s606
        %p608 = pneg %p223
        %p609 = pneg %p220
        %p610 = scmp.lt.s32.totalorder %s25, 1
        %s611 = scalar_select %p610, %s25, 1
        %s612 = smul.addr %s611, 64
        %s613 = smul.addr %s612, 4
        %s614 = scalar_lea.vmem %s8, %s613
        %p615 = pneg %p249
        %p616 = pneg %p246
        %p617 = scmp.lt.s32.totalorder %s25, 1
        %s618 = scalar_select %p617, %s25, 1
        %s619 = smul.addr %s618, 16
        %s620 = scalar_lea.vmem %s9, %s619
        %p621 = pneg %p275
        %p622 = pneg %p272
        %p623 = scmp.lt.s32.totalorder %s25, 1
        %s624 = scalar_select %p623, %s25, 1
        %s625 = smul.addr %s624, 256
        %s626 = smul.addr %s625, 4
        %s627 = scalar_lea.vmem %s10, %s626
        %p628 = pneg %p301
        %p629 = pneg %p298
        %p630 = scmp.lt.s32.totalorder %s25, 1
        %s631 = scalar_select %p630, %s25, 1
        %s632 = scalar_lea.vmem %s11, %s631
        %p633 = pneg %p327
        %p634 = pneg %p324
        %p635 = scmp.lt.s32.totalorder %s25, 1
        %s636 = scalar_select %p635, %s25, 1
        %s637 = scalar_lea.vmem %s12, %s636
        %p638 = pneg %p353
        %p639 = pneg %p350
        %p640 = scmp.lt.s32.totalorder %s25, 1
        %s641 = scalar_select %p640, %s25, 1
        %s642 = scalar_lea.vmem %s13, %s641
        %p643 = pneg %p379
        %p644 = pneg %p376
        %p645 = pneg %p405
        %p646 = pneg %p402
        %s647 = sand.u32 %s392, 1
        %s648 = sand.u32 %s392, 1
        %s649 = smul.addr %s648, 16
        %s650 = scalar_lea.vmem [#allocation3], %s649
        %p651 = scmp.lt.s32.totalorder %s25, 1
        %s652 = scalar_select %p651, %s25, 1
        %s653 = smul.addr %s652, 4
        %s654 = smul.addr %s653, 4
        %s655 = scalar_lea.vmem %s2, %s654
        %p656 = scmp.lt.s32.totalorder %s25, 1
        %s657 = scalar_select %p656, %s25, 1
        %s658 = scalar_lea.vmem %s3, %s657
        %p659 = scmp.lt.s32.totalorder %s25, 1
        %s660 = scalar_select %p659, %s25, 1
        %s661 = smul.addr %s660, 4
        %s662 = smul.addr %s661, 4
        %s663 = scalar_lea.vmem %s4, %s662
        %p664 = scmp.lt.s32.totalorder %s25, 1
        %s665 = scalar_select %p664, %s25, 1
        %s666 = scalar_lea.vmem %s5, %s665
        %p667 = scmp.lt.s32.totalorder %s25, 1
        %s668 = scalar_select %p667, %s25, 1
        %s669 = scalar_lea.vmem %s6, %s668
        %p670 = scmp.lt.s32.totalorder %s25, 1
        %s671 = scalar_select %p670, %s25, 1
        %s672 = scalar_lea.vmem %s7, %s671
        %p673 = scmp.lt.s32.totalorder %s25, 1
        %s674 = scalar_select %p673, %s25, 1
        %s675 = smul.addr %s674, 64
        %s676 = smul.addr %s675, 4
        %s677 = scalar_lea.vmem %s8, %s676
        %p678 = scmp.lt.s32.totalorder %s25, 1
        %s679 = scalar_select %p678, %s25, 1
        %s680 = smul.addr %s679, 16
        %s681 = scalar_lea.vmem %s9, %s680
        %p682 = scmp.lt.s32.totalorder %s25, 1
        %s683 = scalar_select %p682, %s25, 1
        %s684 = smul.addr %s683, 256
        %s685 = smul.addr %s684, 4
        %s686 = scalar_lea.vmem %s10, %s685
        %p687 = scmp.lt.s32.totalorder %s25, 1
        %s688 = scalar_select %p687, %s25, 1
        %s689 = scalar_lea.vmem %s11, %s688
        %p690 = scmp.lt.s32.totalorder %s25, 1
        %s691 = scalar_select %p690, %s25, 1
        %s692 = scalar_lea.vmem %s12, %s691
        %p693 = scmp.lt.s32.totalorder %s25, 1
        %s694 = scalar_select %p693, %s25, 1
        %s695 = scalar_lea.vmem %s13, %s694
        %v697 = vld [vmem:[%s564] sm:$0xff]
        %v698 = vld [vmem:[%s564 + $0x8] sm:$0xff]
        %v699 = vld [vmem:[%s655] sm:$0xf]
        %v700 = vld [vmem:[%s655 + $0x4] sm:$0xf]
        %v701 = vld [vmem:[%s655 + $0x8] sm:$0xf]
        %v702 = vld [vmem:[%s655 + $0xc] sm:$0xf]
        %v703 = vpack.c.bf16 %v698, %v697
        %v704 = vld [vmem:[%s658] sm:$0x1]
        %v706 = vperm.slane %v704, 0
        %v712 = vunpack.c.l.b16 %v699
        %v713 = vunpack.c.l.b16 %v700
        %v714 = vunpack.c.l.b16 %v701
        %v715 = vunpack.c.l.b16 %v702
        %v716 = vpack.c.b16 %v713, %v712
        %v717 = vpack.c.b16 %v715, %v714
        %vm720 = vcmask 261120
        %v722 = vsel %vm720, %v703, 0
        %724 = vmatpush.bf16.msra.mxu0 0
        %725 = vmatpush.bf16.msra.mxu0 0
        %726 = vmatpush.bf16.msra.mxu0 0
        %727 = vmatpush.bf16.msra.mxu0 0
        %728 = vmatpush.bf16.msra.mxu0 0
        %729 = vmatpush.bf16.msra.mxu0 0
        %730 = vmatpush.bf16.msra.mxu0 %v717
        %731 = vmatpush.bf16.msra.mxu0 %v716
        %732 = vmatmul.bf16.gmra.mxu0 %v722
        %v733 = vpop.f32.mrf.mxu0
        %v734 = vadd.f32 %v706, %v733
        %v735 = vpop.f32.mrf.mxu0
        %v736 = vadd.f32 %v706, %v735
        %737 = vdwg.mxu0
        %v738 = vpack.c.bf16 %v734, %v734
        %v739 = vpack.c.bf16 %v736, %v736
        %v741 = vunpack.c.l.b16 %v738
        %v742 = vpack.c.b16 %v741, %v741
        %743 = vrot.lane.b32.xlu0 %v742, 96
        %v744 = vpop.permute.xlu0 %743
        %vm745 = vcmask 64512
        %v747 = vsel %vm745, %v738, 0
        %v750 = vsel %vm745, %v744, 0
        %752 = vmatpush.bf16.xpose.msra.mxu0 0
        %753 = vmatpush.bf16.xpose.msra.mxu0 0
        %754 = vmatpush.bf16.xpose.msra.mxu0 0
        %755 = vmatpush.bf16.xpose.msra.mxu0 0
        %756 = vmatpush.bf16.xpose.msra.mxu0 0
        %757 = vmatpush.bf16.xpose.msra.mxu0 0
        %758 = vmatpush.bf16.xpose.msra.mxu0 0
        %759 = vmatpush.bf16.xpose.msra.mxu0 %v750
        %760 = vmatmul.bf16.gmra.mxu0 %v747
        %v761 = vpop.f32.mrf.mxu0
        %v762 = vadd.f32 0.0, %v761
        %v763 = vpop.f32.mrf.mxu0
        %764 = vdwg.mxu0
        %v766 = vunpack.c.l.b16 %v739
        %v767 = vpack.c.b16 %v766, %v766
        %768 = vrot.lane.b32.xlu0 %v767, 96
        %v769 = vpop.permute.xlu0 %768
        %v771 = vsel %vm745, %v739, 0
        %v774 = vsel %vm745, %v769, 0
        %776 = vmatpush.bf16.xpose.msra.mxu0 0
        %777 = vmatpush.bf16.xpose.msra.mxu0 0
        %778 = vmatpush.bf16.xpose.msra.mxu0 0
        %779 = vmatpush.bf16.xpose.msra.mxu0 0
        %780 = vmatpush.bf16.xpose.msra.mxu0 0
        %781 = vmatpush.bf16.xpose.msra.mxu0 0
        %782 = vmatpush.bf16.xpose.msra.mxu0 0
        %783 = vmatpush.bf16.xpose.msra.mxu0 %v774
        %784 = vmatmul.bf16.gmra.mxu0 %v771
        %v785 = vpop.f32.mrf.mxu0
        %v786 = vadd.f32 0.0, %v785
        %v787 = vpop.f32.mrf.mxu0
        %788 = vdwg.mxu0
        %v789 = vmul.f32 %v762, 0.35355338
        %v790 = vmul.f32 %v786, 0.35355338
        %v791 = vsel %vm745, %v789, -inf
        %792 = vmax.xlane.f32.xlu0 %v791
        %v793 = vpop.xlane.xlu0 %792
        %v794 = vsel %vm745, %v790, -inf
        %795 = vmax.xlane.f32.xlu0 %v794
        %v796 = vpop.xlane.xlu0 %795
        %v797 = vsub.f32 %v789, %v793
        %v798 = vsub.f32 %v790, %v796
        %v799 = vmul.f32 %v797, 1.442695
        %v800 = vpow.pop %v799
        %v801 = vmul.f32 %v798, 1.442695
        %v802 = vpow.pop %v801
        %v803 = vsel %vm745, %v800, 0.0
        %804 = vadd.xlane.f32.xlu0 %v803
        %v805 = vpop.xlane.xlu0 %804
        %v806 = vsel %vm745, %v802, 0.0
        %807 = vadd.xlane.f32.xlu0 %v806
        %v808 = vpop.xlane.xlu0 %807
        %v809 = vrcp.pop %v805
        %v810 = vrcp.pop %v808
        %v811 = vmul.f32 %v800, %v809
        %v812 = vmul.f32 %v802, %v810
        %v813 = vpack.c.bf16 %v811, %v811
        %v814 = vpack.c.bf16 %v812, %v812
        %815 = vrot.lane.b32.xlu0 %v742, 64
        %v816 = vpop.permute.xlu0 %815
        %v818 = vsel %vm745, %v813, 0
        %vm820 = vcmask 1043456
        %v822 = vsel %vm820, %v816, 0
        %824 = vmatpush.bf16.msra.mxu0 0
        %825 = vmatpush.bf16.msra.mxu0 0
        %826 = vmatpush.bf16.msra.mxu0 0
        %827 = vmatpush.bf16.msra.mxu0 0
        %828 = vmatpush.bf16.msra.mxu0 0
        %829 = vmatpush.bf16.msra.mxu0 0
        %830 = vmatpush.bf16.msra.mxu0 0
        %831 = vmatpush.bf16.msra.mxu0 %v822
        %832 = vmatmul.bf16.gmra.mxu0 %v818
        %v833 = vpop.f32.mrf.mxu0
        %v834 = vadd.f32 0.0, %v833
        %v835 = vpop.f32.mrf.mxu0
        %836 = vdwg.mxu0
        %837 = vrot.lane.b32.xlu0 %v767, 64
        %v838 = vpop.permute.xlu0 %837
        %v840 = vsel %vm745, %v814, 0
        %v843 = vsel %vm820, %v838, 0
        %845 = vmatpush.bf16.msra.mxu0 0
        %846 = vmatpush.bf16.msra.mxu0 0
        %847 = vmatpush.bf16.msra.mxu0 0
        %848 = vmatpush.bf16.msra.mxu0 0
        %849 = vmatpush.bf16.msra.mxu0 0
        %850 = vmatpush.bf16.msra.mxu0 0
        %851 = vmatpush.bf16.msra.mxu0 0
        %852 = vmatpush.bf16.msra.mxu0 %v843
        %853 = vmatmul.bf16.gmra.mxu0 %v840
        %v854 = vpop.f32.mrf.mxu0
        %v855 = vadd.f32 0.0, %v854
        %v856 = vpop.f32.mrf.mxu0
        %857 = vdwg.mxu0
        %858 = vrot.lane.b32.xlu0 %v742, 120
        %v859 = vpop.permute.xlu0 %858
        %860 = vrot.lane.b32.xlu0 %v742, 88
        %v861 = vpop.permute.xlu0 %860
        %v863 = vsel %vm745, %v859, 0
        %v866 = vsel %vm745, %v861, 0
        %868 = vmatpush.bf16.xpose.msra.mxu0 0
        %869 = vmatpush.bf16.xpose.msra.mxu0 0
        %870 = vmatpush.bf16.xpose.msra.mxu0 0
        %871 = vmatpush.bf16.xpose.msra.mxu0 0
        %872 = vmatpush.bf16.xpose.msra.mxu0 0
        %873 = vmatpush.bf16.xpose.msra.mxu0 0
        %874 = vmatpush.bf16.xpose.msra.mxu0 0
        %875 = vmatpush.bf16.xpose.msra.mxu0 %v866
        %876 = vmatmul.bf16.gmra.mxu0 %v863
        %v877 = vpop.f32.mrf.mxu0
        %v878 = vadd.f32 0.0, %v877
        %v879 = vpop.f32.mrf.mxu0
        %880 = vdwg.mxu0
        %881 = vrot.lane.b32.xlu0 %v767, 120
        %v882 = vpop.permute.xlu0 %881
        %883 = vrot.lane.b32.xlu0 %v767, 88
        %v884 = vpop.permute.xlu0 %883
        %v886 = vsel %vm745, %v882, 0
        %v889 = vsel %vm745, %v884, 0
        %891 = vmatpush.bf16.xpose.msra.mxu0 0
        %892 = vmatpush.bf16.xpose.msra.mxu0 0
        %893 = vmatpush.bf16.xpose.msra.mxu0 0
        %894 = vmatpush.bf16.xpose.msra.mxu0 0
        %895 = vmatpush.bf16.xpose.msra.mxu0 0
        %896 = vmatpush.bf16.xpose.msra.mxu0 0
        %897 = vmatpush.bf16.xpose.msra.mxu0 0
        %898 = vmatpush.bf16.xpose.msra.mxu0 %v889
        %899 = vmatmul.bf16.gmra.mxu0 %v886
        %v900 = vpop.f32.mrf.mxu0
        %v901 = vadd.f32 0.0, %v900
        %v902 = vpop.f32.mrf.mxu0
        %903 = vdwg.mxu0
        %v904 = vmul.f32 %v878, 0.35355338
        %v905 = vmul.f32 %v901, 0.35355338
        %v906 = vsel %vm745, %v904, -inf
        %907 = vmax.xlane.f32.xlu0 %v906
        %v908 = vpop.xlane.xlu0 %907
        %v909 = vsel %vm745, %v905, -inf
        %910 = vmax.xlane.f32.xlu0 %v909
        %v911 = vpop.xlane.xlu0 %910
        %v912 = vsub.f32 %v904, %v908
        %v913 = vsub.f32 %v905, %v911
        %v914 = vmul.f32 %v912, 1.442695
        %v915 = vpow.pop %v914
        %v916 = vmul.f32 %v913, 1.442695
        %v917 = vpow.pop %v916
        %v918 = vsel %vm745, %v915, 0.0
        %919 = vadd.xlane.f32.xlu0 %v918
        %v920 = vpop.xlane.xlu0 %919
        %v921 = vsel %vm745, %v917, 0.0
        %922 = vadd.xlane.f32.xlu0 %v921
        %v923 = vpop.xlane.xlu0 %922
        %v924 = vrcp.pop %v920
        %v925 = vrcp.pop %v923
        %v926 = vmul.f32 %v915, %v924
        %v927 = vmul.f32 %v917, %v925
        %v928 = vpack.c.bf16 %v926, %v926
        %v929 = vpack.c.bf16 %v927, %v927
        %930 = vrot.lane.b32.xlu0 %v742, 56
        %v931 = vpop.permute.xlu0 %930
        %v933 = vsel %vm745, %v928, 0
        %v936 = vsel %vm820, %v931, 0
        %938 = vmatpush.bf16.msra.mxu0 0
        %939 = vmatpush.bf16.msra.mxu0 0
        %940 = vmatpush.bf16.msra.mxu0 0
        %941 = vmatpush.bf16.msra.mxu0 0
        %942 = vmatpush.bf16.msra.mxu0 0
        %943 = vmatpush.bf16.msra.mxu0 0
        %944 = vmatpush.bf16.msra.mxu0 0
        %945 = vmatpush.bf16.msra.mxu0 %v936
        %946 = vmatmul.bf16.gmra.mxu0 %v933
        %v947 = vpop.f32.mrf.mxu0
        %v948 = vadd.f32 0.0, %v947
        %v949 = vpop.f32.mrf.mxu0
        %950 = vdwg.mxu0
        %951 = vrot.lane.b32.xlu0 %v767, 56
        %v952 = vpop.permute.xlu0 %951
        %v954 = vsel %vm745, %v929, 0
        %v957 = vsel %vm820, %v952, 0
        %959 = vmatpush.bf16.msra.mxu0 0
        %960 = vmatpush.bf16.msra.mxu0 0
        %961 = vmatpush.bf16.msra.mxu0 0
        %962 = vmatpush.bf16.msra.mxu0 0
        %963 = vmatpush.bf16.msra.mxu0 0
        %964 = vmatpush.bf16.msra.mxu0 0
        %965 = vmatpush.bf16.msra.mxu0 0
        %966 = vmatpush.bf16.msra.mxu0 %v957
        %967 = vmatmul.bf16.gmra.mxu0 %v954
        %v968 = vpop.f32.mrf.mxu0
        %v969 = vadd.f32 0.0, %v968
        %v970 = vpop.f32.mrf.mxu0
        %971 = vdwg.mxu0
        %972 = vrot.lane.b32.xlu0 %v742, 112
        %v973 = vpop.permute.xlu0 %972
        %974 = vrot.lane.b32.xlu0 %v742, 80
        %v975 = vpop.permute.xlu0 %974
        %v977 = vsel %vm745, %v973, 0
        %v980 = vsel %vm745, %v975, 0
        %982 = vmatpush.bf16.xpose.msra.mxu0 0
        %983 = vmatpush.bf16.xpose.msra.mxu0 0
        %984 = vmatpush.bf16.xpose.msra.mxu0 0
        %985 = vmatpush.bf16.xpose.msra.mxu0 0
        %986 = vmatpush.bf16.xpose.msra.mxu0 0
        %987 = vmatpush.bf16.xpose.msra.mxu0 0
        %988 = vmatpush.bf16.xpose.msra.mxu0 0
        %989 = vmatpush.bf16.xpose.msra.mxu0 %v980
        %990 = vmatmul.bf16.gmra.mxu0 %v977
        %v991 = vpop.f32.mrf.mxu0
        %v992 = vadd.f32 0.0, %v991
        %v993 = vpop.f32.mrf.mxu0
        %994 = vdwg.mxu0
        %995 = vrot.lane.b32.xlu0 %v767, 112
        %v996 = vpop.permute.xlu0 %995
        %997 = vrot.lane.b32.xlu0 %v767, 80
        %v998 = vpop.permute.xlu0 %997
        %v1000 = vsel %vm745, %v996, 0
        %v1003 = vsel %vm745, %v998, 0
        %1005 = vmatpush.bf16.xpose.msra.mxu0 0
        %1006 = vmatpush.bf16.xpose.msra.mxu0 0
        %1007 = vmatpush.bf16.xpose.msra.mxu0 0
        %1008 = vmatpush.bf16.xpose.msra.mxu0 0
        %1009 = vmatpush.bf16.xpose.msra.mxu0 0
        %1010 = vmatpush.bf16.xpose.msra.mxu0 0
        %1011 = vmatpush.bf16.xpose.msra.mxu0 0
        %1012 = vmatpush.bf16.xpose.msra.mxu0 %v1003
        %1013 = vmatmul.bf16.gmra.mxu0 %v1000
        %v1014 = vpop.f32.mrf.mxu0
        %v1015 = vadd.f32 0.0, %v1014
        %v1016 = vpop.f32.mrf.mxu0
        %1017 = vdwg.mxu0
        %v1018 = vmul.f32 %v992, 0.35355338
        %v1019 = vmul.f32 %v1015, 0.35355338
        %v1020 = vsel %vm745, %v1018, -inf
        %1021 = vmax.xlane.f32.xlu0 %v1020
        %v1022 = vpop.xlane.xlu0 %1021
        %v1023 = vsel %vm745, %v1019, -inf
        %1024 = vmax.xlane.f32.xlu0 %v1023
        %v1025 = vpop.xlane.xlu0 %1024
        %v1026 = vsub.f32 %v1018, %v1022
        %v1027 = vsub.f32 %v1019, %v1025
        %v1028 = vmul.f32 %v1026, 1.442695
        %v1029 = vpow.pop %v1028
        %v1030 = vmul.f32 %v1027, 1.442695
        %v1031 = vpow.pop %v1030
        %v1032 = vsel %vm745, %v1029, 0.0
        %1033 = vadd.xlane.f32.xlu0 %v1032
        %v1034 = vpop.xlane.xlu0 %1033
        %v1035 = vsel %vm745, %v1031, 0.0
        %1036 = vadd.xlane.f32.xlu0 %v1035
        %v1037 = vpop.xlane.xlu0 %1036
        %v1038 = vrcp.pop %v1034
        %v1039 = vrcp.pop %v1037
        %v1040 = vmul.f32 %v1029, %v1038
        %v1041 = vmul.f32 %v1031, %v1039
        %v1042 = vpack.c.bf16 %v1040, %v1040
        %v1043 = vpack.c.bf16 %v1041, %v1041
        %1044 = vrot.lane.b32.xlu0 %v742, 48
        %v1045 = vpop.permute.xlu0 %1044
        %v1047 = vsel %vm745, %v1042, 0
        %v1050 = vsel %vm820, %v1045, 0
        %1052 = vmatpush.bf16.msra.mxu0 0
        %1053 = vmatpush.bf16.msra.mxu0 0
        %1054 = vmatpush.bf16.msra.mxu0 0
        %1055 = vmatpush.bf16.msra.mxu0 0
        %1056 = vmatpush.bf16.msra.mxu0 0
        %1057 = vmatpush.bf16.msra.mxu0 0
        %1058 = vmatpush.bf16.msra.mxu0 0
        %1059 = vmatpush.bf16.msra.mxu0 %v1050
        %1060 = vmatmul.bf16.gmra.mxu0 %v1047
        %v1061 = vpop.f32.mrf.mxu0
        %v1062 = vadd.f32 0.0, %v1061
        %v1063 = vpop.f32.mrf.mxu0
        %1064 = vdwg.mxu0
        %1065 = vrot.lane.b32.xlu0 %v767, 48
        %v1066 = vpop.permute.xlu0 %1065
        %v1068 = vsel %vm745, %v1043, 0
        %v1071 = vsel %vm820, %v1066, 0
        %1073 = vmatpush.bf16.msra.mxu0 0
        %1074 = vmatpush.bf16.msra.mxu0 0
        %1075 = vmatpush.bf16.msra.mxu0 0
        %1076 = vmatpush.bf16.msra.mxu0 0
        %1077 = vmatpush.bf16.msra.mxu0 0
        %1078 = vmatpush.bf16.msra.mxu0 0
        %1079 = vmatpush.bf16.msra.mxu0 0
        %1080 = vmatpush.bf16.msra.mxu0 %v1071
        %1081 = vmatmul.bf16.gmra.mxu0 %v1068
        %v1082 = vpop.f32.mrf.mxu0
        %v1083 = vadd.f32 0.0, %v1082
        %v1084 = vpop.f32.mrf.mxu0
        %1085 = vdwg.mxu0
        %1086 = vrot.lane.b32.xlu0 %v742, 104
        %v1087 = vpop.permute.xlu0 %1086
        %1088 = vrot.lane.b32.xlu0 %v742, 72
        %v1089 = vpop.permute.xlu0 %1088
        %v1091 = vsel %vm745, %v1087, 0
        %v1094 = vsel %vm745, %v1089, 0
        %1096 = vmatpush.bf16.xpose.msra.mxu0 0
        %1097 = vmatpush.bf16.xpose.msra.mxu0 0
        %1098 = vmatpush.bf16.xpose.msra.mxu0 0
        %1099 = vmatpush.bf16.xpose.msra.mxu0 0
        %1100 = vmatpush.bf16.xpose.msra.mxu0 0
        %1101 = vmatpush.bf16.xpose.msra.mxu0 0
        %1102 = vmatpush.bf16.xpose.msra.mxu0 0
        %1103 = vmatpush.bf16.xpose.msra.mxu0 %v1094
        %1104 = vmatmul.bf16.gmra.mxu0 %v1091
        %v1105 = vpop.f32.mrf.mxu0
        %v1106 = vadd.f32 0.0, %v1105
        %v1107 = vpop.f32.mrf.mxu0
        %1108 = vdwg.mxu0
        %1109 = vrot.lane.b32.xlu0 %v767, 104
        %v1110 = vpop.permute.xlu0 %1109
        %1111 = vrot.lane.b32.xlu0 %v767, 72
        %v1112 = vpop.permute.xlu0 %1111
        %v1114 = vsel %vm745, %v1110, 0
        %v1117 = vsel %vm745, %v1112, 0
        %1119 = vmatpush.bf16.xpose.msra.mxu0 0
        %1120 = vmatpush.bf16.xpose.msra.mxu0 0
        %1121 = vmatpush.bf16.xpose.msra.mxu0 0
        %1122 = vmatpush.bf16.xpose.msra.mxu0 0
        %1123 = vmatpush.bf16.xpose.msra.mxu0 0
        %1124 = vmatpush.bf16.xpose.msra.mxu0 0
        %1125 = vmatpush.bf16.xpose.msra.mxu0 0
        %1126 = vmatpush.bf16.xpose.msra.mxu0 %v1117
        %1127 = vmatmul.bf16.gmra.mxu0 %v1114
        %v1128 = vpop.f32.mrf.mxu0
        %v1129 = vadd.f32 0.0, %v1128
        %v1130 = vpop.f32.mrf.mxu0
        %1131 = vdwg.mxu0
        %v1132 = vmul.f32 %v1106, 0.35355338
        %v1133 = vmul.f32 %v1129, 0.35355338
        %v1134 = vsel %vm745, %v1132, -inf
        %1135 = vmax.xlane.f32.xlu0 %v1134
        %v1136 = vpop.xlane.xlu0 %1135
        %v1137 = vsel %vm745, %v1133, -inf
        %1138 = vmax.xlane.f32.xlu0 %v1137
        %v1139 = vpop.xlane.xlu0 %1138
        %v1140 = vsub.f32 %v1132, %v1136
        %v1141 = vsub.f32 %v1133, %v1139
        %v1142 = vmul.f32 %v1140, 1.442695
        %v1143 = vpow.pop %v1142
        %v1144 = vmul.f32 %v1141, 1.442695
        %v1145 = vpow.pop %v1144
        %v1146 = vsel %vm745, %v1143, 0.0
        %1147 = vadd.xlane.f32.xlu0 %v1146
        %v1148 = vpop.xlane.xlu0 %1147
        %v1149 = vsel %vm745, %v1145, 0.0
        %1150 = vadd.xlane.f32.xlu0 %v1149
        %v1151 = vpop.xlane.xlu0 %1150
        %v1152 = vrcp.pop %v1148
        %v1153 = vrcp.pop %v1151
        %v1154 = vmul.f32 %v1143, %v1152
        %v1155 = vmul.f32 %v1145, %v1153
        %v1156 = vpack.c.bf16 %v1154, %v1154
        %v1157 = vpack.c.bf16 %v1155, %v1155
        %1158 = vrot.lane.b32.xlu0 %v742, 40
        %v1159 = vpop.permute.xlu0 %1158
        %v1161 = vsel %vm745, %v1156, 0
        %v1164 = vsel %vm820, %v1159, 0
        %1166 = vmatpush.bf16.msra.mxu0 0
        %1167 = vmatpush.bf16.msra.mxu0 0
        %1168 = vmatpush.bf16.msra.mxu0 0
        %1169 = vmatpush.bf16.msra.mxu0 0
        %1170 = vmatpush.bf16.msra.mxu0 0
        %1171 = vmatpush.bf16.msra.mxu0 0
        %1172 = vmatpush.bf16.msra.mxu0 0
        %1173 = vmatpush.bf16.msra.mxu0 %v1164
        %1174 = vmatmul.bf16.gmra.mxu0 %v1161
        %v1175 = vpop.f32.mrf.mxu0
        %v1176 = vadd.f32 0.0, %v1175
        %v1177 = vpop.f32.mrf.mxu0
        %1178 = vdwg.mxu0
        %1179 = vrot.lane.b32.xlu0 %v767, 40
        %v1180 = vpop.permute.xlu0 %1179
        %v1182 = vsel %vm745, %v1157, 0
        %v1185 = vsel %vm820, %v1180, 0
        %1187 = vmatpush.bf16.msra.mxu0 0
        %1188 = vmatpush.bf16.msra.mxu0 0
        %1189 = vmatpush.bf16.msra.mxu0 0
        %1190 = vmatpush.bf16.msra.mxu0 0
        %1191 = vmatpush.bf16.msra.mxu0 0
        %1192 = vmatpush.bf16.msra.mxu0 0
        %1193 = vmatpush.bf16.msra.mxu0 0
        %1194 = vmatpush.bf16.msra.mxu0 %v1185
        %1195 = vmatmul.bf16.gmra.mxu0 %v1182
        %v1196 = vpop.f32.mrf.mxu0
        %v1197 = vadd.f32 0.0, %v1196
        %v1198 = vpop.f32.mrf.mxu0
        %1199 = vdwg.mxu0
        %1202 = vrot.lane.b32.xlu0 %v948, 8
        %v1203 = vpop.permute.xlu0 %1202
        %1204 = vrot.lane.b32.xlu0 %v969, 8
        %v1205 = vpop.permute.xlu0 %1204
        %1210 = vrot.lane.b32.xlu0 %v1062, 16
        %v1211 = vpop.permute.xlu0 %1210
        %1212 = vrot.lane.b32.xlu0 %v1083, 16
        %v1213 = vpop.permute.xlu0 %1212
        %1218 = vrot.lane.b32.xlu0 %v1176, 24
        %v1219 = vpop.permute.xlu0 %1218
        %1220 = vrot.lane.b32.xlu0 %v1197, 24
        %v1221 = vpop.permute.xlu0 %1220
        %v1224 = vsel %vm745, %v834, %v1203
        %v1225 = vsel %vm745, %v855, %v1205
        %vm1226 = vcmask 130048
        %v1227 = vsel %vm1226, %v1224, %v1211
        %v1228 = vsel %vm1226, %v1225, %v1213
        %vm1229 = vcmask 195584
        %v1230 = vsel %vm1229, %v1227, %v1219
        %v1231 = vsel %vm1229, %v1228, %v1221
        %v1232 = vld [vmem:[%s663] sm:$0xf]
        %v1233 = vld [vmem:[%s663 + $0x4] sm:$0xf]
        %v1234 = vld [vmem:[%s663 + $0x8] sm:$0xf]
        %v1235 = vld [vmem:[%s663 + $0xc] sm:$0xf]
        %v1236 = vpack.c.bf16 %v1231, %v1230
        %v1237 = vld [vmem:[%s666] sm:$0x1]
        %v1239 = vperm.slane %v1237, 0
        %v1245 = vunpack.c.l.b16 %v1232
        %v1246 = vunpack.c.l.b16 %v1233
        %v1247 = vunpack.c.l.b16 %v1234
        %v1248 = vunpack.c.l.b16 %v1235
        %v1249 = vpack.c.b16 %v1246, %v1245
        %v1250 = vpack.c.b16 %v1248, %v1247
        %v1254 = vsel %vm720, %v1236, 0
        %1256 = vmatpush.bf16.msra.mxu0 0
        %1257 = vmatpush.bf16.msra.mxu0 0
        %1258 = vmatpush.bf16.msra.mxu0 0
        %1259 = vmatpush.bf16.msra.mxu0 0
        %1260 = vmatpush.bf16.msra.mxu0 0
        %1261 = vmatpush.bf16.msra.mxu0 0
        %1262 = vmatpush.bf16.msra.mxu0 %v1250
        %1263 = vmatpush.bf16.msra.mxu0 %v1249
        %1264 = vmatmul.bf16.gmra.mxu0 %v1254
        %v1265 = vpop.f32.mrf.mxu0
        %v1266 = vadd.f32 %v1239, %v1265
        %v1267 = vpop.f32.mrf.mxu0
        %v1268 = vadd.f32 %v1239, %v1267
        %1269 = vdwg.mxu0
        %v1270 = vadd.f32 %v697, %v1266
        %v1271 = vadd.f32 %v698, %v1268
        %v1272 = vld [vmem:[%s669] sm:$0x1]
        %v1273 = vld [vmem:[%s672] sm:$0x1]
        %v1274 = vsel %vm720, %v1270, 0.0
        %1275 = vadd.xlane.f32.xlu0 %v1274
        %v1276 = vpop.xlane.xlu0 %1275
        %v1277 = vsel %vm720, %v1271, 0.0
        %1278 = vadd.xlane.f32.xlu0 %v1277
        %v1279 = vpop.xlane.xlu0 %1278
        %v1280 = vrcp.pop 32.0
        %v1281 = vmul.f32 32.0, %v1280
        %v1282 = vsub.f32 1.0, %v1281
        %v1283 = vmul.f32 %v1280, %v1282
        %v1284 = vadd.f32 %v1280, %v1283
        %vm1285 = vweird.f32 %v1280
        %v1286 = vsel %vm1285, %v1280, %v1284
        %v1287 = vmul.f32 %v1276, %v1286
        %v1288 = vmul.f32 %v1279, %v1286
        %v1289 = vsub.f32 %v1270, %v1287
        %v1290 = vsub.f32 %v1271, %v1288
        %v1291 = vmul.f32 %v1289, %v1289
        %v1292 = vmul.f32 %v1290, %v1290
        %v1293 = vsel %vm720, %v1291, 0.0
        %1294 = vadd.xlane.f32.xlu0 %v1293
        %v1295 = vpop.xlane.xlu0 %1294
        %v1296 = vsel %vm720, %v1292, 0.0
        %1297 = vadd.xlane.f32.xlu0 %v1296
        %v1298 = vpop.xlane.xlu0 %1297
        %v1299 = vmul.f32 %v1295, %v1286
        %v1300 = vmul.f32 %v1298, %v1286
        %v1301 = vadd.f32 %v1299, 1e-05
        %v1302 = vadd.f32 %v1300, 1e-05
        %v1303 = vrsqrt.pop %v1301
        %v1304 = vmul.f32 %v1303, %v1301
        %v1305 = vmul.f32 %v1304, %v1303
        %v1306 = vmul.f32 0.5, %v1305
        %v1307 = vsub.f32 1.5, %v1306
        %v1308 = vmul.f32 %v1303, %v1307
        %vm1309 = vweird.f32 %v1301
        %vm1310 = vweird.f32 %v1303
        %vm1311 = vmor %vm1309, %vm1310
        %v1312 = vsel %vm1311, %v1303, %v1308
        %v1313 = vrsqrt.pop %v1302
        %v1314 = vmul.f32 %v1313, %v1302
        %v1315 = vmul.f32 %v1314, %v1313
        %v1316 = vmul.f32 0.5, %v1315
        %v1317 = vsub.f32 1.5, %v1316
        %v1318 = vmul.f32 %v1313, %v1317
        %vm1319 = vweird.f32 %v1302
        %vm1320 = vweird.f32 %v1313
        %vm1321 = vmor %vm1319, %vm1320
        %v1322 = vsel %vm1321, %v1313, %v1318
        %v1323 = vmul.f32 %v1289, %v1312
        %v1324 = vmul.f32 %v1290, %v1322
        %v1326 = vperm.slane %v1272, 0
        %v1328 = vmul.f32 %v1323, %v1326
        %v1329 = vmul.f32 %v1324, %v1326
        %v1331 = vperm.slane %v1273, 0
        %v1333 = vadd.f32 %v1328, %v1331
        %v1334 = vadd.f32 %v1329, %v1331
        %v1335 = vld [vmem:[%s677] sm:$0xff]
        %v1336 = vld [vmem:[%s677 + $0x8] sm:$0xff]
        %v1337 = vld [vmem:[%s677 + $0x10] sm:$0xff]
        %v1338 = vld [vmem:[%s677 + $0x18] sm:$0xff]
        %v1339 = vld [vmem:[%s677 + $0x20] sm:$0xff]
        %v1340 = vld [vmem:[%s677 + $0x28] sm:$0xff]
        %v1341 = vld [vmem:[%s677 + $0x30] sm:$0xff]
        %v1342 = vld [vmem:[%s677 + $0x38] sm:$0xff]
        %v1343 = vld [vmem:[%s677 + $0x40] sm:$0xff]
        %v1344 = vld [vmem:[%s677 + $0x48] sm:$0xff]
        %v1345 = vld [vmem:[%s677 + $0x50] sm:$0xff]
        %v1346 = vld [vmem:[%s677 + $0x58] sm:$0xff]
        %v1347 = vld [vmem:[%s677 + $0x60] sm:$0xff]
        %v1348 = vld [vmem:[%s677 + $0x68] sm:$0xff]
        %v1349 = vld [vmem:[%s677 + $0x70] sm:$0xff]
        %v1350 = vld [vmem:[%s677 + $0x78] sm:$0xff]
        %v1351 = vld [vmem:[%s677 + $0x80] sm:$0xff]
        %v1352 = vld [vmem:[%s677 + $0x88] sm:$0xff]
        %v1353 = vld [vmem:[%s677 + $0x90] sm:$0xff]
        %v1354 = vld [vmem:[%s677 + $0x98] sm:$0xff]
        %v1355 = vld [vmem:[%s677 + $0xa0] sm:$0xff]
        %v1356 = vld [vmem:[%s677 + $0xa8] sm:$0xff]
        %v1357 = vld [vmem:[%s677 + $0xb0] sm:$0xff]
        %v1358 = vld [vmem:[%s677 + $0xb8] sm:$0xff]
        %v1359 = vld [vmem:[%s677 + $0xc0] sm:$0xff]
        %v1360 = vld [vmem:[%s677 + $0xc8] sm:$0xff]
        %v1361 = vld [vmem:[%s677 + $0xd0] sm:$0xff]
        %v1362 = vld [vmem:[%s677 + $0xd8] sm:$0xff]
        %v1363 = vld [vmem:[%s677 + $0xe0] sm:$0xff]
        %v1364 = vld [vmem:[%s677 + $0xe8] sm:$0xff]
        %v1365 = vld [vmem:[%s677 + $0xf0] sm:$0xff]
        %v1366 = vld [vmem:[%s677 + $0xf8] sm:$0xff]
        %v1367 = vpack.c.bf16 %v1334, %v1333
        %v1368 = vld [vmem:[%s681] sm:$0xff]
        %v1369 = vld [vmem:[%s681 + $0x8] sm:$0xff]
        %v1372 = vperm.slane %v1368, 0
        %v1373 = vperm.slane %v1368, 1
        %v1374 = vperm.slane %v1368, 2
        %v1375 = vperm.slane %v1368, 3
        %v1376 = vperm.slane %v1368, 4
        %v1377 = vperm.slane %v1368, 5
        %v1378 = vperm.slane %v1368, 6
        %v1379 = vperm.slane %v1368, 7
        %v1380 = vperm.slane %v1369, 0
        %v1381 = vperm.slane %v1369, 1
        %v1382 = vperm.slane %v1369, 2
        %v1383 = vperm.slane %v1369, 3
        %v1384 = vperm.slane %v1369, 4
        %v1385 = vperm.slane %v1369, 5
        %v1386 = vperm.slane %v1369, 6
        %v1387 = vperm.slane %v1369, 7
        %v1436 = vunpack.c.l.b16 %v1335
        %v1437 = vunpack.c.h.b16 %v1335
        %v1438 = vunpack.c.l.b16 %v1336
        %v1439 = vunpack.c.h.b16 %v1336
        %v1440 = vunpack.c.l.b16 %v1337
        %v1441 = vunpack.c.h.b16 %v1337
        %v1442 = vunpack.c.l.b16 %v1338
        %v1443 = vunpack.c.h.b16 %v1338
        %v1444 = vunpack.c.l.b16 %v1339
        %v1445 = vunpack.c.h.b16 %v1339
        %v1446 = vunpack.c.l.b16 %v1340
        %v1447 = vunpack.c.h.b16 %v1340
        %v1448 = vunpack.c.l.b16 %v1341
        %v1449 = vunpack.c.h.b16 %v1341
        %v1450 = vunpack.c.l.b16 %v1342
        %v1451 = vunpack.c.h.b16 %v1342
        %v1452 = vunpack.c.l.b16 %v1343
        %v1453 = vunpack.c.h.b16 %v1343
        %v1454 = vunpack.c.l.b16 %v1344
        %v1455 = vunpack.c.h.b16 %v1344
        %v1456 = vunpack.c.l.b16 %v1345
        %v1457 = vunpack.c.h.b16 %v1345
        %v1458 = vunpack.c.l.b16 %v1346
        %v1459 = vunpack.c.h.b16 %v1346
        %v1460 = vunpack.c.l.b16 %v1347
        %v1461 = vunpack.c.h.b16 %v1347
        %v1462 = vunpack.c.l.b16 %v1348
        %v1463 = vunpack.c.h.b16 %v1348
        %v1464 = vunpack.c.l.b16 %v1349
        %v1465 = vunpack.c.h.b16 %v1349
        %v1466 = vunpack.c.l.b16 %v1350
        %v1467 = vunpack.c.h.b16 %v1350
        %v1468 = vunpack.c.l.b16 %v1351
        %v1469 = vunpack.c.h.b16 %v1351
        %v1470 = vunpack.c.l.b16 %v1352
        %v1471 = vunpack.c.h.b16 %v1352
        %v1472 = vunpack.c.l.b16 %v1353
        %v1473 = vunpack.c.h.b16 %v1353
        %v1474 = vunpack.c.l.b16 %v1354
        %v1475 = vunpack.c.h.b16 %v1354
        %v1476 = vunpack.c.l.b16 %v1355
        %v1477 = vunpack.c.h.b16 %v1355
        %v1478 = vunpack.c.l.b16 %v1356
        %v1479 = vunpack.c.h.b16 %v1356
        %v1480 = vunpack.c.l.b16 %v1357
        %v1481 = vunpack.c.h.b16 %v1357
        %v1482 = vunpack.c.l.b16 %v1358
        %v1483 = vunpack.c.h.b16 %v1358
        %v1484 = vunpack.c.l.b16 %v1359
        %v1485 = vunpack.c.h.b16 %v1359
        %v1486 = vunpack.c.l.b16 %v1360
        %v1487 = vunpack.c.h.b16 %v1360
        %v1488 = vunpack.c.l.b16 %v1361
        %v1489 = vunpack.c.h.b16 %v1361
        %v1490 = vunpack.c.l.b16 %v1362
        %v1491 = vunpack.c.h.b16 %v1362
        %v1492 = vunpack.c.l.b16 %v1363
        %v1493 = vunpack.c.h.b16 %v1363
        %v1494 = vunpack.c.l.b16 %v1364
        %v1495 = vunpack.c.h.b16 %v1364
        %v1496 = vunpack.c.l.b16 %v1365
        %v1497 = vunpack.c.h.b16 %v1365
        %v1498 = vunpack.c.l.b16 %v1366
        %v1499 = vunpack.c.h.b16 %v1366
        %v1500 = vpack.c.b16 %v1452, %v1436
        %v1501 = vpack.c.b16 %v1453, %v1437
        %v1502 = vpack.c.b16 %v1454, %v1438
        %v1503 = vpack.c.b16 %v1455, %v1439
        %v1504 = vpack.c.b16 %v1456, %v1440
        %v1505 = vpack.c.b16 %v1457, %v1441
        %v1506 = vpack.c.b16 %v1458, %v1442
        %v1507 = vpack.c.b16 %v1459, %v1443
        %v1508 = vpack.c.b16 %v1460, %v1444
        %v1509 = vpack.c.b16 %v1461, %v1445
        %v1510 = vpack.c.b16 %v1462, %v1446
        %v1511 = vpack.c.b16 %v1463, %v1447
        %v1512 = vpack.c.b16 %v1464, %v1448
        %v1513 = vpack.c.b16 %v1465, %v1449
        %v1514 = vpack.c.b16 %v1466, %v1450
        %v1515 = vpack.c.b16 %v1467, %v1451
        %v1516 = vpack.c.b16 %v1484, %v1468
        %v1517 = vpack.c.b16 %v1485, %v1469
        %v1518 = vpack.c.b16 %v1486, %v1470
        %v1519 = vpack.c.b16 %v1487, %v1471
        %v1520 = vpack.c.b16 %v1488, %v1472
        %v1521 = vpack.c.b16 %v1489, %v1473
        %v1522 = vpack.c.b16 %v1490, %v1474
        %v1523 = vpack.c.b16 %v1491, %v1475
        %v1524 = vpack.c.b16 %v1492, %v1476
        %v1525 = vpack.c.b16 %v1493, %v1477
        %v1526 = vpack.c.b16 %v1494, %v1478
        %v1527 = vpack.c.b16 %v1495, %v1479
        %v1528 = vpack.c.b16 %v1496, %v1480
        %v1529 = vpack.c.b16 %v1497, %v1481
        %v1530 = vpack.c.b16 %v1498, %v1482
        %v1531 = vpack.c.b16 %v1499, %v1483
        %v1565 = vsel %vm720, %v1367, 0
        %1567 = vmatpush.bf16.msra.mxu0 0
        %1568 = vmatpush.bf16.msra.mxu0 0
        %1569 = vmatpush.bf16.msra.mxu0 0
        %1570 = vmatpush.bf16.msra.mxu0 0
        %1571 = vmatpush.bf16.msra.mxu0 0
        %1572 = vmatpush.bf16.msra.mxu0 0
        %1573 = vmatpush.bf16.msra.mxu0 %v1516
        %1574 = vmatpush.bf16.msra.mxu0 %v1500
        %1575 = vmatmul.bf16.gmra.mxu0 %v1565
        %v1576 = vpop.f32.mrf.mxu0
        %v1577 = vadd.f32 %v1372, %v1576
        %v1578 = vpop.f32.mrf.mxu0
        %v1579 = vadd.f32 %v1372, %v1578
        %1580 = vdwg.mxu0
        %1581 = vmatpush.bf16.msra.mxu0 0
        %1582 = vmatpush.bf16.msra.mxu0 0
        %1583 = vmatpush.bf16.msra.mxu0 0
        %1584 = vmatpush.bf16.msra.mxu0 0
        %1585 = vmatpush.bf16.msra.mxu0 0
        %1586 = vmatpush.bf16.msra.mxu0 0
        %1587 = vmatpush.bf16.msra.mxu0 %v1517
        %1588 = vmatpush.bf16.msra.mxu0 %v1501
        %1589 = vmatmul.bf16.gmra.mxu0 %v1565
        %v1590 = vpop.f32.mrf.mxu0
        %v1591 = vadd.f32 %v1373, %v1590
        %v1592 = vpop.f32.mrf.mxu0
        %v1593 = vadd.f32 %v1373, %v1592
        %1594 = vdwg.mxu0
        %1595 = vmatpush.bf16.msra.mxu0 0
        %1596 = vmatpush.bf16.msra.mxu0 0
        %1597 = vmatpush.bf16.msra.mxu0 0
        %1598 = vmatpush.bf16.msra.mxu0 0
        %1599 = vmatpush.bf16.msra.mxu0 0
        %1600 = vmatpush.bf16.msra.mxu0 0
        %1601 = vmatpush.bf16.msra.mxu0 %v1518
        %1602 = vmatpush.bf16.msra.mxu0 %v1502
        %1603 = vmatmul.bf16.gmra.mxu0 %v1565
        %v1604 = vpop.f32.mrf.mxu0
        %v1605 = vadd.f32 %v1374, %v1604
        %v1606 = vpop.f32.mrf.mxu0
        %v1607 = vadd.f32 %v1374, %v1606
        %1608 = vdwg.mxu0
        %1609 = vmatpush.bf16.msra.mxu0 0
        %1610 = vmatpush.bf16.msra.mxu0 0
        %1611 = vmatpush.bf16.msra.mxu0 0
        %1612 = vmatpush.bf16.msra.mxu0 0
        %1613 = vmatpush.bf16.msra.mxu0 0
        %1614 = vmatpush.bf16.msra.mxu0 0
        %1615 = vmatpush.bf16.msra.mxu0 %v1519
        %1616 = vmatpush.bf16.msra.mxu0 %v1503
        %1617 = vmatmul.bf16.gmra.mxu0 %v1565
        %v1618 = vpop.f32.mrf.mxu0
        %v1619 = vadd.f32 %v1375, %v1618
        %v1620 = vpop.f32.mrf.mxu0
        %v1621 = vadd.f32 %v1375, %v1620
        %1622 = vdwg.mxu0
        %1623 = vmatpush.bf16.msra.mxu0 0
        %1624 = vmatpush.bf16.msra.mxu0 0
        %1625 = vmatpush.bf16.msra.mxu0 0
        %1626 = vmatpush.bf16.msra.mxu0 0
        %1627 = vmatpush.bf16.msra.mxu0 0
        %1628 = vmatpush.bf16.msra.mxu0 0
        %1629 = vmatpush.bf16.msra.mxu0 %v1520
        %1630 = vmatpush.bf16.msra.mxu0 %v1504
        %1631 = vmatmul.bf16.gmra.mxu0 %v1565
        %v1632 = vpop.f32.mrf.mxu0
        %v1633 = vadd.f32 %v1376, %v1632
        %v1634 = vpop.f32.mrf.mxu0
        %v1635 = vadd.f32 %v1376, %v1634
        %1636 = vdwg.mxu0
        %1637 = vmatpush.bf16.msra.mxu0 0
        %1638 = vmatpush.bf16.msra.mxu0 0
        %1639 = vmatpush.bf16.msra.mxu0 0
        %1640 = vmatpush.bf16.msra.mxu0 0
        %1641 = vmatpush.bf16.msra.mxu0 0
        %1642 = vmatpush.bf16.msra.mxu0 0
        %1643 = vmatpush.bf16.msra.mxu0 %v1521
        %1644 = vmatpush.bf16.msra.mxu0 %v1505
        %1645 = vmatmul.bf16.gmra.mxu0 %v1565
        %v1646 = vpop.f32.mrf.mxu0
        %v1647 = vadd.f32 %v1377, %v1646
        %v1648 = vpop.f32.mrf.mxu0
        %v1649 = vadd.f32 %v1377, %v1648
        %1650 = vdwg.mxu0
        %1651 = vmatpush.bf16.msra.mxu0 0
        %1652 = vmatpush.bf16.msra.mxu0 0
        %1653 = vmatpush.bf16.msra.mxu0 0
        %1654 = vmatpush.bf16.msra.mxu0 0
        %1655 = vmatpush.bf16.msra.mxu0 0
        %1656 = vmatpush.bf16.msra.mxu0 0
        %1657 = vmatpush.bf16.msra.mxu0 %v1522
        %1658 = vmatpush.bf16.msra.mxu0 %v1506
        %1659 = vmatmul.bf16.gmra.mxu0 %v1565
        %v1660 = vpop.f32.mrf.mxu0
        %v1661 = vadd.f32 %v1378, %v1660
        %v1662 = vpop.f32.mrf.mxu0
        %v1663 = vadd.f32 %v1378, %v1662
        %1664 = vdwg.mxu0
        %1665 = vmatpush.bf16.msra.mxu0 0
        %1666 = vmatpush.bf16.msra.mxu0 0
        %1667 = vmatpush.bf16.msra.mxu0 0
        %1668 = vmatpush.bf16.msra.mxu0 0
        %1669 = vmatpush.bf16.msra.mxu0 0
        %1670 = vmatpush.bf16.msra.mxu0 0
        %1671 = vmatpush.bf16.msra.mxu0 %v1523
        %1672 = vmatpush.bf16.msra.mxu0 %v1507
        %1673 = vmatmul.bf16.gmra.mxu0 %v1565
        %v1674 = vpop.f32.mrf.mxu0
        %v1675 = vadd.f32 %v1379, %v1674
        %v1676 = vpop.f32.mrf.mxu0
        %v1677 = vadd.f32 %v1379, %v1676
        %1678 = vdwg.mxu0
        %1679 = vmatpush.bf16.msra.mxu0 0
        %1680 = vmatpush.bf16.msra.mxu0 0
        %1681 = vmatpush.bf16.msra.mxu0 0
        %1682 = vmatpush.bf16.msra.mxu0 0
        %1683 = vmatpush.bf16.msra.mxu0 0
        %1684 = vmatpush.bf16.msra.mxu0 0
        %1685 = vmatpush.bf16.msra.mxu0 %v1524
        %1686 = vmatpush.bf16.msra.mxu0 %v1508
        %1687 = vmatmul.bf16.gmra.mxu0 %v1565
        %v1688 = vpop.f32.mrf.mxu0
        %v1689 = vadd.f32 %v1380, %v1688
        %v1690 = vpop.f32.mrf.mxu0
        %v1691 = vadd.f32 %v1380, %v1690
        %1692 = vdwg.mxu0
        %1693 = vmatpush.bf16.msra.mxu0 0
        %1694 = vmatpush.bf16.msra.mxu0 0
        %1695 = vmatpush.bf16.msra.mxu0 0
        %1696 = vmatpush.bf16.msra.mxu0 0
        %1697 = vmatpush.bf16.msra.mxu0 0
        %1698 = vmatpush.bf16.msra.mxu0 0
        %1699 = vmatpush.bf16.msra.mxu0 %v1525
        %1700 = vmatpush.bf16.msra.mxu0 %v1509
        %1701 = vmatmul.bf16.gmra.mxu0 %v1565
        %v1702 = vpop.f32.mrf.mxu0
        %v1703 = vadd.f32 %v1381, %v1702
        %v1704 = vpop.f32.mrf.mxu0
        %v1705 = vadd.f32 %v1381, %v1704
        %1706 = vdwg.mxu0
        %1707 = vmatpush.bf16.msra.mxu0 0
        %1708 = vmatpush.bf16.msra.mxu0 0
        %1709 = vmatpush.bf16.msra.mxu0 0
        %1710 = vmatpush.bf16.msra.mxu0 0
        %1711 = vmatpush.bf16.msra.mxu0 0
        %1712 = vmatpush.bf16.msra.mxu0 0
        %1713 = vmatpush.bf16.msra.mxu0 %v1526
        %1714 = vmatpush.bf16.msra.mxu0 %v1510
        %1715 = vmatmul.bf16.gmra.mxu0 %v1565
        %v1716 = vpop.f32.mrf.mxu0
        %v1717 = vadd.f32 %v1382, %v1716
        %v1718 = vpop.f32.mrf.mxu0
        %v1719 = vadd.f32 %v1382, %v1718
        %1720 = vdwg.mxu0
        %1721 = vmatpush.bf16.msra.mxu0 0
        %1722 = vmatpush.bf16.msra.mxu0 0
        %1723 = vmatpush.bf16.msra.mxu0 0
        %1724 = vmatpush.bf16.msra.mxu0 0
        %1725 = vmatpush.bf16.msra.mxu0 0
        %1726 = vmatpush.bf16.msra.mxu0 0
        %1727 = vmatpush.bf16.msra.mxu0 %v1527
        %1728 = vmatpush.bf16.msra.mxu0 %v1511
        %1729 = vmatmul.bf16.gmra.mxu0 %v1565
        %v1730 = vpop.f32.mrf.mxu0
        %v1731 = vadd.f32 %v1383, %v1730
        %v1732 = vpop.f32.mrf.mxu0
        %v1733 = vadd.f32 %v1383, %v1732
        %1734 = vdwg.mxu0
        %1735 = vmatpush.bf16.msra.mxu0 0
        %1736 = vmatpush.bf16.msra.mxu0 0
        %1737 = vmatpush.bf16.msra.mxu0 0
        %1738 = vmatpush.bf16.msra.mxu0 0
        %1739 = vmatpush.bf16.msra.mxu0 0
        %1740 = vmatpush.bf16.msra.mxu0 0
        %1741 = vmatpush.bf16.msra.mxu0 %v1528
        %1742 = vmatpush.bf16.msra.mxu0 %v1512
        %1743 = vmatmul.bf16.gmra.mxu0 %v1565
        %v1744 = vpop.f32.mrf.mxu0
        %v1745 = vadd.f32 %v1384, %v1744
        %v1746 = vpop.f32.mrf.mxu0
        %v1747 = vadd.f32 %v1384, %v1746
        %1748 = vdwg.mxu0
        %1749 = vmatpush.bf16.msra.mxu0 0
        %1750 = vmatpush.bf16.msra.mxu0 0
        %1751 = vmatpush.bf16.msra.mxu0 0
        %1752 = vmatpush.bf16.msra.mxu0 0
        %1753 = vmatpush.bf16.msra.mxu0 0
        %1754 = vmatpush.bf16.msra.mxu0 0
        %1755 = vmatpush.bf16.msra.mxu0 %v1529
        %1756 = vmatpush.bf16.msra.mxu0 %v1513
        %1757 = vmatmul.bf16.gmra.mxu0 %v1565
        %v1758 = vpop.f32.mrf.mxu0
        %v1759 = vadd.f32 %v1385, %v1758
        %v1760 = vpop.f32.mrf.mxu0
        %v1761 = vadd.f32 %v1385, %v1760
        %1762 = vdwg.mxu0
        %1763 = vmatpush.bf16.msra.mxu0 0
        %1764 = vmatpush.bf16.msra.mxu0 0
        %1765 = vmatpush.bf16.msra.mxu0 0
        %1766 = vmatpush.bf16.msra.mxu0 0
        %1767 = vmatpush.bf16.msra.mxu0 0
        %1768 = vmatpush.bf16.msra.mxu0 0
        %1769 = vmatpush.bf16.msra.mxu0 %v1530
        %1770 = vmatpush.bf16.msra.mxu0 %v1514
        %1771 = vmatmul.bf16.gmra.mxu0 %v1565
        %v1772 = vpop.f32.mrf.mxu0
        %v1773 = vadd.f32 %v1386, %v1772
        %v1774 = vpop.f32.mrf.mxu0
        %v1775 = vadd.f32 %v1386, %v1774
        %1776 = vdwg.mxu0
        %1777 = vmatpush.bf16.msra.mxu0 0
        %1778 = vmatpush.bf16.msra.mxu0 0
        %1779 = vmatpush.bf16.msra.mxu0 0
        %1780 = vmatpush.bf16.msra.mxu0 0
        %1781 = vmatpush.bf16.msra.mxu0 0
        %1782 = vmatpush.bf16.msra.mxu0 0
        %1783 = vmatpush.bf16.msra.mxu0 %v1531
        %1784 = vmatpush.bf16.msra.mxu0 %v1515
        %1785 = vmatmul.bf16.gmra.mxu0 %v1565
        %v1786 = vpop.f32.mrf.mxu0
        %v1787 = vadd.f32 %v1387, %v1786
        %v1788 = vpop.f32.mrf.mxu0
        %v1789 = vadd.f32 %v1387, %v1788
        %1790 = vdwg.mxu0
        %v1791 = vmax.f32 %v1577, 0.0
        %v1792 = vmax.f32 %v1591, 0.0
        %v1793 = vmax.f32 %v1605, 0.0
        %v1794 = vmax.f32 %v1619, 0.0
        %v1795 = vmax.f32 %v1633, 0.0
        %v1796 = vmax.f32 %v1647, 0.0
        %v1797 = vmax.f32 %v1661, 0.0
        %v1798 = vmax.f32 %v1675, 0.0
        %v1799 = vmax.f32 %v1689, 0.0
        %v1800 = vmax.f32 %v1703, 0.0
        %v1801 = vmax.f32 %v1717, 0.0
        %v1802 = vmax.f32 %v1731, 0.0
        %v1803 = vmax.f32 %v1745, 0.0
        %v1804 = vmax.f32 %v1759, 0.0
        %v1805 = vmax.f32 %v1773, 0.0
        %v1806 = vmax.f32 %v1787, 0.0
        %v1807 = vmax.f32 %v1579, 0.0
        %v1808 = vmax.f32 %v1593, 0.0
        %v1809 = vmax.f32 %v1607, 0.0
        %v1810 = vmax.f32 %v1621, 0.0
        %v1811 = vmax.f32 %v1635, 0.0
        %v1812 = vmax.f32 %v1649, 0.0
        %v1813 = vmax.f32 %v1663, 0.0
        %v1814 = vmax.f32 %v1677, 0.0
        %v1815 = vmax.f32 %v1691, 0.0
        %v1816 = vmax.f32 %v1705, 0.0
        %v1817 = vmax.f32 %v1719, 0.0
        %v1818 = vmax.f32 %v1733, 0.0
        %v1819 = vmax.f32 %v1747, 0.0
        %v1820 = vmax.f32 %v1761, 0.0
        %v1821 = vmax.f32 %v1775, 0.0
        %v1822 = vmax.f32 %v1789, 0.0
        %v1823 = vld [vmem:[%s686] sm:$0xf]
        %v1824 = vld [vmem:[%s686 + $0x4] sm:$0xf]
        %v1825 = vld [vmem:[%s686 + $0x8] sm:$0xf]
        %v1826 = vld [vmem:[%s686 + $0xc] sm:$0xf]
        %v1827 = vld [vmem:[%s686 + $0x10] sm:$0xf]
        %v1828 = vld [vmem:[%s686 + $0x14] sm:$0xf]
        %v1829 = vld [vmem:[%s686 + $0x18] sm:$0xf]
        %v1830 = vld [vmem:[%s686 + $0x1c] sm:$0xf]
        %v1831 = vld [vmem:[%s686 + $0x20] sm:$0xf]
        %v1832 = vld [vmem:[%s686 + $0x24] sm:$0xf]
        %v1833 = vld [vmem:[%s686 + $0x28] sm:$0xf]
        %v1834 = vld [vmem:[%s686 + $0x2c] sm:$0xf]
        %v1835 = vld [vmem:[%s686 + $0x30] sm:$0xf]
        %v1836 = vld [vmem:[%s686 + $0x34] sm:$0xf]
        %v1837 = vld [vmem:[%s686 + $0x38] sm:$0xf]
        %v1838 = vld [vmem:[%s686 + $0x3c] sm:$0xf]
        %v1839 = vld [vmem:[%s686 + $0x40] sm:$0xf]
        %v1840 = vld [vmem:[%s686 + $0x44] sm:$0xf]
        %v1841 = vld [vmem:[%s686 + $0x48] sm:$0xf]
        %v1842 = vld [vmem:[%s686 + $0x4c] sm:$0xf]
        %v1843 = vld [vmem:[%s686 + $0x50] sm:$0xf]
        %v1844 = vld [vmem:[%s686 + $0x54] sm:$0xf]
        %v1845 = vld [vmem:[%s686 + $0x58] sm:$0xf]
        %v1846 = vld [vmem:[%s686 + $0x5c] sm:$0xf]
        %v1847 = vld [vmem:[%s686 + $0x60] sm:$0xf]
        %v1848 = vld [vmem:[%s686 + $0x64] sm:$0xf]
        %v1849 = vld [vmem:[%s686 + $0x68] sm:$0xf]
        %v1850 = vld [vmem:[%s686 + $0x6c] sm:$0xf]
        %v1851 = vld [vmem:[%s686 + $0x70] sm:$0xf]
        %v1852 = vld [vmem:[%s686 + $0x74] sm:$0xf]
        %v1853 = vld [vmem:[%s686 + $0x78] sm:$0xf]
        %v1854 = vld [vmem:[%s686 + $0x7c] sm:$0xf]
        %v1855 = vld [vmem:[%s686 + $0x80] sm:$0xf]
        %v1856 = vld [vmem:[%s686 + $0x84] sm:$0xf]
        %v1857 = vld [vmem:[%s686 + $0x88] sm:$0xf]
        %v1858 = vld [vmem:[%s686 + $0x8c] sm:$0xf]
        %v1859 = vld [vmem:[%s686 + $0x90] sm:$0xf]
        %v1860 = vld [vmem:[%s686 + $0x94] sm:$0xf]
        %v1861 = vld [vmem:[%s686 + $0x98] sm:$0xf]
        %v1862 = vld [vmem:[%s686 + $0x9c] sm:$0xf]
        %v1863 = vld [vmem:[%s686 + $0xa0] sm:$0xf]
        %v1864 = vld [vmem:[%s686 + $0xa4] sm:$0xf]
        %v1865 = vld [vmem:[%s686 + $0xa8] sm:$0xf]
        %v1866 = vld [vmem:[%s686 + $0xac] sm:$0xf]
        %v1867 = vld [vmem:[%s686 + $0xb0] sm:$0xf]
        %v1868 = vld [vmem:[%s686 + $0xb4] sm:$0xf]
        %v1869 = vld [vmem:[%s686 + $0xb8] sm:$0xf]
        %v1870 = vld [vmem:[%s686 + $0xbc] sm:$0xf]
        %v1871 = vld [vmem:[%s686 + $0xc0] sm:$0xf]
        %v1872 = vld [vmem:[%s686 + $0xc4] sm:$0xf]
        %v1873 = vld [vmem:[%s686 + $0xc8] sm:$0xf]
        %v1874 = vld [vmem:[%s686 + $0xcc] sm:$0xf]
        %v1875 = vld [vmem:[%s686 + $0xd0] sm:$0xf]
        %v1876 = vld [vmem:[%s686 + $0xd4] sm:$0xf]
        %v1877 = vld [vmem:[%s686 + $0xd8] sm:$0xf]
        %v1878 = vld [vmem:[%s686 + $0xdc] sm:$0xf]
        %v1879 = vld [vmem:[%s686 + $0xe0] sm:$0xf]
        %v1880 = vld [vmem:[%s686 + $0xe4] sm:$0xf]
        %v1881 = vld [vmem:[%s686 + $0xe8] sm:$0xf]
        %v1882 = vld [vmem:[%s686 + $0xec] sm:$0xf]
        %v1883 = vld [vmem:[%s686 + $0xf0] sm:$0xf]
        %v1884 = vld [vmem:[%s686 + $0xf4] sm:$0xf]
        %v1885 = vld [vmem:[%s686 + $0xf8] sm:$0xf]
        %v1886 = vld [vmem:[%s686 + $0xfc] sm:$0xf]
        %v1887 = vld [vmem:[%s686 + $0x100] sm:$0xf]
        %v1888 = vld [vmem:[%s686 + $0x104] sm:$0xf]
        %v1889 = vld [vmem:[%s686 + $0x108] sm:$0xf]
        %v1890 = vld [vmem:[%s686 + $0x10c] sm:$0xf]
        %v1891 = vld [vmem:[%s686 + $0x110] sm:$0xf]
        %v1892 = vld [vmem:[%s686 + $0x114] sm:$0xf]
        %v1893 = vld [vmem:[%s686 + $0x118] sm:$0xf]
        %v1894 = vld [vmem:[%s686 + $0x11c] sm:$0xf]
        %v1895 = vld [vmem:[%s686 + $0x120] sm:$0xf]
        %v1896 = vld [vmem:[%s686 + $0x124] sm:$0xf]
        %v1897 = vld [vmem:[%s686 + $0x128] sm:$0xf]
        %v1898 = vld [vmem:[%s686 + $0x12c] sm:$0xf]
        %v1899 = vld [vmem:[%s686 + $0x130] sm:$0xf]
        %v1900 = vld [vmem:[%s686 + $0x134] sm:$0xf]
        %v1901 = vld [vmem:[%s686 + $0x138] sm:$0xf]
        %v1902 = vld [vmem:[%s686 + $0x13c] sm:$0xf]
        %v1903 = vld [vmem:[%s686 + $0x140] sm:$0xf]
        %v1904 = vld [vmem:[%s686 + $0x144] sm:$0xf]
        %v1905 = vld [vmem:[%s686 + $0x148] sm:$0xf]
        %v1906 = vld [vmem:[%s686 + $0x14c] sm:$0xf]
        %v1907 = vld [vmem:[%s686 + $0x150] sm:$0xf]
        %v1908 = vld [vmem:[%s686 + $0x154] sm:$0xf]
        %v1909 = vld [vmem:[%s686 + $0x158] sm:$0xf]
        %v1910 = vld [vmem:[%s686 + $0x15c] sm:$0xf]
        %v1911 = vld [vmem:[%s686 + $0x160] sm:$0xf]
        %v1912 = vld [vmem:[%s686 + $0x164] sm:$0xf]
        %v1913 = vld [vmem:[%s686 + $0x168] sm:$0xf]
        %v1914 = vld [vmem:[%s686 + $0x16c] sm:$0xf]
        %v1915 = vld [vmem:[%s686 + $0x170] sm:$0xf]
        %v1916 = vld [vmem:[%s686 + $0x174] sm:$0xf]
        %v1917 = vld [vmem:[%s686 + $0x178] sm:$0xf]
        %v1918 = vld [vmem:[%s686 + $0x17c] sm:$0xf]
        %v1919 = vld [vmem:[%s686 + $0x180] sm:$0xf]
        %v1920 = vld [vmem:[%s686 + $0x184] sm:$0xf]
        %v1921 = vld [vmem:[%s686 + $0x188] sm:$0xf]
        %v1922 = vld [vmem:[%s686 + $0x18c] sm:$0xf]
        %v1923 = vld [vmem:[%s686 + $0x190] sm:$0xf]
        %v1924 = vld [vmem:[%s686 + $0x194] sm:$0xf]
        %v1925 = vld [vmem:[%s686 + $0x198] sm:$0xf]
        %v1926 = vld [vmem:[%s686 + $0x19c] sm:$0xf]
        %v1927 = vld [vmem:[%s686 + $0x1a0] sm:$0xf]
        %v1928 = vld [vmem:[%s686 + $0x1a4] sm:$0xf]
        %v1929 = vld [vmem:[%s686 + $0x1a8] sm:$0xf]
        %v1930 = vld [vmem:[%s686 + $0x1ac] sm:$0xf]
        %v1931 = vld [vmem:[%s686 + $0x1b0] sm:$0xf]
        %v1932 = vld [vmem:[%s686 + $0x1b4] sm:$0xf]
        %v1933 = vld [vmem:[%s686 + $0x1b8] sm:$0xf]
        %v1934 = vld [vmem:[%s686 + $0x1bc] sm:$0xf]
        %v1935 = vld [vmem:[%s686 + $0x1c0] sm:$0xf]
        %v1936 = vld [vmem:[%s686 + $0x1c4] sm:$0xf]
        %v1937 = vld [vmem:[%s686 + $0x1c8] sm:$0xf]
        %v1938 = vld [vmem:[%s686 + $0x1cc] sm:$0xf]
        %v1939 = vld [vmem:[%s686 + $0x1d0] sm:$0xf]
        %v1940 = vld [vmem:[%s686 + $0x1d4] sm:$0xf]
        %v1941 = vld [vmem:[%s686 + $0x1d8] sm:$0xf]
        %v1942 = vld [vmem:[%s686 + $0x1dc] sm:$0xf]
        %v1943 = vld [vmem:[%s686 + $0x1e0] sm:$0xf]
        %v1944 = vld [vmem:[%s686 + $0x1e4] sm:$0xf]
        %v1945 = vld [vmem:[%s686 + $0x1e8] sm:$0xf]
        %v1946 = vld [vmem:[%s686 + $0x1ec] sm:$0xf]
        %v1947 = vld [vmem:[%s686 + $0x1f0] sm:$0xf]
        %v1948 = vld [vmem:[%s686 + $0x1f4] sm:$0xf]
        %v1949 = vld [vmem:[%s686 + $0x1f8] sm:$0xf]
        %v1950 = vld [vmem:[%s686 + $0x1fc] sm:$0xf]
        %v1951 = vld [vmem:[%s686 + $0x200] sm:$0xf]
        %v1952 = vld [vmem:[%s686 + $0x204] sm:$0xf]
        %v1953 = vld [vmem:[%s686 + $0x208] sm:$0xf]
        %v1954 = vld [vmem:[%s686 + $0x20c] sm:$0xf]
        %v1955 = vld [vmem:[%s686 + $0x210] sm:$0xf]
        %v1956 = vld [vmem:[%s686 + $0x214] sm:$0xf]
        %v1957 = vld [vmem:[%s686 + $0x218] sm:$0xf]
        %v1958 = vld [vmem:[%s686 + $0x21c] sm:$0xf]
        %v1959 = vld [vmem:[%s686 + $0x220] sm:$0xf]
        %v1960 = vld [vmem:[%s686 + $0x224] sm:$0xf]
        %v1961 = vld [vmem:[%s686 + $0x228] sm:$0xf]
        %v1962 = vld [vmem:[%s686 + $0x22c] sm:$0xf]
        %v1963 = vld [vmem:[%s686 + $0x230] sm:$0xf]
        %v1964 = vld [vmem:[%s686 + $0x234] sm:$0xf]
        %v1965 = vld [vmem:[%s686 + $0x238] sm:$0xf]
        %v1966 = vld [vmem:[%s686 + $0x23c] sm:$0xf]
        %v1967 = vld [vmem:[%s686 + $0x240] sm:$0xf]
        %v1968 = vld [vmem:[%s686 + $0x244] sm:$0xf]
        %v1969 = vld [vmem:[%s686 + $0x248] sm:$0xf]
        %v1970 = vld [vmem:[%s686 + $0x24c] sm:$0xf]
        %v1971 = vld [vmem:[%s686 + $0x250] sm:$0xf]
        %v1972 = vld [vmem:[%s686 + $0x254] sm:$0xf]
        %v1973 = vld [vmem:[%s686 + $0x258] sm:$0xf]
        %v1974 = vld [vmem:[%s686 + $0x25c] sm:$0xf]
        %v1975 = vld [vmem:[%s686 + $0x260] sm:$0xf]
        %v1976 = vld [vmem:[%s686 + $0x264] sm:$0xf]
        %v1977 = vld [vmem:[%s686 + $0x268] sm:$0xf]
        %v1978 = vld [vmem:[%s686 + $0x26c] sm:$0xf]
        %v1979 = vld [vmem:[%s686 + $0x270] sm:$0xf]
        %v1980 = vld [vmem:[%s686 + $0x274] sm:$0xf]
        %v1981 = vld [vmem:[%s686 + $0x278] sm:$0xf]
        %v1982 = vld [vmem:[%s686 + $0x27c] sm:$0xf]
        %v1983 = vld [vmem:[%s686 + $0x280] sm:$0xf]
        %v1984 = vld [vmem:[%s686 + $0x284] sm:$0xf]
        %v1985 = vld [vmem:[%s686 + $0x288] sm:$0xf]
        %v1986 = vld [vmem:[%s686 + $0x28c] sm:$0xf]
        %v1987 = vld [vmem:[%s686 + $0x290] sm:$0xf]
        %v1988 = vld [vmem:[%s686 + $0x294] sm:$0xf]
        %v1989 = vld [vmem:[%s686 + $0x298] sm:$0xf]
        %v1990 = vld [vmem:[%s686 + $0x29c] sm:$0xf]
        %v1991 = vld [vmem:[%s686 + $0x2a0] sm:$0xf]
        %v1992 = vld [vmem:[%s686 + $0x2a4] sm:$0xf]
        %v1993 = vld [vmem:[%s686 + $0x2a8] sm:$0xf]
        %v1994 = vld [vmem:[%s686 + $0x2ac] sm:$0xf]
        %v1995 = vld [vmem:[%s686 + $0x2b0] sm:$0xf]
        %v1996 = vld [vmem:[%s686 + $0x2b4] sm:$0xf]
        %v1997 = vld [vmem:[%s686 + $0x2b8] sm:$0xf]
        %v1998 = vld [vmem:[%s686 + $0x2bc] sm:$0xf]
        %v1999 = vld [vmem:[%s686 + $0x2c0] sm:$0xf]
        %v2000 = vld [vmem:[%s686 + $0x2c4] sm:$0xf]
        %v2001 = vld [vmem:[%s686 + $0x2c8] sm:$0xf]
        %v2002 = vld [vmem:[%s686 + $0x2cc] sm:$0xf]
        %v2003 = vld [vmem:[%s686 + $0x2d0] sm:$0xf]
        %v2004 = vld [vmem:[%s686 + $0x2d4] sm:$0xf]
        %v2005 = vld [vmem:[%s686 + $0x2d8] sm:$0xf]
        %v2006 = vld [vmem:[%s686 + $0x2dc] sm:$0xf]
        %v2007 = vld [vmem:[%s686 + $0x2e0] sm:$0xf]
        %v2008 = vld [vmem:[%s686 + $0x2e4] sm:$0xf]
        %v2009 = vld [vmem:[%s686 + $0x2e8] sm:$0xf]
        %v2010 = vld [vmem:[%s686 + $0x2ec] sm:$0xf]
        %v2011 = vld [vmem:[%s686 + $0x2f0] sm:$0xf]
        %v2012 = vld [vmem:[%s686 + $0x2f4] sm:$0xf]
        %v2013 = vld [vmem:[%s686 + $0x2f8] sm:$0xf]
        %v2014 = vld [vmem:[%s686 + $0x2fc] sm:$0xf]
        %v2015 = vld [vmem:[%s686 + $0x300] sm:$0xf]
        %v2016 = vld [vmem:[%s686 + $0x304] sm:$0xf]
        %v2017 = vld [vmem:[%s686 + $0x308] sm:$0xf]
        %v2018 = vld [vmem:[%s686 + $0x30c] sm:$0xf]
        %v2019 = vld [vmem:[%s686 + $0x310] sm:$0xf]
        %v2020 = vld [vmem:[%s686 + $0x314] sm:$0xf]
        %v2021 = vld [vmem:[%s686 + $0x318] sm:$0xf]
        %v2022 = vld [vmem:[%s686 + $0x31c] sm:$0xf]
        %v2023 = vld [vmem:[%s686 + $0x320] sm:$0xf]
        %v2024 = vld [vmem:[%s686 + $0x324] sm:$0xf]
        %v2025 = vld [vmem:[%s686 + $0x328] sm:$0xf]
        %v2026 = vld [vmem:[%s686 + $0x32c] sm:$0xf]
        %v2027 = vld [vmem:[%s686 + $0x330] sm:$0xf]
        %v2028 = vld [vmem:[%s686 + $0x334] sm:$0xf]
        %v2029 = vld [vmem:[%s686 + $0x338] sm:$0xf]
        %v2030 = vld [vmem:[%s686 + $0x33c] sm:$0xf]
        %v2031 = vld [vmem:[%s686 + $0x340] sm:$0xf]
        %v2032 = vld [vmem:[%s686 + $0x344] sm:$0xf]
        %v2033 = vld [vmem:[%s686 + $0x348] sm:$0xf]
        %v2034 = vld [vmem:[%s686 + $0x34c] sm:$0xf]
        %v2035 = vld [vmem:[%s686 + $0x350] sm:$0xf]
        %v2036 = vld [vmem:[%s686 + $0x354] sm:$0xf]
        %v2037 = vld [vmem:[%s686 + $0x358] sm:$0xf]
        %v2038 = vld [vmem:[%s686 + $0x35c] sm:$0xf]
        %v2039 = vld [vmem:[%s686 + $0x360] sm:$0xf]
        %v2040 = vld [vmem:[%s686 + $0x364] sm:$0xf]
        %v2041 = vld [vmem:[%s686 + $0x368] sm:$0xf]
        %v2042 = vld [vmem:[%s686 + $0x36c] sm:$0xf]
        %v2043 = vld [vmem:[%s686 + $0x370] sm:$0xf]
        %v2044 = vld [vmem:[%s686 + $0x374] sm:$0xf]
        %v2045 = vld [vmem:[%s686 + $0x378] sm:$0xf]
        %v2046 = vld [vmem:[%s686 + $0x37c] sm:$0xf]
        %v2047 = vld [vmem:[%s686 + $0x380] sm:$0xf]
        %v2048 = vld [vmem:[%s686 + $0x384] sm:$0xf]
        %v2049 = vld [vmem:[%s686 + $0x388] sm:$0xf]
        %v2050 = vld [vmem:[%s686 + $0x38c] sm:$0xf]
        %v2051 = vld [vmem:[%s686 + $0x390] sm:$0xf]
        %v2052 = vld [vmem:[%s686 + $0x394] sm:$0xf]
        %v2053 = vld [vmem:[%s686 + $0x398] sm:$0xf]
        %v2054 = vld [vmem:[%s686 + $0x39c] sm:$0xf]
        %v2055 = vld [vmem:[%s686 + $0x3a0] sm:$0xf]
        %v2056 = vld [vmem:[%s686 + $0x3a4] sm:$0xf]
        %v2057 = vld [vmem:[%s686 + $0x3a8] sm:$0xf]
        %v2058 = vld [vmem:[%s686 + $0x3ac] sm:$0xf]
        %v2059 = vld [vmem:[%s686 + $0x3b0] sm:$0xf]
        %v2060 = vld [vmem:[%s686 + $0x3b4] sm:$0xf]
        %v2061 = vld [vmem:[%s686 + $0x3b8] sm:$0xf]
        %v2062 = vld [vmem:[%s686 + $0x3bc] sm:$0xf]
        %v2063 = vld [vmem:[%s686 + $0x3c0] sm:$0xf]
        %v2064 = vld [vmem:[%s686 + $0x3c4] sm:$0xf]
        %v2065 = vld [vmem:[%s686 + $0x3c8] sm:$0xf]
        %v2066 = vld [vmem:[%s686 + $0x3cc] sm:$0xf]
        %v2067 = vld [vmem:[%s686 + $0x3d0] sm:$0xf]
        %v2068 = vld [vmem:[%s686 + $0x3d4] sm:$0xf]
        %v2069 = vld [vmem:[%s686 + $0x3d8] sm:$0xf]
        %v2070 = vld [vmem:[%s686 + $0x3dc] sm:$0xf]
        %v2071 = vld [vmem:[%s686 + $0x3e0] sm:$0xf]
        %v2072 = vld [vmem:[%s686 + $0x3e4] sm:$0xf]
        %v2073 = vld [vmem:[%s686 + $0x3e8] sm:$0xf]
        %v2074 = vld [vmem:[%s686 + $0x3ec] sm:$0xf]
        %v2075 = vld [vmem:[%s686 + $0x3f0] sm:$0xf]
        %v2076 = vld [vmem:[%s686 + $0x3f4] sm:$0xf]
        %v2077 = vld [vmem:[%s686 + $0x3f8] sm:$0xf]
        %v2078 = vld [vmem:[%s686 + $0x3fc] sm:$0xf]
        %v2079 = vpack.c.bf16 %v1807, %v1791
        %v2080 = vpack.c.bf16 %v1808, %v1792
        %v2081 = vpack.c.bf16 %v1809, %v1793
        %v2082 = vpack.c.bf16 %v1810, %v1794
        %v2083 = vpack.c.bf16 %v1811, %v1795
        %v2084 = vpack.c.bf16 %v1812, %v1796
        %v2085 = vpack.c.bf16 %v1813, %v1797
        %v2086 = vpack.c.bf16 %v1814, %v1798
        %v2087 = vpack.c.bf16 %v1815, %v1799
        %v2088 = vpack.c.bf16 %v1816, %v1800
        %v2089 = vpack.c.bf16 %v1817, %v1801
        %v2090 = vpack.c.bf16 %v1818, %v1802
        %v2091 = vpack.c.bf16 %v1819, %v1803
        %v2092 = vpack.c.bf16 %v1820, %v1804
        %v2093 = vpack.c.bf16 %v1821, %v1805
        %v2094 = vpack.c.bf16 %v1822, %v1806
        %v2095 = vld [vmem:[%s689] sm:$0x1]
        %v2097 = vperm.slane %v2095, 0
        %v2355 = vunpack.c.l.b16 %v1823
        %v2356 = vunpack.c.l.b16 %v1824
        %v2357 = vunpack.c.l.b16 %v1825
        %v2358 = vunpack.c.l.b16 %v1826
        %v2359 = vunpack.c.l.b16 %v1827
        %v2360 = vunpack.c.l.b16 %v1828
        %v2361 = vunpack.c.l.b16 %v1829
        %v2362 = vunpack.c.l.b16 %v1830
        %v2363 = vunpack.c.l.b16 %v1831
        %v2364 = vunpack.c.l.b16 %v1832
        %v2365 = vunpack.c.l.b16 %v1833
        %v2366 = vunpack.c.l.b16 %v1834
        %v2367 = vunpack.c.l.b16 %v1835
        %v2368 = vunpack.c.l.b16 %v1836
        %v2369 = vunpack.c.l.b16 %v1837
        %v2370 = vunpack.c.l.b16 %v1838
        %v2371 = vunpack.c.l.b16 %v1839
        %v2372 = vunpack.c.l.b16 %v1840
        %v2373 = vunpack.c.l.b16 %v1841
        %v2374 = vunpack.c.l.b16 %v1842
        %v2375 = vunpack.c.l.b16 %v1843
        %v2376 = vunpack.c.l.b16 %v1844
        %v2377 = vunpack.c.l.b16 %v1845
        %v2378 = vunpack.c.l.b16 %v1846
        %v2379 = vunpack.c.l.b16 %v1847
        %v2380 = vunpack.c.l.b16 %v1848
        %v2381 = vunpack.c.l.b16 %v1849
        %v2382 = vunpack.c.l.b16 %v1850
        %v2383 = vunpack.c.l.b16 %v1851
        %v2384 = vunpack.c.l.b16 %v1852
        %v2385 = vunpack.c.l.b16 %v1853
        %v2386 = vunpack.c.l.b16 %v1854
        %v2387 = vunpack.c.l.b16 %v1855
        %v2388 = vunpack.c.l.b16 %v1856
        %v2389 = vunpack.c.l.b16 %v1857
        %v2390 = vunpack.c.l.b16 %v1858
        %v2391 = vunpack.c.l.b16 %v1859
        %v2392 = vunpack.c.l.b16 %v1860
        %v2393 = vunpack.c.l.b16 %v1861
        %v2394 = vunpack.c.l.b16 %v1862
        %v2395 = vunpack.c.l.b16 %v1863
        %v2396 = vunpack.c.l.b16 %v1864
        %v2397 = vunpack.c.l.b16 %v1865
        %v2398 = vunpack.c.l.b16 %v1866
        %v2399 = vunpack.c.l.b16 %v1867
        %v2400 = vunpack.c.l.b16 %v1868
        %v2401 = vunpack.c.l.b16 %v1869
        %v2402 = vunpack.c.l.b16 %v1870
        %v2403 = vunpack.c.l.b16 %v1871
        %v2404 = vunpack.c.l.b16 %v1872
        %v2405 = vunpack.c.l.b16 %v1873
        %v2406 = vunpack.c.l.b16 %v1874
        %v2407 = vunpack.c.l.b16 %v1875
        %v2408 = vunpack.c.l.b16 %v1876
        %v2409 = vunpack.c.l.b16 %v1877
        %v2410 = vunpack.c.l.b16 %v1878
        %v2411 = vunpack.c.l.b16 %v1879
        %v2412 = vunpack.c.l.b16 %v1880
        %v2413 = vunpack.c.l.b16 %v1881
        %v2414 = vunpack.c.l.b16 %v1882
        %v2415 = vunpack.c.l.b16 %v1883
        %v2416 = vunpack.c.l.b16 %v1884
        %v2417 = vunpack.c.l.b16 %v1885
        %v2418 = vunpack.c.l.b16 %v1886
        %v2419 = vunpack.c.l.b16 %v1887
        %v2420 = vunpack.c.l.b16 %v1888
        %v2421 = vunpack.c.l.b16 %v1889
        %v2422 = vunpack.c.l.b16 %v1890
        %v2423 = vunpack.c.l.b16 %v1891
        %v2424 = vunpack.c.l.b16 %v1892
        %v2425 = vunpack.c.l.b16 %v1893
        %v2426 = vunpack.c.l.b16 %v1894
        %v2427 = vunpack.c.l.b16 %v1895
        %v2428 = vunpack.c.l.b16 %v1896
        %v2429 = vunpack.c.l.b16 %v1897
        %v2430 = vunpack.c.l.b16 %v1898
        %v2431 = vunpack.c.l.b16 %v1899
        %v2432 = vunpack.c.l.b16 %v1900
        %v2433 = vunpack.c.l.b16 %v1901
        %v2434 = vunpack.c.l.b16 %v1902
        %v2435 = vunpack.c.l.b16 %v1903
        %v2436 = vunpack.c.l.b16 %v1904
        %v2437 = vunpack.c.l.b16 %v1905
        %v2438 = vunpack.c.l.b16 %v1906
        %v2439 = vunpack.c.l.b16 %v1907
        %v2440 = vunpack.c.l.b16 %v1908
        %v2441 = vunpack.c.l.b16 %v1909
        %v2442 = vunpack.c.l.b16 %v1910
        %v2443 = vunpack.c.l.b16 %v1911
        %v2444 = vunpack.c.l.b16 %v1912
        %v2445 = vunpack.c.l.b16 %v1913
        %v2446 = vunpack.c.l.b16 %v1914
        %v2447 = vunpack.c.l.b16 %v1915
        %v2448 = vunpack.c.l.b16 %v1916
        %v2449 = vunpack.c.l.b16 %v1917
        %v2450 = vunpack.c.l.b16 %v1918
        %v2451 = vunpack.c.l.b16 %v1919
        %v2452 = vunpack.c.l.b16 %v1920
        %v2453 = vunpack.c.l.b16 %v1921
        %v2454 = vunpack.c.l.b16 %v1922
        %v2455 = vunpack.c.l.b16 %v1923
        %v2456 = vunpack.c.l.b16 %v1924
        %v2457 = vunpack.c.l.b16 %v1925
        %v2458 = vunpack.c.l.b16 %v1926
        %v2459 = vunpack.c.l.b16 %v1927
        %v2460 = vunpack.c.l.b16 %v1928
        %v2461 = vunpack.c.l.b16 %v1929
        %v2462 = vunpack.c.l.b16 %v1930
        %v2463 = vunpack.c.l.b16 %v1931
        %v2464 = vunpack.c.l.b16 %v1932
        %v2465 = vunpack.c.l.b16 %v1933
        %v2466 = vunpack.c.l.b16 %v1934
        %v2467 = vunpack.c.l.b16 %v1935
        %v2468 = vunpack.c.l.b16 %v1936
        %v2469 = vunpack.c.l.b16 %v1937
        %v2470 = vunpack.c.l.b16 %v1938
        %v2471 = vunpack.c.l.b16 %v1939
        %v2472 = vunpack.c.l.b16 %v1940
        %v2473 = vunpack.c.l.b16 %v1941
        %v2474 = vunpack.c.l.b16 %v1942
        %v2475 = vunpack.c.l.b16 %v1943
        %v2476 = vunpack.c.l.b16 %v1944
        %v2477 = vunpack.c.l.b16 %v1945
        %v2478 = vunpack.c.l.b16 %v1946
        %v2479 = vunpack.c.l.b16 %v1947
        %v2480 = vunpack.c.l.b16 %v1948
        %v2481 = vunpack.c.l.b16 %v1949
        %v2482 = vunpack.c.l.b16 %v1950
        %v2483 = vunpack.c.l.b16 %v1951
        %v2484 = vunpack.c.l.b16 %v1952
        %v2485 = vunpack.c.l.b16 %v1953
        %v2486 = vunpack.c.l.b16 %v1954
        %v2487 = vunpack.c.l.b16 %v1955
        %v2488 = vunpack.c.l.b16 %v1956
        %v2489 = vunpack.c.l.b16 %v1957
        %v2490 = vunpack.c.l.b16 %v1958
        %v2491 = vunpack.c.l.b16 %v1959
        %v2492 = vunpack.c.l.b16 %v1960
        %v2493 = vunpack.c.l.b16 %v1961
        %v2494 = vunpack.c.l.b16 %v1962
        %v2495 = vunpack.c.l.b16 %v1963
        %v2496 = vunpack.c.l.b16 %v1964
        %v2497 = vunpack.c.l.b16 %v1965
        %v2498 = vunpack.c.l.b16 %v1966
        %v2499 = vunpack.c.l.b16 %v1967
        %v2500 = vunpack.c.l.b16 %v1968
        %v2501 = vunpack.c.l.b16 %v1969
        %v2502 = vunpack.c.l.b16 %v1970
        %v2503 = vunpack.c.l.b16 %v1971
        %v2504 = vunpack.c.l.b16 %v1972
        %v2505 = vunpack.c.l.b16 %v1973
        %v2506 = vunpack.c.l.b16 %v1974
        %v2507 = vunpack.c.l.b16 %v1975
        %v2508 = vunpack.c.l.b16 %v1976
        %v2509 = vunpack.c.l.b16 %v1977
        %v2510 = vunpack.c.l.b16 %v1978
        %v2511 = vunpack.c.l.b16 %v1979
        %v2512 = vunpack.c.l.b16 %v1980
        %v2513 = vunpack.c.l.b16 %v1981
        %v2514 = vunpack.c.l.b16 %v1982
        %v2515 = vunpack.c.l.b16 %v1983
        %v2516 = vunpack.c.l.b16 %v1984
        %v2517 = vunpack.c.l.b16 %v1985
        %v2518 = vunpack.c.l.b16 %v1986
        %v2519 = vunpack.c.l.b16 %v1987
        %v2520 = vunpack.c.l.b16 %v1988
        %v2521 = vunpack.c.l.b16 %v1989
        %v2522 = vunpack.c.l.b16 %v1990
        %v2523 = vunpack.c.l.b16 %v1991
        %v2524 = vunpack.c.l.b16 %v1992
        %v2525 = vunpack.c.l.b16 %v1993
        %v2526 = vunpack.c.l.b16 %v1994
        %v2527 = vunpack.c.l.b16 %v1995
        %v2528 = vunpack.c.l.b16 %v1996
        %v2529 = vunpack.c.l.b16 %v1997
        %v2530 = vunpack.c.l.b16 %v1998
        %v2531 = vunpack.c.l.b16 %v1999
        %v2532 = vunpack.c.l.b16 %v2000
        %v2533 = vunpack.c.l.b16 %v2001
        %v2534 = vunpack.c.l.b16 %v2002
        %v2535 = vunpack.c.l.b16 %v2003
        %v2536 = vunpack.c.l.b16 %v2004
        %v2537 = vunpack.c.l.b16 %v2005
        %v2538 = vunpack.c.l.b16 %v2006
        %v2539 = vunpack.c.l.b16 %v2007
        %v2540 = vunpack.c.l.b16 %v2008
        %v2541 = vunpack.c.l.b16 %v2009
        %v2542 = vunpack.c.l.b16 %v2010
        %v2543 = vunpack.c.l.b16 %v2011
        %v2544 = vunpack.c.l.b16 %v2012
        %v2545 = vunpack.c.l.b16 %v2013
        %v2546 = vunpack.c.l.b16 %v2014
        %v2547 = vunpack.c.l.b16 %v2015
        %v2548 = vunpack.c.l.b16 %v2016
        %v2549 = vunpack.c.l.b16 %v2017
        %v2550 = vunpack.c.l.b16 %v2018
        %v2551 = vunpack.c.l.b16 %v2019
        %v2552 = vunpack.c.l.b16 %v2020
        %v2553 = vunpack.c.l.b16 %v2021
        %v2554 = vunpack.c.l.b16 %v2022
        %v2555 = vunpack.c.l.b16 %v2023
        %v2556 = vunpack.c.l.b16 %v2024
        %v2557 = vunpack.c.l.b16 %v2025
        %v2558 = vunpack.c.l.b16 %v2026
        %v2559 = vunpack.c.l.b16 %v2027
        %v2560 = vunpack.c.l.b16 %v2028
        %v2561 = vunpack.c.l.b16 %v2029
        %v2562 = vunpack.c.l.b16 %v2030
        %v2563 = vunpack.c.l.b16 %v2031
        %v2564 = vunpack.c.l.b16 %v2032
        %v2565 = vunpack.c.l.b16 %v2033
        %v2566 = vunpack.c.l.b16 %v2034
        %v2567 = vunpack.c.l.b16 %v2035
        %v2568 = vunpack.c.l.b16 %v2036
        %v2569 = vunpack.c.l.b16 %v2037
        %v2570 = vunpack.c.l.b16 %v2038
        %v2571 = vunpack.c.l.b16 %v2039
        %v2572 = vunpack.c.l.b16 %v2040
        %v2573 = vunpack.c.l.b16 %v2041
        %v2574 = vunpack.c.l.b16 %v2042
        %v2575 = vunpack.c.l.b16 %v2043
        %v2576 = vunpack.c.l.b16 %v2044
        %v2577 = vunpack.c.l.b16 %v2045
        %v2578 = vunpack.c.l.b16 %v2046
        %v2579 = vunpack.c.l.b16 %v2047
        %v2580 = vunpack.c.l.b16 %v2048
        %v2581 = vunpack.c.l.b16 %v2049
        %v2582 = vunpack.c.l.b16 %v2050
        %v2583 = vunpack.c.l.b16 %v2051
        %v2584 = vunpack.c.l.b16 %v2052
        %v2585 = vunpack.c.l.b16 %v2053
        %v2586 = vunpack.c.l.b16 %v2054
        %v2587 = vunpack.c.l.b16 %v2055
        %v2588 = vunpack.c.l.b16 %v2056
        %v2589 = vunpack.c.l.b16 %v2057
        %v2590 = vunpack.c.l.b16 %v2058
        %v2591 = vunpack.c.l.b16 %v2059
        %v2592 = vunpack.c.l.b16 %v2060
        %v2593 = vunpack.c.l.b16 %v2061
        %v2594 = vunpack.c.l.b16 %v2062
        %v2595 = vunpack.c.l.b16 %v2063
        %v2596 = vunpack.c.l.b16 %v2064
        %v2597 = vunpack.c.l.b16 %v2065
        %v2598 = vunpack.c.l.b16 %v2066
        %v2599 = vunpack.c.l.b16 %v2067
        %v2600 = vunpack.c.l.b16 %v2068
        %v2601 = vunpack.c.l.b16 %v2069
        %v2602 = vunpack.c.l.b16 %v2070
        %v2603 = vunpack.c.l.b16 %v2071
        %v2604 = vunpack.c.l.b16 %v2072
        %v2605 = vunpack.c.l.b16 %v2073
        %v2606 = vunpack.c.l.b16 %v2074
        %v2607 = vunpack.c.l.b16 %v2075
        %v2608 = vunpack.c.l.b16 %v2076
        %v2609 = vunpack.c.l.b16 %v2077
        %v2610 = vunpack.c.l.b16 %v2078
        %v2611 = vpack.c.b16 %v2356, %v2355
        %v2612 = vpack.c.b16 %v2358, %v2357
        %v2613 = vpack.c.b16 %v2360, %v2359
        %v2614 = vpack.c.b16 %v2362, %v2361
        %v2615 = vpack.c.b16 %v2364, %v2363
        %v2616 = vpack.c.b16 %v2366, %v2365
        %v2617 = vpack.c.b16 %v2368, %v2367
        %v2618 = vpack.c.b16 %v2370, %v2369
        %v2619 = vpack.c.b16 %v2372, %v2371
        %v2620 = vpack.c.b16 %v2374, %v2373
        %v2621 = vpack.c.b16 %v2376, %v2375
        %v2622 = vpack.c.b16 %v2378, %v2377
        %v2623 = vpack.c.b16 %v2380, %v2379
        %v2624 = vpack.c.b16 %v2382, %v2381
        %v2625 = vpack.c.b16 %v2384, %v2383
        %v2626 = vpack.c.b16 %v2386, %v2385
        %v2627 = vpack.c.b16 %v2388, %v2387
        %v2628 = vpack.c.b16 %v2390, %v2389
        %v2629 = vpack.c.b16 %v2392, %v2391
        %v2630 = vpack.c.b16 %v2394, %v2393
        %v2631 = vpack.c.b16 %v2396, %v2395
        %v2632 = vpack.c.b16 %v2398, %v2397
        %v2633 = vpack.c.b16 %v2400, %v2399
        %v2634 = vpack.c.b16 %v2402, %v2401
        %v2635 = vpack.c.b16 %v2404, %v2403
        %v2636 = vpack.c.b16 %v2406, %v2405
        %v2637 = vpack.c.b16 %v2408, %v2407
        %v2638 = vpack.c.b16 %v2410, %v2409
        %v2639 = vpack.c.b16 %v2412, %v2411
        %v2640 = vpack.c.b16 %v2414, %v2413
        %v2641 = vpack.c.b16 %v2416, %v2415
        %v2642 = vpack.c.b16 %v2418, %v2417
        %v2643 = vpack.c.b16 %v2420, %v2419
        %v2644 = vpack.c.b16 %v2422, %v2421
        %v2645 = vpack.c.b16 %v2424, %v2423
        %v2646 = vpack.c.b16 %v2426, %v2425
        %v2647 = vpack.c.b16 %v2428, %v2427
        %v2648 = vpack.c.b16 %v2430, %v2429
        %v2649 = vpack.c.b16 %v2432, %v2431
        %v2650 = vpack.c.b16 %v2434, %v2433
        %v2651 = vpack.c.b16 %v2436, %v2435
        %v2652 = vpack.c.b16 %v2438, %v2437
        %v2653 = vpack.c.b16 %v2440, %v2439
        %v2654 = vpack.c.b16 %v2442, %v2441
        %v2655 = vpack.c.b16 %v2444, %v2443
        %v2656 = vpack.c.b16 %v2446, %v2445
        %v2657 = vpack.c.b16 %v2448, %v2447
        %v2658 = vpack.c.b16 %v2450, %v2449
        %v2659 = vpack.c.b16 %v2452, %v2451
        %v2660 = vpack.c.b16 %v2454, %v2453
        %v2661 = vpack.c.b16 %v2456, %v2455
        %v2662 = vpack.c.b16 %v2458, %v2457
        %v2663 = vpack.c.b16 %v2460, %v2459
        %v2664 = vpack.c.b16 %v2462, %v2461
        %v2665 = vpack.c.b16 %v2464, %v2463
        %v2666 = vpack.c.b16 %v2466, %v2465
        %v2667 = vpack.c.b16 %v2468, %v2467
        %v2668 = vpack.c.b16 %v2470, %v2469
        %v2669 = vpack.c.b16 %v2472, %v2471
        %v2670 = vpack.c.b16 %v2474, %v2473
        %v2671 = vpack.c.b16 %v2476, %v2475
        %v2672 = vpack.c.b16 %v2478, %v2477
        %v2673 = vpack.c.b16 %v2480, %v2479
        %v2674 = vpack.c.b16 %v2482, %v2481
        %v2675 = vpack.c.b16 %v2484, %v2483
        %v2676 = vpack.c.b16 %v2486, %v2485
        %v2677 = vpack.c.b16 %v2488, %v2487
        %v2678 = vpack.c.b16 %v2490, %v2489
        %v2679 = vpack.c.b16 %v2492, %v2491
        %v2680 = vpack.c.b16 %v2494, %v2493
        %v2681 = vpack.c.b16 %v2496, %v2495
        %v2682 = vpack.c.b16 %v2498, %v2497
        %v2683 = vpack.c.b16 %v2500, %v2499
        %v2684 = vpack.c.b16 %v2502, %v2501
        %v2685 = vpack.c.b16 %v2504, %v2503
        %v2686 = vpack.c.b16 %v2506, %v2505
        %v2687 = vpack.c.b16 %v2508, %v2507
        %v2688 = vpack.c.b16 %v2510, %v2509
        %v2689 = vpack.c.b16 %v2512, %v2511
        %v2690 = vpack.c.b16 %v2514, %v2513
        %v2691 = vpack.c.b16 %v2516, %v2515
        %v2692 = vpack.c.b16 %v2518, %v2517
        %v2693 = vpack.c.b16 %v2520, %v2519
        %v2694 = vpack.c.b16 %v2522, %v2521
        %v2695 = vpack.c.b16 %v2524, %v2523
        %v2696 = vpack.c.b16 %v2526, %v2525
        %v2697 = vpack.c.b16 %v2528, %v2527
        %v2698 = vpack.c.b16 %v2530, %v2529
        %v2699 = vpack.c.b16 %v2532, %v2531
        %v2700 = vpack.c.b16 %v2534, %v2533
        %v2701 = vpack.c.b16 %v2536, %v2535
        %v2702 = vpack.c.b16 %v2538, %v2537
        %v2703 = vpack.c.b16 %v2540, %v2539
        %v2704 = vpack.c.b16 %v2542, %v2541
        %v2705 = vpack.c.b16 %v2544, %v2543
        %v2706 = vpack.c.b16 %v2546, %v2545
        %v2707 = vpack.c.b16 %v2548, %v2547
        %v2708 = vpack.c.b16 %v2550, %v2549
        %v2709 = vpack.c.b16 %v2552, %v2551
        %v2710 = vpack.c.b16 %v2554, %v2553
        %v2711 = vpack.c.b16 %v2556, %v2555
        %v2712 = vpack.c.b16 %v2558, %v2557
        %v2713 = vpack.c.b16 %v2560, %v2559
        %v2714 = vpack.c.b16 %v2562, %v2561
        %v2715 = vpack.c.b16 %v2564, %v2563
        %v2716 = vpack.c.b16 %v2566, %v2565
        %v2717 = vpack.c.b16 %v2568, %v2567
        %v2718 = vpack.c.b16 %v2570, %v2569
        %v2719 = vpack.c.b16 %v2572, %v2571
        %v2720 = vpack.c.b16 %v2574, %v2573
        %v2721 = vpack.c.b16 %v2576, %v2575
        %v2722 = vpack.c.b16 %v2578, %v2577
        %v2723 = vpack.c.b16 %v2580, %v2579
        %v2724 = vpack.c.b16 %v2582, %v2581
        %v2725 = vpack.c.b16 %v2584, %v2583
        %v2726 = vpack.c.b16 %v2586, %v2585
        %v2727 = vpack.c.b16 %v2588, %v2587
        %v2728 = vpack.c.b16 %v2590, %v2589
        %v2729 = vpack.c.b16 %v2592, %v2591
        %v2730 = vpack.c.b16 %v2594, %v2593
        %v2731 = vpack.c.b16 %v2596, %v2595
        %v2732 = vpack.c.b16 %v2598, %v2597
        %v2733 = vpack.c.b16 %v2600, %v2599
        %v2734 = vpack.c.b16 %v2602, %v2601
        %v2735 = vpack.c.b16 %v2604, %v2603
        %v2736 = vpack.c.b16 %v2606, %v2605
        %v2737 = vpack.c.b16 %v2608, %v2607
        %v2738 = vpack.c.b16 %v2610, %v2609
        %2867 = vmatpush.bf16.msra.mxu0 %v2618
        %2868 = vmatpush.bf16.msra.mxu0 %v2617
        %2869 = vmatpush.bf16.msra.mxu0 %v2616
        %2870 = vmatpush.bf16.msra.mxu0 %v2615
        %2871 = vmatpush.bf16.msra.mxu0 %v2614
        %2872 = vmatpush.bf16.msra.mxu0 %v2613
        %2873 = vmatpush.bf16.msra.mxu0 %v2612
        %2874 = vmatpush.bf16.msra.mxu0 %v2611
        %2875 = vmatmul.bf16.gmra.mxu0 %v2079
        %v2876 = vpop.f32.mrf.mxu0
        %v2877 = vadd.f32 %v2097, %v2876
        %v2878 = vpop.f32.mrf.mxu0
        %v2879 = vadd.f32 %v2097, %v2878
        %2880 = vdwg.mxu0
        %2881 = vmatpush.bf16.msra.mxu0 %v2626
        %2882 = vmatpush.bf16.msra.mxu0 %v2625
        %2883 = vmatpush.bf16.msra.mxu0 %v2624
        %2884 = vmatpush.bf16.msra.mxu0 %v2623
        %2885 = vmatpush.bf16.msra.mxu0 %v2622
        %2886 = vmatpush.bf16.msra.mxu0 %v2621
        %2887 = vmatpush.bf16.msra.mxu0 %v2620
        %2888 = vmatpush.bf16.msra.mxu0 %v2619
        %2889 = vmatmul.bf16.gmra.mxu0 %v2080
        %v2890 = vpop.f32.mrf.mxu0
        %v2891 = vadd.f32 %v2877, %v2890
        %v2892 = vpop.f32.mrf.mxu0
        %v2893 = vadd.f32 %v2879, %v2892
        %2894 = vdwg.mxu0
        %2895 = vmatpush.bf16.msra.mxu0 %v2634
        %2896 = vmatpush.bf16.msra.mxu0 %v2633
        %2897 = vmatpush.bf16.msra.mxu0 %v2632
        %2898 = vmatpush.bf16.msra.mxu0 %v2631
        %2899 = vmatpush.bf16.msra.mxu0 %v2630
        %2900 = vmatpush.bf16.msra.mxu0 %v2629
        %2901 = vmatpush.bf16.msra.mxu0 %v2628
        %2902 = vmatpush.bf16.msra.mxu0 %v2627
        %2903 = vmatmul.bf16.gmra.mxu0 %v2081
        %v2904 = vpop.f32.mrf.mxu0
        %v2905 = vadd.f32 %v2891, %v2904
        %v2906 = vpop.f32.mrf.mxu0
        %v2907 = vadd.f32 %v2893, %v2906
        %2908 = vdwg.mxu0
        %2909 = vmatpush.bf16.msra.mxu0 %v2642
        %2910 = vmatpush.bf16.msra.mxu0 %v2641
        %2911 = vmatpush.bf16.msra.mxu0 %v2640
        %2912 = vmatpush.bf16.msra.mxu0 %v2639
        %2913 = vmatpush.bf16.msra.mxu0 %v2638
        %2914 = vmatpush.bf16.msra.mxu0 %v2637
        %2915 = vmatpush.bf16.msra.mxu0 %v2636
        %2916 = vmatpush.bf16.msra.mxu0 %v2635
        %2917 = vmatmul.bf16.gmra.mxu0 %v2082
        %v2918 = vpop.f32.mrf.mxu0
        %v2919 = vadd.f32 %v2905, %v2918
        %v2920 = vpop.f32.mrf.mxu0
        %v2921 = vadd.f32 %v2907, %v2920
        %2922 = vdwg.mxu0
        %2923 = vmatpush.bf16.msra.mxu0 %v2650
        %2924 = vmatpush.bf16.msra.mxu0 %v2649
        %2925 = vmatpush.bf16.msra.mxu0 %v2648
        %2926 = vmatpush.bf16.msra.mxu0 %v2647
        %2927 = vmatpush.bf16.msra.mxu0 %v2646
        %2928 = vmatpush.bf16.msra.mxu0 %v2645
        %2929 = vmatpush.bf16.msra.mxu0 %v2644
        %2930 = vmatpush.bf16.msra.mxu0 %v2643
        %2931 = vmatmul.bf16.gmra.mxu0 %v2083
        %v2932 = vpop.f32.mrf.mxu0
        %v2933 = vadd.f32 %v2919, %v2932
        %v2934 = vpop.f32.mrf.mxu0
        %v2935 = vadd.f32 %v2921, %v2934
        %2936 = vdwg.mxu0
        %2937 = vmatpush.bf16.msra.mxu0 %v2658
        %2938 = vmatpush.bf16.msra.mxu0 %v2657
        %2939 = vmatpush.bf16.msra.mxu0 %v2656
        %2940 = vmatpush.bf16.msra.mxu0 %v2655
        %2941 = vmatpush.bf16.msra.mxu0 %v2654
        %2942 = vmatpush.bf16.msra.mxu0 %v2653
        %2943 = vmatpush.bf16.msra.mxu0 %v2652
        %2944 = vmatpush.bf16.msra.mxu0 %v2651
        %2945 = vmatmul.bf16.gmra.mxu0 %v2084
        %v2946 = vpop.f32.mrf.mxu0
        %v2947 = vadd.f32 %v2933, %v2946
        %v2948 = vpop.f32.mrf.mxu0
        %v2949 = vadd.f32 %v2935, %v2948
        %2950 = vdwg.mxu0
        %2951 = vmatpush.bf16.msra.mxu0 %v2666
        %2952 = vmatpush.bf16.msra.mxu0 %v2665
        %2953 = vmatpush.bf16.msra.mxu0 %v2664
        %2954 = vmatpush.bf16.msra.mxu0 %v2663
        %2955 = vmatpush.bf16.msra.mxu0 %v2662
        %2956 = vmatpush.bf16.msra.mxu0 %v2661
        %2957 = vmatpush.bf16.msra.mxu0 %v2660
        %2958 = vmatpush.bf16.msra.mxu0 %v2659
        %2959 = vmatmul.bf16.gmra.mxu0 %v2085
        %v2960 = vpop.f32.mrf.mxu0
        %v2961 = vadd.f32 %v2947, %v2960
        %v2962 = vpop.f32.mrf.mxu0
        %v2963 = vadd.f32 %v2949, %v2962
        %2964 = vdwg.mxu0
        %2965 = vmatpush.bf16.msra.mxu0 %v2674
        %2966 = vmatpush.bf16.msra.mxu0 %v2673
        %2967 = vmatpush.bf16.msra.mxu0 %v2672
        %2968 = vmatpush.bf16.msra.mxu0 %v2671
        %2969 = vmatpush.bf16.msra.mxu0 %v2670
        %2970 = vmatpush.bf16.msra.mxu0 %v2669
        %2971 = vmatpush.bf16.msra.mxu0 %v2668
        %2972 = vmatpush.bf16.msra.mxu0 %v2667
        %2973 = vmatmul.bf16.gmra.mxu0 %v2086
        %v2974 = vpop.f32.mrf.mxu0
        %v2975 = vadd.f32 %v2961, %v2974
        %v2976 = vpop.f32.mrf.mxu0
        %v2977 = vadd.f32 %v2963, %v2976
        %2978 = vdwg.mxu0
        %2979 = vmatpush.bf16.msra.mxu0 %v2682
        %2980 = vmatpush.bf16.msra.mxu0 %v2681
        %2981 = vmatpush.bf16.msra.mxu0 %v2680
        %2982 = vmatpush.bf16.msra.mxu0 %v2679
        %2983 = vmatpush.bf16.msra.mxu0 %v2678
        %2984 = vmatpush.bf16.msra.mxu0 %v2677
        %2985 = vmatpush.bf16.msra.mxu0 %v2676
        %2986 = vmatpush.bf16.msra.mxu0 %v2675
        %2987 = vmatmul.bf16.gmra.mxu0 %v2087
        %v2988 = vpop.f32.mrf.mxu0
        %v2989 = vadd.f32 %v2975, %v2988
        %v2990 = vpop.f32.mrf.mxu0
        %v2991 = vadd.f32 %v2977, %v2990
        %2992 = vdwg.mxu0
        %2993 = vmatpush.bf16.msra.mxu0 %v2690
        %2994 = vmatpush.bf16.msra.mxu0 %v2689
        %2995 = vmatpush.bf16.msra.mxu0 %v2688
        %2996 = vmatpush.bf16.msra.mxu0 %v2687
        %2997 = vmatpush.bf16.msra.mxu0 %v2686
        %2998 = vmatpush.bf16.msra.mxu0 %v2685
        %2999 = vmatpush.bf16.msra.mxu0 %v2684
        %3000 = vmatpush.bf16.msra.mxu0 %v2683
        %3001 = vmatmul.bf16.gmra.mxu0 %v2088
        %v3002 = vpop.f32.mrf.mxu0
        %v3003 = vadd.f32 %v2989, %v3002
        %v3004 = vpop.f32.mrf.mxu0
        %v3005 = vadd.f32 %v2991, %v3004
        %3006 = vdwg.mxu0
        %3007 = vmatpush.bf16.msra.mxu0 %v2698
        %3008 = vmatpush.bf16.msra.mxu0 %v2697
        %3009 = vmatpush.bf16.msra.mxu0 %v2696
        %3010 = vmatpush.bf16.msra.mxu0 %v2695
        %3011 = vmatpush.bf16.msra.mxu0 %v2694
        %3012 = vmatpush.bf16.msra.mxu0 %v2693
        %3013 = vmatpush.bf16.msra.mxu0 %v2692
        %3014 = vmatpush.bf16.msra.mxu0 %v2691
        %3015 = vmatmul.bf16.gmra.mxu0 %v2089
        %v3016 = vpop.f32.mrf.mxu0
        %v3017 = vadd.f32 %v3003, %v3016
        %v3018 = vpop.f32.mrf.mxu0
        %v3019 = vadd.f32 %v3005, %v3018
        %3020 = vdwg.mxu0
        %3021 = vmatpush.bf16.msra.mxu0 %v2706
        %3022 = vmatpush.bf16.msra.mxu0 %v2705
        %3023 = vmatpush.bf16.msra.mxu0 %v2704
        %3024 = vmatpush.bf16.msra.mxu0 %v2703
        %3025 = vmatpush.bf16.msra.mxu0 %v2702
        %3026 = vmatpush.bf16.msra.mxu0 %v2701
        %3027 = vmatpush.bf16.msra.mxu0 %v2700
        %3028 = vmatpush.bf16.msra.mxu0 %v2699
        %3029 = vmatmul.bf16.gmra.mxu0 %v2090
        %v3030 = vpop.f32.mrf.mxu0
        %v3031 = vadd.f32 %v3017, %v3030
        %v3032 = vpop.f32.mrf.mxu0
        %v3033 = vadd.f32 %v3019, %v3032
        %3034 = vdwg.mxu0
        %3035 = vmatpush.bf16.msra.mxu0 %v2714
        %3036 = vmatpush.bf16.msra.mxu0 %v2713
        %3037 = vmatpush.bf16.msra.mxu0 %v2712
        %3038 = vmatpush.bf16.msra.mxu0 %v2711
        %3039 = vmatpush.bf16.msra.mxu0 %v2710
        %3040 = vmatpush.bf16.msra.mxu0 %v2709
        %3041 = vmatpush.bf16.msra.mxu0 %v2708
        %3042 = vmatpush.bf16.msra.mxu0 %v2707
        %3043 = vmatmul.bf16.gmra.mxu0 %v2091
        %v3044 = vpop.f32.mrf.mxu0
        %v3045 = vadd.f32 %v3031, %v3044
        %v3046 = vpop.f32.mrf.mxu0
        %v3047 = vadd.f32 %v3033, %v3046
        %3048 = vdwg.mxu0
        %3049 = vmatpush.bf16.msra.mxu0 %v2722
        %3050 = vmatpush.bf16.msra.mxu0 %v2721
        %3051 = vmatpush.bf16.msra.mxu0 %v2720
        %3052 = vmatpush.bf16.msra.mxu0 %v2719
        %3053 = vmatpush.bf16.msra.mxu0 %v2718
        %3054 = vmatpush.bf16.msra.mxu0 %v2717
        %3055 = vmatpush.bf16.msra.mxu0 %v2716
        %3056 = vmatpush.bf16.msra.mxu0 %v2715
        %3057 = vmatmul.bf16.gmra.mxu0 %v2092
        %v3058 = vpop.f32.mrf.mxu0
        %v3059 = vadd.f32 %v3045, %v3058
        %v3060 = vpop.f32.mrf.mxu0
        %v3061 = vadd.f32 %v3047, %v3060
        %3062 = vdwg.mxu0
        %3063 = vmatpush.bf16.msra.mxu0 %v2730
        %3064 = vmatpush.bf16.msra.mxu0 %v2729
        %3065 = vmatpush.bf16.msra.mxu0 %v2728
        %3066 = vmatpush.bf16.msra.mxu0 %v2727
        %3067 = vmatpush.bf16.msra.mxu0 %v2726
        %3068 = vmatpush.bf16.msra.mxu0 %v2725
        %3069 = vmatpush.bf16.msra.mxu0 %v2724
        %3070 = vmatpush.bf16.msra.mxu0 %v2723
        %3071 = vmatmul.bf16.gmra.mxu0 %v2093
        %v3072 = vpop.f32.mrf.mxu0
        %v3073 = vadd.f32 %v3059, %v3072
        %v3074 = vpop.f32.mrf.mxu0
        %v3075 = vadd.f32 %v3061, %v3074
        %3076 = vdwg.mxu0
        %3077 = vmatpush.bf16.msra.mxu0 %v2738
        %3078 = vmatpush.bf16.msra.mxu0 %v2737
        %3079 = vmatpush.bf16.msra.mxu0 %v2736
        %3080 = vmatpush.bf16.msra.mxu0 %v2735
        %3081 = vmatpush.bf16.msra.mxu0 %v2734
        %3082 = vmatpush.bf16.msra.mxu0 %v2733
        %3083 = vmatpush.bf16.msra.mxu0 %v2732
        %3084 = vmatpush.bf16.msra.mxu0 %v2731
        %3085 = vmatmul.bf16.gmra.mxu0 %v2094
        %v3086 = vpop.f32.mrf.mxu0
        %v3087 = vadd.f32 %v3073, %v3086
        %v3088 = vpop.f32.mrf.mxu0
        %v3089 = vadd.f32 %v3075, %v3088
        %3090 = vdwg.mxu0
        %v3091 = vadd.f32 %v1333, %v3087
        %v3092 = vadd.f32 %v1334, %v3089
        %v3093 = vld [vmem:[%s692] sm:$0x1]
        %v3094 = vld [vmem:[%s695] sm:$0x1]
        %v3095 = vsel %vm720, %v3091, 0.0
        %3096 = vadd.xlane.f32.xlu0 %v3095
        %v3097 = vpop.xlane.xlu0 %3096
        %v3098 = vsel %vm720, %v3092, 0.0
        %3099 = vadd.xlane.f32.xlu0 %v3098
        %v3100 = vpop.xlane.xlu0 %3099
        %v3101 = vmul.f32 %v3097, %v1286
        %v3102 = vmul.f32 %v3100, %v1286
        %v3103 = vsub.f32 %v3091, %v3101
        %v3104 = vsub.f32 %v3092, %v3102
        %v3105 = vmul.f32 %v3103, %v3103
        %v3106 = vmul.f32 %v3104, %v3104
        %v3107 = vsel %vm720, %v3105, 0.0
        %3108 = vadd.xlane.f32.xlu0 %v3107
        %v3109 = vpop.xlane.xlu0 %3108
        %v3110 = vsel %vm720, %v3106, 0.0
        %3111 = vadd.xlane.f32.xlu0 %v3110
        %v3112 = vpop.xlane.xlu0 %3111
        %v3113 = vmul.f32 %v3109, %v1286
        %v3114 = vmul.f32 %v3112, %v1286
        %v3115 = vadd.f32 %v3113, 1e-05
        %v3116 = vadd.f32 %v3114, 1e-05
        %v3117 = vrsqrt.pop %v3115
        %v3118 = vmul.f32 %v3117, %v3115
        %v3119 = vmul.f32 %v3118, %v3117
        %v3120 = vmul.f32 0.5, %v3119
        %v3121 = vsub.f32 1.5, %v3120
        %v3122 = vmul.f32 %v3117, %v3121
        %vm3123 = vweird.f32 %v3115
        %vm3124 = vweird.f32 %v3117
        %vm3125 = vmor %vm3123, %vm3124
        %v3126 = vsel %vm3125, %v3117, %v3122
        %v3127 = vrsqrt.pop %v3116
        %v3128 = vmul.f32 %v3127, %v3116
        %v3129 = vmul.f32 %v3128, %v3127
        %v3130 = vmul.f32 0.5, %v3129
        %v3131 = vsub.f32 1.5, %v3130
        %v3132 = vmul.f32 %v3127, %v3131
        %vm3133 = vweird.f32 %v3116
        %vm3134 = vweird.f32 %v3127
        %vm3135 = vmor %vm3133, %vm3134
        %v3136 = vsel %vm3135, %v3127, %v3132
        %v3137 = vmul.f32 %v3103, %v3126
        %v3138 = vmul.f32 %v3104, %v3136
        %v3140 = vperm.slane %v3093, 0
        %v3142 = vmul.f32 %v3137, %v3140
        %v3143 = vmul.f32 %v3138, %v3140
        %v3145 = vperm.slane %v3094, 0
        %v3147 = vadd.f32 %v3142, %v3145
        %v3148 = vadd.f32 %v3143, %v3145
        %3149 = vst.msk [vmem:[%s650] sm:$0xff] %vm720, %v3147
        %3150 = vst.msk [vmem:[%s650 + $0x8] sm:$0xff] %vm720, %v3148
        %s3151 = sand.u32 %s392, 1
        %s3152 = sand.u32 %s392, 1
        %s3153 = smul.addr %s3152, 16
        %s3154 = scalar_lea.vmem [#allocation3], %s3153
        // Predicated region
        $region115: #{hama_block_forward.6} parent=109 // pred_check
          %p3155 = pneg %p402
        $region116: #{hama_block_forward.6} parent=109 // pred_check_branch
          %3157 = sbr.rel (%p3155) target = $region118
        $region117: #{hama_block_forward.6} parent=109 // pred_region
          %s3158 = smul.addr %s25, 8
          %s3159 = scalar_lea.vmem %s14, %s3158
          // Predicated region
          $region119: #{hama_block_forward.6} parent=117 // pred_check
            _
          $region120: #{hama_block_forward.6} parent=117 // pred_check_branch
            %3161 = sbr.rel (0) target = $region122
          $region121: #{hama_block_forward.6} parent=117 // pred_region
            // Predicated region
            $region123: #{hama_block_forward.6} parent=121 // pred_check
              _
            $region124: #{hama_block_forward.6} parent=121 // pred_check_branch
              %3163 = sbr.rel (0) target = $region126
            $region125: #{hama_block_forward.6} parent=121 // pred_region
              // Predicated region
              $region138: #{hama_block_forward.6} parent=125 // pred_check
                _
              $region139: #{hama_block_forward.6} parent=125 // pred_check_branch
                %3181 = sbr.rel (0) target = $region141
              $region140: #{hama_block_forward.6} parent=125 // pred_region
                loop: start=0, step=1, limit=1
                $region142: #{hama_block_forward.6} parent=140 // loop_pre_header
                  _
                $region143: #{hama_block_forward.6} parent=140 // loop_header
                  %s3183 = sphi 0, %s3187
                  %p3184 = scmp.ge.s32.totalorder %s3183, 1
                  %s3188 = sphi %s3154, %s3154
                  %s3189 = sphi %s3159, %s3159
                $region144: #{hama_block_forward.6} parent=140 // loop_header_branch
                  %3186 = sbr.rel (%p3184) target = $region148
                $region145: #{hama_block_forward.6} parent=140 // loop_body
                  %v3190 = vld [vmem:[%s3188] sm:$0xff]
                  %3191 = vst [vmem:[%s3189] sm:$0xff] %v3190
                  %v3192 = vld [vmem:[%s3188 + $0x8] sm:$0xff]
                  %3193 = vst [vmem:[%s3189 + $0x10] sm:$0xff] %v3192
                $region146: #{hama_block_forward.6} parent=140 // loop_footer
                  %s3187 = sadd.s32 1, %s3183
                $region147: #{hama_block_forward.6} parent=140 // loop_footer_branch
                  %3182 = sbr.rel target = $region143
                $region148: #{hama_block_forward.6} parent=140 // loop_exit
                  _
              $region141: #{hama_block_forward.6} parent=125 // pred_fallthru
                _
              // Predicated region
              $region149: #{hama_block_forward.6} parent=125 // pred_check
                _
              $region150: #{hama_block_forward.6} parent=125 // pred_check_branch
                %3195 = sbr.rel target = $region152
              $region151: #{hama_block_forward.6} parent=125 // pred_region
                _
              $region152: #{hama_block_forward.6} parent=125 // pred_fallthru
                _
            $region126: #{hama_block_forward.6} parent=121 // pred_fallthru
              _
            // Predicated region
            $region127: #{hama_block_forward.6} parent=121 // pred_check
              _
            $region128: #{hama_block_forward.6} parent=121 // pred_check_branch
              %3165 = sbr.rel target = $region130
            $region129: #{hama_block_forward.6} parent=121 // pred_region
              %s3167 = ssub.s32 256, 1
              loop: start=0, step=1, limit=1
              $region131: #{hama_block_forward.6} parent=129 // loop_pre_header
                _
              $region132: #{hama_block_forward.6} parent=129 // loop_header
                %s3169 = sphi 0, %s3173
                %p3170 = scmp.ge.s32.totalorder %s3169, 1
                %s3174 = sphi %s3154, %s3154
                %s3175 = sphi %s3159, %s3159
              $region133: #{hama_block_forward.6} parent=129 // loop_header_branch
                %3172 = sbr.rel (%p3170) target = $region137
              $region134: #{hama_block_forward.6} parent=129 // loop_body
                %v3176 = vld [vmem:[%s3174] sm:%s3167]
                %3177 = vst [vmem:[%s3175] sm:%s3167] %v3176
                %v3178 = vld [vmem:[%s3174 + $0x8] sm:%s3167]
                %3179 = vst [vmem:[%s3175 + $0x10] sm:%s3167] %v3178
              $region135: #{hama_block_forward.6} parent=129 // loop_footer
                %s3173 = sadd.s32 1, %s3169
              $region136: #{hama_block_forward.6} parent=129 // loop_footer_branch
                %3168 = sbr.rel target = $region132
              $region137: #{hama_block_forward.6} parent=129 // loop_exit
                _
            $region130: #{hama_block_forward.6} parent=121 // pred_fallthru
              _
          $region122: #{hama_block_forward.6} parent=117 // pred_fallthru
            _
          %3196 = vnop
        $region118: #{hama_block_forward.6} parent=109 // pred_fallthru
          _
      $region110: #{hama_block_forward.6} parent=5 // pred_fallthru
        _
      %p3197 = scmp.le.s32.totalorder 2, %s20
      // Predicated region
      $region153: #{hama_block_forward.6} parent=5 // pred_check
        %p3198 = pneg %p3197
      $region154: #{hama_block_forward.6} parent=5 // pred_check_branch
        %3200 = sbr.rel (%p3198) target = $region156
      $region155: #{hama_block_forward.6} parent=5 // pred_region
        %s3201 = ssub.s32 %s20, 2
        // Predicated region
        $region157: #{hama_block_forward.6} parent=155 // pred_check
          %p3202 = pneg %p408
        $region158: #{hama_block_forward.6} parent=155 // pred_check_branch
          %3204 = sbr.rel (%p3202) target = $region160
        $region159: #{hama_block_forward.6} parent=155 // pred_region
          %s3205 = sand.u32 %s393, 1
          %s3206 = sand.u32 %s393, 1
          %s3207 = smul.addr %s3206, 16
          %s3208 = scalar_lea.vmem [#allocation3], %s3207
        $region160: #{hama_block_forward.6} parent=155 // pred_fallthru
          _
      $region156: #{hama_block_forward.6} parent=5 // pred_fallthru
        _
    $region6: #{hama_block_forward.6} parent=1 // loop_footer
      %s24 = sadd.s32 1, %s20
    $region7: #{hama_block_forward.6} parent=1 // loop_footer_branch
      %19 = sbr.rel target = $region3
    $region8: #{hama_block_forward.6} parent=1 // loop_exit
      _

</llo_original>
